<compile_context>
chip_gen: v7x
topology: tpu7x:2x2x1
jax: 0.10.0
libtpu: 0.0.40
codegen_flags: <defaults>
</compile_context>

<pallas_src>
import functools

import numpy as np
import jax
import jax.numpy as jnp
from jax.experimental import pallas as pl
from jax.experimental.pallas import tpu as pltpu


# ------------------------------ small helpers ------------------------------ #
def _round_up(n, m):
    return ((n + m - 1) // m) * m


def _choose_time_tiling(T, target=16):
    """Pick (tile_t, T_pad). Prefer an exact divisor of T in [target/2, target];
    otherwise pad T to a multiple of 8 and mask the tail steps in-kernel."""
    tile = min(target, T)
    for d in range(tile, 0, -1):
        if T % d == 0 and 2 * d >= tile:
            return d, T
    T_pad = _round_up(T, 8)
    best = 1
    for d in range(1, min(target, T_pad) + 1):
        if T_pad % d == 0:
            best = d
    return best, T_pad


def _choose_batch_tiling(B, cap=64, min_blocks=1, quantum=16):
    """Pick (bt, Bp). bt is a multiple of `quantum` (bf16 sublane packing) and
    capped to bound vreg pressure on the serial recurrence; Bp = nb * bt."""
    Bp0 = _round_up(max(B, 1), quantum)
    if Bp0 < min_blocks * quantum:
        min_blocks = 1
    bt = min(cap, Bp0)
    nb = max(min_blocks, -(-Bp0 // bt))
    bt = _round_up(-(-Bp0 // nb), quantum)
    return bt, bt * nb


def _min_batch_blocks():
    """>= 2 batch blocks on v7x so the 'parallel' grid axis can shard across
    its two TensorCores; 1 elsewhere (extra blocks only serialize on 1 TC)."""
    try:
        kind = jax.devices()[0].device_kind.lower()
    except Exception:
        return 1
    return 2 if "v7" in kind else 1


def _vmem_limit_bytes(tile_t, bt, Din, Hp, emit_seq):
    x_b = 2 * tile_t * bt * Din * 2                        # bf16, double-buffered
    out_b = 2 * (tile_t * bt * Hp * 2 if emit_seq else bt * Hp * 4)
    w_b = 2 * (Din * 4 * Hp * 2 + Hp * 4 * Hp * 2 + 4 * Hp * 4)
    scratch_b = 2 * bt * Hp * 4 + tile_t * bt * 4 * Hp * 4
    need = x_b + out_b + w_b + scratch_b + (8 << 20)       # + headroom
    return int(min(max(need, 32 << 20), 96 << 20))


# ----------------------------- Pallas kernel ------------------------------- #
def _make_lstm_kernel(tile_t, bt, Hp, T_real, T_pad, emit_seq):
    """One LSTM-layer kernel.

    Refs:
      x_ref   : (tile_t, bt, Din) bf16   input time tile
      wih_ref : (Din, 4*Hp)       bf16   input->gates weight (resident)
      whh_ref : (Hp, 4*Hp)        bf16   hidden->gates weight (resident)
      b_ref   : (1, 4*Hp)         f32    combined bias b_ih + b_hh
      out_ref : (tile_t, bt, Hp) bf16 hseq tile   if emit_seq
                (bt, Hp)         f32  final hidden otherwise
      h_ref, c_ref : (bt, Hp) f32        carried state (VMEM scratch)
      gx_ref  : (tile_t*bt, 4*Hp) f32    hoisted input-projection gates
    """
    mask_time = (T_pad != T_real)

    def kernel(x_ref, wih_ref, whh_ref, b_ref, out_ref, h_ref, c_ref, gx_ref):
        ti = pl.program_id(1)

        # grid = (batch_blocks, time_blocks): time is the inner "arbitrary"
        # axis, so (h, c) scratch carries across time and is re-zeroed at the
        # start of every batch block.
        @pl.when(ti == 0)
        def _init():
            h_ref[...] = jnp.zeros_like(h_ref)
            c_ref[...] = jnp.zeros_like(c_ref)

        Din = x_ref.shape[-1]

        # Hoisted input projection + bias for the whole time tile: one big
        # bf16 MXU matmul (f32 accumulate), off the serial recurrence.
        gx_ref[...] = (
            jnp.dot(x_ref[...].reshape(tile_t * bt, Din), wih_ref[...],
                    preferred_element_type=jnp.float32)
            + b_ref[...])

        h = h_ref[...]
        c = c_ref[...]

        def sig(z):
            # sigmoid(z) = 0.5*tanh(0.5*z) + 0.5  -> single EUP op, no divide.
            return 0.5 * jnp.tanh(0.5 * z) + 0.5

        # Fully-unrolled time loop; only h @ W_hh stays on the serial chain.
        for t in range(tile_t):
            h_bf = h.astype(jnp.bfloat16)

            def gate(k, _h=h_bf, _t=t):
                # Per-gate (bt,Hp)x(Hp,Hp) bf16 matmul fused with its
                # activation; avoids a live (bt, 4Hp) gates tensor (vreg spill).
                return (gx_ref[_t * bt:(_t + 1) * bt, k * Hp:(k + 1) * Hp]
                        + jnp.dot(_h, whh_ref[:, k * Hp:(k + 1) * Hp],
                                  preferred_element_type=jnp.float32))

            # PyTorch gate order: i, f, g, o — computed/consumed in an order
            # that minimizes simultaneous liveness.
            g = jnp.tanh(gate(2))
            i = sig(gate(0))
            ig = i * g
            f = sig(gate(1))
            c_new = f * c + ig
            o = sig(gate(3))
            h_new = o * jnp.tanh(c_new)

            if mask_time:
                valid = ti * tile_t + t < T_real      # freeze state on pad steps
                c = jnp.where(valid, c_new, c)
                h = jnp.where(valid, h_new, h)
            else:
                c, h = c_new, h_new

            if emit_seq:
                out_ref[t] = h.astype(out_ref.dtype)  # lane-dense (bt, Hp) store

        h_ref[...] = h
        c_ref[...] = c

        if not emit_seq:
            # Only the final time block needs to emit the last hidden state.
            @pl.when(ti == pl.num_programs(1) - 1)
            def _fin():
                out_ref[...] = h.astype(out_ref.dtype)

    return kernel


def _lstm_layer(x_tm, wih, whh, b, *, Hp, T_real, tile_t, bt, emit_seq):
    """One LSTM layer. x_tm: (T_pad, Bp, Din) bf16, weights pre-padded/cast.

    Returns hseq (T_pad, Bp, Hp) bf16 if emit_seq else h_final (Bp, Hp) f32.
    """
    T_pad, Bp, Din = x_tm.shape
    nb, nt = Bp // bt, T_pad // tile_t

    kernel = _make_lstm_kernel(tile_t, bt, Hp, T_real, T_pad, emit_seq)

    if emit_seq:
        out_shape = jax.ShapeDtypeStruct((T_pad, Bp, Hp), jnp.bfloat16)
        out_spec = pl.BlockSpec((tile_t, bt, Hp), lambda bi, ti: (ti, bi, 0))
    else:
        out_shape = jax.ShapeDtypeStruct((Bp, Hp), jnp.float32)
        out_spec = pl.BlockSpec((bt, Hp), lambda bi, ti: (bi, 0))

    return pl.pallas_call(
        kernel,
        out_shape=out_shape,
        grid_spec=pltpu.PrefetchScalarGridSpec(
            num_scalar_prefetch=0,
            grid=(nb, nt),
            in_specs=[
                pl.BlockSpec((tile_t, bt, Din), lambda bi, ti: (ti, bi, 0)),
                pl.BlockSpec((Din, 4 * Hp), lambda bi, ti: (0, 0)),
                pl.BlockSpec((Hp, 4 * Hp), lambda bi, ti: (0, 0)),
                pl.BlockSpec((1, 4 * Hp), lambda bi, ti: (0, 0)),
            ],
            out_specs=out_spec,
            scratch_shapes=[
                pltpu.VMEM((bt, Hp), jnp.float32),               # h carry
                pltpu.VMEM((bt, Hp), jnp.float32),               # c carry
                pltpu.VMEM((tile_t * bt, 4 * Hp), jnp.float32),  # hoisted gates
            ],
        ),
        compiler_params=pltpu.CompilerParams(
            dimension_semantics=("parallel", "arbitrary"),
            vmem_limit_bytes=_vmem_limit_bytes(tile_t, bt, Din, Hp, emit_seq)),
    )(x_tm, wih, whh, b)


# ------------------------ weight padding / transpose ------------------------ #
def _prep_weights(w_ih, w_hh, b_ih, b_hh, Hp, in_pad):
    """Pad each gate block H->Hp with zeros, pre-transpose for x @ W, and cast
    the matmul operands to bf16 (bias stays f32; padded lanes stay exactly 0)."""
    H4, in_dim = w_ih.shape
    H = H4 // 4
    wih = w_ih.reshape(4, H, in_dim)
    wih = jnp.pad(wih, ((0, 0), (0, Hp - H), (0, in_pad - in_dim)))
    wih = wih.reshape(4 * Hp, in_pad).T.astype(jnp.bfloat16)    # (in_pad, 4Hp)
    whh = w_hh.reshape(4, H, H)
    whh = jnp.pad(whh, ((0, 0), (0, Hp - H), (0, Hp - H)))
    whh = whh.reshape(4 * Hp, Hp).T.astype(jnp.bfloat16)        # (Hp, 4Hp)
    b = (b_ih + b_hh).reshape(4, H)
    b = jnp.pad(b, ((0, 0), (0, Hp - H))).reshape(1, 4 * Hp)    # f32
    return wih, whh, b


def prepare_lstm_params(params):
    """One-time parameter setup (outside the per-call jit)."""
    H = params[0][1].shape[1]                  # w_hh: (4H, H)
    Hp = _round_up(H, 128)                     # lane-aligned hidden width
    layers = []
    for li, (w_ih, w_hh, b_ih, b_hh) in enumerate(params):
        in_dim = w_ih.shape[1]
        in_pad = in_dim if li == 0 else Hp     # layer>0 consumes padded hseq
        layers.append(_prep_weights(w_ih, w_hh, b_ih, b_hh, Hp, in_pad))
    return tuple(layers), H


# ---------------------------------- forward -------------------------------- #
@functools.partial(jax.jit, static_argnums=(2,))
def lstm_forward(x, layers, hidden_dim):
    """x: (B, T, D) batch_first f32. Returns h_n[-1]: (B, hidden_dim) f32."""
    B, T, D = x.shape
    Hp = layers[0][1].shape[0]                 # whh: (Hp, 4Hp)

    tile_t, T_pad = _choose_time_tiling(T, target=16)
    bt, Bp = _choose_batch_tiling(B, cap=64,
                                  min_blocks=_min_batch_blocks(), quantum=16)

    x_tm = jnp.transpose(x, (1, 0, 2)).astype(jnp.bfloat16)     # (T, B, D)
    x_tm = jnp.pad(x_tm, ((0, T_pad - T), (0, Bp - B), (0, 0)))

    inp = x_tm
    num_layers = len(layers)
    h_last = None
    for li, (wih, whh, b) in enumerate(layers):
        last = li == num_layers - 1
        out = _lstm_layer(inp, wih, whh, b, Hp=Hp, T_real=T,
                          tile_t=tile_t, bt=bt, emit_seq=not last)
        if last:
            h_last = out                       # (Bp, Hp) f32
        else:
            inp = out                          # (T_pad, Bp, Hp) bf16
    return h_last[:B, :hidden_dim]


# ----------------------- deterministic parameter init ----------------------- #
def init_lstm_params(key, input_dim, hidden_dim, num_layers):
    """Mimic PyTorch nn.LSTM init: U(-1/sqrt(H), 1/sqrt(H)) for all params."""
    params = []
    k = 1.0 / np.sqrt(hidden_dim)
    for layer in range(num_layers):
        in_dim = input_dim if layer == 0 else hidden_dim
        key, k1, k2, k3, k4 = jax.random.split(key, 5)
        w_ih = jax.random.uniform(k1, (4 * hidden_dim, in_dim), jnp.float32, -k, k)
        w_hh = jax.random.uniform(k2, (4 * hidden_dim, hidden_dim), jnp.float32, -k, k)
        b_ih = jax.random.uniform(k3, (4 * hidden_dim,), jnp.float32, -k, k)
        b_hh = jax.random.uniform(k4, (4 * hidden_dim,), jnp.float32, -k, k)
        params.append((w_ih, w_hh, b_ih, b_hh))
    return params


# ------------------------------ pure-JAX ref -------------------------------- #
def lstm_ref(x, params):
    B, T, _ = x.shape
    inp = x
    h = None
    for (w_ih, w_hh, b_ih, b_hh) in params:
        H = w_hh.shape[1]
        h = jnp.zeros((B, H), jnp.float32)
        c = jnp.zeros((B, H), jnp.float32)
        outs = []
        for t in range(T):
            gates = inp[:, t, :] @ w_ih.T + h @ w_hh.T + b_ih + b_hh
            i = jax.nn.sigmoid(gates[:, :H])
            f = jax.nn.sigmoid(gates[:, H:2 * H])
            g = jnp.tanh(gates[:, 2 * H:3 * H])
            o = jax.nn.sigmoid(gates[:, 3 * H:])
            c = f * c + i * g
            h = o * jnp.tanh(c)
            outs.append(h)
        inp = jnp.stack(outs, axis=1)
    return h


# ----------------------------------- main ----------------------------------- #
if __name__ == "__main__":
    B, T, D, H, L = 8, 8, 16, 32, 2   # batch, seq, input_dim, hidden_dim, layers

    key = jax.random.PRNGKey(0)
    key, xk = jax.random.split(key)
    x = jax.random.normal(xk, (B, T, D), jnp.float32)
    params = init_lstm_params(key, D, H, L)

    layers, hidden = prepare_lstm_params(params)      # one-time weight prep

    out = jax.block_until_ready(lstm_forward(x, layers, hidden))
    assert out.shape == (B, H), out.shape
    ref = jax.block_until_ready(lstm_ref(x, params))
    # bf16 matmul operands (f32 accumulate/state) -> looser parity tolerance.
    np.testing.assert_allclose(np.asarray(out), np.asarray(ref),
                               rtol=3e-2, atol=3e-2)

    # Ragged shapes: exercises batch padding and the masked time-tail path.
    B2, T2 = 5, 19
    key, xk2 = jax.random.split(key)
    x2 = jax.random.normal(xk2, (B2, T2, D), jnp.float32)
    out2 = jax.block_until_ready(lstm_forward(x2, layers, hidden))
    ref2 = jax.block_until_ready(lstm_ref(x2, params))
    np.testing.assert_allclose(np.asarray(out2), np.asarray(ref2),
                               rtol=3e-2, atol=3e-2)

    print("KERNEL_OK")
</pallas_src>

<mosaic_0001>
module attributes {stable_mosaic.version = 11 : i64} {
  func.func @kernel(%arg0: i32, %arg1: i32, %arg2: memref<8x16x128xbf16, #tpu.memory_space<vmem>>, %arg3: memref<128x512xbf16, #tpu.memory_space<vmem>>, %arg4: memref<128x512xbf16, #tpu.memory_space<vmem>>, %arg5: memref<1x512xf32, #tpu.memory_space<vmem>>, %arg6: memref<16x128xf32, #tpu.memory_space<vmem>>, %arg7: memref<16x128xf32, #tpu.memory_space<vmem>>, %arg8: memref<16x128xf32, #tpu.memory_space<vmem>>, %arg9: memref<128x512xf32, #tpu.memory_space<vmem>>) attributes {dimension_semantics = [#tpu.dimension_semantics<parallel>, #tpu.dimension_semantics<arbitrary>], iteration_bounds = array<i64: 1, 1>, scalar_prefetch = 0 : i64, scratch_operands = 3 : i64, tpu.core_type = #tpu.core_type<tc>, window_params = [{transform_indices = @transform_0, window_bounds = array<i64: 8, 16, 128>}, {pipeline_mode = #tpu.pipeline_mode<synchronous>, transform_indices = @transform_1, window_bounds = array<i64: 128, 512>}, {pipeline_mode = #tpu.pipeline_mode<synchronous>, transform_indices = @transform_2, window_bounds = array<i64: 128, 512>}, {pipeline_mode = #tpu.pipeline_mode<synchronous>, transform_indices = @transform_3, window_bounds = array<i64: 1, 512>}, {transform_indices = @transform_4, window_bounds = array<i64: 16, 128>}]} {
    %c0_i32 = arith.constant 0 : i32
    %0 = arith.cmpi eq, %arg1, %c0_i32 : i32
    %1 = arith.extui %0 : i1 to i32
    %c0_i32_0 = arith.constant 0 : i32
    %2 = arith.cmpi ne, %1, %c0_i32_0 : i32
    scf.if %2 {
      %cst_241 = arith.constant 0.000000e+00 : f32
      %370 = vector.broadcast %cst_241 : f32 to vector<16x128xf32>
      %c0_242 = arith.constant 0 : index
      %c0_243 = arith.constant 0 : index
      %371 = vector.load %arg7[%c0_242, %c0_243] : memref<16x128xf32, #tpu.memory_space<vmem>>, vector<16x128xf32>
      tpu.vector_store %arg7[%c0_242, %c0_243], %370 {strides = array<i32>} : memref<16x128xf32, #tpu.memory_space<vmem>>, vector<16x128xf32>,
      %cst_244 = arith.constant 0.000000e+00 : f32
      %372 = vector.broadcast %cst_244 : f32 to vector<16x128xf32>
      %c0_245 = arith.constant 0 : index
      %c0_246 = arith.constant 0 : index
      %373 = vector.load %arg8[%c0_245, %c0_246] : memref<16x128xf32, #tpu.memory_space<vmem>>, vector<16x128xf32>
      tpu.vector_store %arg8[%c0_245, %c0_246], %372 {strides = array<i32>} : memref<16x128xf32, #tpu.memory_space<vmem>>, vector<16x128xf32>,
    } else {
    }
    %c0 = arith.constant 0 : index
    %c0_1 = arith.constant 0 : index
    %c0_2 = arith.constant 0 : index
    %3 = vector.load %arg2[%c0, %c0_1, %c0_2] : memref<8x16x128xbf16, #tpu.memory_space<vmem>>, vector<8x16x128xbf16>
    %4 = vector.shape_cast %3 : vector<8x16x128xbf16> to vector<128x128xbf16>
    %c0_3 = arith.constant 0 : index
    %c0_4 = arith.constant 0 : index
    %5 = vector.load %arg3[%c0_3, %c0_4] : memref<128x512xbf16, #tpu.memory_space<vmem>>, vector<128x512xbf16>
    %cst = arith.constant dense<0.000000e+00> : vector<128x512xf32>
    %6 = tpu.matmul %4, %5, %cst {dimension_numbers = #tpu.dot_dimension_numbers<[1], [0], [0], [1], [0, 0, 1, 1], [], []>} : vector<128x128xbf16>, vector<128x512xbf16>, vector<128x512xf32> -> vector<128x512xf32>
    %c0_5 = arith.constant 0 : index
    %c0_6 = arith.constant 0 : index
    %7 = vector.load %arg5[%c0_5, %c0_6] : memref<1x512xf32, #tpu.memory_space<vmem>>, vector<1x512xf32>
    %8 = vector.broadcast %7 : vector<1x512xf32> to vector<128x512xf32>
    %9 = arith.addf %6, %8 : vector<128x512xf32>
    %c0_7 = arith.constant 0 : index
    %c0_8 = arith.constant 0 : index
    %10 = vector.load %arg9[%c0_7, %c0_8] : memref<128x512xf32, #tpu.memory_space<vmem>>, vector<128x512xf32>
    tpu.vector_store %arg9[%c0_7, %c0_8], %9 {strides = array<i32>} : memref<128x512xf32, #tpu.memory_space<vmem>>, vector<128x512xf32>,
    %c0_9 = arith.constant 0 : index
    %c0_10 = arith.constant 0 : index
    %11 = vector.load %arg7[%c0_9, %c0_10] : memref<16x128xf32, #tpu.memory_space<vmem>>, vector<16x128xf32>
    %c0_11 = arith.constant 0 : index
    %c0_12 = arith.constant 0 : index
    %12 = vector.load %arg8[%c0_11, %c0_12] : memref<16x128xf32, #tpu.memory_space<vmem>>, vector<16x128xf32>
    %13 = arith.truncf %11 : vector<16x128xf32> to vector<16x128xbf16>
    %c0_13 = arith.constant 0 : index
    %c256 = arith.constant 256 : index
    %14 = vector.load %arg9[%c0_13, %c256] : memref<128x512xf32, #tpu.memory_space<vmem>>, vector<16x128xf32>
    %c0_14 = arith.constant 0 : index
    %c256_15 = arith.constant 256 : index
    %15 = vector.load %arg4[%c0_14, %c256_15] : memref<128x512xbf16, #tpu.memory_space<vmem>>, vector<128x128xbf16>
    %cst_16 = arith.constant dense<0.000000e+00> : vector<16x128xf32>
    %16 = tpu.matmul %13, %15, %cst_16 {dimension_numbers = #tpu.dot_dimension_numbers<[1], [0], [0], [1], [0, 0, 1, 1], [], []>} : vector<16x128xbf16>, vector<128x128xbf16>, vector<16x128xf32> -> vector<16x128xf32>
    %17 = arith.addf %14, %16 : vector<16x128xf32>
    %18 = math.tanh %17 : vector<16x128xf32>
    %c0_17 = arith.constant 0 : index
    %c0_18 = arith.constant 0 : index
    %19 = vector.load %arg9[%c0_17, %c0_18] : memref<128x512xf32, #tpu.memory_space<vmem>>, vector<16x128xf32>
    %c0_19 = arith.constant 0 : index
    %c0_20 = arith.constant 0 : index
    %20 = vector.load %arg4[%c0_19, %c0_20] : memref<128x512xbf16, #tpu.memory_space<vmem>>, vector<128x128xbf16>
    %cst_21 = arith.constant dense<0.000000e+00> : vector<16x128xf32>
    %21 = tpu.matmul %13, %20, %cst_21 {dimension_numbers = #tpu.dot_dimension_numbers<[1], [0], [0], [1], [0, 0, 1, 1], [], []>} : vector<16x128xbf16>, vector<128x128xbf16>, vector<16x128xf32> -> vector<16x128xf32>
    %22 = arith.addf %19, %21 : vector<16x128xf32>
    %cst_22 = arith.constant 5.000000e-01 : f32
    %23 = vector.broadcast %cst_22 : f32 to vector<16x128xf32>
    %24 = arith.mulf %23, %22 : vector<16x128xf32>
    %25 = math.tanh %24 : vector<16x128xf32>
    %cst_23 = arith.constant 5.000000e-01 : f32
    %26 = vector.broadcast %cst_23 : f32 to vector<16x128xf32>
    %27 = arith.mulf %26, %25 : vector<16x128xf32>
    %cst_24 = arith.constant 5.000000e-01 : f32
    %28 = vector.broadcast %cst_24 : f32 to vector<16x128xf32>
    %29 = arith.addf %27, %28 : vector<16x128xf32>
    %30 = arith.mulf %29, %18 : vector<16x128xf32>
    %c0_25 = arith.constant 0 : index
    %c128 = arith.constant 128 : index
    %31 = vector.load %arg9[%c0_25, %c128] : memref<128x512xf32, #tpu.memory_space<vmem>>, vector<16x128xf32>
    %c0_26 = arith.constant 0 : index
    %c128_27 = arith.constant 128 : index
    %32 = vector.load %arg4[%c0_26, %c128_27] : memref<128x512xbf16, #tpu.memory_space<vmem>>, vector<128x128xbf16>
    %cst_28 = arith.constant dense<0.000000e+00> : vector<16x128xf32>
    %33 = tpu.matmul %13, %32, %cst_28 {dimension_numbers = #tpu.dot_dimension_numbers<[1], [0], [0], [1], [0, 0, 1, 1], [], []>} : vector<16x128xbf16>, vector<128x128xbf16>, vector<16x128xf32> -> vector<16x128xf32>
    %34 = arith.addf %31, %33 : vector<16x128xf32>
    %cst_29 = arith.constant 5.000000e-01 : f32
    %35 = vector.broadcast %cst_29 : f32 to vector<16x128xf32>
    %36 = arith.mulf %35, %34 : vector<16x128xf32>
    %37 = math.tanh %36 : vector<16x128xf32>
    %cst_30 = arith.constant 5.000000e-01 : f32
    %38 = vector.broadcast %cst_30 : f32 to vector<16x128xf32>
    %39 = arith.mulf %38, %37 : vector<16x128xf32>
    %cst_31 = arith.constant 5.000000e-01 : f32
    %40 = vector.broadcast %cst_31 : f32 to vector<16x128xf32>
    %41 = arith.addf %39, %40 : vector<16x128xf32>
    %42 = arith.mulf %41, %12 : vector<16x128xf32>
    %43 = arith.addf %42, %30 : vector<16x128xf32>
    %c0_32 = arith.constant 0 : index
    %c384 = arith.constant 384 : index
    %44 = vector.load %arg9[%c0_32, %c384] : memref<128x512xf32, #tpu.memory_space<vmem>>, vector<16x128xf32>
    %c0_33 = arith.constant 0 : index
    %c384_34 = arith.constant 384 : index
    %45 = vector.load %arg4[%c0_33, %c384_34] : memref<128x512xbf16, #tpu.memory_space<vmem>>, vector<128x128xbf16>
    %cst_35 = arith.constant dense<0.000000e+00> : vector<16x128xf32>
    %46 = tpu.matmul %13, %45, %cst_35 {dimension_numbers = #tpu.dot_dimension_numbers<[1], [0], [0], [1], [0, 0, 1, 1], [], []>} : vector<16x128xbf16>, vector<128x128xbf16>, vector<16x128xf32> -> vector<16x128xf32>
    %47 = arith.addf %44, %46 : vector<16x128xf32>
    %cst_36 = arith.constant 5.000000e-01 : f32
    %48 = vector.broadcast %cst_36 : f32 to vector<16x128xf32>
    %49 = arith.mulf %48, %47 : vector<16x128xf32>
    %50 = math.tanh %49 : vector<16x128xf32>
    %cst_37 = arith.constant 5.000000e-01 : f32
    %51 = vector.broadcast %cst_37 : f32 to vector<16x128xf32>
    %52 = arith.mulf %51, %50 : vector<16x128xf32>
    %cst_38 = arith.constant 5.000000e-01 : f32
    %53 = vector.broadcast %cst_38 : f32 to vector<16x128xf32>
    %54 = arith.addf %52, %53 : vector<16x128xf32>
    %55 = math.tanh %43 : vector<16x128xf32>
    %56 = arith.mulf %54, %55 : vector<16x128xf32>
    %57 = arith.truncf %56 : vector<16x128xf32> to vector<16x128xbf16>
    %c16 = arith.constant 16 : index
    %c256_39 = arith.constant 256 : index
    %58 = vector.load %arg9[%c16, %c256_39] : memref<128x512xf32, #tpu.memory_space<vmem>>, vector<16x128xf32>
    %c0_40 = arith.constant 0 : index
    %c256_41 = arith.constant 256 : index
    %59 = vector.load %arg4[%c0_40, %c256_41] : memref<128x512xbf16, #tpu.memory_space<vmem>>, vector<128x128xbf16>
    %cst_42 = arith.constant dense<0.000000e+00> : vector<16x128xf32>
    %60 = tpu.matmul %57, %59, %cst_42 {dimension_numbers = #tpu.dot_dimension_numbers<[1], [0], [0], [1], [0, 0, 1, 1], [], []>} : vector<16x128xbf16>, vector<128x128xbf16>, vector<16x128xf32> -> vector<16x128xf32>
    %61 = arith.addf %58, %60 : vector<16x128xf32>
    %62 = math.tanh %61 : vector<16x128xf32>
    %c16_43 = arith.constant 16 : index
    %c0_44 = arith.constant 0 : index
    %63 = vector.load %arg9[%c16_43, %c0_44] : memref<128x512xf32, #tpu.memory_space<vmem>>, vector<16x128xf32>
    %c0_45 = arith.constant 0 : index
    %c0_46 = arith.constant 0 : index
    %64 = vector.load %arg4[%c0_45, %c0_46] : memref<128x512xbf16, #tpu.memory_space<vmem>>, vector<128x128xbf16>
    %cst_47 = arith.constant dense<0.000000e+00> : vector<16x128xf32>
    %65 = tpu.matmul %57, %64, %cst_47 {dimension_numbers = #tpu.dot_dimension_numbers<[1], [0], [0], [1], [0, 0, 1, 1], [], []>} : vector<16x128xbf16>, vector<128x128xbf16>, vector<16x128xf32> -> vector<16x128xf32>
    %66 = arith.addf %63, %65 : vector<16x128xf32>
    %cst_48 = arith.constant 5.000000e-01 : f32
    %67 = vector.broadcast %cst_48 : f32 to vector<16x128xf32>
    %68 = arith.mulf %67, %66 : vector<16x128xf32>
    %69 = math.tanh %68 : vector<16x128xf32>
    %cst_49 = arith.constant 5.000000e-01 : f32
    %70 = vector.broadcast %cst_49 : f32 to vector<16x128xf32>
    %71 = arith.mulf %70, %69 : vector<16x128xf32>
    %cst_50 = arith.constant 5.000000e-01 : f32
    %72 = vector.broadcast %cst_50 : f32 to vector<16x128xf32>
    %73 = arith.addf %71, %72 : vector<16x128xf32>
    %74 = arith.mulf %73, %62 : vector<16x128xf32>
    %c16_51 = arith.constant 16 : index
    %c128_52 = arith.constant 128 : index
    %75 = vector.load %arg9[%c16_51, %c128_52] : memref<128x512xf32, #tpu.memory_space<vmem>>, vector<16x128xf32>
    %c0_53 = arith.constant 0 : index
    %c128_54 = arith.constant 128 : index
    %76 = vector.load %arg4[%c0_53, %c128_54] : memref<128x512xbf16, #tpu.memory_space<vmem>>, vector<128x128xbf16>
    %cst_55 = arith.constant dense<0.000000e+00> : vector<16x128xf32>
    %77 = tpu.matmul %57, %76, %cst_55 {dimension_numbers = #tpu.dot_dimension_numbers<[1], [0], [0], [1], [0, 0, 1, 1], [], []>} : vector<16x128xbf16>, vector<128x128xbf16>, vector<16x128xf32> -> vector<16x128xf32>
    %78 = arith.addf %75, %77 : vector<16x128xf32>
    %cst_56 = arith.constant 5.000000e-01 : f32
    %79 = vector.broadcast %cst_56 : f32 to vector<16x128xf32>
    %80 = arith.mulf %79, %78 : vector<16x128xf32>
    %81 = math.tanh %80 : vector<16x128xf32>
    %cst_57 = arith.constant 5.000000e-01 : f32
    %82 = vector.broadcast %cst_57 : f32 to vector<16x128xf32>
    %83 = arith.mulf %82, %81 : vector<16x128xf32>
    %cst_58 = arith.constant 5.000000e-01 : f32
    %84 = vector.broadcast %cst_58 : f32 to vector<16x128xf32>
    %85 = arith.addf %83, %84 : vector<16x128xf32>
    %86 = arith.mulf %85, %43 : vector<16x128xf32>
    %87 = arith.addf %86, %74 : vector<16x128xf32>
    %c16_59 = arith.constant 16 : index
    %c384_60 = arith.constant 384 : index
    %88 = vector.load %arg9[%c16_59, %c384_60] : memref<128x512xf32, #tpu.memory_space<vmem>>, vector<16x128xf32>
    %c0_61 = arith.constant 0 : index
    %c384_62 = arith.constant 384 : index
    %89 = vector.load %arg4[%c0_61, %c384_62] : memref<128x512xbf16, #tpu.memory_space<vmem>>, vector<128x128xbf16>
    %cst_63 = arith.constant dense<0.000000e+00> : vector<16x128xf32>
    %90 = tpu.matmul %57, %89, %cst_63 {dimension_numbers = #tpu.dot_dimension_numbers<[1], [0], [0], [1], [0, 0, 1, 1], [], []>} : vector<16x128xbf16>, vector<128x128xbf16>, vector<16x128xf32> -> vector<16x128xf32>
    %91 = arith.addf %88, %90 : vector<16x128xf32>
    %cst_64 = arith.constant 5.000000e-01 : f32
    %92 = vector.broadcast %cst_64 : f32 to vector<16x128xf32>
    %93 = arith.mulf %92, %91 : vector<16x128xf32>
    %94 = math.tanh %93 : vector<16x128xf32>
    %cst_65 = arith.constant 5.000000e-01 : f32
    %95 = vector.broadcast %cst_65 : f32 to vector<16x128xf32>
    %96 = arith.mulf %95, %94 : vector<16x128xf32>
    %cst_66 = arith.constant 5.000000e-01 : f32
    %97 = vector.broadcast %cst_66 : f32 to vector<16x128xf32>
    %98 = arith.addf %96, %97 : vector<16x128xf32>
    %99 = math.tanh %87 : vector<16x128xf32>
    %100 = arith.mulf %98, %99 : vector<16x128xf32>
    %101 = arith.truncf %100 : vector<16x128xf32> to vector<16x128xbf16>
    %c32 = arith.constant 32 : index
    %c256_67 = arith.constant 256 : index
    %102 = vector.load %arg9[%c32, %c256_67] : memref<128x512xf32, #tpu.memory_space<vmem>>, vector<16x128xf32>
    %c0_68 = arith.constant 0 : index
    %c256_69 = arith.constant 256 : index
    %103 = vector.load %arg4[%c0_68, %c256_69] : memref<128x512xbf16, #tpu.memory_space<vmem>>, vector<128x128xbf16>
    %cst_70 = arith.constant dense<0.000000e+00> : vector<16x128xf32>
    %104 = tpu.matmul %101, %103, %cst_70 {dimension_numbers = #tpu.dot_dimension_numbers<[1], [0], [0], [1], [0, 0, 1, 1], [], []>} : vector<16x128xbf16>, vector<128x128xbf16>, vector<16x128xf32> -> vector<16x128xf32>
    %105 = arith.addf %102, %104 : vector<16x128xf32>
    %106 = math.tanh %105 : vector<16x128xf32>
    %c32_71 = arith.constant 32 : index
    %c0_72 = arith.constant 0 : index
    %107 = vector.load %arg9[%c32_71, %c0_72] : memref<128x512xf32, #tpu.memory_space<vmem>>, vector<16x128xf32>
    %c0_73 = arith.constant 0 : index
    %c0_74 = arith.constant 0 : index
    %108 = vector.load %arg4[%c0_73, %c0_74] : memref<128x512xbf16, #tpu.memory_space<vmem>>, vector<128x128xbf16>
    %cst_75 = arith.constant dense<0.000000e+00> : vector<16x128xf32>
    %109 = tpu.matmul %101, %108, %cst_75 {dimension_numbers = #tpu.dot_dimension_numbers<[1], [0], [0], [1], [0, 0, 1, 1], [], []>} : vector<16x128xbf16>, vector<128x128xbf16>, vector<16x128xf32> -> vector<16x128xf32>
    %110 = arith.addf %107, %109 : vector<16x128xf32>
    %cst_76 = arith.constant 5.000000e-01 : f32
    %111 = vector.broadcast %cst_76 : f32 to vector<16x128xf32>
    %112 = arith.mulf %111, %110 : vector<16x128xf32>
    %113 = math.tanh %112 : vector<16x128xf32>
    %cst_77 = arith.constant 5.000000e-01 : f32
    %114 = vector.broadcast %cst_77 : f32 to vector<16x128xf32>
    %115 = arith.mulf %114, %113 : vector<16x128xf32>
    %cst_78 = arith.constant 5.000000e-01 : f32
    %116 = vector.broadcast %cst_78 : f32 to vector<16x128xf32>
    %117 = arith.addf %115, %116 : vector<16x128xf32>
    %118 = arith.mulf %117, %106 : vector<16x128xf32>
    %c32_79 = arith.constant 32 : index
    %c128_80 = arith.constant 128 : index
    %119 = vector.load %arg9[%c32_79, %c128_80] : memref<128x512xf32, #tpu.memory_space<vmem>>, vector<16x128xf32>
    %c0_81 = arith.constant 0 : index
    %c128_82 = arith.constant 128 : index
    %120 = vector.load %arg4[%c0_81, %c128_82] : memref<128x512xbf16, #tpu.memory_space<vmem>>, vector<128x128xbf16>
    %cst_83 = arith.constant dense<0.000000e+00> : vector<16x128xf32>
    %121 = tpu.matmul %101, %120, %cst_83 {dimension_numbers = #tpu.dot_dimension_numbers<[1], [0], [0], [1], [0, 0, 1, 1], [], []>} : vector<16x128xbf16>, vector<128x128xbf16>, vector<16x128xf32> -> vector<16x128xf32>
    %122 = arith.addf %119, %121 : vector<16x128xf32>
    %cst_84 = arith.constant 5.000000e-01 : f32
    %123 = vector.broadcast %cst_84 : f32 to vector<16x128xf32>
    %124 = arith.mulf %123, %122 : vector<16x128xf32>
    %125 = math.tanh %124 : vector<16x128xf32>
    %cst_85 = arith.constant 5.000000e-01 : f32
    %126 = vector.broadcast %cst_85 : f32 to vector<16x128xf32>
    %127 = arith.mulf %126, %125 : vector<16x128xf32>
    %cst_86 = arith.constant 5.000000e-01 : f32
    %128 = vector.broadcast %cst_86 : f32 to vector<16x128xf32>
    %129 = arith.addf %127, %128 : vector<16x128xf32>
    %130 = arith.mulf %129, %87 : vector<16x128xf32>
    %131 = arith.addf %130, %118 : vector<16x128xf32>
    %c32_87 = arith.constant 32 : index
    %c384_88 = arith.constant 384 : index
    %132 = vector.load %arg9[%c32_87, %c384_88] : memref<128x512xf32, #tpu.memory_space<vmem>>, vector<16x128xf32>
    %c0_89 = arith.constant 0 : index
    %c384_90 = arith.constant 384 : index
    %133 = vector.load %arg4[%c0_89, %c384_90] : memref<128x512xbf16, #tpu.memory_space<vmem>>, vector<128x128xbf16>
    %cst_91 = arith.constant dense<0.000000e+00> : vector<16x128xf32>
    %134 = tpu.matmul %101, %133, %cst_91 {dimension_numbers = #tpu.dot_dimension_numbers<[1], [0], [0], [1], [0, 0, 1, 1], [], []>} : vector<16x128xbf16>, vector<128x128xbf16>, vector<16x128xf32> -> vector<16x128xf32>
    %135 = arith.addf %132, %134 : vector<16x128xf32>
    %cst_92 = arith.constant 5.000000e-01 : f32
    %136 = vector.broadcast %cst_92 : f32 to vector<16x128xf32>
    %137 = arith.mulf %136, %135 : vector<16x128xf32>
    %138 = math.tanh %137 : vector<16x128xf32>
    %cst_93 = arith.constant 5.000000e-01 : f32
    %139 = vector.broadcast %cst_93 : f32 to vector<16x128xf32>
    %140 = arith.mulf %139, %138 : vector<16x128xf32>
    %cst_94 = arith.constant 5.000000e-01 : f32
    %141 = vector.broadcast %cst_94 : f32 to vector<16x128xf32>
    %142 = arith.addf %140, %141 : vector<16x128xf32>
    %143 = math.tanh %131 : vector<16x128xf32>
    %144 = arith.mulf %142, %143 : vector<16x128xf32>
    %145 = arith.truncf %144 : vector<16x128xf32> to vector<16x128xbf16>
    %c48 = arith.constant 48 : index
    %c256_95 = arith.constant 256 : index
    %146 = vector.load %arg9[%c48, %c256_95] : memref<128x512xf32, #tpu.memory_space<vmem>>, vector<16x128xf32>
    %c0_96 = arith.constant 0 : index
    %c256_97 = arith.constant 256 : index
    %147 = vector.load %arg4[%c0_96, %c256_97] : memref<128x512xbf16, #tpu.memory_space<vmem>>, vector<128x128xbf16>
    %cst_98 = arith.constant dense<0.000000e+00> : vector<16x128xf32>
    %148 = tpu.matmul %145, %147, %cst_98 {dimension_numbers = #tpu.dot_dimension_numbers<[1], [0], [0], [1], [0, 0, 1, 1], [], []>} : vector<16x128xbf16>, vector<128x128xbf16>, vector<16x128xf32> -> vector<16x128xf32>
    %149 = arith.addf %146, %148 : vector<16x128xf32>
    %150 = math.tanh %149 : vector<16x128xf32>
    %c48_99 = arith.constant 48 : index
    %c0_100 = arith.constant 0 : index
    %151 = vector.load %arg9[%c48_99, %c0_100] : memref<128x512xf32, #tpu.memory_space<vmem>>, vector<16x128xf32>
    %c0_101 = arith.constant 0 : index
    %c0_102 = arith.constant 0 : index
    %152 = vector.load %arg4[%c0_101, %c0_102] : memref<128x512xbf16, #tpu.memory_space<vmem>>, vector<128x128xbf16>
    %cst_103 = arith.constant dense<0.000000e+00> : vector<16x128xf32>
    %153 = tpu.matmul %145, %152, %cst_103 {dimension_numbers = #tpu.dot_dimension_numbers<[1], [0], [0], [1], [0, 0, 1, 1], [], []>} : vector<16x128xbf16>, vector<128x128xbf16>, vector<16x128xf32> -> vector<16x128xf32>
    %154 = arith.addf %151, %153 : vector<16x128xf32>
    %cst_104 = arith.constant 5.000000e-01 : f32
    %155 = vector.broadcast %cst_104 : f32 to vector<16x128xf32>
    %156 = arith.mulf %155, %154 : vector<16x128xf32>
    %157 = math.tanh %156 : vector<16x128xf32>
    %cst_105 = arith.constant 5.000000e-01 : f32
    %158 = vector.broadcast %cst_105 : f32 to vector<16x128xf32>
    %159 = arith.mulf %158, %157 : vector<16x128xf32>
    %cst_106 = arith.constant 5.000000e-01 : f32
    %160 = vector.broadcast %cst_106 : f32 to vector<16x128xf32>
    %161 = arith.addf %159, %160 : vector<16x128xf32>
    %162 = arith.mulf %161, %150 : vector<16x128xf32>
    %c48_107 = arith.constant 48 : index
    %c128_108 = arith.constant 128 : index
    %163 = vector.load %arg9[%c48_107, %c128_108] : memref<128x512xf32, #tpu.memory_space<vmem>>, vector<16x128xf32>
    %c0_109 = arith.constant 0 : index
    %c128_110 = arith.constant 128 : index
    %164 = vector.load %arg4[%c0_109, %c128_110] : memref<128x512xbf16, #tpu.memory_space<vmem>>, vector<128x128xbf16>
    %cst_111 = arith.constant dense<0.000000e+00> : vector<16x128xf32>
    %165 = tpu.matmul %145, %164, %cst_111 {dimension_numbers = #tpu.dot_dimension_numbers<[1], [0], [0], [1], [0, 0, 1, 1], [], []>} : vector<16x128xbf16>, vector<128x128xbf16>, vector<16x128xf32> -> vector<16x128xf32>
    %166 = arith.addf %163, %165 : vector<16x128xf32>
    %cst_112 = arith.constant 5.000000e-01 : f32
    %167 = vector.broadcast %cst_112 : f32 to vector<16x128xf32>
    %168 = arith.mulf %167, %166 : vector<16x128xf32>
    %169 = math.tanh %168 : vector<16x128xf32>
    %cst_113 = arith.constant 5.000000e-01 : f32
    %170 = vector.broadcast %cst_113 : f32 to vector<16x128xf32>
    %171 = arith.mulf %170, %169 : vector<16x128xf32>
    %cst_114 = arith.constant 5.000000e-01 : f32
    %172 = vector.broadcast %cst_114 : f32 to vector<16x128xf32>
    %173 = arith.addf %171, %172 : vector<16x128xf32>
    %174 = arith.mulf %173, %131 : vector<16x128xf32>
    %175 = arith.addf %174, %162 : vector<16x128xf32>
    %c48_115 = arith.constant 48 : index
    %c384_116 = arith.constant 384 : index
    %176 = vector.load %arg9[%c48_115, %c384_116] : memref<128x512xf32, #tpu.memory_space<vmem>>, vector<16x128xf32>
    %c0_117 = arith.constant 0 : index
    %c384_118 = arith.constant 384 : index
    %177 = vector.load %arg4[%c0_117, %c384_118] : memref<128x512xbf16, #tpu.memory_space<vmem>>, vector<128x128xbf16>
    %cst_119 = arith.constant dense<0.000000e+00> : vector<16x128xf32>
    %178 = tpu.matmul %145, %177, %cst_119 {dimension_numbers = #tpu.dot_dimension_numbers<[1], [0], [0], [1], [0, 0, 1, 1], [], []>} : vector<16x128xbf16>, vector<128x128xbf16>, vector<16x128xf32> -> vector<16x128xf32>
    %179 = arith.addf %176, %178 : vector<16x128xf32>
    %cst_120 = arith.constant 5.000000e-01 : f32
    %180 = vector.broadcast %cst_120 : f32 to vector<16x128xf32>
    %181 = arith.mulf %180, %179 : vector<16x128xf32>
    %182 = math.tanh %181 : vector<16x128xf32>
    %cst_121 = arith.constant 5.000000e-01 : f32
    %183 = vector.broadcast %cst_121 : f32 to vector<16x128xf32>
    %184 = arith.mulf %183, %182 : vector<16x128xf32>
    %cst_122 = arith.constant 5.000000e-01 : f32
    %185 = vector.broadcast %cst_122 : f32 to vector<16x128xf32>
    %186 = arith.addf %184, %185 : vector<16x128xf32>
    %187 = math.tanh %175 : vector<16x128xf32>
    %188 = arith.mulf %186, %187 : vector<16x128xf32>
    %189 = arith.truncf %188 : vector<16x128xf32> to vector<16x128xbf16>
    %c64 = arith.constant 64 : index
    %c256_123 = arith.constant 256 : index
    %190 = vector.load %arg9[%c64, %c256_123] : memref<128x512xf32, #tpu.memory_space<vmem>>, vector<16x128xf32>
    %c0_124 = arith.constant 0 : index
    %c256_125 = arith.constant 256 : index
    %191 = vector.load %arg4[%c0_124, %c256_125] : memref<128x512xbf16, #tpu.memory_space<vmem>>, vector<128x128xbf16>
    %cst_126 = arith.constant dense<0.000000e+00> : vector<16x128xf32>
    %192 = tpu.matmul %189, %191, %cst_126 {dimension_numbers = #tpu.dot_dimension_numbers<[1], [0], [0], [1], [0, 0, 1, 1], [], []>} : vector<16x128xbf16>, vector<128x128xbf16>, vector<16x128xf32> -> vector<16x128xf32>
    %193 = arith.addf %190, %192 : vector<16x128xf32>
    %194 = math.tanh %193 : vector<16x128xf32>
    %c64_127 = arith.constant 64 : index
    %c0_128 = arith.constant 0 : index
    %195 = vector.load %arg9[%c64_127, %c0_128] : memref<128x512xf32, #tpu.memory_space<vmem>>, vector<16x128xf32>
    %c0_129 = arith.constant 0 : index
    %c0_130 = arith.constant 0 : index
    %196 = vector.load %arg4[%c0_129, %c0_130] : memref<128x512xbf16, #tpu.memory_space<vmem>>, vector<128x128xbf16>
    %cst_131 = arith.constant dense<0.000000e+00> : vector<16x128xf32>
    %197 = tpu.matmul %189, %196, %cst_131 {dimension_numbers = #tpu.dot_dimension_numbers<[1], [0], [0], [1], [0, 0, 1, 1], [], []>} : vector<16x128xbf16>, vector<128x128xbf16>, vector<16x128xf32> -> vector<16x128xf32>
    %198 = arith.addf %195, %197 : vector<16x128xf32>
    %cst_132 = arith.constant 5.000000e-01 : f32
    %199 = vector.broadcast %cst_132 : f32 to vector<16x128xf32>
    %200 = arith.mulf %199, %198 : vector<16x128xf32>
    %201 = math.tanh %200 : vector<16x128xf32>
    %cst_133 = arith.constant 5.000000e-01 : f32
    %202 = vector.broadcast %cst_133 : f32 to vector<16x128xf32>
    %203 = arith.mulf %202, %201 : vector<16x128xf32>
    %cst_134 = arith.constant 5.000000e-01 : f32
    %204 = vector.broadcast %cst_134 : f32 to vector<16x128xf32>
    %205 = arith.addf %203, %204 : vector<16x128xf32>
    %206 = arith.mulf %205, %194 : vector<16x128xf32>
    %c64_135 = arith.constant 64 : index
    %c128_136 = arith.constant 128 : index
    %207 = vector.load %arg9[%c64_135, %c128_136] : memref<128x512xf32, #tpu.memory_space<vmem>>, vector<16x128xf32>
    %c0_137 = arith.constant 0 : index
    %c128_138 = arith.constant 128 : index
    %208 = vector.load %arg4[%c0_137, %c128_138] : memref<128x512xbf16, #tpu.memory_space<vmem>>, vector<128x128xbf16>
    %cst_139 = arith.constant dense<0.000000e+00> : vector<16x128xf32>
    %209 = tpu.matmul %189, %208, %cst_139 {dimension_numbers = #tpu.dot_dimension_numbers<[1], [0], [0], [1], [0, 0, 1, 1], [], []>} : vector<16x128xbf16>, vector<128x128xbf16>, vector<16x128xf32> -> vector<16x128xf32>
    %210 = arith.addf %207, %209 : vector<16x128xf32>
    %cst_140 = arith.constant 5.000000e-01 : f32
    %211 = vector.broadcast %cst_140 : f32 to vector<16x128xf32>
    %212 = arith.mulf %211, %210 : vector<16x128xf32>
    %213 = math.tanh %212 : vector<16x128xf32>
    %cst_141 = arith.constant 5.000000e-01 : f32
    %214 = vector.broadcast %cst_141 : f32 to vector<16x128xf32>
    %215 = arith.mulf %214, %213 : vector<16x128xf32>
    %cst_142 = arith.constant 5.000000e-01 : f32
    %216 = vector.broadcast %cst_142 : f32 to vector<16x128xf32>
    %217 = arith.addf %215, %216 : vector<16x128xf32>
    %218 = arith.mulf %217, %175 : vector<16x128xf32>
    %219 = arith.addf %218, %206 : vector<16x128xf32>
    %c64_143 = arith.constant 64 : index
    %c384_144 = arith.constant 384 : index
    %220 = vector.load %arg9[%c64_143, %c384_144] : memref<128x512xf32, #tpu.memory_space<vmem>>, vector<16x128xf32>
    %c0_145 = arith.constant 0 : index
    %c384_146 = arith.constant 384 : index
    %221 = vector.load %arg4[%c0_145, %c384_146] : memref<128x512xbf16, #tpu.memory_space<vmem>>, vector<128x128xbf16>
    %cst_147 = arith.constant dense<0.000000e+00> : vector<16x128xf32>
    %222 = tpu.matmul %189, %221, %cst_147 {dimension_numbers = #tpu.dot_dimension_numbers<[1], [0], [0], [1], [0, 0, 1, 1], [], []>} : vector<16x128xbf16>, vector<128x128xbf16>, vector<16x128xf32> -> vector<16x128xf32>
    %223 = arith.addf %220, %222 : vector<16x128xf32>
    %cst_148 = arith.constant 5.000000e-01 : f32
    %224 = vector.broadcast %cst_148 : f32 to vector<16x128xf32>
    %225 = arith.mulf %224, %223 : vector<16x128xf32>
    %226 = math.tanh %225 : vector<16x128xf32>
    %cst_149 = arith.constant 5.000000e-01 : f32
    %227 = vector.broadcast %cst_149 : f32 to vector<16x128xf32>
    %228 = arith.mulf %227, %226 : vector<16x128xf32>
    %cst_150 = arith.constant 5.000000e-01 : f32
    %229 = vector.broadcast %cst_150 : f32 to vector<16x128xf32>
    %230 = arith.addf %228, %229 : vector<16x128xf32>
    %231 = math.tanh %219 : vector<16x128xf32>
    %232 = arith.mulf %230, %231 : vector<16x128xf32>
    %233 = arith.truncf %232 : vector<16x128xf32> to vector<16x128xbf16>
    %c80 = arith.constant 80 : index
    %c256_151 = arith.constant 256 : index
    %234 = vector.load %arg9[%c80, %c256_151] : memref<128x512xf32, #tpu.memory_space<vmem>>, vector<16x128xf32>
    %c0_152 = arith.constant 0 : index
    %c256_153 = arith.constant 256 : index
    %235 = vector.load %arg4[%c0_152, %c256_153] : memref<128x512xbf16, #tpu.memory_space<vmem>>, vector<128x128xbf16>
    %cst_154 = arith.constant dense<0.000000e+00> : vector<16x128xf32>
    %236 = tpu.matmul %233, %235, %cst_154 {dimension_numbers = #tpu.dot_dimension_numbers<[1], [0], [0], [1], [0, 0, 1, 1], [], []>} : vector<16x128xbf16>, vector<128x128xbf16>, vector<16x128xf32> -> vector<16x128xf32>
    %237 = arith.addf %234, %236 : vector<16x128xf32>
    %238 = math.tanh %237 : vector<16x128xf32>
    %c80_155 = arith.constant 80 : index
    %c0_156 = arith.constant 0 : index
    %239 = vector.load %arg9[%c80_155, %c0_156] : memref<128x512xf32, #tpu.memory_space<vmem>>, vector<16x128xf32>
    %c0_157 = arith.constant 0 : index
    %c0_158 = arith.constant 0 : index
    %240 = vector.load %arg4[%c0_157, %c0_158] : memref<128x512xbf16, #tpu.memory_space<vmem>>, vector<128x128xbf16>
    %cst_159 = arith.constant dense<0.000000e+00> : vector<16x128xf32>
    %241 = tpu.matmul %233, %240, %cst_159 {dimension_numbers = #tpu.dot_dimension_numbers<[1], [0], [0], [1], [0, 0, 1, 1], [], []>} : vector<16x128xbf16>, vector<128x128xbf16>, vector<16x128xf32> -> vector<16x128xf32>
    %242 = arith.addf %239, %241 : vector<16x128xf32>
    %cst_160 = arith.constant 5.000000e-01 : f32
    %243 = vector.broadcast %cst_160 : f32 to vector<16x128xf32>
    %244 = arith.mulf %243, %242 : vector<16x128xf32>
    %245 = math.tanh %244 : vector<16x128xf32>
    %cst_161 = arith.constant 5.000000e-01 : f32
    %246 = vector.broadcast %cst_161 : f32 to vector<16x128xf32>
    %247 = arith.mulf %246, %245 : vector<16x128xf32>
    %cst_162 = arith.constant 5.000000e-01 : f32
    %248 = vector.broadcast %cst_162 : f32 to vector<16x128xf32>
    %249 = arith.addf %247, %248 : vector<16x128xf32>
    %250 = arith.mulf %249, %238 : vector<16x128xf32>
    %c80_163 = arith.constant 80 : index
    %c128_164 = arith.constant 128 : index
    %251 = vector.load %arg9[%c80_163, %c128_164] : memref<128x512xf32, #tpu.memory_space<vmem>>, vector<16x128xf32>
    %c0_165 = arith.constant 0 : index
    %c128_166 = arith.constant 128 : index
    %252 = vector.load %arg4[%c0_165, %c128_166] : memref<128x512xbf16, #tpu.memory_space<vmem>>, vector<128x128xbf16>
    %cst_167 = arith.constant dense<0.000000e+00> : vector<16x128xf32>
    %253 = tpu.matmul %233, %252, %cst_167 {dimension_numbers = #tpu.dot_dimension_numbers<[1], [0], [0], [1], [0, 0, 1, 1], [], []>} : vector<16x128xbf16>, vector<128x128xbf16>, vector<16x128xf32> -> vector<16x128xf32>
    %254 = arith.addf %251, %253 : vector<16x128xf32>
    %cst_168 = arith.constant 5.000000e-01 : f32
    %255 = vector.broadcast %cst_168 : f32 to vector<16x128xf32>
    %256 = arith.mulf %255, %254 : vector<16x128xf32>
    %257 = math.tanh %256 : vector<16x128xf32>
    %cst_169 = arith.constant 5.000000e-01 : f32
    %258 = vector.broadcast %cst_169 : f32 to vector<16x128xf32>
    %259 = arith.mulf %258, %257 : vector<16x128xf32>
    %cst_170 = arith.constant 5.000000e-01 : f32
    %260 = vector.broadcast %cst_170 : f32 to vector<16x128xf32>
    %261 = arith.addf %259, %260 : vector<16x128xf32>
    %262 = arith.mulf %261, %219 : vector<16x128xf32>
    %263 = arith.addf %262, %250 : vector<16x128xf32>
    %c80_171 = arith.constant 80 : index
    %c384_172 = arith.constant 384 : index
    %264 = vector.load %arg9[%c80_171, %c384_172] : memref<128x512xf32, #tpu.memory_space<vmem>>, vector<16x128xf32>
    %c0_173 = arith.constant 0 : index
    %c384_174 = arith.constant 384 : index
    %265 = vector.load %arg4[%c0_173, %c384_174] : memref<128x512xbf16, #tpu.memory_space<vmem>>, vector<128x128xbf16>
    %cst_175 = arith.constant dense<0.000000e+00> : vector<16x128xf32>
    %266 = tpu.matmul %233, %265, %cst_175 {dimension_numbers = #tpu.dot_dimension_numbers<[1], [0], [0], [1], [0, 0, 1, 1], [], []>} : vector<16x128xbf16>, vector<128x128xbf16>, vector<16x128xf32> -> vector<16x128xf32>
    %267 = arith.addf %264, %266 : vector<16x128xf32>
    %cst_176 = arith.constant 5.000000e-01 : f32
    %268 = vector.broadcast %cst_176 : f32 to vector<16x128xf32>
    %269 = arith.mulf %268, %267 : vector<16x128xf32>
    %270 = math.tanh %269 : vector<16x128xf32>
    %cst_177 = arith.constant 5.000000e-01 : f32
    %271 = vector.broadcast %cst_177 : f32 to vector<16x128xf32>
    %272 = arith.mulf %271, %270 : vector<16x128xf32>
    %cst_178 = arith.constant 5.000000e-01 : f32
    %273 = vector.broadcast %cst_178 : f32 to vector<16x128xf32>
    %274 = arith.addf %272, %273 : vector<16x128xf32>
    %275 = math.tanh %263 : vector<16x128xf32>
    %276 = arith.mulf %274, %275 : vector<16x128xf32>
    %277 = arith.truncf %276 : vector<16x128xf32> to vector<16x128xbf16>
    %c96 = arith.constant 96 : index
    %c256_179 = arith.constant 256 : index
    %278 = vector.load %arg9[%c96, %c256_179] : memref<128x512xf32, #tpu.memory_space<vmem>>, vector<16x128xf32>
    %c0_180 = arith.constant 0 : index
    %c256_181 = arith.constant 256 : index
    %279 = vector.load %arg4[%c0_180, %c256_181] : memref<128x512xbf16, #tpu.memory_space<vmem>>, vector<128x128xbf16>
    %cst_182 = arith.constant dense<0.000000e+00> : vector<16x128xf32>
    %280 = tpu.matmul %277, %279, %cst_182 {dimension_numbers = #tpu.dot_dimension_numbers<[1], [0], [0], [1], [0, 0, 1, 1], [], []>} : vector<16x128xbf16>, vector<128x128xbf16>, vector<16x128xf32> -> vector<16x128xf32>
    %281 = arith.addf %278, %280 : vector<16x128xf32>
    %282 = math.tanh %281 : vector<16x128xf32>
    %c96_183 = arith.constant 96 : index
    %c0_184 = arith.constant 0 : index
    %283 = vector.load %arg9[%c96_183, %c0_184] : memref<128x512xf32, #tpu.memory_space<vmem>>, vector<16x128xf32>
    %c0_185 = arith.constant 0 : index
    %c0_186 = arith.constant 0 : index
    %284 = vector.load %arg4[%c0_185, %c0_186] : memref<128x512xbf16, #tpu.memory_space<vmem>>, vector<128x128xbf16>
    %cst_187 = arith.constant dense<0.000000e+00> : vector<16x128xf32>
    %285 = tpu.matmul %277, %284, %cst_187 {dimension_numbers = #tpu.dot_dimension_numbers<[1], [0], [0], [1], [0, 0, 1, 1], [], []>} : vector<16x128xbf16>, vector<128x128xbf16>, vector<16x128xf32> -> vector<16x128xf32>
    %286 = arith.addf %283, %285 : vector<16x128xf32>
    %cst_188 = arith.constant 5.000000e-01 : f32
    %287 = vector.broadcast %cst_188 : f32 to vector<16x128xf32>
    %288 = arith.mulf %287, %286 : vector<16x128xf32>
    %289 = math.tanh %288 : vector<16x128xf32>
    %cst_189 = arith.constant 5.000000e-01 : f32
    %290 = vector.broadcast %cst_189 : f32 to vector<16x128xf32>
    %291 = arith.mulf %290, %289 : vector<16x128xf32>
    %cst_190 = arith.constant 5.000000e-01 : f32
    %292 = vector.broadcast %cst_190 : f32 to vector<16x128xf32>
    %293 = arith.addf %291, %292 : vector<16x128xf32>
    %294 = arith.mulf %293, %282 : vector<16x128xf32>
    %c96_191 = arith.constant 96 : index
    %c128_192 = arith.constant 128 : index
    %295 = vector.load %arg9[%c96_191, %c128_192] : memref<128x512xf32, #tpu.memory_space<vmem>>, vector<16x128xf32>
    %c0_193 = arith.constant 0 : index
    %c128_194 = arith.constant 128 : index
    %296 = vector.load %arg4[%c0_193, %c128_194] : memref<128x512xbf16, #tpu.memory_space<vmem>>, vector<128x128xbf16>
    %cst_195 = arith.constant dense<0.000000e+00> : vector<16x128xf32>
    %297 = tpu.matmul %277, %296, %cst_195 {dimension_numbers = #tpu.dot_dimension_numbers<[1], [0], [0], [1], [0, 0, 1, 1], [], []>} : vector<16x128xbf16>, vector<128x128xbf16>, vector<16x128xf32> -> vector<16x128xf32>
    %298 = arith.addf %295, %297 : vector<16x128xf32>
    %cst_196 = arith.constant 5.000000e-01 : f32
    %299 = vector.broadcast %cst_196 : f32 to vector<16x128xf32>
    %300 = arith.mulf %299, %298 : vector<16x128xf32>
    %301 = math.tanh %300 : vector<16x128xf32>
    %cst_197 = arith.constant 5.000000e-01 : f32
    %302 = vector.broadcast %cst_197 : f32 to vector<16x128xf32>
    %303 = arith.mulf %302, %301 : vector<16x128xf32>
    %cst_198 = arith.constant 5.000000e-01 : f32
    %304 = vector.broadcast %cst_198 : f32 to vector<16x128xf32>
    %305 = arith.addf %303, %304 : vector<16x128xf32>
    %306 = arith.mulf %305, %263 : vector<16x128xf32>
    %307 = arith.addf %306, %294 : vector<16x128xf32>
    %c96_199 = arith.constant 96 : index
    %c384_200 = arith.constant 384 : index
    %308 = vector.load %arg9[%c96_199, %c384_200] : memref<128x512xf32, #tpu.memory_space<vmem>>, vector<16x128xf32>
    %c0_201 = arith.constant 0 : index
    %c384_202 = arith.constant 384 : index
    %309 = vector.load %arg4[%c0_201, %c384_202] : memref<128x512xbf16, #tpu.memory_space<vmem>>, vector<128x128xbf16>
    %cst_203 = arith.constant dense<0.000000e+00> : vector<16x128xf32>
    %310 = tpu.matmul %277, %309, %cst_203 {dimension_numbers = #tpu.dot_dimension_numbers<[1], [0], [0], [1], [0, 0, 1, 1], [], []>} : vector<16x128xbf16>, vector<128x128xbf16>, vector<16x128xf32> -> vector<16x128xf32>
    %311 = arith.addf %308, %310 : vector<16x128xf32>
    %cst_204 = arith.constant 5.000000e-01 : f32
    %312 = vector.broadcast %cst_204 : f32 to vector<16x128xf32>
    %313 = arith.mulf %312, %311 : vector<16x128xf32>
    %314 = math.tanh %313 : vector<16x128xf32>
    %cst_205 = arith.constant 5.000000e-01 : f32
    %315 = vector.broadcast %cst_205 : f32 to vector<16x128xf32>
    %316 = arith.mulf %315, %314 : vector<16x128xf32>
    %cst_206 = arith.constant 5.000000e-01 : f32
    %317 = vector.broadcast %cst_206 : f32 to vector<16x128xf32>
    %318 = arith.addf %316, %317 : vector<16x128xf32>
    %319 = math.tanh %307 : vector<16x128xf32>
    %320 = arith.mulf %318, %319 : vector<16x128xf32>
    %321 = arith.truncf %320 : vector<16x128xf32> to vector<16x128xbf16>
    %c112 = arith.constant 112 : index
    %c256_207 = arith.constant 256 : index
    %322 = vector.load %arg9[%c112, %c256_207] : memref<128x512xf32, #tpu.memory_space<vmem>>, vector<16x128xf32>
    %c0_208 = arith.constant 0 : index
    %c256_209 = arith.constant 256 : index
    %323 = vector.load %arg4[%c0_208, %c256_209] : memref<128x512xbf16, #tpu.memory_space<vmem>>, vector<128x128xbf16>
    %cst_210 = arith.constant dense<0.000000e+00> : vector<16x128xf32>
    %324 = tpu.matmul %321, %323, %cst_210 {dimension_numbers = #tpu.dot_dimension_numbers<[1], [0], [0], [1], [0, 0, 1, 1], [], []>} : vector<16x128xbf16>, vector<128x128xbf16>, vector<16x128xf32> -> vector<16x128xf32>
    %325 = arith.addf %322, %324 : vector<16x128xf32>
    %326 = math.tanh %325 : vector<16x128xf32>
    %c112_211 = arith.constant 112 : index
    %c0_212 = arith.constant 0 : index
    %327 = vector.load %arg9[%c112_211, %c0_212] : memref<128x512xf32, #tpu.memory_space<vmem>>, vector<16x128xf32>
    %c0_213 = arith.constant 0 : index
    %c0_214 = arith.constant 0 : index
    %328 = vector.load %arg4[%c0_213, %c0_214] : memref<128x512xbf16, #tpu.memory_space<vmem>>, vector<128x128xbf16>
    %cst_215 = arith.constant dense<0.000000e+00> : vector<16x128xf32>
    %329 = tpu.matmul %321, %328, %cst_215 {dimension_numbers = #tpu.dot_dimension_numbers<[1], [0], [0], [1], [0, 0, 1, 1], [], []>} : vector<16x128xbf16>, vector<128x128xbf16>, vector<16x128xf32> -> vector<16x128xf32>
    %330 = arith.addf %327, %329 : vector<16x128xf32>
    %cst_216 = arith.constant 5.000000e-01 : f32
    %331 = vector.broadcast %cst_216 : f32 to vector<16x128xf32>
    %332 = arith.mulf %331, %330 : vector<16x128xf32>
    %333 = math.tanh %332 : vector<16x128xf32>
    %cst_217 = arith.constant 5.000000e-01 : f32
    %334 = vector.broadcast %cst_217 : f32 to vector<16x128xf32>
    %335 = arith.mulf %334, %333 : vector<16x128xf32>
    %cst_218 = arith.constant 5.000000e-01 : f32
    %336 = vector.broadcast %cst_218 : f32 to vector<16x128xf32>
    %337 = arith.addf %335, %336 : vector<16x128xf32>
    %338 = arith.mulf %337, %326 : vector<16x128xf32>
    %c112_219 = arith.constant 112 : index
    %c128_220 = arith.constant 128 : index
    %339 = vector.load %arg9[%c112_219, %c128_220] : memref<128x512xf32, #tpu.memory_space<vmem>>, vector<16x128xf32>
    %c0_221 = arith.constant 0 : index
    %c128_222 = arith.constant 128 : index
    %340 = vector.load %arg4[%c0_221, %c128_222] : memref<128x512xbf16, #tpu.memory_space<vmem>>, vector<128x128xbf16>
    %cst_223 = arith.constant dense<0.000000e+00> : vector<16x128xf32>
    %341 = tpu.matmul %321, %340, %cst_223 {dimension_numbers = #tpu.dot_dimension_numbers<[1], [0], [0], [1], [0, 0, 1, 1], [], []>} : vector<16x128xbf16>, vector<128x128xbf16>, vector<16x128xf32> -> vector<16x128xf32>
    %342 = arith.addf %339, %341 : vector<16x128xf32>
    %cst_224 = arith.constant 5.000000e-01 : f32
    %343 = vector.broadcast %cst_224 : f32 to vector<16x128xf32>
    %344 = arith.mulf %343, %342 : vector<16x128xf32>
    %345 = math.tanh %344 : vector<16x128xf32>
    %cst_225 = arith.constant 5.000000e-01 : f32
    %346 = vector.broadcast %cst_225 : f32 to vector<16x128xf32>
    %347 = arith.mulf %346, %345 : vector<16x128xf32>
    %cst_226 = arith.constant 5.000000e-01 : f32
    %348 = vector.broadcast %cst_226 : f32 to vector<16x128xf32>
    %349 = arith.addf %347, %348 : vector<16x128xf32>
    %350 = arith.mulf %349, %307 : vector<16x128xf32>
    %351 = arith.addf %350, %338 : vector<16x128xf32>
    %c112_227 = arith.constant 112 : index
    %c384_228 = arith.constant 384 : index
    %352 = vector.load %arg9[%c112_227, %c384_228] : memref<128x512xf32, #tpu.memory_space<vmem>>, vector<16x128xf32>
    %c0_229 = arith.constant 0 : index
    %c384_230 = arith.constant 384 : index
    %353 = vector.load %arg4[%c0_229, %c384_230] : memref<128x512xbf16, #tpu.memory_space<vmem>>, vector<128x128xbf16>
    %cst_231 = arith.constant dense<0.000000e+00> : vector<16x128xf32>
    %354 = tpu.matmul %321, %353, %cst_231 {dimension_numbers = #tpu.dot_dimension_numbers<[1], [0], [0], [1], [0, 0, 1, 1], [], []>} : vector<16x128xbf16>, vector<128x128xbf16>, vector<16x128xf32> -> vector<16x128xf32>
    %355 = arith.addf %352, %354 : vector<16x128xf32>
    %cst_232 = arith.constant 5.000000e-01 : f32
    %356 = vector.broadcast %cst_232 : f32 to vector<16x128xf32>
    %357 = arith.mulf %356, %355 : vector<16x128xf32>
    %358 = math.tanh %357 : vector<16x128xf32>
    %cst_233 = arith.constant 5.000000e-01 : f32
    %359 = vector.broadcast %cst_233 : f32 to vector<16x128xf32>
    %360 = arith.mulf %359, %358 : vector<16x128xf32>
    %cst_234 = arith.constant 5.000000e-01 : f32
    %361 = vector.broadcast %cst_234 : f32 to vector<16x128xf32>
    %362 = arith.addf %360, %361 : vector<16x128xf32>
    %363 = math.tanh %351 : vector<16x128xf32>
    %364 = arith.mulf %362, %363 : vector<16x128xf32>
    %c0_235 = arith.constant 0 : index
    %c0_236 = arith.constant 0 : index
    %365 = vector.load %arg7[%c0_235, %c0_236] : memref<16x128xf32, #tpu.memory_space<vmem>>, vector<16x128xf32>
    tpu.vector_store %arg7[%c0_235, %c0_236], %364 {strides = array<i32>} : memref<16x128xf32, #tpu.memory_space<vmem>>, vector<16x128xf32>,
    %c0_237 = arith.constant 0 : index
    %c0_238 = arith.constant 0 : index
    %366 = vector.load %arg8[%c0_237, %c0_238] : memref<16x128xf32, #tpu.memory_space<vmem>>, vector<16x128xf32>
    tpu.vector_store %arg8[%c0_237, %c0_238], %351 {strides = array<i32>} : memref<16x128xf32, #tpu.memory_space<vmem>>, vector<16x128xf32>,
    %c0_i32_239 = arith.constant 0 : i32
    %367 = arith.cmpi eq, %arg1, %c0_i32_239 : i32
    %368 = arith.extui %367 : i1 to i32
    %c0_i32_240 = arith.constant 0 : i32
    %369 = arith.cmpi ne, %368, %c0_i32_240 : i32
    scf.if %369 {
      %c0_241 = arith.constant 0 : index
      %c0_242 = arith.constant 0 : index
      %370 = vector.load %arg6[%c0_241, %c0_242] : memref<16x128xf32, #tpu.memory_space<vmem>>, vector<16x128xf32>
      tpu.vector_store %arg6[%c0_241, %c0_242], %364 {strides = array<i32>} : memref<16x128xf32, #tpu.memory_space<vmem>>, vector<16x128xf32>,
    } else {
    }
    return
  }
  func.func @transform_0(%arg0: i32, %arg1: i32) -> (i32, i32, i32) {
    %c0_i32 = arith.constant 0 : i32
    %c0_i32_0 = arith.constant 0 : i32
    return %arg1, %arg0, %c0_i32 : i32, i32, i32
  }
  func.func @transform_1(%arg0: i32, %arg1: i32) -> (i32, i32) {
    %c0_i32 = arith.constant 0 : i32
    %c0_i32_0 = arith.constant 0 : i32
    %c0_i32_1 = arith.constant 0 : i32
    return %c0_i32, %c0_i32_0 : i32, i32
  }
  func.func @transform_2(%arg0: i32, %arg1: i32) -> (i32, i32) {
    %c0_i32 = arith.constant 0 : i32
    %c0_i32_0 = arith.constant 0 : i32
    %c0_i32_1 = arith.constant 0 : i32
    return %c0_i32, %c0_i32_0 : i32, i32
  }
  func.func @transform_3(%arg0: i32, %arg1: i32) -> (i32, i32) {
    %c0_i32 = arith.constant 0 : i32
    %c0_i32_0 = arith.constant 0 : i32
    %c0_i32_1 = arith.constant 0 : i32
    return %c0_i32, %c0_i32_0 : i32, i32
  }
  func.func @transform_4(%arg0: i32, %arg1: i32) -> (i32, i32) {
    %c0_i32 = arith.constant 0 : i32
    %c0_i32_0 = arith.constant 0 : i32
    return %arg0, %c0_i32 : i32, i32
  }
}

module attributes {stable_mosaic.version = 11 : i64} {
  func.func @kernel(%arg0: i32, %arg1: i32, %arg2: memref<8x16x16xbf16, #tpu.memory_space<vmem>>, %arg3: memref<16x512xbf16, #tpu.memory_space<vmem>>, %arg4: memref<128x512xbf16, #tpu.memory_space<vmem>>, %arg5: memref<1x512xf32, #tpu.memory_space<vmem>>, %arg6: memref<8x16x128xbf16, #tpu.memory_space<vmem>>, %arg7: memref<16x128xf32, #tpu.memory_space<vmem>>, %arg8: memref<16x128xf32, #tpu.memory_space<vmem>>, %arg9: memref<128x512xf32, #tpu.memory_space<vmem>>) attributes {dimension_semantics = [#tpu.dimension_semantics<parallel>, #tpu.dimension_semantics<arbitrary>], iteration_bounds = array<i64: 1, 1>, scalar_prefetch = 0 : i64, scratch_operands = 3 : i64, tpu.core_type = #tpu.core_type<tc>, window_params = [{transform_indices = @transform_0, window_bounds = array<i64: 8, 16, 16>}, {pipeline_mode = #tpu.pipeline_mode<synchronous>, transform_indices = @transform_1, window_bounds = array<i64: 16, 512>}, {pipeline_mode = #tpu.pipeline_mode<synchronous>, transform_indices = @transform_2, window_bounds = array<i64: 128, 512>}, {pipeline_mode = #tpu.pipeline_mode<synchronous>, transform_indices = @transform_3, window_bounds = array<i64: 1, 512>}, {transform_indices = @transform_4, window_bounds = array<i64: 8, 16, 128>}]} {
    %c0_i32 = arith.constant 0 : i32
    %0 = arith.cmpi eq, %arg1, %c0_i32 : i32
    %1 = arith.extui %0 : i1 to i32
    %c0_i32_0 = arith.constant 0 : i32
    %2 = arith.cmpi ne, %1, %c0_i32_0 : i32
    scf.if %2 {
      %cst_256 = arith.constant 0.000000e+00 : f32
      %399 = vector.broadcast %cst_256 : f32 to vector<16x128xf32>
      %c0_257 = arith.constant 0 : index
      %c0_258 = arith.constant 0 : index
      %400 = vector.load %arg7[%c0_257, %c0_258] : memref<16x128xf32, #tpu.memory_space<vmem>>, vector<16x128xf32>
      tpu.vector_store %arg7[%c0_257, %c0_258], %399 {strides = array<i32>} : memref<16x128xf32, #tpu.memory_space<vmem>>, vector<16x128xf32>,
      %cst_259 = arith.constant 0.000000e+00 : f32
      %401 = vector.broadcast %cst_259 : f32 to vector<16x128xf32>
      %c0_260 = arith.constant 0 : index
      %c0_261 = arith.constant 0 : index
      %402 = vector.load %arg8[%c0_260, %c0_261] : memref<16x128xf32, #tpu.memory_space<vmem>>, vector<16x128xf32>
      tpu.vector_store %arg8[%c0_260, %c0_261], %401 {strides = array<i32>} : memref<16x128xf32, #tpu.memory_space<vmem>>, vector<16x128xf32>,
    } else {
    }
    %c0 = arith.constant 0 : index
    %c0_1 = arith.constant 0 : index
    %c0_2 = arith.constant 0 : index
    %3 = vector.load %arg2[%c0, %c0_1, %c0_2] : memref<8x16x16xbf16, #tpu.memory_space<vmem>>, vector<8x16x16xbf16>
    %4 = vector.shape_cast %3 : vector<8x16x16xbf16> to vector<128x16xbf16>
    %c0_3 = arith.constant 0 : index
    %c0_4 = arith.constant 0 : index
    %5 = vector.load %arg3[%c0_3, %c0_4] : memref<16x512xbf16, #tpu.memory_space<vmem>>, vector<16x512xbf16>
    %cst = arith.constant dense<0.000000e+00> : vector<128x512xf32>
    %6 = tpu.matmul %4, %5, %cst {dimension_numbers = #tpu.dot_dimension_numbers<[1], [0], [0], [1], [0, 0, 1, 1], [], []>} : vector<128x16xbf16>, vector<16x512xbf16>, vector<128x512xf32> -> vector<128x512xf32>
    %c0_5 = arith.constant 0 : index
    %c0_6 = arith.constant 0 : index
    %7 = vector.load %arg5[%c0_5, %c0_6] : memref<1x512xf32, #tpu.memory_space<vmem>>, vector<1x512xf32>
    %8 = vector.broadcast %7 : vector<1x512xf32> to vector<128x512xf32>
    %9 = arith.addf %6, %8 : vector<128x512xf32>
    %c0_7 = arith.constant 0 : index
    %c0_8 = arith.constant 0 : index
    %10 = vector.load %arg9[%c0_7, %c0_8] : memref<128x512xf32, #tpu.memory_space<vmem>>, vector<128x512xf32>
    tpu.vector_store %arg9[%c0_7, %c0_8], %9 {strides = array<i32>} : memref<128x512xf32, #tpu.memory_space<vmem>>, vector<128x512xf32>,
    %c0_9 = arith.constant 0 : index
    %c0_10 = arith.constant 0 : index
    %11 = vector.load %arg7[%c0_9, %c0_10] : memref<16x128xf32, #tpu.memory_space<vmem>>, vector<16x128xf32>
    %c0_11 = arith.constant 0 : index
    %c0_12 = arith.constant 0 : index
    %12 = vector.load %arg8[%c0_11, %c0_12] : memref<16x128xf32, #tpu.memory_space<vmem>>, vector<16x128xf32>
    %13 = arith.truncf %11 : vector<16x128xf32> to vector<16x128xbf16>
    %c0_13 = arith.constant 0 : index
    %c256 = arith.constant 256 : index
    %14 = vector.load %arg9[%c0_13, %c256] : memref<128x512xf32, #tpu.memory_space<vmem>>, vector<16x128xf32>
    %c0_14 = arith.constant 0 : index
    %c256_15 = arith.constant 256 : index
    %15 = vector.load %arg4[%c0_14, %c256_15] : memref<128x512xbf16, #tpu.memory_space<vmem>>, vector<128x128xbf16>
    %cst_16 = arith.constant dense<0.000000e+00> : vector<16x128xf32>
    %16 = tpu.matmul %13, %15, %cst_16 {dimension_numbers = #tpu.dot_dimension_numbers<[1], [0], [0], [1], [0, 0, 1, 1], [], []>} : vector<16x128xbf16>, vector<128x128xbf16>, vector<16x128xf32> -> vector<16x128xf32>
    %17 = arith.addf %14, %16 : vector<16x128xf32>
    %18 = math.tanh %17 : vector<16x128xf32>
    %c0_17 = arith.constant 0 : index
    %c0_18 = arith.constant 0 : index
    %19 = vector.load %arg9[%c0_17, %c0_18] : memref<128x512xf32, #tpu.memory_space<vmem>>, vector<16x128xf32>
    %c0_19 = arith.constant 0 : index
    %c0_20 = arith.constant 0 : index
    %20 = vector.load %arg4[%c0_19, %c0_20] : memref<128x512xbf16, #tpu.memory_space<vmem>>, vector<128x128xbf16>
    %cst_21 = arith.constant dense<0.000000e+00> : vector<16x128xf32>
    %21 = tpu.matmul %13, %20, %cst_21 {dimension_numbers = #tpu.dot_dimension_numbers<[1], [0], [0], [1], [0, 0, 1, 1], [], []>} : vector<16x128xbf16>, vector<128x128xbf16>, vector<16x128xf32> -> vector<16x128xf32>
    %22 = arith.addf %19, %21 : vector<16x128xf32>
    %cst_22 = arith.constant 5.000000e-01 : f32
    %23 = vector.broadcast %cst_22 : f32 to vector<16x128xf32>
    %24 = arith.mulf %23, %22 : vector<16x128xf32>
    %25 = math.tanh %24 : vector<16x128xf32>
    %cst_23 = arith.constant 5.000000e-01 : f32
    %26 = vector.broadcast %cst_23 : f32 to vector<16x128xf32>
    %27 = arith.mulf %26, %25 : vector<16x128xf32>
    %cst_24 = arith.constant 5.000000e-01 : f32
    %28 = vector.broadcast %cst_24 : f32 to vector<16x128xf32>
    %29 = arith.addf %27, %28 : vector<16x128xf32>
    %30 = arith.mulf %29, %18 : vector<16x128xf32>
    %c0_25 = arith.constant 0 : index
    %c128 = arith.constant 128 : index
    %31 = vector.load %arg9[%c0_25, %c128] : memref<128x512xf32, #tpu.memory_space<vmem>>, vector<16x128xf32>
    %c0_26 = arith.constant 0 : index
    %c128_27 = arith.constant 128 : index
    %32 = vector.load %arg4[%c0_26, %c128_27] : memref<128x512xbf16, #tpu.memory_space<vmem>>, vector<128x128xbf16>
    %cst_28 = arith.constant dense<0.000000e+00> : vector<16x128xf32>
    %33 = tpu.matmul %13, %32, %cst_28 {dimension_numbers = #tpu.dot_dimension_numbers<[1], [0], [0], [1], [0, 0, 1, 1], [], []>} : vector<16x128xbf16>, vector<128x128xbf16>, vector<16x128xf32> -> vector<16x128xf32>
    %34 = arith.addf %31, %33 : vector<16x128xf32>
    %cst_29 = arith.constant 5.000000e-01 : f32
    %35 = vector.broadcast %cst_29 : f32 to vector<16x128xf32>
    %36 = arith.mulf %35, %34 : vector<16x128xf32>
    %37 = math.tanh %36 : vector<16x128xf32>
    %cst_30 = arith.constant 5.000000e-01 : f32
    %38 = vector.broadcast %cst_30 : f32 to vector<16x128xf32>
    %39 = arith.mulf %38, %37 : vector<16x128xf32>
    %cst_31 = arith.constant 5.000000e-01 : f32
    %40 = vector.broadcast %cst_31 : f32 to vector<16x128xf32>
    %41 = arith.addf %39, %40 : vector<16x128xf32>
    %42 = arith.mulf %41, %12 : vector<16x128xf32>
    %43 = arith.addf %42, %30 : vector<16x128xf32>
    %c0_32 = arith.constant 0 : index
    %c384 = arith.constant 384 : index
    %44 = vector.load %arg9[%c0_32, %c384] : memref<128x512xf32, #tpu.memory_space<vmem>>, vector<16x128xf32>
    %c0_33 = arith.constant 0 : index
    %c384_34 = arith.constant 384 : index
    %45 = vector.load %arg4[%c0_33, %c384_34] : memref<128x512xbf16, #tpu.memory_space<vmem>>, vector<128x128xbf16>
    %cst_35 = arith.constant dense<0.000000e+00> : vector<16x128xf32>
    %46 = tpu.matmul %13, %45, %cst_35 {dimension_numbers = #tpu.dot_dimension_numbers<[1], [0], [0], [1], [0, 0, 1, 1], [], []>} : vector<16x128xbf16>, vector<128x128xbf16>, vector<16x128xf32> -> vector<16x128xf32>
    %47 = arith.addf %44, %46 : vector<16x128xf32>
    %cst_36 = arith.constant 5.000000e-01 : f32
    %48 = vector.broadcast %cst_36 : f32 to vector<16x128xf32>
    %49 = arith.mulf %48, %47 : vector<16x128xf32>
    %50 = math.tanh %49 : vector<16x128xf32>
    %cst_37 = arith.constant 5.000000e-01 : f32
    %51 = vector.broadcast %cst_37 : f32 to vector<16x128xf32>
    %52 = arith.mulf %51, %50 : vector<16x128xf32>
    %cst_38 = arith.constant 5.000000e-01 : f32
    %53 = vector.broadcast %cst_38 : f32 to vector<16x128xf32>
    %54 = arith.addf %52, %53 : vector<16x128xf32>
    %55 = math.tanh %43 : vector<16x128xf32>
    %56 = arith.mulf %54, %55 : vector<16x128xf32>
    %57 = arith.truncf %56 : vector<16x128xf32> to vector<16x128xbf16>
    %c0_39 = arith.constant 0 : index
    %c0_40 = arith.constant 0 : index
    %c0_41 = arith.constant 0 : index
    %58 = vector.load %arg6[%c0_39, %c0_40, %c0_41] : memref<8x16x128xbf16, #tpu.memory_space<vmem>>, vector<1x16x128xbf16>
    %59 = vector.shape_cast %58 : vector<1x16x128xbf16> to vector<16x128xbf16>
    %60 = vector.shape_cast %57 : vector<16x128xbf16> to vector<1x16x128xbf16>
    tpu.vector_store %arg6[%c0_39, %c0_40, %c0_41], %60 {strides = array<i32>} : memref<8x16x128xbf16, #tpu.memory_space<vmem>>, vector<1x16x128xbf16>,
    %61 = arith.truncf %56 : vector<16x128xf32> to vector<16x128xbf16>
    %c16 = arith.constant 16 : index
    %c256_42 = arith.constant 256 : index
    %62 = vector.load %arg9[%c16, %c256_42] : memref<128x512xf32, #tpu.memory_space<vmem>>, vector<16x128xf32>
    %c0_43 = arith.constant 0 : index
    %c256_44 = arith.constant 256 : index
    %63 = vector.load %arg4[%c0_43, %c256_44] : memref<128x512xbf16, #tpu.memory_space<vmem>>, vector<128x128xbf16>
    %cst_45 = arith.constant dense<0.000000e+00> : vector<16x128xf32>
    %64 = tpu.matmul %61, %63, %cst_45 {dimension_numbers = #tpu.dot_dimension_numbers<[1], [0], [0], [1], [0, 0, 1, 1], [], []>} : vector<16x128xbf16>, vector<128x128xbf16>, vector<16x128xf32> -> vector<16x128xf32>
    %65 = arith.addf %62, %64 : vector<16x128xf32>
    %66 = math.tanh %65 : vector<16x128xf32>
    %c16_46 = arith.constant 16 : index
    %c0_47 = arith.constant 0 : index
    %67 = vector.load %arg9[%c16_46, %c0_47] : memref<128x512xf32, #tpu.memory_space<vmem>>, vector<16x128xf32>
    %c0_48 = arith.constant 0 : index
    %c0_49 = arith.constant 0 : index
    %68 = vector.load %arg4[%c0_48, %c0_49] : memref<128x512xbf16, #tpu.memory_space<vmem>>, vector<128x128xbf16>
    %cst_50 = arith.constant dense<0.000000e+00> : vector<16x128xf32>
    %69 = tpu.matmul %61, %68, %cst_50 {dimension_numbers = #tpu.dot_dimension_numbers<[1], [0], [0], [1], [0, 0, 1, 1], [], []>} : vector<16x128xbf16>, vector<128x128xbf16>, vector<16x128xf32> -> vector<16x128xf32>
    %70 = arith.addf %67, %69 : vector<16x128xf32>
    %cst_51 = arith.constant 5.000000e-01 : f32
    %71 = vector.broadcast %cst_51 : f32 to vector<16x128xf32>
    %72 = arith.mulf %71, %70 : vector<16x128xf32>
    %73 = math.tanh %72 : vector<16x128xf32>
    %cst_52 = arith.constant 5.000000e-01 : f32
    %74 = vector.broadcast %cst_52 : f32 to vector<16x128xf32>
    %75 = arith.mulf %74, %73 : vector<16x128xf32>
    %cst_53 = arith.constant 5.000000e-01 : f32
    %76 = vector.broadcast %cst_53 : f32 to vector<16x128xf32>
    %77 = arith.addf %75, %76 : vector<16x128xf32>
    %78 = arith.mulf %77, %66 : vector<16x128xf32>
    %c16_54 = arith.constant 16 : index
    %c128_55 = arith.constant 128 : index
    %79 = vector.load %arg9[%c16_54, %c128_55] : memref<128x512xf32, #tpu.memory_space<vmem>>, vector<16x128xf32>
    %c0_56 = arith.constant 0 : index
    %c128_57 = arith.constant 128 : index
    %80 = vector.load %arg4[%c0_56, %c128_57] : memref<128x512xbf16, #tpu.memory_space<vmem>>, vector<128x128xbf16>
    %cst_58 = arith.constant dense<0.000000e+00> : vector<16x128xf32>
    %81 = tpu.matmul %61, %80, %cst_58 {dimension_numbers = #tpu.dot_dimension_numbers<[1], [0], [0], [1], [0, 0, 1, 1], [], []>} : vector<16x128xbf16>, vector<128x128xbf16>, vector<16x128xf32> -> vector<16x128xf32>
    %82 = arith.addf %79, %81 : vector<16x128xf32>
    %cst_59 = arith.constant 5.000000e-01 : f32
    %83 = vector.broadcast %cst_59 : f32 to vector<16x128xf32>
    %84 = arith.mulf %83, %82 : vector<16x128xf32>
    %85 = math.tanh %84 : vector<16x128xf32>
    %cst_60 = arith.constant 5.000000e-01 : f32
    %86 = vector.broadcast %cst_60 : f32 to vector<16x128xf32>
    %87 = arith.mulf %86, %85 : vector<16x128xf32>
    %cst_61 = arith.constant 5.000000e-01 : f32
    %88 = vector.broadcast %cst_61 : f32 to vector<16x128xf32>
    %89 = arith.addf %87, %88 : vector<16x128xf32>
    %90 = arith.mulf %89, %43 : vector<16x128xf32>
    %91 = arith.addf %90, %78 : vector<16x128xf32>
    %c16_62 = arith.constant 16 : index
    %c384_63 = arith.constant 384 : index
    %92 = vector.load %arg9[%c16_62, %c384_63] : memref<128x512xf32, #tpu.memory_space<vmem>>, vector<16x128xf32>
    %c0_64 = arith.constant 0 : index
    %c384_65 = arith.constant 384 : index
    %93 = vector.load %arg4[%c0_64, %c384_65] : memref<128x512xbf16, #tpu.memory_space<vmem>>, vector<128x128xbf16>
    %cst_66 = arith.constant dense<0.000000e+00> : vector<16x128xf32>
    %94 = tpu.matmul %61, %93, %cst_66 {dimension_numbers = #tpu.dot_dimension_numbers<[1], [0], [0], [1], [0, 0, 1, 1], [], []>} : vector<16x128xbf16>, vector<128x128xbf16>, vector<16x128xf32> -> vector<16x128xf32>
    %95 = arith.addf %92, %94 : vector<16x128xf32>
    %cst_67 = arith.constant 5.000000e-01 : f32
    %96 = vector.broadcast %cst_67 : f32 to vector<16x128xf32>
    %97 = arith.mulf %96, %95 : vector<16x128xf32>
    %98 = math.tanh %97 : vector<16x128xf32>
    %cst_68 = arith.constant 5.000000e-01 : f32
    %99 = vector.broadcast %cst_68 : f32 to vector<16x128xf32>
    %100 = arith.mulf %99, %98 : vector<16x128xf32>
    %cst_69 = arith.constant 5.000000e-01 : f32
    %101 = vector.broadcast %cst_69 : f32 to vector<16x128xf32>
    %102 = arith.addf %100, %101 : vector<16x128xf32>
    %103 = math.tanh %91 : vector<16x128xf32>
    %104 = arith.mulf %102, %103 : vector<16x128xf32>
    %105 = arith.truncf %104 : vector<16x128xf32> to vector<16x128xbf16>
    %c1 = arith.constant 1 : index
    %c0_70 = arith.constant 0 : index
    %c0_71 = arith.constant 0 : index
    %106 = vector.load %arg6[%c1, %c0_70, %c0_71] : memref<8x16x128xbf16, #tpu.memory_space<vmem>>, vector<1x16x128xbf16>
    %107 = vector.shape_cast %106 : vector<1x16x128xbf16> to vector<16x128xbf16>
    %108 = vector.shape_cast %105 : vector<16x128xbf16> to vector<1x16x128xbf16>
    tpu.vector_store %arg6[%c1, %c0_70, %c0_71], %108 {strides = array<i32>} : memref<8x16x128xbf16, #tpu.memory_space<vmem>>, vector<1x16x128xbf16>,
    %109 = arith.truncf %104 : vector<16x128xf32> to vector<16x128xbf16>
    %c32 = arith.constant 32 : index
    %c256_72 = arith.constant 256 : index
    %110 = vector.load %arg9[%c32, %c256_72] : memref<128x512xf32, #tpu.memory_space<vmem>>, vector<16x128xf32>
    %c0_73 = arith.constant 0 : index
    %c256_74 = arith.constant 256 : index
    %111 = vector.load %arg4[%c0_73, %c256_74] : memref<128x512xbf16, #tpu.memory_space<vmem>>, vector<128x128xbf16>
    %cst_75 = arith.constant dense<0.000000e+00> : vector<16x128xf32>
    %112 = tpu.matmul %109, %111, %cst_75 {dimension_numbers = #tpu.dot_dimension_numbers<[1], [0], [0], [1], [0, 0, 1, 1], [], []>} : vector<16x128xbf16>, vector<128x128xbf16>, vector<16x128xf32> -> vector<16x128xf32>
    %113 = arith.addf %110, %112 : vector<16x128xf32>
    %114 = math.tanh %113 : vector<16x128xf32>
    %c32_76 = arith.constant 32 : index
    %c0_77 = arith.constant 0 : index
    %115 = vector.load %arg9[%c32_76, %c0_77] : memref<128x512xf32, #tpu.memory_space<vmem>>, vector<16x128xf32>
    %c0_78 = arith.constant 0 : index
    %c0_79 = arith.constant 0 : index
    %116 = vector.load %arg4[%c0_78, %c0_79] : memref<128x512xbf16, #tpu.memory_space<vmem>>, vector<128x128xbf16>
    %cst_80 = arith.constant dense<0.000000e+00> : vector<16x128xf32>
    %117 = tpu.matmul %109, %116, %cst_80 {dimension_numbers = #tpu.dot_dimension_numbers<[1], [0], [0], [1], [0, 0, 1, 1], [], []>} : vector<16x128xbf16>, vector<128x128xbf16>, vector<16x128xf32> -> vector<16x128xf32>
    %118 = arith.addf %115, %117 : vector<16x128xf32>
    %cst_81 = arith.constant 5.000000e-01 : f32
    %119 = vector.broadcast %cst_81 : f32 to vector<16x128xf32>
    %120 = arith.mulf %119, %118 : vector<16x128xf32>
    %121 = math.tanh %120 : vector<16x128xf32>
    %cst_82 = arith.constant 5.000000e-01 : f32
    %122 = vector.broadcast %cst_82 : f32 to vector<16x128xf32>
    %123 = arith.mulf %122, %121 : vector<16x128xf32>
    %cst_83 = arith.constant 5.000000e-01 : f32
    %124 = vector.broadcast %cst_83 : f32 to vector<16x128xf32>
    %125 = arith.addf %123, %124 : vector<16x128xf32>
    %126 = arith.mulf %125, %114 : vector<16x128xf32>
    %c32_84 = arith.constant 32 : index
    %c128_85 = arith.constant 128 : index
    %127 = vector.load %arg9[%c32_84, %c128_85] : memref<128x512xf32, #tpu.memory_space<vmem>>, vector<16x128xf32>
    %c0_86 = arith.constant 0 : index
    %c128_87 = arith.constant 128 : index
    %128 = vector.load %arg4[%c0_86, %c128_87] : memref<128x512xbf16, #tpu.memory_space<vmem>>, vector<128x128xbf16>
    %cst_88 = arith.constant dense<0.000000e+00> : vector<16x128xf32>
    %129 = tpu.matmul %109, %128, %cst_88 {dimension_numbers = #tpu.dot_dimension_numbers<[1], [0], [0], [1], [0, 0, 1, 1], [], []>} : vector<16x128xbf16>, vector<128x128xbf16>, vector<16x128xf32> -> vector<16x128xf32>
    %130 = arith.addf %127, %129 : vector<16x128xf32>
    %cst_89 = arith.constant 5.000000e-01 : f32
    %131 = vector.broadcast %cst_89 : f32 to vector<16x128xf32>
    %132 = arith.mulf %131, %130 : vector<16x128xf32>
    %133 = math.tanh %132 : vector<16x128xf32>
    %cst_90 = arith.constant 5.000000e-01 : f32
    %134 = vector.broadcast %cst_90 : f32 to vector<16x128xf32>
    %135 = arith.mulf %134, %133 : vector<16x128xf32>
    %cst_91 = arith.constant 5.000000e-01 : f32
    %136 = vector.broadcast %cst_91 : f32 to vector<16x128xf32>
    %137 = arith.addf %135, %136 : vector<16x128xf32>
    %138 = arith.mulf %137, %91 : vector<16x128xf32>
    %139 = arith.addf %138, %126 : vector<16x128xf32>
    %c32_92 = arith.constant 32 : index
    %c384_93 = arith.constant 384 : index
    %140 = vector.load %arg9[%c32_92, %c384_93] : memref<128x512xf32, #tpu.memory_space<vmem>>, vector<16x128xf32>
    %c0_94 = arith.constant 0 : index
    %c384_95 = arith.constant 384 : index
    %141 = vector.load %arg4[%c0_94, %c384_95] : memref<128x512xbf16, #tpu.memory_space<vmem>>, vector<128x128xbf16>
    %cst_96 = arith.constant dense<0.000000e+00> : vector<16x128xf32>
    %142 = tpu.matmul %109, %141, %cst_96 {dimension_numbers = #tpu.dot_dimension_numbers<[1], [0], [0], [1], [0, 0, 1, 1], [], []>} : vector<16x128xbf16>, vector<128x128xbf16>, vector<16x128xf32> -> vector<16x128xf32>
    %143 = arith.addf %140, %142 : vector<16x128xf32>
    %cst_97 = arith.constant 5.000000e-01 : f32
    %144 = vector.broadcast %cst_97 : f32 to vector<16x128xf32>
    %145 = arith.mulf %144, %143 : vector<16x128xf32>
    %146 = math.tanh %145 : vector<16x128xf32>
    %cst_98 = arith.constant 5.000000e-01 : f32
    %147 = vector.broadcast %cst_98 : f32 to vector<16x128xf32>
    %148 = arith.mulf %147, %146 : vector<16x128xf32>
    %cst_99 = arith.constant 5.000000e-01 : f32
    %149 = vector.broadcast %cst_99 : f32 to vector<16x128xf32>
    %150 = arith.addf %148, %149 : vector<16x128xf32>
    %151 = math.tanh %139 : vector<16x128xf32>
    %152 = arith.mulf %150, %151 : vector<16x128xf32>
    %153 = arith.truncf %152 : vector<16x128xf32> to vector<16x128xbf16>
    %c2 = arith.constant 2 : index
    %c0_100 = arith.constant 0 : index
    %c0_101 = arith.constant 0 : index
    %154 = vector.load %arg6[%c2, %c0_100, %c0_101] : memref<8x16x128xbf16, #tpu.memory_space<vmem>>, vector<1x16x128xbf16>
    %155 = vector.shape_cast %154 : vector<1x16x128xbf16> to vector<16x128xbf16>
    %156 = vector.shape_cast %153 : vector<16x128xbf16> to vector<1x16x128xbf16>
    tpu.vector_store %arg6[%c2, %c0_100, %c0_101], %156 {strides = array<i32>} : memref<8x16x128xbf16, #tpu.memory_space<vmem>>, vector<1x16x128xbf16>,
    %157 = arith.truncf %152 : vector<16x128xf32> to vector<16x128xbf16>
    %c48 = arith.constant 48 : index
    %c256_102 = arith.constant 256 : index
    %158 = vector.load %arg9[%c48, %c256_102] : memref<128x512xf32, #tpu.memory_space<vmem>>, vector<16x128xf32>
    %c0_103 = arith.constant 0 : index
    %c256_104 = arith.constant 256 : index
    %159 = vector.load %arg4[%c0_103, %c256_104] : memref<128x512xbf16, #tpu.memory_space<vmem>>, vector<128x128xbf16>
    %cst_105 = arith.constant dense<0.000000e+00> : vector<16x128xf32>
    %160 = tpu.matmul %157, %159, %cst_105 {dimension_numbers = #tpu.dot_dimension_numbers<[1], [0], [0], [1], [0, 0, 1, 1], [], []>} : vector<16x128xbf16>, vector<128x128xbf16>, vector<16x128xf32> -> vector<16x128xf32>
    %161 = arith.addf %158, %160 : vector<16x128xf32>
    %162 = math.tanh %161 : vector<16x128xf32>
    %c48_106 = arith.constant 48 : index
    %c0_107 = arith.constant 0 : index
    %163 = vector.load %arg9[%c48_106, %c0_107] : memref<128x512xf32, #tpu.memory_space<vmem>>, vector<16x128xf32>
    %c0_108 = arith.constant 0 : index
    %c0_109 = arith.constant 0 : index
    %164 = vector.load %arg4[%c0_108, %c0_109] : memref<128x512xbf16, #tpu.memory_space<vmem>>, vector<128x128xbf16>
    %cst_110 = arith.constant dense<0.000000e+00> : vector<16x128xf32>
    %165 = tpu.matmul %157, %164, %cst_110 {dimension_numbers = #tpu.dot_dimension_numbers<[1], [0], [0], [1], [0, 0, 1, 1], [], []>} : vector<16x128xbf16>, vector<128x128xbf16>, vector<16x128xf32> -> vector<16x128xf32>
    %166 = arith.addf %163, %165 : vector<16x128xf32>
    %cst_111 = arith.constant 5.000000e-01 : f32
    %167 = vector.broadcast %cst_111 : f32 to vector<16x128xf32>
    %168 = arith.mulf %167, %166 : vector<16x128xf32>
    %169 = math.tanh %168 : vector<16x128xf32>
    %cst_112 = arith.constant 5.000000e-01 : f32
    %170 = vector.broadcast %cst_112 : f32 to vector<16x128xf32>
    %171 = arith.mulf %170, %169 : vector<16x128xf32>
    %cst_113 = arith.constant 5.000000e-01 : f32
    %172 = vector.broadcast %cst_113 : f32 to vector<16x128xf32>
    %173 = arith.addf %171, %172 : vector<16x128xf32>
    %174 = arith.mulf %173, %162 : vector<16x128xf32>
    %c48_114 = arith.constant 48 : index
    %c128_115 = arith.constant 128 : index
    %175 = vector.load %arg9[%c48_114, %c128_115] : memref<128x512xf32, #tpu.memory_space<vmem>>, vector<16x128xf32>
    %c0_116 = arith.constant 0 : index
    %c128_117 = arith.constant 128 : index
    %176 = vector.load %arg4[%c0_116, %c128_117] : memref<128x512xbf16, #tpu.memory_space<vmem>>, vector<128x128xbf16>
    %cst_118 = arith.constant dense<0.000000e+00> : vector<16x128xf32>
    %177 = tpu.matmul %157, %176, %cst_118 {dimension_numbers = #tpu.dot_dimension_numbers<[1], [0], [0], [1], [0, 0, 1, 1], [], []>} : vector<16x128xbf16>, vector<128x128xbf16>, vector<16x128xf32> -> vector<16x128xf32>
    %178 = arith.addf %175, %177 : vector<16x128xf32>
    %cst_119 = arith.constant 5.000000e-01 : f32
    %179 = vector.broadcast %cst_119 : f32 to vector<16x128xf32>
    %180 = arith.mulf %179, %178 : vector<16x128xf32>
    %181 = math.tanh %180 : vector<16x128xf32>
    %cst_120 = arith.constant 5.000000e-01 : f32
    %182 = vector.broadcast %cst_120 : f32 to vector<16x128xf32>
    %183 = arith.mulf %182, %181 : vector<16x128xf32>
    %cst_121 = arith.constant 5.000000e-01 : f32
    %184 = vector.broadcast %cst_121 : f32 to vector<16x128xf32>
    %185 = arith.addf %183, %184 : vector<16x128xf32>
    %186 = arith.mulf %185, %139 : vector<16x128xf32>
    %187 = arith.addf %186, %174 : vector<16x128xf32>
    %c48_122 = arith.constant 48 : index
    %c384_123 = arith.constant 384 : index
    %188 = vector.load %arg9[%c48_122, %c384_123] : memref<128x512xf32, #tpu.memory_space<vmem>>, vector<16x128xf32>
    %c0_124 = arith.constant 0 : index
    %c384_125 = arith.constant 384 : index
    %189 = vector.load %arg4[%c0_124, %c384_125] : memref<128x512xbf16, #tpu.memory_space<vmem>>, vector<128x128xbf16>
    %cst_126 = arith.constant dense<0.000000e+00> : vector<16x128xf32>
    %190 = tpu.matmul %157, %189, %cst_126 {dimension_numbers = #tpu.dot_dimension_numbers<[1], [0], [0], [1], [0, 0, 1, 1], [], []>} : vector<16x128xbf16>, vector<128x128xbf16>, vector<16x128xf32> -> vector<16x128xf32>
    %191 = arith.addf %188, %190 : vector<16x128xf32>
    %cst_127 = arith.constant 5.000000e-01 : f32
    %192 = vector.broadcast %cst_127 : f32 to vector<16x128xf32>
    %193 = arith.mulf %192, %191 : vector<16x128xf32>
    %194 = math.tanh %193 : vector<16x128xf32>
    %cst_128 = arith.constant 5.000000e-01 : f32
    %195 = vector.broadcast %cst_128 : f32 to vector<16x128xf32>
    %196 = arith.mulf %195, %194 : vector<16x128xf32>
    %cst_129 = arith.constant 5.000000e-01 : f32
    %197 = vector.broadcast %cst_129 : f32 to vector<16x128xf32>
    %198 = arith.addf %196, %197 : vector<16x128xf32>
    %199 = math.tanh %187 : vector<16x128xf32>
    %200 = arith.mulf %198, %199 : vector<16x128xf32>
    %201 = arith.truncf %200 : vector<16x128xf32> to vector<16x128xbf16>
    %c3 = arith.constant 3 : index
    %c0_130 = arith.constant 0 : index
    %c0_131 = arith.constant 0 : index
    %202 = vector.load %arg6[%c3, %c0_130, %c0_131] : memref<8x16x128xbf16, #tpu.memory_space<vmem>>, vector<1x16x128xbf16>
    %203 = vector.shape_cast %202 : vector<1x16x128xbf16> to vector<16x128xbf16>
    %204 = vector.shape_cast %201 : vector<16x128xbf16> to vector<1x16x128xbf16>
    tpu.vector_store %arg6[%c3, %c0_130, %c0_131], %204 {strides = array<i32>} : memref<8x16x128xbf16, #tpu.memory_space<vmem>>, vector<1x16x128xbf16>,
    %205 = arith.truncf %200 : vector<16x128xf32> to vector<16x128xbf16>
    %c64 = arith.constant 64 : index
    %c256_132 = arith.constant 256 : index
    %206 = vector.load %arg9[%c64, %c256_132] : memref<128x512xf32, #tpu.memory_space<vmem>>, vector<16x128xf32>
    %c0_133 = arith.constant 0 : index
    %c256_134 = arith.constant 256 : index
    %207 = vector.load %arg4[%c0_133, %c256_134] : memref<128x512xbf16, #tpu.memory_space<vmem>>, vector<128x128xbf16>
    %cst_135 = arith.constant dense<0.000000e+00> : vector<16x128xf32>
    %208 = tpu.matmul %205, %207, %cst_135 {dimension_numbers = #tpu.dot_dimension_numbers<[1], [0], [0], [1], [0, 0, 1, 1], [], []>} : vector<16x128xbf16>, vector<128x128xbf16>, vector<16x128xf32> -> vector<16x128xf32>
    %209 = arith.addf %206, %208 : vector<16x128xf32>
    %210 = math.tanh %209 : vector<16x128xf32>
    %c64_136 = arith.constant 64 : index
    %c0_137 = arith.constant 0 : index
    %211 = vector.load %arg9[%c64_136, %c0_137] : memref<128x512xf32, #tpu.memory_space<vmem>>, vector<16x128xf32>
    %c0_138 = arith.constant 0 : index
    %c0_139 = arith.constant 0 : index
    %212 = vector.load %arg4[%c0_138, %c0_139] : memref<128x512xbf16, #tpu.memory_space<vmem>>, vector<128x128xbf16>
    %cst_140 = arith.constant dense<0.000000e+00> : vector<16x128xf32>
    %213 = tpu.matmul %205, %212, %cst_140 {dimension_numbers = #tpu.dot_dimension_numbers<[1], [0], [0], [1], [0, 0, 1, 1], [], []>} : vector<16x128xbf16>, vector<128x128xbf16>, vector<16x128xf32> -> vector<16x128xf32>
    %214 = arith.addf %211, %213 : vector<16x128xf32>
    %cst_141 = arith.constant 5.000000e-01 : f32
    %215 = vector.broadcast %cst_141 : f32 to vector<16x128xf32>
    %216 = arith.mulf %215, %214 : vector<16x128xf32>
    %217 = math.tanh %216 : vector<16x128xf32>
    %cst_142 = arith.constant 5.000000e-01 : f32
    %218 = vector.broadcast %cst_142 : f32 to vector<16x128xf32>
    %219 = arith.mulf %218, %217 : vector<16x128xf32>
    %cst_143 = arith.constant 5.000000e-01 : f32
    %220 = vector.broadcast %cst_143 : f32 to vector<16x128xf32>
    %221 = arith.addf %219, %220 : vector<16x128xf32>
    %222 = arith.mulf %221, %210 : vector<16x128xf32>
    %c64_144 = arith.constant 64 : index
    %c128_145 = arith.constant 128 : index
    %223 = vector.load %arg9[%c64_144, %c128_145] : memref<128x512xf32, #tpu.memory_space<vmem>>, vector<16x128xf32>
    %c0_146 = arith.constant 0 : index
    %c128_147 = arith.constant 128 : index
    %224 = vector.load %arg4[%c0_146, %c128_147] : memref<128x512xbf16, #tpu.memory_space<vmem>>, vector<128x128xbf16>
    %cst_148 = arith.constant dense<0.000000e+00> : vector<16x128xf32>
    %225 = tpu.matmul %205, %224, %cst_148 {dimension_numbers = #tpu.dot_dimension_numbers<[1], [0], [0], [1], [0, 0, 1, 1], [], []>} : vector<16x128xbf16>, vector<128x128xbf16>, vector<16x128xf32> -> vector<16x128xf32>
    %226 = arith.addf %223, %225 : vector<16x128xf32>
    %cst_149 = arith.constant 5.000000e-01 : f32
    %227 = vector.broadcast %cst_149 : f32 to vector<16x128xf32>
    %228 = arith.mulf %227, %226 : vector<16x128xf32>
    %229 = math.tanh %228 : vector<16x128xf32>
    %cst_150 = arith.constant 5.000000e-01 : f32
    %230 = vector.broadcast %cst_150 : f32 to vector<16x128xf32>
    %231 = arith.mulf %230, %229 : vector<16x128xf32>
    %cst_151 = arith.constant 5.000000e-01 : f32
    %232 = vector.broadcast %cst_151 : f32 to vector<16x128xf32>
    %233 = arith.addf %231, %232 : vector<16x128xf32>
    %234 = arith.mulf %233, %187 : vector<16x128xf32>
    %235 = arith.addf %234, %222 : vector<16x128xf32>
    %c64_152 = arith.constant 64 : index
    %c384_153 = arith.constant 384 : index
    %236 = vector.load %arg9[%c64_152, %c384_153] : memref<128x512xf32, #tpu.memory_space<vmem>>, vector<16x128xf32>
    %c0_154 = arith.constant 0 : index
    %c384_155 = arith.constant 384 : index
    %237 = vector.load %arg4[%c0_154, %c384_155] : memref<128x512xbf16, #tpu.memory_space<vmem>>, vector<128x128xbf16>
    %cst_156 = arith.constant dense<0.000000e+00> : vector<16x128xf32>
    %238 = tpu.matmul %205, %237, %cst_156 {dimension_numbers = #tpu.dot_dimension_numbers<[1], [0], [0], [1], [0, 0, 1, 1], [], []>} : vector<16x128xbf16>, vector<128x128xbf16>, vector<16x128xf32> -> vector<16x128xf32>
    %239 = arith.addf %236, %238 : vector<16x128xf32>
    %cst_157 = arith.constant 5.000000e-01 : f32
    %240 = vector.broadcast %cst_157 : f32 to vector<16x128xf32>
    %241 = arith.mulf %240, %239 : vector<16x128xf32>
    %242 = math.tanh %241 : vector<16x128xf32>
    %cst_158 = arith.constant 5.000000e-01 : f32
    %243 = vector.broadcast %cst_158 : f32 to vector<16x128xf32>
    %244 = arith.mulf %243, %242 : vector<16x128xf32>
    %cst_159 = arith.constant 5.000000e-01 : f32
    %245 = vector.broadcast %cst_159 : f32 to vector<16x128xf32>
    %246 = arith.addf %244, %245 : vector<16x128xf32>
    %247 = math.tanh %235 : vector<16x128xf32>
    %248 = arith.mulf %246, %247 : vector<16x128xf32>
    %249 = arith.truncf %248 : vector<16x128xf32> to vector<16x128xbf16>
    %c4 = arith.constant 4 : index
    %c0_160 = arith.constant 0 : index
    %c0_161 = arith.constant 0 : index
    %250 = vector.load %arg6[%c4, %c0_160, %c0_161] : memref<8x16x128xbf16, #tpu.memory_space<vmem>>, vector<1x16x128xbf16>
    %251 = vector.shape_cast %250 : vector<1x16x128xbf16> to vector<16x128xbf16>
    %252 = vector.shape_cast %249 : vector<16x128xbf16> to vector<1x16x128xbf16>
    tpu.vector_store %arg6[%c4, %c0_160, %c0_161], %252 {strides = array<i32>} : memref<8x16x128xbf16, #tpu.memory_space<vmem>>, vector<1x16x128xbf16>,
    %253 = arith.truncf %248 : vector<16x128xf32> to vector<16x128xbf16>
    %c80 = arith.constant 80 : index
    %c256_162 = arith.constant 256 : index
    %254 = vector.load %arg9[%c80, %c256_162] : memref<128x512xf32, #tpu.memory_space<vmem>>, vector<16x128xf32>
    %c0_163 = arith.constant 0 : index
    %c256_164 = arith.constant 256 : index
    %255 = vector.load %arg4[%c0_163, %c256_164] : memref<128x512xbf16, #tpu.memory_space<vmem>>, vector<128x128xbf16>
    %cst_165 = arith.constant dense<0.000000e+00> : vector<16x128xf32>
    %256 = tpu.matmul %253, %255, %cst_165 {dimension_numbers = #tpu.dot_dimension_numbers<[1], [0], [0], [1], [0, 0, 1, 1], [], []>} : vector<16x128xbf16>, vector<128x128xbf16>, vector<16x128xf32> -> vector<16x128xf32>
    %257 = arith.addf %254, %256 : vector<16x128xf32>
    %258 = math.tanh %257 : vector<16x128xf32>
    %c80_166 = arith.constant 80 : index
    %c0_167 = arith.constant 0 : index
    %259 = vector.load %arg9[%c80_166, %c0_167] : memref<128x512xf32, #tpu.memory_space<vmem>>, vector<16x128xf32>
    %c0_168 = arith.constant 0 : index
    %c0_169 = arith.constant 0 : index
    %260 = vector.load %arg4[%c0_168, %c0_169] : memref<128x512xbf16, #tpu.memory_space<vmem>>, vector<128x128xbf16>
    %cst_170 = arith.constant dense<0.000000e+00> : vector<16x128xf32>
    %261 = tpu.matmul %253, %260, %cst_170 {dimension_numbers = #tpu.dot_dimension_numbers<[1], [0], [0], [1], [0, 0, 1, 1], [], []>} : vector<16x128xbf16>, vector<128x128xbf16>, vector<16x128xf32> -> vector<16x128xf32>
    %262 = arith.addf %259, %261 : vector<16x128xf32>
    %cst_171 = arith.constant 5.000000e-01 : f32
    %263 = vector.broadcast %cst_171 : f32 to vector<16x128xf32>
    %264 = arith.mulf %263, %262 : vector<16x128xf32>
    %265 = math.tanh %264 : vector<16x128xf32>
    %cst_172 = arith.constant 5.000000e-01 : f32
    %266 = vector.broadcast %cst_172 : f32 to vector<16x128xf32>
    %267 = arith.mulf %266, %265 : vector<16x128xf32>
    %cst_173 = arith.constant 5.000000e-01 : f32
    %268 = vector.broadcast %cst_173 : f32 to vector<16x128xf32>
    %269 = arith.addf %267, %268 : vector<16x128xf32>
    %270 = arith.mulf %269, %258 : vector<16x128xf32>
    %c80_174 = arith.constant 80 : index
    %c128_175 = arith.constant 128 : index
    %271 = vector.load %arg9[%c80_174, %c128_175] : memref<128x512xf32, #tpu.memory_space<vmem>>, vector<16x128xf32>
    %c0_176 = arith.constant 0 : index
    %c128_177 = arith.constant 128 : index
    %272 = vector.load %arg4[%c0_176, %c128_177] : memref<128x512xbf16, #tpu.memory_space<vmem>>, vector<128x128xbf16>
    %cst_178 = arith.constant dense<0.000000e+00> : vector<16x128xf32>
    %273 = tpu.matmul %253, %272, %cst_178 {dimension_numbers = #tpu.dot_dimension_numbers<[1], [0], [0], [1], [0, 0, 1, 1], [], []>} : vector<16x128xbf16>, vector<128x128xbf16>, vector<16x128xf32> -> vector<16x128xf32>
    %274 = arith.addf %271, %273 : vector<16x128xf32>
    %cst_179 = arith.constant 5.000000e-01 : f32
    %275 = vector.broadcast %cst_179 : f32 to vector<16x128xf32>
    %276 = arith.mulf %275, %274 : vector<16x128xf32>
    %277 = math.tanh %276 : vector<16x128xf32>
    %cst_180 = arith.constant 5.000000e-01 : f32
    %278 = vector.broadcast %cst_180 : f32 to vector<16x128xf32>
    %279 = arith.mulf %278, %277 : vector<16x128xf32>
    %cst_181 = arith.constant 5.000000e-01 : f32
    %280 = vector.broadcast %cst_181 : f32 to vector<16x128xf32>
    %281 = arith.addf %279, %280 : vector<16x128xf32>
    %282 = arith.mulf %281, %235 : vector<16x128xf32>
    %283 = arith.addf %282, %270 : vector<16x128xf32>
    %c80_182 = arith.constant 80 : index
    %c384_183 = arith.constant 384 : index
    %284 = vector.load %arg9[%c80_182, %c384_183] : memref<128x512xf32, #tpu.memory_space<vmem>>, vector<16x128xf32>
    %c0_184 = arith.constant 0 : index
    %c384_185 = arith.constant 384 : index
    %285 = vector.load %arg4[%c0_184, %c384_185] : memref<128x512xbf16, #tpu.memory_space<vmem>>, vector<128x128xbf16>
    %cst_186 = arith.constant dense<0.000000e+00> : vector<16x128xf32>
    %286 = tpu.matmul %253, %285, %cst_186 {dimension_numbers = #tpu.dot_dimension_numbers<[1], [0], [0], [1], [0, 0, 1, 1], [], []>} : vector<16x128xbf16>, vector<128x128xbf16>, vector<16x128xf32> -> vector<16x128xf32>
    %287 = arith.addf %284, %286 : vector<16x128xf32>
    %cst_187 = arith.constant 5.000000e-01 : f32
    %288 = vector.broadcast %cst_187 : f32 to vector<16x128xf32>
    %289 = arith.mulf %288, %287 : vector<16x128xf32>
    %290 = math.tanh %289 : vector<16x128xf32>
    %cst_188 = arith.constant 5.000000e-01 : f32
    %291 = vector.broadcast %cst_188 : f32 to vector<16x128xf32>
    %292 = arith.mulf %291, %290 : vector<16x128xf32>
    %cst_189 = arith.constant 5.000000e-01 : f32
    %293 = vector.broadcast %cst_189 : f32 to vector<16x128xf32>
    %294 = arith.addf %292, %293 : vector<16x128xf32>
    %295 = math.tanh %283 : vector<16x128xf32>
    %296 = arith.mulf %294, %295 : vector<16x128xf32>
    %297 = arith.truncf %296 : vector<16x128xf32> to vector<16x128xbf16>
    %c5 = arith.constant 5 : index
    %c0_190 = arith.constant 0 : index
    %c0_191 = arith.constant 0 : index
    %298 = vector.load %arg6[%c5, %c0_190, %c0_191] : memref<8x16x128xbf16, #tpu.memory_space<vmem>>, vector<1x16x128xbf16>
    %299 = vector.shape_cast %298 : vector<1x16x128xbf16> to vector<16x128xbf16>
    %300 = vector.shape_cast %297 : vector<16x128xbf16> to vector<1x16x128xbf16>
    tpu.vector_store %arg6[%c5, %c0_190, %c0_191], %300 {strides = array<i32>} : memref<8x16x128xbf16, #tpu.memory_space<vmem>>, vector<1x16x128xbf16>,
    %301 = arith.truncf %296 : vector<16x128xf32> to vector<16x128xbf16>
    %c96 = arith.constant 96 : index
    %c256_192 = arith.constant 256 : index
    %302 = vector.load %arg9[%c96, %c256_192] : memref<128x512xf32, #tpu.memory_space<vmem>>, vector<16x128xf32>
    %c0_193 = arith.constant 0 : index
    %c256_194 = arith.constant 256 : index
    %303 = vector.load %arg4[%c0_193, %c256_194] : memref<128x512xbf16, #tpu.memory_space<vmem>>, vector<128x128xbf16>
    %cst_195 = arith.constant dense<0.000000e+00> : vector<16x128xf32>
    %304 = tpu.matmul %301, %303, %cst_195 {dimension_numbers = #tpu.dot_dimension_numbers<[1], [0], [0], [1], [0, 0, 1, 1], [], []>} : vector<16x128xbf16>, vector<128x128xbf16>, vector<16x128xf32> -> vector<16x128xf32>
    %305 = arith.addf %302, %304 : vector<16x128xf32>
    %306 = math.tanh %305 : vector<16x128xf32>
    %c96_196 = arith.constant 96 : index
    %c0_197 = arith.constant 0 : index
    %307 = vector.load %arg9[%c96_196, %c0_197] : memref<128x512xf32, #tpu.memory_space<vmem>>, vector<16x128xf32>
    %c0_198 = arith.constant 0 : index
    %c0_199 = arith.constant 0 : index
    %308 = vector.load %arg4[%c0_198, %c0_199] : memref<128x512xbf16, #tpu.memory_space<vmem>>, vector<128x128xbf16>
    %cst_200 = arith.constant dense<0.000000e+00> : vector<16x128xf32>
    %309 = tpu.matmul %301, %308, %cst_200 {dimension_numbers = #tpu.dot_dimension_numbers<[1], [0], [0], [1], [0, 0, 1, 1], [], []>} : vector<16x128xbf16>, vector<128x128xbf16>, vector<16x128xf32> -> vector<16x128xf32>
    %310 = arith.addf %307, %309 : vector<16x128xf32>
    %cst_201 = arith.constant 5.000000e-01 : f32
    %311 = vector.broadcast %cst_201 : f32 to vector<16x128xf32>
    %312 = arith.mulf %311, %310 : vector<16x128xf32>
    %313 = math.tanh %312 : vector<16x128xf32>
    %cst_202 = arith.constant 5.000000e-01 : f32
    %314 = vector.broadcast %cst_202 : f32 to vector<16x128xf32>
    %315 = arith.mulf %314, %313 : vector<16x128xf32>
    %cst_203 = arith.constant 5.000000e-01 : f32
    %316 = vector.broadcast %cst_203 : f32 to vector<16x128xf32>
    %317 = arith.addf %315, %316 : vector<16x128xf32>
    %318 = arith.mulf %317, %306 : vector<16x128xf32>
    %c96_204 = arith.constant 96 : index
    %c128_205 = arith.constant 128 : index
    %319 = vector.load %arg9[%c96_204, %c128_205] : memref<128x512xf32, #tpu.memory_space<vmem>>, vector<16x128xf32>
    %c0_206 = arith.constant 0 : index
    %c128_207 = arith.constant 128 : index
    %320 = vector.load %arg4[%c0_206, %c128_207] : memref<128x512xbf16, #tpu.memory_space<vmem>>, vector<128x128xbf16>
    %cst_208 = arith.constant dense<0.000000e+00> : vector<16x128xf32>
    %321 = tpu.matmul %301, %320, %cst_208 {dimension_numbers = #tpu.dot_dimension_numbers<[1], [0], [0], [1], [0, 0, 1, 1], [], []>} : vector<16x128xbf16>, vector<128x128xbf16>, vector<16x128xf32> -> vector<16x128xf32>
    %322 = arith.addf %319, %321 : vector<16x128xf32>
    %cst_209 = arith.constant 5.000000e-01 : f32
    %323 = vector.broadcast %cst_209 : f32 to vector<16x128xf32>
    %324 = arith.mulf %323, %322 : vector<16x128xf32>
    %325 = math.tanh %324 : vector<16x128xf32>
    %cst_210 = arith.constant 5.000000e-01 : f32
    %326 = vector.broadcast %cst_210 : f32 to vector<16x128xf32>
    %327 = arith.mulf %326, %325 : vector<16x128xf32>
    %cst_211 = arith.constant 5.000000e-01 : f32
    %328 = vector.broadcast %cst_211 : f32 to vector<16x128xf32>
    %329 = arith.addf %327, %328 : vector<16x128xf32>
    %330 = arith.mulf %329, %283 : vector<16x128xf32>
    %331 = arith.addf %330, %318 : vector<16x128xf32>
    %c96_212 = arith.constant 96 : index
    %c384_213 = arith.constant 384 : index
    %332 = vector.load %arg9[%c96_212, %c384_213] : memref<128x512xf32, #tpu.memory_space<vmem>>, vector<16x128xf32>
    %c0_214 = arith.constant 0 : index
    %c384_215 = arith.constant 384 : index
    %333 = vector.load %arg4[%c0_214, %c384_215] : memref<128x512xbf16, #tpu.memory_space<vmem>>, vector<128x128xbf16>
    %cst_216 = arith.constant dense<0.000000e+00> : vector<16x128xf32>
    %334 = tpu.matmul %301, %333, %cst_216 {dimension_numbers = #tpu.dot_dimension_numbers<[1], [0], [0], [1], [0, 0, 1, 1], [], []>} : vector<16x128xbf16>, vector<128x128xbf16>, vector<16x128xf32> -> vector<16x128xf32>
    %335 = arith.addf %332, %334 : vector<16x128xf32>
    %cst_217 = arith.constant 5.000000e-01 : f32
    %336 = vector.broadcast %cst_217 : f32 to vector<16x128xf32>
    %337 = arith.mulf %336, %335 : vector<16x128xf32>
    %338 = math.tanh %337 : vector<16x128xf32>
    %cst_218 = arith.constant 5.000000e-01 : f32
    %339 = vector.broadcast %cst_218 : f32 to vector<16x128xf32>
    %340 = arith.mulf %339, %338 : vector<16x128xf32>
    %cst_219 = arith.constant 5.000000e-01 : f32
    %341 = vector.broadcast %cst_219 : f32 to vector<16x128xf32>
    %342 = arith.addf %340, %341 : vector<16x128xf32>
    %343 = math.tanh %331 : vector<16x128xf32>
    %344 = arith.mulf %342, %343 : vector<16x128xf32>
    %345 = arith.truncf %344 : vector<16x128xf32> to vector<16x128xbf16>
    %c6 = arith.constant 6 : index
    %c0_220 = arith.constant 0 : index
    %c0_221 = arith.constant 0 : index
    %346 = vector.load %arg6[%c6, %c0_220, %c0_221] : memref<8x16x128xbf16, #tpu.memory_space<vmem>>, vector<1x16x128xbf16>
    %347 = vector.shape_cast %346 : vector<1x16x128xbf16> to vector<16x128xbf16>
    %348 = vector.shape_cast %345 : vector<16x128xbf16> to vector<1x16x128xbf16>
    tpu.vector_store %arg6[%c6, %c0_220, %c0_221], %348 {strides = array<i32>} : memref<8x16x128xbf16, #tpu.memory_space<vmem>>, vector<1x16x128xbf16>,
    %349 = arith.truncf %344 : vector<16x128xf32> to vector<16x128xbf16>
    %c112 = arith.constant 112 : index
    %c256_222 = arith.constant 256 : index
    %350 = vector.load %arg9[%c112, %c256_222] : memref<128x512xf32, #tpu.memory_space<vmem>>, vector<16x128xf32>
    %c0_223 = arith.constant 0 : index
    %c256_224 = arith.constant 256 : index
    %351 = vector.load %arg4[%c0_223, %c256_224] : memref<128x512xbf16, #tpu.memory_space<vmem>>, vector<128x128xbf16>
    %cst_225 = arith.constant dense<0.000000e+00> : vector<16x128xf32>
    %352 = tpu.matmul %349, %351, %cst_225 {dimension_numbers = #tpu.dot_dimension_numbers<[1], [0], [0], [1], [0, 0, 1, 1], [], []>} : vector<16x128xbf16>, vector<128x128xbf16>, vector<16x128xf32> -> vector<16x128xf32>
    %353 = arith.addf %350, %352 : vector<16x128xf32>
    %354 = math.tanh %353 : vector<16x128xf32>
    %c112_226 = arith.constant 112 : index
    %c0_227 = arith.constant 0 : index
    %355 = vector.load %arg9[%c112_226, %c0_227] : memref<128x512xf32, #tpu.memory_space<vmem>>, vector<16x128xf32>
    %c0_228 = arith.constant 0 : index
    %c0_229 = arith.constant 0 : index
    %356 = vector.load %arg4[%c0_228, %c0_229] : memref<128x512xbf16, #tpu.memory_space<vmem>>, vector<128x128xbf16>
    %cst_230 = arith.constant dense<0.000000e+00> : vector<16x128xf32>
    %357 = tpu.matmul %349, %356, %cst_230 {dimension_numbers = #tpu.dot_dimension_numbers<[1], [0], [0], [1], [0, 0, 1, 1], [], []>} : vector<16x128xbf16>, vector<128x128xbf16>, vector<16x128xf32> -> vector<16x128xf32>
    %358 = arith.addf %355, %357 : vector<16x128xf32>
    %cst_231 = arith.constant 5.000000e-01 : f32
    %359 = vector.broadcast %cst_231 : f32 to vector<16x128xf32>
    %360 = arith.mulf %359, %358 : vector<16x128xf32>
    %361 = math.tanh %360 : vector<16x128xf32>
    %cst_232 = arith.constant 5.000000e-01 : f32
    %362 = vector.broadcast %cst_232 : f32 to vector<16x128xf32>
    %363 = arith.mulf %362, %361 : vector<16x128xf32>
    %cst_233 = arith.constant 5.000000e-01 : f32
    %364 = vector.broadcast %cst_233 : f32 to vector<16x128xf32>
    %365 = arith.addf %363, %364 : vector<16x128xf32>
    %366 = arith.mulf %365, %354 : vector<16x128xf32>
    %c112_234 = arith.constant 112 : index
    %c128_235 = arith.constant 128 : index
    %367 = vector.load %arg9[%c112_234, %c128_235] : memref<128x512xf32, #tpu.memory_space<vmem>>, vector<16x128xf32>
    %c0_236 = arith.constant 0 : index
    %c128_237 = arith.constant 128 : index
    %368 = vector.load %arg4[%c0_236, %c128_237] : memref<128x512xbf16, #tpu.memory_space<vmem>>, vector<128x128xbf16>
    %cst_238 = arith.constant dense<0.000000e+00> : vector<16x128xf32>
    %369 = tpu.matmul %349, %368, %cst_238 {dimension_numbers = #tpu.dot_dimension_numbers<[1], [0], [0], [1], [0, 0, 1, 1], [], []>} : vector<16x128xbf16>, vector<128x128xbf16>, vector<16x128xf32> -> vector<16x128xf32>
    %370 = arith.addf %367, %369 : vector<16x128xf32>
    %cst_239 = arith.constant 5.000000e-01 : f32
    %371 = vector.broadcast %cst_239 : f32 to vector<16x128xf32>
    %372 = arith.mulf %371, %370 : vector<16x128xf32>
    %373 = math.tanh %372 : vector<16x128xf32>
    %cst_240 = arith.constant 5.000000e-01 : f32
    %374 = vector.broadcast %cst_240 : f32 to vector<16x128xf32>
    %375 = arith.mulf %374, %373 : vector<16x128xf32>
    %cst_241 = arith.constant 5.000000e-01 : f32
    %376 = vector.broadcast %cst_241 : f32 to vector<16x128xf32>
    %377 = arith.addf %375, %376 : vector<16x128xf32>
    %378 = arith.mulf %377, %331 : vector<16x128xf32>
    %379 = arith.addf %378, %366 : vector<16x128xf32>
    %c112_242 = arith.constant 112 : index
    %c384_243 = arith.constant 384 : index
    %380 = vector.load %arg9[%c112_242, %c384_243] : memref<128x512xf32, #tpu.memory_space<vmem>>, vector<16x128xf32>
    %c0_244 = arith.constant 0 : index
    %c384_245 = arith.constant 384 : index
    %381 = vector.load %arg4[%c0_244, %c384_245] : memref<128x512xbf16, #tpu.memory_space<vmem>>, vector<128x128xbf16>
    %cst_246 = arith.constant dense<0.000000e+00> : vector<16x128xf32>
    %382 = tpu.matmul %349, %381, %cst_246 {dimension_numbers = #tpu.dot_dimension_numbers<[1], [0], [0], [1], [0, 0, 1, 1], [], []>} : vector<16x128xbf16>, vector<128x128xbf16>, vector<16x128xf32> -> vector<16x128xf32>
    %383 = arith.addf %380, %382 : vector<16x128xf32>
    %cst_247 = arith.constant 5.000000e-01 : f32
    %384 = vector.broadcast %cst_247 : f32 to vector<16x128xf32>
    %385 = arith.mulf %384, %383 : vector<16x128xf32>
    %386 = math.tanh %385 : vector<16x128xf32>
    %cst_248 = arith.constant 5.000000e-01 : f32
    %387 = vector.broadcast %cst_248 : f32 to vector<16x128xf32>
    %388 = arith.mulf %387, %386 : vector<16x128xf32>
    %cst_249 = arith.constant 5.000000e-01 : f32
    %389 = vector.broadcast %cst_249 : f32 to vector<16x128xf32>
    %390 = arith.addf %388, %389 : vector<16x128xf32>
    %391 = math.tanh %379 : vector<16x128xf32>
    %392 = arith.mulf %390, %391 : vector<16x128xf32>
    %393 = arith.truncf %392 : vector<16x128xf32> to vector<16x128xbf16>
    %c7 = arith.constant 7 : index
    %c0_250 = arith.constant 0 : index
    %c0_251 = arith.constant 0 : index
    %394 = vector.load %arg6[%c7, %c0_250, %c0_251] : memref<8x16x128xbf16, #tpu.memory_space<vmem>>, vector<1x16x128xbf16>
    %395 = vector.shape_cast %394 : vector<1x16x128xbf16> to vector<16x128xbf16>
    %396 = vector.shape_cast %393 : vector<16x128xbf16> to vector<1x16x128xbf16>
    tpu.vector_store %arg6[%c7, %c0_250, %c0_251], %396 {strides = array<i32>} : memref<8x16x128xbf16, #tpu.memory_space<vmem>>, vector<1x16x128xbf16>,
    %c0_252 = arith.constant 0 : index
    %c0_253 = arith.constant 0 : index
    %397 = vector.load %arg7[%c0_252, %c0_253] : memref<16x128xf32, #tpu.memory_space<vmem>>, vector<16x128xf32>
    tpu.vector_store %arg7[%c0_252, %c0_253], %392 {strides = array<i32>} : memref<16x128xf32, #tpu.memory_space<vmem>>, vector<16x128xf32>,
    %c0_254 = arith.constant 0 : index
    %c0_255 = arith.constant 0 : index
    %398 = vector.load %arg8[%c0_254, %c0_255] : memref<16x128xf32, #tpu.memory_space<vmem>>, vector<16x128xf32>
    tpu.vector_store %arg8[%c0_254, %c0_255], %379 {strides = array<i32>} : memref<16x128xf32, #tpu.memory_space<vmem>>, vector<16x128xf32>,
    return
  }
  func.func @transform_0(%arg0: i32, %arg1: i32) -> (i32, i32, i32) {
    %c0_i32 = arith.constant 0 : i32
    %c0_i32_0 = arith.constant 0 : i32
    return %arg1, %arg0, %c0_i32 : i32, i32, i32
  }
  func.func @transform_1(%arg0: i32, %arg1: i32) -> (i32, i32) {
    %c0_i32 = arith.constant 0 : i32
    %c0_i32_0 = arith.constant 0 : i32
    %c0_i32_1 = arith.constant 0 : i32
    return %c0_i32, %c0_i32_0 : i32, i32
  }
  func.func @transform_2(%arg0: i32, %arg1: i32) -> (i32, i32) {
    %c0_i32 = arith.constant 0 : i32
    %c0_i32_0 = arith.constant 0 : i32
    %c0_i32_1 = arith.constant 0 : i32
    return %c0_i32, %c0_i32_0 : i32, i32
  }
  func.func @transform_3(%arg0: i32, %arg1: i32) -> (i32, i32) {
    %c0_i32 = arith.constant 0 : i32
    %c0_i32_0 = arith.constant 0 : i32
    %c0_i32_1 = arith.constant 0 : i32
    return %c0_i32, %c0_i32_0 : i32, i32
  }
  func.func @transform_4(%arg0: i32, %arg1: i32) -> (i32, i32, i32) {
    %c0_i32 = arith.constant 0 : i32
    %c0_i32_0 = arith.constant 0 : i32
    return %arg1, %arg0, %c0_i32 : i32, i32, i32
  }
}

</mosaic_0001>

<llo_original>
// kernel: lstm_forward.3
$region0: #{lstm_forward.3}
  #allocation0 [shape = 'u32[]', space=smem, size = 0x4, offset = 0x4, fixed_abs, tag = 'smem constant byte address 0x4 - core index']
  #allocation1 [shape = 'u32[144,128]{1,0:T(1,128)}', space=vmem, size = 0x12000, scoped, tag = 'internal scratch']
  #allocation2 [shape = 'f32[16,128]{1,0:T(8,128)}', space=vmem, size = 0x2000, scoped, tag = 'scratch operand']
  #allocation3 [shape = 'f32[16,128]{1,0:T(8,128)}', space=vmem, size = 0x2000, scoped, tag = 'scratch operand']
  #allocation4 [shape = 'f32[128,512]{1,0:T(8,128)}', space=vmem, size = 0x40000, scoped, tag = 'scratch operand']
  %s0 = inlined_call_operand.vmem [shape: bf16[8,16,128], index: 0, kind: input, shape index: {}]
  %s1 = inlined_call_operand.vmem [shape: bf16[128,512], index: 1, kind: input, shape index: {}]
  %s2 = inlined_call_operand.vmem [shape: bf16[128,512], index: 2, kind: input, shape index: {}]
  %s3 = inlined_call_operand.vmem [shape: f32[1,512], index: 3, kind: input, shape index: {}]
  %s4 = inlined_call_operand.vmem [shape: f32[16,128], index: 4, kind: output, shape index: {}]
  %s5 = sld [smem:[#allocation0]]
  $region34: #{lstm_forward.3} parent=0
    _
  %s7 = ssub.s32 1, %s5
  %s8 = scalar_select 0, %s7, %s5
  // Predicated region
  $region2: #{lstm_forward.3} parent=0 // pred_check
    _
  $region3: #{lstm_forward.3} parent=0 // pred_check_branch
    %10 = sbr.rel (0) target = $region5
  $region4: #{lstm_forward.3} parent=0 // pred_region
    _
  $region5: #{lstm_forward.3} parent=0 // pred_fallthru
    _
  // Predicated region
  $region6: #{lstm_forward.3} parent=0 // pred_check
    _
  $region7: #{lstm_forward.3} parent=0 // pred_check_branch
    %12 = sbr.rel (0) target = $region9
  $region8: #{lstm_forward.3} parent=0 // pred_region
    _
  $region9: #{lstm_forward.3} parent=0 // pred_fallthru
    _
  // Predicated region
  $region10: #{lstm_forward.3} parent=0 // pred_check
    _
  $region11: #{lstm_forward.3} parent=0 // pred_check_branch
    %14 = sbr.rel (0) target = $region13
  $region12: #{lstm_forward.3} parent=0 // pred_region
    _
  $region13: #{lstm_forward.3} parent=0 // pred_fallthru
    _
  // Predicated region
  $region14: #{lstm_forward.3} parent=0 // pred_check
    _
  $region15: #{lstm_forward.3} parent=0 // pred_check_branch
    %16 = sbr.rel (0) target = $region17
  $region16: #{lstm_forward.3} parent=0 // pred_region
    _
  $region17: #{lstm_forward.3} parent=0 // pred_fallthru
    _
  %p18 = scmp.eq.s32.totalorder 0, 0
  // Predicated region
  $region18: #{lstm_forward.3} parent=0 // pred_check
    %p19 = pneg %p18
  $region19: #{lstm_forward.3} parent=0 // pred_check_branch
    %21 = sbr.rel (%p19) target = $region21
  $region20: #{lstm_forward.3} parent=0 // pred_region
    %22 = vst [vmem:[#allocation2] sm:$0xff] 0.0
    %23 = vst [vmem:[#allocation2 + $0x8] sm:$0xff] 0.0
    %24 = vst [vmem:[#allocation3] sm:$0xff] 0.0
    %25 = vst [vmem:[#allocation3 + $0x8] sm:$0xff] 0.0
  $region21: #{lstm_forward.3} parent=0 // pred_fallthru
    _
  %v26 = vld [vmem:[%s0] sm:$0xf]
  %v27 = vld [vmem:[%s0 + $0x4] sm:$0xf]
  %v28 = vld [vmem:[%s0 + $0x8] sm:$0xf]
  %v29 = vld [vmem:[%s0 + $0xc] sm:$0xf]
  %v30 = vld [vmem:[%s0 + $0x10] sm:$0xf]
  %v31 = vld [vmem:[%s0 + $0x14] sm:$0xf]
  %v32 = vld [vmem:[%s0 + $0x18] sm:$0xf]
  %v33 = vld [vmem:[%s0 + $0x1c] sm:$0xf]
  %v34 = vld [vmem:[%s0 + $0x20] sm:$0xf]
  %v35 = vld [vmem:[%s0 + $0x24] sm:$0xf]
  %v36 = vld [vmem:[%s0 + $0x28] sm:$0xf]
  %v37 = vld [vmem:[%s0 + $0x2c] sm:$0xf]
  %v38 = vld [vmem:[%s0 + $0x30] sm:$0xf]
  %v39 = vld [vmem:[%s0 + $0x34] sm:$0xf]
  %v40 = vld [vmem:[%s0 + $0x38] sm:$0xf]
  %v41 = vld [vmem:[%s0 + $0x3c] sm:$0xf]
  %v42 = vld [vmem:[%s1] sm:$0xff]
  %v43 = vld [vmem:[%s1 + $0x8] sm:$0xff]
  %v44 = vld [vmem:[%s1 + $0x10] sm:$0xff]
  %v45 = vld [vmem:[%s1 + $0x18] sm:$0xff]
  %v46 = vld [vmem:[%s1 + $0x20] sm:$0xff]
  %v47 = vld [vmem:[%s1 + $0x28] sm:$0xff]
  %v48 = vld [vmem:[%s1 + $0x30] sm:$0xff]
  %v49 = vld [vmem:[%s1 + $0x38] sm:$0xff]
  %v50 = vld [vmem:[%s1 + $0x40] sm:$0xff]
  %v51 = vld [vmem:[%s1 + $0x48] sm:$0xff]
  %v52 = vld [vmem:[%s1 + $0x50] sm:$0xff]
  %v53 = vld [vmem:[%s1 + $0x58] sm:$0xff]
  %v54 = vld [vmem:[%s1 + $0x60] sm:$0xff]
  %v55 = vld [vmem:[%s1 + $0x68] sm:$0xff]
  %v56 = vld [vmem:[%s1 + $0x70] sm:$0xff]
  %v57 = vld [vmem:[%s1 + $0x78] sm:$0xff]
  %v58 = vld [vmem:[%s1 + $0x80] sm:$0xff]
  %v59 = vld [vmem:[%s1 + $0x88] sm:$0xff]
  %v60 = vld [vmem:[%s1 + $0x90] sm:$0xff]
  %v61 = vld [vmem:[%s1 + $0x98] sm:$0xff]
  %v62 = vld [vmem:[%s1 + $0xa0] sm:$0xff]
  %v63 = vld [vmem:[%s1 + $0xa8] sm:$0xff]
  %v64 = vld [vmem:[%s1 + $0xb0] sm:$0xff]
  %v65 = vld [vmem:[%s1 + $0xb8] sm:$0xff]
  %v66 = vld [vmem:[%s1 + $0xc0] sm:$0xff]
  %v67 = vld [vmem:[%s1 + $0xc8] sm:$0xff]
  %v68 = vld [vmem:[%s1 + $0xd0] sm:$0xff]
  %v69 = vld [vmem:[%s1 + $0xd8] sm:$0xff]
  %v70 = vld [vmem:[%s1 + $0xe0] sm:$0xff]
  %v71 = vld [vmem:[%s1 + $0xe8] sm:$0xff]
  %v72 = vld [vmem:[%s1 + $0xf0] sm:$0xff]
  %v73 = vld [vmem:[%s1 + $0xf8] sm:$0xff]
  %v74 = vld [vmem:[%s3] sm:$0xf]
  %v76 = vlaneseq
  %v77 = vshrl.u32 %v76, 7
  %v78 = vsub.s32 0, %v77
  %v79 = vrot.slane %v74, %v78
  %v80 = vlaneseq
  %v81 = vshrl.u32 %v80, 7
  %v82 = vsub.s32 1, %v81
  %v83 = vrot.slane %v74, %v82
  %v84 = vlaneseq
  %v85 = vshrl.u32 %v84, 7
  %v86 = vsub.s32 2, %v85
  %v87 = vrot.slane %v74, %v86
  %v88 = vlaneseq
  %v89 = vshrl.u32 %v88, 7
  %v90 = vsub.s32 3, %v89
  %v91 = vrot.slane %v74, %v90
  %v112 = vunpack.c.l.b16 %v26
  %v113 = vunpack.c.l.b16 %v27
  %v114 = vunpack.c.l.b16 %v28
  %v115 = vunpack.c.l.b16 %v29
  %v116 = vunpack.c.l.b16 %v30
  %v117 = vunpack.c.l.b16 %v31
  %v118 = vunpack.c.l.b16 %v32
  %v119 = vunpack.c.l.b16 %v33
  %v120 = vunpack.c.l.b16 %v34
  %v121 = vunpack.c.l.b16 %v35
  %v122 = vunpack.c.l.b16 %v36
  %v123 = vunpack.c.l.b16 %v37
  %v124 = vunpack.c.l.b16 %v38
  %v125 = vunpack.c.l.b16 %v39
  %v126 = vunpack.c.l.b16 %v40
  %v127 = vunpack.c.l.b16 %v41
  %v128 = vpack.c.b16 %v113, %v112
  %v129 = vpack.c.b16 %v115, %v114
  %v130 = vpack.c.b16 %v117, %v116
  %v131 = vpack.c.b16 %v119, %v118
  %v132 = vpack.c.b16 %v121, %v120
  %v133 = vpack.c.b16 %v123, %v122
  %v134 = vpack.c.b16 %v125, %v124
  %v135 = vpack.c.b16 %v127, %v126
  %v176 = vunpack.c.l.b16 %v42
  %v177 = vunpack.c.h.b16 %v42
  %v178 = vunpack.c.l.b16 %v43
  %v179 = vunpack.c.h.b16 %v43
  %v180 = vunpack.c.l.b16 %v44
  %v181 = vunpack.c.h.b16 %v44
  %v182 = vunpack.c.l.b16 %v45
  %v183 = vunpack.c.h.b16 %v45
  %v184 = vunpack.c.l.b16 %v46
  %v185 = vunpack.c.h.b16 %v46
  %v186 = vunpack.c.l.b16 %v47
  %v187 = vunpack.c.h.b16 %v47
  %v188 = vunpack.c.l.b16 %v48
  %v189 = vunpack.c.h.b16 %v48
  %v190 = vunpack.c.l.b16 %v49
  %v191 = vunpack.c.h.b16 %v49
  %v192 = vunpack.c.l.b16 %v50
  %v193 = vunpack.c.h.b16 %v50
  %v194 = vunpack.c.l.b16 %v51
  %v195 = vunpack.c.h.b16 %v51
  %v196 = vunpack.c.l.b16 %v52
  %v197 = vunpack.c.h.b16 %v52
  %v198 = vunpack.c.l.b16 %v53
  %v199 = vunpack.c.h.b16 %v53
  %v200 = vunpack.c.l.b16 %v54
  %v201 = vunpack.c.h.b16 %v54
  %v202 = vunpack.c.l.b16 %v55
  %v203 = vunpack.c.h.b16 %v55
  %v204 = vunpack.c.l.b16 %v56
  %v205 = vunpack.c.h.b16 %v56
  %v206 = vunpack.c.l.b16 %v57
  %v207 = vunpack.c.h.b16 %v57
  %v208 = vunpack.c.l.b16 %v58
  %v209 = vunpack.c.h.b16 %v58
  %v210 = vunpack.c.l.b16 %v59
  %v211 = vunpack.c.h.b16 %v59
  %v212 = vunpack.c.l.b16 %v60
  %v213 = vunpack.c.h.b16 %v60
  %v214 = vunpack.c.l.b16 %v61
  %v215 = vunpack.c.h.b16 %v61
  %v216 = vunpack.c.l.b16 %v62
  %v217 = vunpack.c.h.b16 %v62
  %v218 = vunpack.c.l.b16 %v63
  %v219 = vunpack.c.h.b16 %v63
  %v220 = vunpack.c.l.b16 %v64
  %v221 = vunpack.c.h.b16 %v64
  %v222 = vunpack.c.l.b16 %v65
  %v223 = vunpack.c.h.b16 %v65
  %v224 = vunpack.c.l.b16 %v66
  %v225 = vunpack.c.h.b16 %v66
  %v226 = vunpack.c.l.b16 %v67
  %v227 = vunpack.c.h.b16 %v67
  %v228 = vunpack.c.l.b16 %v68
  %v229 = vunpack.c.h.b16 %v68
  %v230 = vunpack.c.l.b16 %v69
  %v231 = vunpack.c.h.b16 %v69
  %v232 = vunpack.c.l.b16 %v70
  %v233 = vunpack.c.h.b16 %v70
  %v234 = vunpack.c.l.b16 %v71
  %v235 = vunpack.c.h.b16 %v71
  %v236 = vunpack.c.l.b16 %v72
  %v237 = vunpack.c.h.b16 %v72
  %v238 = vunpack.c.l.b16 %v73
  %v239 = vunpack.c.h.b16 %v73
  %v240 = vpack.c.b16 %v180, %v176
  %v241 = vpack.c.b16 %v181, %v177
  %v242 = vpack.c.b16 %v182, %v178
  %v243 = vpack.c.b16 %v183, %v179
  %v244 = vpack.c.b16 %v188, %v184
  %v245 = vpack.c.b16 %v189, %v185
  %v246 = vpack.c.b16 %v190, %v186
  %v247 = vpack.c.b16 %v191, %v187
  %v248 = vpack.c.b16 %v196, %v192
  %v249 = vpack.c.b16 %v197, %v193
  %v250 = vpack.c.b16 %v198, %v194
  %v251 = vpack.c.b16 %v199, %v195
  %v252 = vpack.c.b16 %v204, %v200
  %v253 = vpack.c.b16 %v205, %v201
  %v254 = vpack.c.b16 %v206, %v202
  %v255 = vpack.c.b16 %v207, %v203
  %v256 = vpack.c.b16 %v212, %v208
  %v257 = vpack.c.b16 %v213, %v209
  %v258 = vpack.c.b16 %v214, %v210
  %v259 = vpack.c.b16 %v215, %v211
  %v260 = vpack.c.b16 %v220, %v216
  %v261 = vpack.c.b16 %v221, %v217
  %v262 = vpack.c.b16 %v222, %v218
  %v263 = vpack.c.b16 %v223, %v219
  %v264 = vpack.c.b16 %v228, %v224
  %v265 = vpack.c.b16 %v229, %v225
  %v266 = vpack.c.b16 %v230, %v226
  %v267 = vpack.c.b16 %v231, %v227
  %v268 = vpack.c.b16 %v236, %v232
  %v269 = vpack.c.b16 %v237, %v233
  %v270 = vpack.c.b16 %v238, %v234
  %v271 = vpack.c.b16 %v239, %v235
  %304 = vmatprep.subr.bf16.mxu0 %v241
  %305 = vmatpush1.bf16.msra.mxu0 %v240
  %306 = vmatprep.subr.bf16.mxu0 %v245
  %307 = vmatpush1.bf16.msra.mxu0 %v244
  %308 = vmatprep.subr.bf16.mxu0 %v249
  %309 = vmatpush1.bf16.msra.mxu0 %v248
  %310 = vmatprep.subr.bf16.mxu0 %v253
  %311 = vmatpush1.bf16.msra.mxu0 %v252
  %312 = vmatprep.subr.bf16.mxu0 %v257
  %313 = vmatpush1.bf16.msra.mxu0 %v256
  %314 = vmatprep.subr.bf16.mxu0 %v261
  %315 = vmatpush1.bf16.msra.mxu0 %v260
  %316 = vmatprep.subr.bf16.mxu0 %v265
  %317 = vmatpush1.bf16.msra.mxu0 %v264
  %318 = vmatprep.subr.bf16.mxu0 %v269
  %319 = vmatpush1.bf16.msra.mxu0 %v268
  %320 = vmatprep.subr.bf16.mxu0 0
  %321 = vmatpush1.bf16.msra.mxu0 0
  %322 = vmatprep.subr.bf16.mxu0 0
  %323 = vmatpush1.bf16.msra.mxu0 0
  %324 = vmatprep.subr.bf16.mxu0 0
  %325 = vmatpush1.bf16.msra.mxu0 0
  %326 = vmatprep.subr.bf16.mxu0 0
  %327 = vmatpush1.bf16.msra.mxu0 0
  %328 = vmatprep.subr.bf16.mxu0 0
  %329 = vmatpush1.bf16.msra.mxu0 0
  %330 = vmatprep.subr.bf16.mxu0 0
  %331 = vmatpush1.bf16.msra.mxu0 0
  %332 = vmatprep.subr.bf16.mxu0 0
  %333 = vmatpush1.bf16.msra.mxu0 0
  %334 = vmatprep.subr.bf16.mxu0 0
  %335 = vmatpush1.bf16.msra.mxu0 0
  %336 = vmatprep.mubr.bf16.mxu0 0
  %337 = vmatmul.mubr.bf16.gmra.mrb[0].mxu0 %v128
  %v338 = vpop.f32.mrb[0].mxu0
  %v339 = vadd.f32 %v79, %v338
  %v340 = vpop.f32.mrb[0].mxu0
  %v341 = vadd.f32 %v83, %v340
  %v342 = vpop.f32.mrb[0].mxu0
  %v343 = vadd.f32 %v79, %v342
  %v344 = vpop.f32.mrb[0].mxu0
  %v345 = vadd.f32 %v83, %v344
  %346 = vmatprep.mubr.bf16.mxu0 0
  %347 = vmatmul.mubr.bf16.gmra.mrb[0].mxu0 %v129
  %v348 = vpop.f32.mrb[0].mxu0
  %v349 = vadd.f32 %v79, %v348
  %v350 = vpop.f32.mrb[0].mxu0
  %v351 = vadd.f32 %v83, %v350
  %v352 = vpop.f32.mrb[0].mxu0
  %v353 = vadd.f32 %v79, %v352
  %v354 = vpop.f32.mrb[0].mxu0
  %v355 = vadd.f32 %v83, %v354
  %356 = vmatprep.mubr.bf16.mxu0 0
  %357 = vmatmul.mubr.bf16.gmra.mrb[0].mxu0 %v130
  %v358 = vpop.f32.mrb[0].mxu0
  %v359 = vadd.f32 %v79, %v358
  %v360 = vpop.f32.mrb[0].mxu0
  %v361 = vadd.f32 %v83, %v360
  %v362 = vpop.f32.mrb[0].mxu0
  %v363 = vadd.f32 %v79, %v362
  %v364 = vpop.f32.mrb[0].mxu0
  %v365 = vadd.f32 %v83, %v364
  %366 = vmatprep.mubr.bf16.mxu0 0
  %367 = vmatmul.mubr.bf16.gmra.mrb[0].mxu0 %v131
  %v368 = vpop.f32.mrb[0].mxu0
  %v369 = vadd.f32 %v79, %v368
  %v370 = vpop.f32.mrb[0].mxu0
  %v371 = vadd.f32 %v83, %v370
  %v372 = vpop.f32.mrb[0].mxu0
  %v373 = vadd.f32 %v79, %v372
  %v374 = vpop.f32.mrb[0].mxu0
  %v375 = vadd.f32 %v83, %v374
  %376 = vmatprep.mubr.bf16.mxu0 0
  %377 = vmatmul.mubr.bf16.gmra.mrb[0].mxu0 %v132
  %v378 = vpop.f32.mrb[0].mxu0
  %v379 = vadd.f32 %v79, %v378
  %v380 = vpop.f32.mrb[0].mxu0
  %v381 = vadd.f32 %v83, %v380
  %v382 = vpop.f32.mrb[0].mxu0
  %v383 = vadd.f32 %v79, %v382
  %v384 = vpop.f32.mrb[0].mxu0
  %v385 = vadd.f32 %v83, %v384
  %386 = vmatprep.mubr.bf16.mxu0 0
  %387 = vmatmul.mubr.bf16.gmra.mrb[0].mxu0 %v133
  %v388 = vpop.f32.mrb[0].mxu0
  %v389 = vadd.f32 %v79, %v388
  %v390 = vpop.f32.mrb[0].mxu0
  %v391 = vadd.f32 %v83, %v390
  %v392 = vpop.f32.mrb[0].mxu0
  %v393 = vadd.f32 %v79, %v392
  %v394 = vpop.f32.mrb[0].mxu0
  %v395 = vadd.f32 %v83, %v394
  %396 = vmatprep.mubr.bf16.mxu0 0
  %397 = vmatmul.mubr.bf16.gmra.mrb[0].mxu0 %v134
  %v398 = vpop.f32.mrb[0].mxu0
  %v399 = vadd.f32 %v79, %v398
  %v400 = vpop.f32.mrb[0].mxu0
  %v401 = vadd.f32 %v83, %v400
  %v402 = vpop.f32.mrb[0].mxu0
  %v403 = vadd.f32 %v79, %v402
  %v404 = vpop.f32.mrb[0].mxu0
  %v405 = vadd.f32 %v83, %v404
  %406 = vmatprep.mubr.bf16.mxu0 0
  %407 = vmatmul.mubr.bf16.gmra.mrb[0].mxu0 %v135
  %v408 = vpop.f32.mrb[0].mxu0
  %v409 = vadd.f32 %v79, %v408
  %v410 = vpop.f32.mrb[0].mxu0
  %v411 = vadd.f32 %v83, %v410
  %v412 = vpop.f32.mrb[0].mxu0
  %v413 = vadd.f32 %v79, %v412
  %v414 = vpop.f32.mrb[0].mxu0
  %v415 = vadd.f32 %v83, %v414
  %416 = vdwg.mxu0
  %417 = vmatprep.subr.bf16.mxu0 %v243
  %418 = vmatpush1.bf16.msra.mxu0 %v242
  %419 = vmatprep.subr.bf16.mxu0 %v247
  %420 = vmatpush1.bf16.msra.mxu0 %v246
  %421 = vmatprep.subr.bf16.mxu0 %v251
  %422 = vmatpush1.bf16.msra.mxu0 %v250
  %423 = vmatprep.subr.bf16.mxu0 %v255
  %424 = vmatpush1.bf16.msra.mxu0 %v254
  %425 = vmatprep.subr.bf16.mxu0 %v259
  %426 = vmatpush1.bf16.msra.mxu0 %v258
  %427 = vmatprep.subr.bf16.mxu0 %v263
  %428 = vmatpush1.bf16.msra.mxu0 %v262
  %429 = vmatprep.subr.bf16.mxu0 %v267
  %430 = vmatpush1.bf16.msra.mxu0 %v266
  %431 = vmatprep.subr.bf16.mxu0 %v271
  %432 = vmatpush1.bf16.msra.mxu0 %v270
  %433 = vmatprep.subr.bf16.mxu0 0
  %434 = vmatpush1.bf16.msra.mxu0 0
  %435 = vmatprep.subr.bf16.mxu0 0
  %436 = vmatpush1.bf16.msra.mxu0 0
  %437 = vmatprep.subr.bf16.mxu0 0
  %438 = vmatpush1.bf16.msra.mxu0 0
  %439 = vmatprep.subr.bf16.mxu0 0
  %440 = vmatpush1.bf16.msra.mxu0 0
  %441 = vmatprep.subr.bf16.mxu0 0
  %442 = vmatpush1.bf16.msra.mxu0 0
  %443 = vmatprep.subr.bf16.mxu0 0
  %444 = vmatpush1.bf16.msra.mxu0 0
  %445 = vmatprep.subr.bf16.mxu0 0
  %446 = vmatpush1.bf16.msra.mxu0 0
  %447 = vmatprep.subr.bf16.mxu0 0
  %448 = vmatpush1.bf16.msra.mxu0 0
  %449 = vmatprep.mubr.bf16.mxu0 0
  %450 = vmatmul.mubr.bf16.gmra.mrb[0].mxu0 %v128
  %v451 = vpop.f32.mrb[0].mxu0
  %v452 = vadd.f32 %v87, %v451
  %v453 = vpop.f32.mrb[0].mxu0
  %v454 = vadd.f32 %v91, %v453
  %v455 = vpop.f32.mrb[0].mxu0
  %v456 = vadd.f32 %v87, %v455
  %v457 = vpop.f32.mrb[0].mxu0
  %v458 = vadd.f32 %v91, %v457
  %459 = vmatprep.mubr.bf16.mxu0 0
  %460 = vmatmul.mubr.bf16.gmra.mrb[0].mxu0 %v129
  %v461 = vpop.f32.mrb[0].mxu0
  %v462 = vadd.f32 %v87, %v461
  %v463 = vpop.f32.mrb[0].mxu0
  %v464 = vadd.f32 %v91, %v463
  %v465 = vpop.f32.mrb[0].mxu0
  %v466 = vadd.f32 %v87, %v465
  %v467 = vpop.f32.mrb[0].mxu0
  %v468 = vadd.f32 %v91, %v467
  %469 = vmatprep.mubr.bf16.mxu0 0
  %470 = vmatmul.mubr.bf16.gmra.mrb[0].mxu0 %v130
  %v471 = vpop.f32.mrb[0].mxu0
  %v472 = vadd.f32 %v87, %v471
  %v473 = vpop.f32.mrb[0].mxu0
  %v474 = vadd.f32 %v91, %v473
  %v475 = vpop.f32.mrb[0].mxu0
  %v476 = vadd.f32 %v87, %v475
  %v477 = vpop.f32.mrb[0].mxu0
  %v478 = vadd.f32 %v91, %v477
  %479 = vmatprep.mubr.bf16.mxu0 0
  %480 = vmatmul.mubr.bf16.gmra.mrb[0].mxu0 %v131
  %v481 = vpop.f32.mrb[0].mxu0
  %v482 = vadd.f32 %v87, %v481
  %v483 = vpop.f32.mrb[0].mxu0
  %v484 = vadd.f32 %v91, %v483
  %v485 = vpop.f32.mrb[0].mxu0
  %v486 = vadd.f32 %v87, %v485
  %v487 = vpop.f32.mrb[0].mxu0
  %v488 = vadd.f32 %v91, %v487
  %489 = vmatprep.mubr.bf16.mxu0 0
  %490 = vmatmul.mubr.bf16.gmra.mrb[0].mxu0 %v132
  %v491 = vpop.f32.mrb[0].mxu0
  %v492 = vadd.f32 %v87, %v491
  %v493 = vpop.f32.mrb[0].mxu0
  %v494 = vadd.f32 %v91, %v493
  %v495 = vpop.f32.mrb[0].mxu0
  %v496 = vadd.f32 %v87, %v495
  %v497 = vpop.f32.mrb[0].mxu0
  %v498 = vadd.f32 %v91, %v497
  %499 = vmatprep.mubr.bf16.mxu0 0
  %500 = vmatmul.mubr.bf16.gmra.mrb[0].mxu0 %v133
  %v501 = vpop.f32.mrb[0].mxu0
  %v502 = vadd.f32 %v87, %v501
  %v503 = vpop.f32.mrb[0].mxu0
  %v504 = vadd.f32 %v91, %v503
  %v505 = vpop.f32.mrb[0].mxu0
  %v506 = vadd.f32 %v87, %v505
  %v507 = vpop.f32.mrb[0].mxu0
  %v508 = vadd.f32 %v91, %v507
  %509 = vmatprep.mubr.bf16.mxu0 0
  %510 = vmatmul.mubr.bf16.gmra.mrb[0].mxu0 %v134
  %v511 = vpop.f32.mrb[0].mxu0
  %v512 = vadd.f32 %v87, %v511
  %v513 = vpop.f32.mrb[0].mxu0
  %v514 = vadd.f32 %v91, %v513
  %v515 = vpop.f32.mrb[0].mxu0
  %v516 = vadd.f32 %v87, %v515
  %v517 = vpop.f32.mrb[0].mxu0
  %v518 = vadd.f32 %v91, %v517
  %519 = vmatprep.mubr.bf16.mxu0 0
  %520 = vmatmul.mubr.bf16.gmra.mrb[0].mxu0 %v135
  %v521 = vpop.f32.mrb[0].mxu0
  %v522 = vadd.f32 %v87, %v521
  %v523 = vpop.f32.mrb[0].mxu0
  %v524 = vadd.f32 %v91, %v523
  %v525 = vpop.f32.mrb[0].mxu0
  %v526 = vadd.f32 %v87, %v525
  %v527 = vpop.f32.mrb[0].mxu0
  %v528 = vadd.f32 %v91, %v527
  %529 = vdwg.mxu0
  %530 = vst [vmem:[#allocation4] sm:$0xff] %v339
  %531 = vst [vmem:[#allocation4 + $0x8] sm:$0xff] %v341
  %532 = vst [vmem:[#allocation4 + $0x10] sm:$0xff] %v452
  %533 = vst [vmem:[#allocation4 + $0x18] sm:$0xff] %v454
  %534 = vst [vmem:[#allocation4 + $0x20] sm:$0xff] %v343
  %535 = vst [vmem:[#allocation4 + $0x28] sm:$0xff] %v345
  %536 = vst [vmem:[#allocation4 + $0x30] sm:$0xff] %v456
  %537 = vst [vmem:[#allocation4 + $0x38] sm:$0xff] %v458
  %538 = vst [vmem:[#allocation4 + $0x40] sm:$0xff] %v349
  %539 = vst [vmem:[#allocation4 + $0x48] sm:$0xff] %v351
  %540 = vst [vmem:[#allocation4 + $0x50] sm:$0xff] %v462
  %541 = vst [vmem:[#allocation4 + $0x58] sm:$0xff] %v464
  %542 = vst [vmem:[#allocation4 + $0x60] sm:$0xff] %v353
  %543 = vst [vmem:[#allocation4 + $0x68] sm:$0xff] %v355
  %544 = vst [vmem:[#allocation4 + $0x70] sm:$0xff] %v466
  %545 = vst [vmem:[#allocation4 + $0x78] sm:$0xff] %v468
  %546 = vst [vmem:[#allocation4 + $0x80] sm:$0xff] %v359
  %547 = vst [vmem:[#allocation4 + $0x88] sm:$0xff] %v361
  %548 = vst [vmem:[#allocation4 + $0x90] sm:$0xff] %v472
  %549 = vst [vmem:[#allocation4 + $0x98] sm:$0xff] %v474
  %550 = vst [vmem:[#allocation4 + $0xa0] sm:$0xff] %v363
  %551 = vst [vmem:[#allocation4 + $0xa8] sm:$0xff] %v365
  %552 = vst [vmem:[#allocation4 + $0xb0] sm:$0xff] %v476
  %553 = vst [vmem:[#allocation4 + $0xb8] sm:$0xff] %v478
  %554 = vst [vmem:[#allocation4 + $0xc0] sm:$0xff] %v369
  %555 = vst [vmem:[#allocation4 + $0xc8] sm:$0xff] %v371
  %556 = vst [vmem:[#allocation4 + $0xd0] sm:$0xff] %v482
  %557 = vst [vmem:[#allocation4 + $0xd8] sm:$0xff] %v484
  %558 = vst [vmem:[#allocation4 + $0xe0] sm:$0xff] %v373
  %559 = vst [vmem:[#allocation4 + $0xe8] sm:$0xff] %v375
  %560 = vst [vmem:[#allocation4 + $0xf0] sm:$0xff] %v486
  %561 = vst [vmem:[#allocation4 + $0xf8] sm:$0xff] %v488
  %562 = vst [vmem:[#allocation4 + $0x100] sm:$0xff] %v379
  %563 = vst [vmem:[#allocation4 + $0x108] sm:$0xff] %v381
  %564 = vst [vmem:[#allocation4 + $0x110] sm:$0xff] %v492
  %565 = vst [vmem:[#allocation4 + $0x118] sm:$0xff] %v494
  %566 = vst [vmem:[#allocation4 + $0x120] sm:$0xff] %v383
  %567 = vst [vmem:[#allocation4 + $0x128] sm:$0xff] %v385
  %568 = vst [vmem:[#allocation4 + $0x130] sm:$0xff] %v496
  %569 = vst [vmem:[#allocation4 + $0x138] sm:$0xff] %v498
  %570 = vst [vmem:[#allocation4 + $0x140] sm:$0xff] %v389
  %571 = vst [vmem:[#allocation4 + $0x148] sm:$0xff] %v391
  %572 = vst [vmem:[#allocation4 + $0x150] sm:$0xff] %v502
  %573 = vst [vmem:[#allocation4 + $0x158] sm:$0xff] %v504
  %574 = vst [vmem:[#allocation4 + $0x160] sm:$0xff] %v393
  %575 = vst [vmem:[#allocation4 + $0x168] sm:$0xff] %v395
  %576 = vst [vmem:[#allocation4 + $0x170] sm:$0xff] %v506
  %577 = vst [vmem:[#allocation4 + $0x178] sm:$0xff] %v508
  %578 = vst [vmem:[#allocation4 + $0x180] sm:$0xff] %v399
  %579 = vst [vmem:[#allocation4 + $0x188] sm:$0xff] %v401
  %580 = vst [vmem:[#allocation4 + $0x190] sm:$0xff] %v512
  %581 = vst [vmem:[#allocation4 + $0x198] sm:$0xff] %v514
  %582 = vst [vmem:[#allocation4 + $0x1a0] sm:$0xff] %v403
  %583 = vst [vmem:[#allocation4 + $0x1a8] sm:$0xff] %v405
  %584 = vst [vmem:[#allocation4 + $0x1b0] sm:$0xff] %v516
  %585 = vst [vmem:[#allocation4 + $0x1b8] sm:$0xff] %v518
  %586 = vst [vmem:[#allocation4 + $0x1c0] sm:$0xff] %v409
  %587 = vst [vmem:[#allocation4 + $0x1c8] sm:$0xff] %v411
  %588 = vst [vmem:[#allocation4 + $0x1d0] sm:$0xff] %v522
  %589 = vst [vmem:[#allocation4 + $0x1d8] sm:$0xff] %v524
  %590 = vst [vmem:[#allocation4 + $0x1e0] sm:$0xff] %v413
  %591 = vst [vmem:[#allocation4 + $0x1e8] sm:$0xff] %v415
  %592 = vst [vmem:[#allocation4 + $0x1f0] sm:$0xff] %v526
  %593 = vst [vmem:[#allocation4 + $0x1f8] sm:$0xff] %v528
  %v594 = vld [vmem:[#allocation2] sm:$0xff]
  %v595 = vld [vmem:[#allocation2 + $0x8] sm:$0xff]
  %v596 = vld [vmem:[#allocation3] sm:$0xff]
  %v597 = vld [vmem:[#allocation3 + $0x8] sm:$0xff]
  %v598 = vpack.c.bf16 %v595, %v594
  %v599 = vld [vmem:[#allocation4 + $0x10] sm:$0xff]
  %v600 = vld [vmem:[#allocation4 + $0x30] sm:$0xff]
  %v601 = vld [vmem:[%s2 + $0x8] sm:$0xf]
  %v602 = vld [vmem:[%s2 + $0x18] sm:$0xf]
  %v603 = vld [vmem:[%s2 + $0x28] sm:$0xf]
  %v604 = vld [vmem:[%s2 + $0x38] sm:$0xf]
  %v605 = vld [vmem:[%s2 + $0x48] sm:$0xf]
  %v606 = vld [vmem:[%s2 + $0x58] sm:$0xf]
  %v607 = vld [vmem:[%s2 + $0x68] sm:$0xf]
  %v608 = vld [vmem:[%s2 + $0x78] sm:$0xf]
  %v609 = vld [vmem:[%s2 + $0x88] sm:$0xf]
  %v610 = vld [vmem:[%s2 + $0x98] sm:$0xf]
  %v611 = vld [vmem:[%s2 + $0xa8] sm:$0xf]
  %v612 = vld [vmem:[%s2 + $0xb8] sm:$0xf]
  %v613 = vld [vmem:[%s2 + $0xc8] sm:$0xf]
  %v614 = vld [vmem:[%s2 + $0xd8] sm:$0xf]
  %v615 = vld [vmem:[%s2 + $0xe8] sm:$0xf]
  %v616 = vld [vmem:[%s2 + $0xf8] sm:$0xf]
  %v633 = vunpack.c.l.b16 %v601
  %v634 = vunpack.c.l.b16 %v602
  %v635 = vunpack.c.l.b16 %v603
  %v636 = vunpack.c.l.b16 %v604
  %v637 = vunpack.c.l.b16 %v605
  %v638 = vunpack.c.l.b16 %v606
  %v639 = vunpack.c.l.b16 %v607
  %v640 = vunpack.c.l.b16 %v608
  %v641 = vunpack.c.l.b16 %v609
  %v642 = vunpack.c.l.b16 %v610
  %v643 = vunpack.c.l.b16 %v611
  %v644 = vunpack.c.l.b16 %v612
  %v645 = vunpack.c.l.b16 %v613
  %v646 = vunpack.c.l.b16 %v614
  %v647 = vunpack.c.l.b16 %v615
  %v648 = vunpack.c.l.b16 %v616
  %v649 = vpack.c.b16 %v634, %v633
  %v650 = vpack.c.b16 %v636, %v635
  %v651 = vpack.c.b16 %v638, %v637
  %v652 = vpack.c.b16 %v640, %v639
  %v653 = vpack.c.b16 %v642, %v641
  %v654 = vpack.c.b16 %v644, %v643
  %v655 = vpack.c.b16 %v646, %v645
  %v656 = vpack.c.b16 %v648, %v647
  %665 = vmatprep.subr.bf16.mxu0 0
  %666 = vmatpush1.bf16.msra.mxu0 %v649
  %667 = vmatprep.subr.bf16.mxu0 0
  %668 = vmatpush1.bf16.msra.mxu0 %v650
  %669 = vmatprep.subr.bf16.mxu0 0
  %670 = vmatpush1.bf16.msra.mxu0 %v651
  %671 = vmatprep.subr.bf16.mxu0 0
  %672 = vmatpush1.bf16.msra.mxu0 %v652
  %673 = vmatprep.subr.bf16.mxu0 0
  %674 = vmatpush1.bf16.msra.mxu0 %v653
  %675 = vmatprep.subr.bf16.mxu0 0
  %676 = vmatpush1.bf16.msra.mxu0 %v654
  %677 = vmatprep.subr.bf16.mxu0 0
  %678 = vmatpush1.bf16.msra.mxu0 %v655
  %679 = vmatprep.subr.bf16.mxu0 0
  %680 = vmatpush1.bf16.msra.mxu0 %v656
  %681 = vmatprep.subr.bf16.mxu0 0
  %682 = vmatpush1.bf16.msra.mxu0 0
  %683 = vmatprep.subr.bf16.mxu0 0
  %684 = vmatpush1.bf16.msra.mxu0 0
  %685 = vmatprep.subr.bf16.mxu0 0
  %686 = vmatpush1.bf16.msra.mxu0 0
  %687 = vmatprep.subr.bf16.mxu0 0
  %688 = vmatpush1.bf16.msra.mxu0 0
  %689 = vmatprep.subr.bf16.mxu0 0
  %690 = vmatpush1.bf16.msra.mxu0 0
  %691 = vmatprep.subr.bf16.mxu0 0
  %692 = vmatpush1.bf16.msra.mxu0 0
  %693 = vmatprep.subr.bf16.mxu0 0
  %694 = vmatpush1.bf16.msra.mxu0 0
  %695 = vmatprep.subr.bf16.mxu0 0
  %696 = vmatpush1.bf16.msra.mxu0 0
  %697 = vmatprep.mubr.bf16.mxu0 0
  %698 = vmatmul.mubr.bf16.gmra.mrb[0].mxu0 %v598
  %v699 = vpop.f32.mrb[0].mxu0
  %v700 = vadd.f32 0.0, %v699
  %v701 = vpop.f32.mrb[0].mxu0
  %v702 = vpop.f32.mrb[0].mxu0
  %v703 = vadd.f32 0.0, %v702
  %v704 = vpop.f32.mrb[0].mxu0
  %705 = vdwg.mxu0
  %v706 = vadd.f32 %v599, %v700
  %v707 = vadd.f32 %v600, %v703
  %v708 = vtanh.pop %v706
  %v709 = vtanh.pop %v707
  %v710 = vld [vmem:[#allocation4] sm:$0xff]
  %v711 = vld [vmem:[#allocation4 + $0x20] sm:$0xff]
  %v712 = vld [vmem:[%s2] sm:$0xf]
  %v713 = vld [vmem:[%s2 + $0x10] sm:$0xf]
  %v714 = vld [vmem:[%s2 + $0x20] sm:$0xf]
  %v715 = vld [vmem:[%s2 + $0x30] sm:$0xf]
  %v716 = vld [vmem:[%s2 + $0x40] sm:$0xf]
  %v717 = vld [vmem:[%s2 + $0x50] sm:$0xf]
  %v718 = vld [vmem:[%s2 + $0x60] sm:$0xf]
  %v719 = vld [vmem:[%s2 + $0x70] sm:$0xf]
  %v720 = vld [vmem:[%s2 + $0x80] sm:$0xf]
  %v721 = vld [vmem:[%s2 + $0x90] sm:$0xf]
  %v722 = vld [vmem:[%s2 + $0xa0] sm:$0xf]
  %v723 = vld [vmem:[%s2 + $0xb0] sm:$0xf]
  %v724 = vld [vmem:[%s2 + $0xc0] sm:$0xf]
  %v725 = vld [vmem:[%s2 + $0xd0] sm:$0xf]
  %v726 = vld [vmem:[%s2 + $0xe0] sm:$0xf]
  %v727 = vld [vmem:[%s2 + $0xf0] sm:$0xf]
  %v744 = vunpack.c.l.b16 %v712
  %v745 = vunpack.c.l.b16 %v713
  %v746 = vunpack.c.l.b16 %v714
  %v747 = vunpack.c.l.b16 %v715
  %v748 = vunpack.c.l.b16 %v716
  %v749 = vunpack.c.l.b16 %v717
  %v750 = vunpack.c.l.b16 %v718
  %v751 = vunpack.c.l.b16 %v719
  %v752 = vunpack.c.l.b16 %v720
  %v753 = vunpack.c.l.b16 %v721
  %v754 = vunpack.c.l.b16 %v722
  %v755 = vunpack.c.l.b16 %v723
  %v756 = vunpack.c.l.b16 %v724
  %v757 = vunpack.c.l.b16 %v725
  %v758 = vunpack.c.l.b16 %v726
  %v759 = vunpack.c.l.b16 %v727
  %v760 = vpack.c.b16 %v745, %v744
  %v761 = vpack.c.b16 %v747, %v746
  %v762 = vpack.c.b16 %v749, %v748
  %v763 = vpack.c.b16 %v751, %v750
  %v764 = vpack.c.b16 %v753, %v752
  %v765 = vpack.c.b16 %v755, %v754
  %v766 = vpack.c.b16 %v757, %v756
  %v767 = vpack.c.b16 %v759, %v758
  %776 = vmatprep.subr.bf16.mxu0 0
  %777 = vmatpush1.bf16.msra.mxu0 %v760
  %778 = vmatprep.subr.bf16.mxu0 0
  %779 = vmatpush1.bf16.msra.mxu0 %v761
  %780 = vmatprep.subr.bf16.mxu0 0
  %781 = vmatpush1.bf16.msra.mxu0 %v762
  %782 = vmatprep.subr.bf16.mxu0 0
  %783 = vmatpush1.bf16.msra.mxu0 %v763
  %784 = vmatprep.subr.bf16.mxu0 0
  %785 = vmatpush1.bf16.msra.mxu0 %v764
  %786 = vmatprep.subr.bf16.mxu0 0
  %787 = vmatpush1.bf16.msra.mxu0 %v765
  %788 = vmatprep.subr.bf16.mxu0 0
  %789 = vmatpush1.bf16.msra.mxu0 %v766
  %790 = vmatprep.subr.bf16.mxu0 0
  %791 = vmatpush1.bf16.msra.mxu0 %v767
  %792 = vmatprep.subr.bf16.mxu0 0
  %793 = vmatpush1.bf16.msra.mxu0 0
  %794 = vmatprep.subr.bf16.mxu0 0
  %795 = vmatpush1.bf16.msra.mxu0 0
  %796 = vmatprep.subr.bf16.mxu0 0
  %797 = vmatpush1.bf16.msra.mxu0 0
  %798 = vmatprep.subr.bf16.mxu0 0
  %799 = vmatpush1.bf16.msra.mxu0 0
  %800 = vmatprep.subr.bf16.mxu0 0
  %801 = vmatpush1.bf16.msra.mxu0 0
  %802 = vmatprep.subr.bf16.mxu0 0
  %803 = vmatpush1.bf16.msra.mxu0 0
  %804 = vmatprep.subr.bf16.mxu0 0
  %805 = vmatpush1.bf16.msra.mxu0 0
  %806 = vmatprep.subr.bf16.mxu0 0
  %807 = vmatpush1.bf16.msra.mxu0 0
  %808 = vmatprep.mubr.bf16.mxu0 0
  %809 = vmatmul.mubr.bf16.gmra.mrb[0].mxu0 %v598
  %v810 = vpop.f32.mrb[0].mxu0
  %v811 = vadd.f32 0.0, %v810
  %v812 = vpop.f32.mrb[0].mxu0
  %v813 = vpop.f32.mrb[0].mxu0
  %v814 = vadd.f32 0.0, %v813
  %v815 = vpop.f32.mrb[0].mxu0
  %816 = vdwg.mxu0
  %v817 = vadd.f32 %v710, %v811
  %v818 = vadd.f32 %v711, %v814
  %v819 = vmul.f32 %v817, 0.5
  %v820 = vmul.f32 %v818, 0.5
  %v821 = vtanh.pop %v819
  %v822 = vtanh.pop %v820
  %v823 = vmul.f32 %v821, 0.5
  %v824 = vmul.f32 %v822, 0.5
  %v825 = vadd.f32 %v823, 0.5
  %v826 = vadd.f32 %v824, 0.5
  %v827 = vmul.f32 %v825, %v708
  %v828 = vmul.f32 %v826, %v709
  %v829 = vld [vmem:[#allocation4 + $0x8] sm:$0xff]
  %v830 = vld [vmem:[#allocation4 + $0x28] sm:$0xff]
  %v831 = vld [vmem:[%s2 + $0x4] sm:$0xf]
  %v832 = vld [vmem:[%s2 + $0x14] sm:$0xf]
  %v833 = vld [vmem:[%s2 + $0x24] sm:$0xf]
  %v834 = vld [vmem:[%s2 + $0x34] sm:$0xf]
  %v835 = vld [vmem:[%s2 + $0x44] sm:$0xf]
  %v836 = vld [vmem:[%s2 + $0x54] sm:$0xf]
  %v837 = vld [vmem:[%s2 + $0x64] sm:$0xf]
  %v838 = vld [vmem:[%s2 + $0x74] sm:$0xf]
  %v839 = vld [vmem:[%s2 + $0x84] sm:$0xf]
  %v840 = vld [vmem:[%s2 + $0x94] sm:$0xf]
  %v841 = vld [vmem:[%s2 + $0xa4] sm:$0xf]
  %v842 = vld [vmem:[%s2 + $0xb4] sm:$0xf]
  %v843 = vld [vmem:[%s2 + $0xc4] sm:$0xf]
  %v844 = vld [vmem:[%s2 + $0xd4] sm:$0xf]
  %v845 = vld [vmem:[%s2 + $0xe4] sm:$0xf]
  %v846 = vld [vmem:[%s2 + $0xf4] sm:$0xf]
  %v863 = vunpack.c.l.b16 %v831
  %v864 = vunpack.c.l.b16 %v832
  %v865 = vunpack.c.l.b16 %v833
  %v866 = vunpack.c.l.b16 %v834
  %v867 = vunpack.c.l.b16 %v835
  %v868 = vunpack.c.l.b16 %v836
  %v869 = vunpack.c.l.b16 %v837
  %v870 = vunpack.c.l.b16 %v838
  %v871 = vunpack.c.l.b16 %v839
  %v872 = vunpack.c.l.b16 %v840
  %v873 = vunpack.c.l.b16 %v841
  %v874 = vunpack.c.l.b16 %v842
  %v875 = vunpack.c.l.b16 %v843
  %v876 = vunpack.c.l.b16 %v844
  %v877 = vunpack.c.l.b16 %v845
  %v878 = vunpack.c.l.b16 %v846
  %v879 = vpack.c.b16 %v864, %v863
  %v880 = vpack.c.b16 %v866, %v865
  %v881 = vpack.c.b16 %v868, %v867
  %v882 = vpack.c.b16 %v870, %v869
  %v883 = vpack.c.b16 %v872, %v871
  %v884 = vpack.c.b16 %v874, %v873
  %v885 = vpack.c.b16 %v876, %v875
  %v886 = vpack.c.b16 %v878, %v877
  %895 = vmatprep.subr.bf16.mxu0 0
  %896 = vmatpush1.bf16.msra.mxu0 %v879
  %897 = vmatprep.subr.bf16.mxu0 0
  %898 = vmatpush1.bf16.msra.mxu0 %v880
  %899 = vmatprep.subr.bf16.mxu0 0
  %900 = vmatpush1.bf16.msra.mxu0 %v881
  %901 = vmatprep.subr.bf16.mxu0 0
  %902 = vmatpush1.bf16.msra.mxu0 %v882
  %903 = vmatprep.subr.bf16.mxu0 0
  %904 = vmatpush1.bf16.msra.mxu0 %v883
  %905 = vmatprep.subr.bf16.mxu0 0
  %906 = vmatpush1.bf16.msra.mxu0 %v884
  %907 = vmatprep.subr.bf16.mxu0 0
  %908 = vmatpush1.bf16.msra.mxu0 %v885
  %909 = vmatprep.subr.bf16.mxu0 0
  %910 = vmatpush1.bf16.msra.mxu0 %v886
  %911 = vmatprep.subr.bf16.mxu0 0
  %912 = vmatpush1.bf16.msra.mxu0 0
  %913 = vmatprep.subr.bf16.mxu0 0
  %914 = vmatpush1.bf16.msra.mxu0 0
  %915 = vmatprep.subr.bf16.mxu0 0
  %916 = vmatpush1.bf16.msra.mxu0 0
  %917 = vmatprep.subr.bf16.mxu0 0
  %918 = vmatpush1.bf16.msra.mxu0 0
  %919 = vmatprep.subr.bf16.mxu0 0
  %920 = vmatpush1.bf16.msra.mxu0 0
  %921 = vmatprep.subr.bf16.mxu0 0
  %922 = vmatpush1.bf16.msra.mxu0 0
  %923 = vmatprep.subr.bf16.mxu0 0
  %924 = vmatpush1.bf16.msra.mxu0 0
  %925 = vmatprep.subr.bf16.mxu0 0
  %926 = vmatpush1.bf16.msra.mxu0 0
  %927 = vmatprep.mubr.bf16.mxu0 0
  %928 = vmatmul.mubr.bf16.gmra.mrb[0].mxu0 %v598
  %v929 = vpop.f32.mrb[0].mxu0
  %v930 = vadd.f32 0.0, %v929
  %v931 = vpop.f32.mrb[0].mxu0
  %v932 = vpop.f32.mrb[0].mxu0
  %v933 = vadd.f32 0.0, %v932
  %v934 = vpop.f32.mrb[0].mxu0
  %935 = vdwg.mxu0
  %v936 = vadd.f32 %v829, %v930
  %v937 = vadd.f32 %v830, %v933
  %v938 = vmul.f32 %v936, 0.5
  %v939 = vmul.f32 %v937, 0.5
  %v940 = vtanh.pop %v938
  %v941 = vtanh.pop %v939
  %v942 = vmul.f32 %v940, 0.5
  %v943 = vmul.f32 %v941, 0.5
  %v944 = vadd.f32 %v942, 0.5
  %v945 = vadd.f32 %v943, 0.5
  %v946 = vmul.f32 %v944, %v596
  %v947 = vmul.f32 %v945, %v597
  %v948 = vadd.f32 %v946, %v827
  %v949 = vadd.f32 %v947, %v828
  %v950 = vld [vmem:[#allocation4 + $0x18] sm:$0xff]
  %v951 = vld [vmem:[#allocation4 + $0x38] sm:$0xff]
  %v952 = vld [vmem:[%s2 + $0xc] sm:$0xf]
  %v953 = vld [vmem:[%s2 + $0x1c] sm:$0xf]
  %v954 = vld [vmem:[%s2 + $0x2c] sm:$0xf]
  %v955 = vld [vmem:[%s2 + $0x3c] sm:$0xf]
  %v956 = vld [vmem:[%s2 + $0x4c] sm:$0xf]
  %v957 = vld [vmem:[%s2 + $0x5c] sm:$0xf]
  %v958 = vld [vmem:[%s2 + $0x6c] sm:$0xf]
  %v959 = vld [vmem:[%s2 + $0x7c] sm:$0xf]
  %v960 = vld [vmem:[%s2 + $0x8c] sm:$0xf]
  %v961 = vld [vmem:[%s2 + $0x9c] sm:$0xf]
  %v962 = vld [vmem:[%s2 + $0xac] sm:$0xf]
  %v963 = vld [vmem:[%s2 + $0xbc] sm:$0xf]
  %v964 = vld [vmem:[%s2 + $0xcc] sm:$0xf]
  %v965 = vld [vmem:[%s2 + $0xdc] sm:$0xf]
  %v966 = vld [vmem:[%s2 + $0xec] sm:$0xf]
  %v967 = vld [vmem:[%s2 + $0xfc] sm:$0xf]
  %v984 = vunpack.c.l.b16 %v952
  %v985 = vunpack.c.l.b16 %v953
  %v986 = vunpack.c.l.b16 %v954
  %v987 = vunpack.c.l.b16 %v955
  %v988 = vunpack.c.l.b16 %v956
  %v989 = vunpack.c.l.b16 %v957
  %v990 = vunpack.c.l.b16 %v958
  %v991 = vunpack.c.l.b16 %v959
  %v992 = vunpack.c.l.b16 %v960
  %v993 = vunpack.c.l.b16 %v961
  %v994 = vunpack.c.l.b16 %v962
  %v995 = vunpack.c.l.b16 %v963
  %v996 = vunpack.c.l.b16 %v964
  %v997 = vunpack.c.l.b16 %v965
  %v998 = vunpack.c.l.b16 %v966
  %v999 = vunpack.c.l.b16 %v967
  %v1000 = vpack.c.b16 %v985, %v984
  %v1001 = vpack.c.b16 %v987, %v986
  %v1002 = vpack.c.b16 %v989, %v988
  %v1003 = vpack.c.b16 %v991, %v990
  %v1004 = vpack.c.b16 %v993, %v992
  %v1005 = vpack.c.b16 %v995, %v994
  %v1006 = vpack.c.b16 %v997, %v996
  %v1007 = vpack.c.b16 %v999, %v998
  %1016 = vmatprep.subr.bf16.mxu0 0
  %1017 = vmatpush1.bf16.msra.mxu0 %v1000
  %1018 = vmatprep.subr.bf16.mxu0 0
  %1019 = vmatpush1.bf16.msra.mxu0 %v1001
  %1020 = vmatprep.subr.bf16.mxu0 0
  %1021 = vmatpush1.bf16.msra.mxu0 %v1002
  %1022 = vmatprep.subr.bf16.mxu0 0
  %1023 = vmatpush1.bf16.msra.mxu0 %v1003
  %1024 = vmatprep.subr.bf16.mxu0 0
  %1025 = vmatpush1.bf16.msra.mxu0 %v1004
  %1026 = vmatprep.subr.bf16.mxu0 0
  %1027 = vmatpush1.bf16.msra.mxu0 %v1005
  %1028 = vmatprep.subr.bf16.mxu0 0
  %1029 = vmatpush1.bf16.msra.mxu0 %v1006
  %1030 = vmatprep.subr.bf16.mxu0 0
  %1031 = vmatpush1.bf16.msra.mxu0 %v1007
  %1032 = vmatprep.subr.bf16.mxu0 0
  %1033 = vmatpush1.bf16.msra.mxu0 0
  %1034 = vmatprep.subr.bf16.mxu0 0
  %1035 = vmatpush1.bf16.msra.mxu0 0
  %1036 = vmatprep.subr.bf16.mxu0 0
  %1037 = vmatpush1.bf16.msra.mxu0 0
  %1038 = vmatprep.subr.bf16.mxu0 0
  %1039 = vmatpush1.bf16.msra.mxu0 0
  %1040 = vmatprep.subr.bf16.mxu0 0
  %1041 = vmatpush1.bf16.msra.mxu0 0
  %1042 = vmatprep.subr.bf16.mxu0 0
  %1043 = vmatpush1.bf16.msra.mxu0 0
  %1044 = vmatprep.subr.bf16.mxu0 0
  %1045 = vmatpush1.bf16.msra.mxu0 0
  %1046 = vmatprep.subr.bf16.mxu0 0
  %1047 = vmatpush1.bf16.msra.mxu0 0
  %1048 = vmatprep.mubr.bf16.mxu0 0
  %1049 = vmatmul.mubr.bf16.gmra.mrb[0].mxu0 %v598
  %v1050 = vpop.f32.mrb[0].mxu0
  %v1051 = vadd.f32 0.0, %v1050
  %v1052 = vpop.f32.mrb[0].mxu0
  %v1053 = vpop.f32.mrb[0].mxu0
  %v1054 = vadd.f32 0.0, %v1053
  %v1055 = vpop.f32.mrb[0].mxu0
  %1056 = vdwg.mxu0
  %v1057 = vadd.f32 %v950, %v1051
  %v1058 = vadd.f32 %v951, %v1054
  %v1059 = vmul.f32 %v1057, 0.5
  %v1060 = vmul.f32 %v1058, 0.5
  %v1061 = vtanh.pop %v1059
  %v1062 = vtanh.pop %v1060
  %v1063 = vmul.f32 %v1061, 0.5
  %v1064 = vmul.f32 %v1062, 0.5
  %v1065 = vadd.f32 %v1063, 0.5
  %v1066 = vadd.f32 %v1064, 0.5
  %v1067 = vtanh.pop %v948
  %v1068 = vtanh.pop %v949
  %v1069 = vmul.f32 %v1065, %v1067
  %v1070 = vmul.f32 %v1066, %v1068
  %v1071 = vpack.c.bf16 %v1070, %v1069
  %v1072 = vld [vmem:[#allocation4 + $0x50] sm:$0xff]
  %v1073 = vld [vmem:[#allocation4 + $0x70] sm:$0xff]
  %1074 = vmatprep.subr.bf16.mxu0 0
  %1075 = vmatpush1.bf16.msra.mxu0 %v649
  %1076 = vmatprep.subr.bf16.mxu0 0
  %1077 = vmatpush1.bf16.msra.mxu0 %v650
  %1078 = vmatprep.subr.bf16.mxu0 0
  %1079 = vmatpush1.bf16.msra.mxu0 %v651
  %1080 = vmatprep.subr.bf16.mxu0 0
  %1081 = vmatpush1.bf16.msra.mxu0 %v652
  %1082 = vmatprep.subr.bf16.mxu0 0
  %1083 = vmatpush1.bf16.msra.mxu0 %v653
  %1084 = vmatprep.subr.bf16.mxu0 0
  %1085 = vmatpush1.bf16.msra.mxu0 %v654
  %1086 = vmatprep.subr.bf16.mxu0 0
  %1087 = vmatpush1.bf16.msra.mxu0 %v655
  %1088 = vmatprep.subr.bf16.mxu0 0
  %1089 = vmatpush1.bf16.msra.mxu0 %v656
  %1090 = vmatprep.subr.bf16.mxu0 0
  %1091 = vmatpush1.bf16.msra.mxu0 0
  %1092 = vmatprep.subr.bf16.mxu0 0
  %1093 = vmatpush1.bf16.msra.mxu0 0
  %1094 = vmatprep.subr.bf16.mxu0 0
  %1095 = vmatpush1.bf16.msra.mxu0 0
  %1096 = vmatprep.subr.bf16.mxu0 0
  %1097 = vmatpush1.bf16.msra.mxu0 0
  %1098 = vmatprep.subr.bf16.mxu0 0
  %1099 = vmatpush1.bf16.msra.mxu0 0
  %1100 = vmatprep.subr.bf16.mxu0 0
  %1101 = vmatpush1.bf16.msra.mxu0 0
  %1102 = vmatprep.subr.bf16.mxu0 0
  %1103 = vmatpush1.bf16.msra.mxu0 0
  %1104 = vmatprep.subr.bf16.mxu0 0
  %1105 = vmatpush1.bf16.msra.mxu0 0
  %1106 = vmatprep.mubr.bf16.mxu0 0
  %1107 = vmatmul.mubr.bf16.gmra.mrb[0].mxu0 %v1071
  %v1108 = vpop.f32.mrb[0].mxu0
  %v1109 = vadd.f32 0.0, %v1108
  %v1110 = vpop.f32.mrb[0].mxu0
  %v1111 = vpop.f32.mrb[0].mxu0
  %v1112 = vadd.f32 0.0, %v1111
  %v1113 = vpop.f32.mrb[0].mxu0
  %1114 = vdwg.mxu0
  %v1115 = vadd.f32 %v1072, %v1109
  %v1116 = vadd.f32 %v1073, %v1112
  %v1117 = vtanh.pop %v1115
  %v1118 = vtanh.pop %v1116
  %v1119 = vld [vmem:[#allocation4 + $0x40] sm:$0xff]
  %v1120 = vld [vmem:[#allocation4 + $0x60] sm:$0xff]
  %1121 = vmatprep.subr.bf16.mxu0 0
  %1122 = vmatpush1.bf16.msra.mxu0 %v760
  %1123 = vmatprep.subr.bf16.mxu0 0
  %1124 = vmatpush1.bf16.msra.mxu0 %v761
  %1125 = vmatprep.subr.bf16.mxu0 0
  %1126 = vmatpush1.bf16.msra.mxu0 %v762
  %1127 = vmatprep.subr.bf16.mxu0 0
  %1128 = vmatpush1.bf16.msra.mxu0 %v763
  %1129 = vmatprep.subr.bf16.mxu0 0
  %1130 = vmatpush1.bf16.msra.mxu0 %v764
  %1131 = vmatprep.subr.bf16.mxu0 0
  %1132 = vmatpush1.bf16.msra.mxu0 %v765
  %1133 = vmatprep.subr.bf16.mxu0 0
  %1134 = vmatpush1.bf16.msra.mxu0 %v766
  %1135 = vmatprep.subr.bf16.mxu0 0
  %1136 = vmatpush1.bf16.msra.mxu0 %v767
  %1137 = vmatprep.subr.bf16.mxu0 0
  %1138 = vmatpush1.bf16.msra.mxu0 0
  %1139 = vmatprep.subr.bf16.mxu0 0
  %1140 = vmatpush1.bf16.msra.mxu0 0
  %1141 = vmatprep.subr.bf16.mxu0 0
  %1142 = vmatpush1.bf16.msra.mxu0 0
  %1143 = vmatprep.subr.bf16.mxu0 0
  %1144 = vmatpush1.bf16.msra.mxu0 0
  %1145 = vmatprep.subr.bf16.mxu0 0
  %1146 = vmatpush1.bf16.msra.mxu0 0
  %1147 = vmatprep.subr.bf16.mxu0 0
  %1148 = vmatpush1.bf16.msra.mxu0 0
  %1149 = vmatprep.subr.bf16.mxu0 0
  %1150 = vmatpush1.bf16.msra.mxu0 0
  %1151 = vmatprep.subr.bf16.mxu0 0
  %1152 = vmatpush1.bf16.msra.mxu0 0
  %1153 = vmatprep.mubr.bf16.mxu0 0
  %1154 = vmatmul.mubr.bf16.gmra.mrb[0].mxu0 %v1071
  %v1155 = vpop.f32.mrb[0].mxu0
  %v1156 = vadd.f32 0.0, %v1155
  %v1157 = vpop.f32.mrb[0].mxu0
  %v1158 = vpop.f32.mrb[0].mxu0
  %v1159 = vadd.f32 0.0, %v1158
  %v1160 = vpop.f32.mrb[0].mxu0
  %1161 = vdwg.mxu0
  %v1162 = vadd.f32 %v1119, %v1156
  %v1163 = vadd.f32 %v1120, %v1159
  %v1164 = vmul.f32 %v1162, 0.5
  %v1165 = vmul.f32 %v1163, 0.5
  %v1166 = vtanh.pop %v1164
  %v1167 = vtanh.pop %v1165
  %v1168 = vmul.f32 %v1166, 0.5
  %v1169 = vmul.f32 %v1167, 0.5
  %v1170 = vadd.f32 %v1168, 0.5
  %v1171 = vadd.f32 %v1169, 0.5
  %v1172 = vmul.f32 %v1170, %v1117
  %v1173 = vmul.f32 %v1171, %v1118
  %v1174 = vld [vmem:[#allocation4 + $0x48] sm:$0xff]
  %v1175 = vld [vmem:[#allocation4 + $0x68] sm:$0xff]
  %1176 = vmatprep.subr.bf16.mxu0 0
  %1177 = vmatpush1.bf16.msra.mxu0 %v879
  %1178 = vmatprep.subr.bf16.mxu0 0
  %1179 = vmatpush1.bf16.msra.mxu0 %v880
  %1180 = vmatprep.subr.bf16.mxu0 0
  %1181 = vmatpush1.bf16.msra.mxu0 %v881
  %1182 = vmatprep.subr.bf16.mxu0 0
  %1183 = vmatpush1.bf16.msra.mxu0 %v882
  %1184 = vmatprep.subr.bf16.mxu0 0
  %1185 = vmatpush1.bf16.msra.mxu0 %v883
  %1186 = vmatprep.subr.bf16.mxu0 0
  %1187 = vmatpush1.bf16.msra.mxu0 %v884
  %1188 = vmatprep.subr.bf16.mxu0 0
  %1189 = vmatpush1.bf16.msra.mxu0 %v885
  %1190 = vmatprep.subr.bf16.mxu0 0
  %1191 = vmatpush1.bf16.msra.mxu0 %v886
  %1192 = vmatprep.subr.bf16.mxu0 0
  %1193 = vmatpush1.bf16.msra.mxu0 0
  %1194 = vmatprep.subr.bf16.mxu0 0
  %1195 = vmatpush1.bf16.msra.mxu0 0
  %1196 = vmatprep.subr.bf16.mxu0 0
  %1197 = vmatpush1.bf16.msra.mxu0 0
  %1198 = vmatprep.subr.bf16.mxu0 0
  %1199 = vmatpush1.bf16.msra.mxu0 0
  %1200 = vmatprep.subr.bf16.mxu0 0
  %1201 = vmatpush1.bf16.msra.mxu0 0
  %1202 = vmatprep.subr.bf16.mxu0 0
  %1203 = vmatpush1.bf16.msra.mxu0 0
  %1204 = vmatprep.subr.bf16.mxu0 0
  %1205 = vmatpush1.bf16.msra.mxu0 0
  %1206 = vmatprep.subr.bf16.mxu0 0
  %1207 = vmatpush1.bf16.msra.mxu0 0
  %1208 = vmatprep.mubr.bf16.mxu0 0
  %1209 = vmatmul.mubr.bf16.gmra.mrb[0].mxu0 %v1071
  %v1210 = vpop.f32.mrb[0].mxu0
  %v1211 = vadd.f32 0.0, %v1210
  %v1212 = vpop.f32.mrb[0].mxu0
  %v1213 = vpop.f32.mrb[0].mxu0
  %v1214 = vadd.f32 0.0, %v1213
  %v1215 = vpop.f32.mrb[0].mxu0
  %1216 = vdwg.mxu0
  %v1217 = vadd.f32 %v1174, %v1211
  %v1218 = vadd.f32 %v1175, %v1214
  %v1219 = vmul.f32 %v1217, 0.5
  %v1220 = vmul.f32 %v1218, 0.5
  %v1221 = vtanh.pop %v1219
  %v1222 = vtanh.pop %v1220
  %v1223 = vmul.f32 %v1221, 0.5
  %v1224 = vmul.f32 %v1222, 0.5
  %v1225 = vadd.f32 %v1223, 0.5
  %v1226 = vadd.f32 %v1224, 0.5
  %v1227 = vmul.f32 %v1225, %v948
  %v1228 = vmul.f32 %v1226, %v949
  %v1229 = vadd.f32 %v1227, %v1172
  %v1230 = vadd.f32 %v1228, %v1173
  %v1231 = vld [vmem:[#allocation4 + $0x58] sm:$0xff]
  %v1232 = vld [vmem:[#allocation4 + $0x78] sm:$0xff]
  %1233 = vmatprep.subr.bf16.mxu0 0
  %1234 = vmatpush1.bf16.msra.mxu0 %v1000
  %1235 = vmatprep.subr.bf16.mxu0 0
  %1236 = vmatpush1.bf16.msra.mxu0 %v1001
  %1237 = vmatprep.subr.bf16.mxu0 0
  %1238 = vmatpush1.bf16.msra.mxu0 %v1002
  %1239 = vmatprep.subr.bf16.mxu0 0
  %1240 = vmatpush1.bf16.msra.mxu0 %v1003
  %1241 = vmatprep.subr.bf16.mxu0 0
  %1242 = vmatpush1.bf16.msra.mxu0 %v1004
  %1243 = vmatprep.subr.bf16.mxu0 0
  %1244 = vmatpush1.bf16.msra.mxu0 %v1005
  %1245 = vmatprep.subr.bf16.mxu0 0
  %1246 = vmatpush1.bf16.msra.mxu0 %v1006
  %1247 = vmatprep.subr.bf16.mxu0 0
  %1248 = vmatpush1.bf16.msra.mxu0 %v1007
  %1249 = vmatprep.subr.bf16.mxu0 0
  %1250 = vmatpush1.bf16.msra.mxu0 0
  %1251 = vmatprep.subr.bf16.mxu0 0
  %1252 = vmatpush1.bf16.msra.mxu0 0
  %1253 = vmatprep.subr.bf16.mxu0 0
  %1254 = vmatpush1.bf16.msra.mxu0 0
  %1255 = vmatprep.subr.bf16.mxu0 0
  %1256 = vmatpush1.bf16.msra.mxu0 0
  %1257 = vmatprep.subr.bf16.mxu0 0
  %1258 = vmatpush1.bf16.msra.mxu0 0
  %1259 = vmatprep.subr.bf16.mxu0 0
  %1260 = vmatpush1.bf16.msra.mxu0 0
  %1261 = vmatprep.subr.bf16.mxu0 0
  %1262 = vmatpush1.bf16.msra.mxu0 0
  %1263 = vmatprep.subr.bf16.mxu0 0
  %1264 = vmatpush1.bf16.msra.mxu0 0
  %1265 = vmatprep.mubr.bf16.mxu0 0
  %1266 = vmatmul.mubr.bf16.gmra.mrb[0].mxu0 %v1071
  %v1267 = vpop.f32.mrb[0].mxu0
  %v1268 = vadd.f32 0.0, %v1267
  %v1269 = vpop.f32.mrb[0].mxu0
  %v1270 = vpop.f32.mrb[0].mxu0
  %v1271 = vadd.f32 0.0, %v1270
  %v1272 = vpop.f32.mrb[0].mxu0
  %1273 = vdwg.mxu0
  %v1274 = vadd.f32 %v1231, %v1268
  %v1275 = vadd.f32 %v1232, %v1271
  %v1276 = vmul.f32 %v1274, 0.5
  %v1277 = vmul.f32 %v1275, 0.5
  %v1278 = vtanh.pop %v1276
  %v1279 = vtanh.pop %v1277
  %v1280 = vmul.f32 %v1278, 0.5
  %v1281 = vmul.f32 %v1279, 0.5
  %v1282 = vadd.f32 %v1280, 0.5
  %v1283 = vadd.f32 %v1281, 0.5
  %v1284 = vtanh.pop %v1229
  %v1285 = vtanh.pop %v1230
  %v1286 = vmul.f32 %v1282, %v1284
  %v1287 = vmul.f32 %v1283, %v1285
  %v1288 = vpack.c.bf16 %v1287, %v1286
  %v1289 = vld [vmem:[#allocation4 + $0x90] sm:$0xff]
  %v1290 = vld [vmem:[#allocation4 + $0xb0] sm:$0xff]
  %1291 = vmatprep.subr.bf16.mxu0 0
  %1292 = vmatpush1.bf16.msra.mxu0 %v649
  %1293 = vmatprep.subr.bf16.mxu0 0
  %1294 = vmatpush1.bf16.msra.mxu0 %v650
  %1295 = vmatprep.subr.bf16.mxu0 0
  %1296 = vmatpush1.bf16.msra.mxu0 %v651
  %1297 = vmatprep.subr.bf16.mxu0 0
  %1298 = vmatpush1.bf16.msra.mxu0 %v652
  %1299 = vmatprep.subr.bf16.mxu0 0
  %1300 = vmatpush1.bf16.msra.mxu0 %v653
  %1301 = vmatprep.subr.bf16.mxu0 0
  %1302 = vmatpush1.bf16.msra.mxu0 %v654
  %1303 = vmatprep.subr.bf16.mxu0 0
  %1304 = vmatpush1.bf16.msra.mxu0 %v655
  %1305 = vmatprep.subr.bf16.mxu0 0
  %1306 = vmatpush1.bf16.msra.mxu0 %v656
  %1307 = vmatprep.subr.bf16.mxu0 0
  %1308 = vmatpush1.bf16.msra.mxu0 0
  %1309 = vmatprep.subr.bf16.mxu0 0
  %1310 = vmatpush1.bf16.msra.mxu0 0
  %1311 = vmatprep.subr.bf16.mxu0 0
  %1312 = vmatpush1.bf16.msra.mxu0 0
  %1313 = vmatprep.subr.bf16.mxu0 0
  %1314 = vmatpush1.bf16.msra.mxu0 0
  %1315 = vmatprep.subr.bf16.mxu0 0
  %1316 = vmatpush1.bf16.msra.mxu0 0
  %1317 = vmatprep.subr.bf16.mxu0 0
  %1318 = vmatpush1.bf16.msra.mxu0 0
  %1319 = vmatprep.subr.bf16.mxu0 0
  %1320 = vmatpush1.bf16.msra.mxu0 0
  %1321 = vmatprep.subr.bf16.mxu0 0
  %1322 = vmatpush1.bf16.msra.mxu0 0
  %1323 = vmatprep.mubr.bf16.mxu0 0
  %1324 = vmatmul.mubr.bf16.gmra.mrb[0].mxu0 %v1288
  %v1325 = vpop.f32.mrb[0].mxu0
  %v1326 = vadd.f32 0.0, %v1325
  %v1327 = vpop.f32.mrb[0].mxu0
  %v1328 = vpop.f32.mrb[0].mxu0
  %v1329 = vadd.f32 0.0, %v1328
  %v1330 = vpop.f32.mrb[0].mxu0
  %1331 = vdwg.mxu0
  %v1332 = vadd.f32 %v1289, %v1326
  %v1333 = vadd.f32 %v1290, %v1329
  %v1334 = vtanh.pop %v1332
  %v1335 = vtanh.pop %v1333
  %v1336 = vld [vmem:[#allocation4 + $0x80] sm:$0xff]
  %v1337 = vld [vmem:[#allocation4 + $0xa0] sm:$0xff]
  %1338 = vmatprep.subr.bf16.mxu0 0
  %1339 = vmatpush1.bf16.msra.mxu0 %v760
  %1340 = vmatprep.subr.bf16.mxu0 0
  %1341 = vmatpush1.bf16.msra.mxu0 %v761
  %1342 = vmatprep.subr.bf16.mxu0 0
  %1343 = vmatpush1.bf16.msra.mxu0 %v762
  %1344 = vmatprep.subr.bf16.mxu0 0
  %1345 = vmatpush1.bf16.msra.mxu0 %v763
  %1346 = vmatprep.subr.bf16.mxu0 0
  %1347 = vmatpush1.bf16.msra.mxu0 %v764
  %1348 = vmatprep.subr.bf16.mxu0 0
  %1349 = vmatpush1.bf16.msra.mxu0 %v765
  %1350 = vmatprep.subr.bf16.mxu0 0
  %1351 = vmatpush1.bf16.msra.mxu0 %v766
  %1352 = vmatprep.subr.bf16.mxu0 0
  %1353 = vmatpush1.bf16.msra.mxu0 %v767
  %1354 = vmatprep.subr.bf16.mxu0 0
  %1355 = vmatpush1.bf16.msra.mxu0 0
  %1356 = vmatprep.subr.bf16.mxu0 0
  %1357 = vmatpush1.bf16.msra.mxu0 0
  %1358 = vmatprep.subr.bf16.mxu0 0
  %1359 = vmatpush1.bf16.msra.mxu0 0
  %1360 = vmatprep.subr.bf16.mxu0 0
  %1361 = vmatpush1.bf16.msra.mxu0 0
  %1362 = vmatprep.subr.bf16.mxu0 0
  %1363 = vmatpush1.bf16.msra.mxu0 0
  %1364 = vmatprep.subr.bf16.mxu0 0
  %1365 = vmatpush1.bf16.msra.mxu0 0
  %1366 = vmatprep.subr.bf16.mxu0 0
  %1367 = vmatpush1.bf16.msra.mxu0 0
  %1368 = vmatprep.subr.bf16.mxu0 0
  %1369 = vmatpush1.bf16.msra.mxu0 0
  %1370 = vmatprep.mubr.bf16.mxu0 0
  %1371 = vmatmul.mubr.bf16.gmra.mrb[0].mxu0 %v1288
  %v1372 = vpop.f32.mrb[0].mxu0
  %v1373 = vadd.f32 0.0, %v1372
  %v1374 = vpop.f32.mrb[0].mxu0
  %v1375 = vpop.f32.mrb[0].mxu0
  %v1376 = vadd.f32 0.0, %v1375
  %v1377 = vpop.f32.mrb[0].mxu0
  %1378 = vdwg.mxu0
  %v1379 = vadd.f32 %v1336, %v1373
  %v1380 = vadd.f32 %v1337, %v1376
  %v1381 = vmul.f32 %v1379, 0.5
  %v1382 = vmul.f32 %v1380, 0.5
  %v1383 = vtanh.pop %v1381
  %v1384 = vtanh.pop %v1382
  %v1385 = vmul.f32 %v1383, 0.5
  %v1386 = vmul.f32 %v1384, 0.5
  %v1387 = vadd.f32 %v1385, 0.5
  %v1388 = vadd.f32 %v1386, 0.5
  %v1389 = vmul.f32 %v1387, %v1334
  %v1390 = vmul.f32 %v1388, %v1335
  %v1391 = vld [vmem:[#allocation4 + $0x88] sm:$0xff]
  %v1392 = vld [vmem:[#allocation4 + $0xa8] sm:$0xff]
  %1393 = vmatprep.subr.bf16.mxu0 0
  %1394 = vmatpush1.bf16.msra.mxu0 %v879
  %1395 = vmatprep.subr.bf16.mxu0 0
  %1396 = vmatpush1.bf16.msra.mxu0 %v880
  %1397 = vmatprep.subr.bf16.mxu0 0
  %1398 = vmatpush1.bf16.msra.mxu0 %v881
  %1399 = vmatprep.subr.bf16.mxu0 0
  %1400 = vmatpush1.bf16.msra.mxu0 %v882
  %1401 = vmatprep.subr.bf16.mxu0 0
  %1402 = vmatpush1.bf16.msra.mxu0 %v883
  %1403 = vmatprep.subr.bf16.mxu0 0
  %1404 = vmatpush1.bf16.msra.mxu0 %v884
  %1405 = vmatprep.subr.bf16.mxu0 0
  %1406 = vmatpush1.bf16.msra.mxu0 %v885
  %1407 = vmatprep.subr.bf16.mxu0 0
  %1408 = vmatpush1.bf16.msra.mxu0 %v886
  %1409 = vmatprep.subr.bf16.mxu0 0
  %1410 = vmatpush1.bf16.msra.mxu0 0
  %1411 = vmatprep.subr.bf16.mxu0 0
  %1412 = vmatpush1.bf16.msra.mxu0 0
  %1413 = vmatprep.subr.bf16.mxu0 0
  %1414 = vmatpush1.bf16.msra.mxu0 0
  %1415 = vmatprep.subr.bf16.mxu0 0
  %1416 = vmatpush1.bf16.msra.mxu0 0
  %1417 = vmatprep.subr.bf16.mxu0 0
  %1418 = vmatpush1.bf16.msra.mxu0 0
  %1419 = vmatprep.subr.bf16.mxu0 0
  %1420 = vmatpush1.bf16.msra.mxu0 0
  %1421 = vmatprep.subr.bf16.mxu0 0
  %1422 = vmatpush1.bf16.msra.mxu0 0
  %1423 = vmatprep.subr.bf16.mxu0 0
  %1424 = vmatpush1.bf16.msra.mxu0 0
  %1425 = vmatprep.mubr.bf16.mxu0 0
  %1426 = vmatmul.mubr.bf16.gmra.mrb[0].mxu0 %v1288
  %v1427 = vpop.f32.mrb[0].mxu0
  %v1428 = vadd.f32 0.0, %v1427
  %v1429 = vpop.f32.mrb[0].mxu0
  %v1430 = vpop.f32.mrb[0].mxu0
  %v1431 = vadd.f32 0.0, %v1430
  %v1432 = vpop.f32.mrb[0].mxu0
  %1433 = vdwg.mxu0
  %v1434 = vadd.f32 %v1391, %v1428
  %v1435 = vadd.f32 %v1392, %v1431
  %v1436 = vmul.f32 %v1434, 0.5
  %v1437 = vmul.f32 %v1435, 0.5
  %v1438 = vtanh.pop %v1436
  %v1439 = vtanh.pop %v1437
  %v1440 = vmul.f32 %v1438, 0.5
  %v1441 = vmul.f32 %v1439, 0.5
  %v1442 = vadd.f32 %v1440, 0.5
  %v1443 = vadd.f32 %v1441, 0.5
  %v1444 = vmul.f32 %v1442, %v1229
  %v1445 = vmul.f32 %v1443, %v1230
  %v1446 = vadd.f32 %v1444, %v1389
  %v1447 = vadd.f32 %v1445, %v1390
  %v1448 = vld [vmem:[#allocation4 + $0x98] sm:$0xff]
  %v1449 = vld [vmem:[#allocation4 + $0xb8] sm:$0xff]
  %1450 = vmatprep.subr.bf16.mxu0 0
  %1451 = vmatpush1.bf16.msra.mxu0 %v1000
  %1452 = vmatprep.subr.bf16.mxu0 0
  %1453 = vmatpush1.bf16.msra.mxu0 %v1001
  %1454 = vmatprep.subr.bf16.mxu0 0
  %1455 = vmatpush1.bf16.msra.mxu0 %v1002
  %1456 = vmatprep.subr.bf16.mxu0 0
  %1457 = vmatpush1.bf16.msra.mxu0 %v1003
  %1458 = vmatprep.subr.bf16.mxu0 0
  %1459 = vmatpush1.bf16.msra.mxu0 %v1004
  %1460 = vmatprep.subr.bf16.mxu0 0
  %1461 = vmatpush1.bf16.msra.mxu0 %v1005
  %1462 = vmatprep.subr.bf16.mxu0 0
  %1463 = vmatpush1.bf16.msra.mxu0 %v1006
  %1464 = vmatprep.subr.bf16.mxu0 0
  %1465 = vmatpush1.bf16.msra.mxu0 %v1007
  %1466 = vmatprep.subr.bf16.mxu0 0
  %1467 = vmatpush1.bf16.msra.mxu0 0
  %1468 = vmatprep.subr.bf16.mxu0 0
  %1469 = vmatpush1.bf16.msra.mxu0 0
  %1470 = vmatprep.subr.bf16.mxu0 0
  %1471 = vmatpush1.bf16.msra.mxu0 0
  %1472 = vmatprep.subr.bf16.mxu0 0
  %1473 = vmatpush1.bf16.msra.mxu0 0
  %1474 = vmatprep.subr.bf16.mxu0 0
  %1475 = vmatpush1.bf16.msra.mxu0 0
  %1476 = vmatprep.subr.bf16.mxu0 0
  %1477 = vmatpush1.bf16.msra.mxu0 0
  %1478 = vmatprep.subr.bf16.mxu0 0
  %1479 = vmatpush1.bf16.msra.mxu0 0
  %1480 = vmatprep.subr.bf16.mxu0 0
  %1481 = vmatpush1.bf16.msra.mxu0 0
  %1482 = vmatprep.mubr.bf16.mxu0 0
  %1483 = vmatmul.mubr.bf16.gmra.mrb[0].mxu0 %v1288
  %v1484 = vpop.f32.mrb[0].mxu0
  %v1485 = vadd.f32 0.0, %v1484
  %v1486 = vpop.f32.mrb[0].mxu0
  %v1487 = vpop.f32.mrb[0].mxu0
  %v1488 = vadd.f32 0.0, %v1487
  %v1489 = vpop.f32.mrb[0].mxu0
  %1490 = vdwg.mxu0
  %v1491 = vadd.f32 %v1448, %v1485
  %v1492 = vadd.f32 %v1449, %v1488
  %v1493 = vmul.f32 %v1491, 0.5
  %v1494 = vmul.f32 %v1492, 0.5
  %v1495 = vtanh.pop %v1493
  %v1496 = vtanh.pop %v1494
  %v1497 = vmul.f32 %v1495, 0.5
  %v1498 = vmul.f32 %v1496, 0.5
  %v1499 = vadd.f32 %v1497, 0.5
  %v1500 = vadd.f32 %v1498, 0.5
  %v1501 = vtanh.pop %v1446
  %v1502 = vtanh.pop %v1447
  %v1503 = vmul.f32 %v1499, %v1501
  %v1504 = vmul.f32 %v1500, %v1502
  %v1505 = vpack.c.bf16 %v1504, %v1503
  %v1506 = vld [vmem:[#allocation4 + $0xd0] sm:$0xff]
  %v1507 = vld [vmem:[#allocation4 + $0xf0] sm:$0xff]
  %1508 = vmatprep.subr.bf16.mxu0 0
  %1509 = vmatpush1.bf16.msra.mxu0 %v649
  %1510 = vmatprep.subr.bf16.mxu0 0
  %1511 = vmatpush1.bf16.msra.mxu0 %v650
  %1512 = vmatprep.subr.bf16.mxu0 0
  %1513 = vmatpush1.bf16.msra.mxu0 %v651
  %1514 = vmatprep.subr.bf16.mxu0 0
  %1515 = vmatpush1.bf16.msra.mxu0 %v652
  %1516 = vmatprep.subr.bf16.mxu0 0
  %1517 = vmatpush1.bf16.msra.mxu0 %v653
  %1518 = vmatprep.subr.bf16.mxu0 0
  %1519 = vmatpush1.bf16.msra.mxu0 %v654
  %1520 = vmatprep.subr.bf16.mxu0 0
  %1521 = vmatpush1.bf16.msra.mxu0 %v655
  %1522 = vmatprep.subr.bf16.mxu0 0
  %1523 = vmatpush1.bf16.msra.mxu0 %v656
  %1524 = vmatprep.subr.bf16.mxu0 0
  %1525 = vmatpush1.bf16.msra.mxu0 0
  %1526 = vmatprep.subr.bf16.mxu0 0
  %1527 = vmatpush1.bf16.msra.mxu0 0
  %1528 = vmatprep.subr.bf16.mxu0 0
  %1529 = vmatpush1.bf16.msra.mxu0 0
  %1530 = vmatprep.subr.bf16.mxu0 0
  %1531 = vmatpush1.bf16.msra.mxu0 0
  %1532 = vmatprep.subr.bf16.mxu0 0
  %1533 = vmatpush1.bf16.msra.mxu0 0
  %1534 = vmatprep.subr.bf16.mxu0 0
  %1535 = vmatpush1.bf16.msra.mxu0 0
  %1536 = vmatprep.subr.bf16.mxu0 0
  %1537 = vmatpush1.bf16.msra.mxu0 0
  %1538 = vmatprep.subr.bf16.mxu0 0
  %1539 = vmatpush1.bf16.msra.mxu0 0
  %1540 = vmatprep.mubr.bf16.mxu0 0
  %1541 = vmatmul.mubr.bf16.gmra.mrb[0].mxu0 %v1505
  %v1542 = vpop.f32.mrb[0].mxu0
  %v1543 = vadd.f32 0.0, %v1542
  %v1544 = vpop.f32.mrb[0].mxu0
  %v1545 = vpop.f32.mrb[0].mxu0
  %v1546 = vadd.f32 0.0, %v1545
  %v1547 = vpop.f32.mrb[0].mxu0
  %1548 = vdwg.mxu0
  %v1549 = vadd.f32 %v1506, %v1543
  %v1550 = vadd.f32 %v1507, %v1546
  %v1551 = vtanh.pop %v1549
  %v1552 = vtanh.pop %v1550
  %v1553 = vld [vmem:[#allocation4 + $0xc0] sm:$0xff]
  %v1554 = vld [vmem:[#allocation4 + $0xe0] sm:$0xff]
  %1555 = vmatprep.subr.bf16.mxu0 0
  %1556 = vmatpush1.bf16.msra.mxu0 %v760
  %1557 = vmatprep.subr.bf16.mxu0 0
  %1558 = vmatpush1.bf16.msra.mxu0 %v761
  %1559 = vmatprep.subr.bf16.mxu0 0
  %1560 = vmatpush1.bf16.msra.mxu0 %v762
  %1561 = vmatprep.subr.bf16.mxu0 0
  %1562 = vmatpush1.bf16.msra.mxu0 %v763
  %1563 = vmatprep.subr.bf16.mxu0 0
  %1564 = vmatpush1.bf16.msra.mxu0 %v764
  %1565 = vmatprep.subr.bf16.mxu0 0
  %1566 = vmatpush1.bf16.msra.mxu0 %v765
  %1567 = vmatprep.subr.bf16.mxu0 0
  %1568 = vmatpush1.bf16.msra.mxu0 %v766
  %1569 = vmatprep.subr.bf16.mxu0 0
  %1570 = vmatpush1.bf16.msra.mxu0 %v767
  %1571 = vmatprep.subr.bf16.mxu0 0
  %1572 = vmatpush1.bf16.msra.mxu0 0
  %1573 = vmatprep.subr.bf16.mxu0 0
  %1574 = vmatpush1.bf16.msra.mxu0 0
  %1575 = vmatprep.subr.bf16.mxu0 0
  %1576 = vmatpush1.bf16.msra.mxu0 0
  %1577 = vmatprep.subr.bf16.mxu0 0
  %1578 = vmatpush1.bf16.msra.mxu0 0
  %1579 = vmatprep.subr.bf16.mxu0 0
  %1580 = vmatpush1.bf16.msra.mxu0 0
  %1581 = vmatprep.subr.bf16.mxu0 0
  %1582 = vmatpush1.bf16.msra.mxu0 0
  %1583 = vmatprep.subr.bf16.mxu0 0
  %1584 = vmatpush1.bf16.msra.mxu0 0
  %1585 = vmatprep.subr.bf16.mxu0 0
  %1586 = vmatpush1.bf16.msra.mxu0 0
  %1587 = vmatprep.mubr.bf16.mxu0 0
  %1588 = vmatmul.mubr.bf16.gmra.mrb[0].mxu0 %v1505
  %v1589 = vpop.f32.mrb[0].mxu0
  %v1590 = vadd.f32 0.0, %v1589
  %v1591 = vpop.f32.mrb[0].mxu0
  %v1592 = vpop.f32.mrb[0].mxu0
  %v1593 = vadd.f32 0.0, %v1592
  %v1594 = vpop.f32.mrb[0].mxu0
  %1595 = vdwg.mxu0
  %v1596 = vadd.f32 %v1553, %v1590
  %v1597 = vadd.f32 %v1554, %v1593
  %v1598 = vmul.f32 %v1596, 0.5
  %v1599 = vmul.f32 %v1597, 0.5
  %v1600 = vtanh.pop %v1598
  %v1601 = vtanh.pop %v1599
  %v1602 = vmul.f32 %v1600, 0.5
  %v1603 = vmul.f32 %v1601, 0.5
  %v1604 = vadd.f32 %v1602, 0.5
  %v1605 = vadd.f32 %v1603, 0.5
  %v1606 = vmul.f32 %v1604, %v1551
  %v1607 = vmul.f32 %v1605, %v1552
  %v1608 = vld [vmem:[#allocation4 + $0xc8] sm:$0xff]
  %v1609 = vld [vmem:[#allocation4 + $0xe8] sm:$0xff]
  %1610 = vmatprep.subr.bf16.mxu0 0
  %1611 = vmatpush1.bf16.msra.mxu0 %v879
  %1612 = vmatprep.subr.bf16.mxu0 0
  %1613 = vmatpush1.bf16.msra.mxu0 %v880
  %1614 = vmatprep.subr.bf16.mxu0 0
  %1615 = vmatpush1.bf16.msra.mxu0 %v881
  %1616 = vmatprep.subr.bf16.mxu0 0
  %1617 = vmatpush1.bf16.msra.mxu0 %v882
  %1618 = vmatprep.subr.bf16.mxu0 0
  %1619 = vmatpush1.bf16.msra.mxu0 %v883
  %1620 = vmatprep.subr.bf16.mxu0 0
  %1621 = vmatpush1.bf16.msra.mxu0 %v884
  %1622 = vmatprep.subr.bf16.mxu0 0
  %1623 = vmatpush1.bf16.msra.mxu0 %v885
  %1624 = vmatprep.subr.bf16.mxu0 0
  %1625 = vmatpush1.bf16.msra.mxu0 %v886
  %1626 = vmatprep.subr.bf16.mxu0 0
  %1627 = vmatpush1.bf16.msra.mxu0 0
  %1628 = vmatprep.subr.bf16.mxu0 0
  %1629 = vmatpush1.bf16.msra.mxu0 0
  %1630 = vmatprep.subr.bf16.mxu0 0
  %1631 = vmatpush1.bf16.msra.mxu0 0
  %1632 = vmatprep.subr.bf16.mxu0 0
  %1633 = vmatpush1.bf16.msra.mxu0 0
  %1634 = vmatprep.subr.bf16.mxu0 0
  %1635 = vmatpush1.bf16.msra.mxu0 0
  %1636 = vmatprep.subr.bf16.mxu0 0
  %1637 = vmatpush1.bf16.msra.mxu0 0
  %1638 = vmatprep.subr.bf16.mxu0 0
  %1639 = vmatpush1.bf16.msra.mxu0 0
  %1640 = vmatprep.subr.bf16.mxu0 0
  %1641 = vmatpush1.bf16.msra.mxu0 0
  %1642 = vmatprep.mubr.bf16.mxu0 0
  %1643 = vmatmul.mubr.bf16.gmra.mrb[0].mxu0 %v1505
  %v1644 = vpop.f32.mrb[0].mxu0
  %v1645 = vadd.f32 0.0, %v1644
  %v1646 = vpop.f32.mrb[0].mxu0
  %v1647 = vpop.f32.mrb[0].mxu0
  %v1648 = vadd.f32 0.0, %v1647
  %v1649 = vpop.f32.mrb[0].mxu0
  %1650 = vdwg.mxu0
  %v1651 = vadd.f32 %v1608, %v1645
  %v1652 = vadd.f32 %v1609, %v1648
  %v1653 = vmul.f32 %v1651, 0.5
  %v1654 = vmul.f32 %v1652, 0.5
  %v1655 = vtanh.pop %v1653
  %v1656 = vtanh.pop %v1654
  %v1657 = vmul.f32 %v1655, 0.5
  %v1658 = vmul.f32 %v1656, 0.5
  %v1659 = vadd.f32 %v1657, 0.5
  %v1660 = vadd.f32 %v1658, 0.5
  %v1661 = vmul.f32 %v1659, %v1446
  %v1662 = vmul.f32 %v1660, %v1447
  %v1663 = vadd.f32 %v1661, %v1606
  %v1664 = vadd.f32 %v1662, %v1607
  %v1665 = vld [vmem:[#allocation4 + $0xd8] sm:$0xff]
  %v1666 = vld [vmem:[#allocation4 + $0xf8] sm:$0xff]
  %1667 = vmatprep.subr.bf16.mxu0 0
  %1668 = vmatpush1.bf16.msra.mxu0 %v1000
  %1669 = vmatprep.subr.bf16.mxu0 0
  %1670 = vmatpush1.bf16.msra.mxu0 %v1001
  %1671 = vmatprep.subr.bf16.mxu0 0
  %1672 = vmatpush1.bf16.msra.mxu0 %v1002
  %1673 = vmatprep.subr.bf16.mxu0 0
  %1674 = vmatpush1.bf16.msra.mxu0 %v1003
  %1675 = vmatprep.subr.bf16.mxu0 0
  %1676 = vmatpush1.bf16.msra.mxu0 %v1004
  %1677 = vmatprep.subr.bf16.mxu0 0
  %1678 = vmatpush1.bf16.msra.mxu0 %v1005
  %1679 = vmatprep.subr.bf16.mxu0 0
  %1680 = vmatpush1.bf16.msra.mxu0 %v1006
  %1681 = vmatprep.subr.bf16.mxu0 0
  %1682 = vmatpush1.bf16.msra.mxu0 %v1007
  %1683 = vmatprep.subr.bf16.mxu0 0
  %1684 = vmatpush1.bf16.msra.mxu0 0
  %1685 = vmatprep.subr.bf16.mxu0 0
  %1686 = vmatpush1.bf16.msra.mxu0 0
  %1687 = vmatprep.subr.bf16.mxu0 0
  %1688 = vmatpush1.bf16.msra.mxu0 0
  %1689 = vmatprep.subr.bf16.mxu0 0
  %1690 = vmatpush1.bf16.msra.mxu0 0
  %1691 = vmatprep.subr.bf16.mxu0 0
  %1692 = vmatpush1.bf16.msra.mxu0 0
  %1693 = vmatprep.subr.bf16.mxu0 0
  %1694 = vmatpush1.bf16.msra.mxu0 0
  %1695 = vmatprep.subr.bf16.mxu0 0
  %1696 = vmatpush1.bf16.msra.mxu0 0
  %1697 = vmatprep.subr.bf16.mxu0 0
  %1698 = vmatpush1.bf16.msra.mxu0 0
  %1699 = vmatprep.mubr.bf16.mxu0 0
  %1700 = vmatmul.mubr.bf16.gmra.mrb[0].mxu0 %v1505
  %v1701 = vpop.f32.mrb[0].mxu0
  %v1702 = vadd.f32 0.0, %v1701
  %v1703 = vpop.f32.mrb[0].mxu0
  %v1704 = vpop.f32.mrb[0].mxu0
  %v1705 = vadd.f32 0.0, %v1704
  %v1706 = vpop.f32.mrb[0].mxu0
  %1707 = vdwg.mxu0
  %v1708 = vadd.f32 %v1665, %v1702
  %v1709 = vadd.f32 %v1666, %v1705
  %v1710 = vmul.f32 %v1708, 0.5
  %v1711 = vmul.f32 %v1709, 0.5
  %v1712 = vtanh.pop %v1710
  %v1713 = vtanh.pop %v1711
  %v1714 = vmul.f32 %v1712, 0.5
  %v1715 = vmul.f32 %v1713, 0.5
  %v1716 = vadd.f32 %v1714, 0.5
  %v1717 = vadd.f32 %v1715, 0.5
  %v1718 = vtanh.pop %v1663
  %v1719 = vtanh.pop %v1664
  %v1720 = vmul.f32 %v1716, %v1718
  %v1721 = vmul.f32 %v1717, %v1719
  %v1722 = vpack.c.bf16 %v1721, %v1720
  %v1723 = vld [vmem:[#allocation4 + $0x110] sm:$0xff]
  %v1724 = vld [vmem:[#allocation4 + $0x130] sm:$0xff]
  %1725 = vmatprep.subr.bf16.mxu0 0
  %1726 = vmatpush1.bf16.msra.mxu0 %v649
  %1727 = vmatprep.subr.bf16.mxu0 0
  %1728 = vmatpush1.bf16.msra.mxu0 %v650
  %1729 = vmatprep.subr.bf16.mxu0 0
  %1730 = vmatpush1.bf16.msra.mxu0 %v651
  %1731 = vmatprep.subr.bf16.mxu0 0
  %1732 = vmatpush1.bf16.msra.mxu0 %v652
  %1733 = vmatprep.subr.bf16.mxu0 0
  %1734 = vmatpush1.bf16.msra.mxu0 %v653
  %1735 = vmatprep.subr.bf16.mxu0 0
  %1736 = vmatpush1.bf16.msra.mxu0 %v654
  %1737 = vmatprep.subr.bf16.mxu0 0
  %1738 = vmatpush1.bf16.msra.mxu0 %v655
  %1739 = vmatprep.subr.bf16.mxu0 0
  %1740 = vmatpush1.bf16.msra.mxu0 %v656
  %1741 = vmatprep.subr.bf16.mxu0 0
  %1742 = vmatpush1.bf16.msra.mxu0 0
  %1743 = vmatprep.subr.bf16.mxu0 0
  %1744 = vmatpush1.bf16.msra.mxu0 0
  %1745 = vmatprep.subr.bf16.mxu0 0
  %1746 = vmatpush1.bf16.msra.mxu0 0
  %1747 = vmatprep.subr.bf16.mxu0 0
  %1748 = vmatpush1.bf16.msra.mxu0 0
  %1749 = vmatprep.subr.bf16.mxu0 0
  %1750 = vmatpush1.bf16.msra.mxu0 0
  %1751 = vmatprep.subr.bf16.mxu0 0
  %1752 = vmatpush1.bf16.msra.mxu0 0
  %1753 = vmatprep.subr.bf16.mxu0 0
  %1754 = vmatpush1.bf16.msra.mxu0 0
  %1755 = vmatprep.subr.bf16.mxu0 0
  %1756 = vmatpush1.bf16.msra.mxu0 0
  %1757 = vmatprep.mubr.bf16.mxu0 0
  %1758 = vmatmul.mubr.bf16.gmra.mrb[0].mxu0 %v1722
  %v1759 = vpop.f32.mrb[0].mxu0
  %v1760 = vadd.f32 0.0, %v1759
  %v1761 = vpop.f32.mrb[0].mxu0
  %v1762 = vpop.f32.mrb[0].mxu0
  %v1763 = vadd.f32 0.0, %v1762
  %v1764 = vpop.f32.mrb[0].mxu0
  %1765 = vdwg.mxu0
  %v1766 = vadd.f32 %v1723, %v1760
  %v1767 = vadd.f32 %v1724, %v1763
  %v1768 = vtanh.pop %v1766
  %v1769 = vtanh.pop %v1767
  %v1770 = vld [vmem:[#allocation4 + $0x100] sm:$0xff]
  %v1771 = vld [vmem:[#allocation4 + $0x120] sm:$0xff]
  %1772 = vmatprep.subr.bf16.mxu0 0
  %1773 = vmatpush1.bf16.msra.mxu0 %v760
  %1774 = vmatprep.subr.bf16.mxu0 0
  %1775 = vmatpush1.bf16.msra.mxu0 %v761
  %1776 = vmatprep.subr.bf16.mxu0 0
  %1777 = vmatpush1.bf16.msra.mxu0 %v762
  %1778 = vmatprep.subr.bf16.mxu0 0
  %1779 = vmatpush1.bf16.msra.mxu0 %v763
  %1780 = vmatprep.subr.bf16.mxu0 0
  %1781 = vmatpush1.bf16.msra.mxu0 %v764
  %1782 = vmatprep.subr.bf16.mxu0 0
  %1783 = vmatpush1.bf16.msra.mxu0 %v765
  %1784 = vmatprep.subr.bf16.mxu0 0
  %1785 = vmatpush1.bf16.msra.mxu0 %v766
  %1786 = vmatprep.subr.bf16.mxu0 0
  %1787 = vmatpush1.bf16.msra.mxu0 %v767
  %1788 = vmatprep.subr.bf16.mxu0 0
  %1789 = vmatpush1.bf16.msra.mxu0 0
  %1790 = vmatprep.subr.bf16.mxu0 0
  %1791 = vmatpush1.bf16.msra.mxu0 0
  %1792 = vmatprep.subr.bf16.mxu0 0
  %1793 = vmatpush1.bf16.msra.mxu0 0
  %1794 = vmatprep.subr.bf16.mxu0 0
  %1795 = vmatpush1.bf16.msra.mxu0 0
  %1796 = vmatprep.subr.bf16.mxu0 0
  %1797 = vmatpush1.bf16.msra.mxu0 0
  %1798 = vmatprep.subr.bf16.mxu0 0
  %1799 = vmatpush1.bf16.msra.mxu0 0
  %1800 = vmatprep.subr.bf16.mxu0 0
  %1801 = vmatpush1.bf16.msra.mxu0 0
  %1802 = vmatprep.subr.bf16.mxu0 0
  %1803 = vmatpush1.bf16.msra.mxu0 0
  %1804 = vmatprep.mubr.bf16.mxu0 0
  %1805 = vmatmul.mubr.bf16.gmra.mrb[0].mxu0 %v1722
  %v1806 = vpop.f32.mrb[0].mxu0
  %v1807 = vadd.f32 0.0, %v1806
  %v1808 = vpop.f32.mrb[0].mxu0
  %v1809 = vpop.f32.mrb[0].mxu0
  %v1810 = vadd.f32 0.0, %v1809
  %v1811 = vpop.f32.mrb[0].mxu0
  %1812 = vdwg.mxu0
  %v1813 = vadd.f32 %v1770, %v1807
  %v1814 = vadd.f32 %v1771, %v1810
  %v1815 = vmul.f32 %v1813, 0.5
  %v1816 = vmul.f32 %v1814, 0.5
  %v1817 = vtanh.pop %v1815
  %v1818 = vtanh.pop %v1816
  %v1819 = vmul.f32 %v1817, 0.5
  %v1820 = vmul.f32 %v1818, 0.5
  %v1821 = vadd.f32 %v1819, 0.5
  %v1822 = vadd.f32 %v1820, 0.5
  %v1823 = vmul.f32 %v1821, %v1768
  %v1824 = vmul.f32 %v1822, %v1769
  %v1825 = vld [vmem:[#allocation4 + $0x108] sm:$0xff]
  %v1826 = vld [vmem:[#allocation4 + $0x128] sm:$0xff]
  %1827 = vmatprep.subr.bf16.mxu0 0
  %1828 = vmatpush1.bf16.msra.mxu0 %v879
  %1829 = vmatprep.subr.bf16.mxu0 0
  %1830 = vmatpush1.bf16.msra.mxu0 %v880
  %1831 = vmatprep.subr.bf16.mxu0 0
  %1832 = vmatpush1.bf16.msra.mxu0 %v881
  %1833 = vmatprep.subr.bf16.mxu0 0
  %1834 = vmatpush1.bf16.msra.mxu0 %v882
  %1835 = vmatprep.subr.bf16.mxu0 0
  %1836 = vmatpush1.bf16.msra.mxu0 %v883
  %1837 = vmatprep.subr.bf16.mxu0 0
  %1838 = vmatpush1.bf16.msra.mxu0 %v884
  %1839 = vmatprep.subr.bf16.mxu0 0
  %1840 = vmatpush1.bf16.msra.mxu0 %v885
  %1841 = vmatprep.subr.bf16.mxu0 0
  %1842 = vmatpush1.bf16.msra.mxu0 %v886
  %1843 = vmatprep.subr.bf16.mxu0 0
  %1844 = vmatpush1.bf16.msra.mxu0 0
  %1845 = vmatprep.subr.bf16.mxu0 0
  %1846 = vmatpush1.bf16.msra.mxu0 0
  %1847 = vmatprep.subr.bf16.mxu0 0
  %1848 = vmatpush1.bf16.msra.mxu0 0
  %1849 = vmatprep.subr.bf16.mxu0 0
  %1850 = vmatpush1.bf16.msra.mxu0 0
  %1851 = vmatprep.subr.bf16.mxu0 0
  %1852 = vmatpush1.bf16.msra.mxu0 0
  %1853 = vmatprep.subr.bf16.mxu0 0
  %1854 = vmatpush1.bf16.msra.mxu0 0
  %1855 = vmatprep.subr.bf16.mxu0 0
  %1856 = vmatpush1.bf16.msra.mxu0 0
  %1857 = vmatprep.subr.bf16.mxu0 0
  %1858 = vmatpush1.bf16.msra.mxu0 0
  %1859 = vmatprep.mubr.bf16.mxu0 0
  %1860 = vmatmul.mubr.bf16.gmra.mrb[0].mxu0 %v1722
  %v1861 = vpop.f32.mrb[0].mxu0
  %v1862 = vadd.f32 0.0, %v1861
  %v1863 = vpop.f32.mrb[0].mxu0
  %v1864 = vpop.f32.mrb[0].mxu0
  %v1865 = vadd.f32 0.0, %v1864
  %v1866 = vpop.f32.mrb[0].mxu0
  %1867 = vdwg.mxu0
  %v1868 = vadd.f32 %v1825, %v1862
  %v1869 = vadd.f32 %v1826, %v1865
  %v1870 = vmul.f32 %v1868, 0.5
  %v1871 = vmul.f32 %v1869, 0.5
  %v1872 = vtanh.pop %v1870
  %v1873 = vtanh.pop %v1871
  %v1874 = vmul.f32 %v1872, 0.5
  %v1875 = vmul.f32 %v1873, 0.5
  %v1876 = vadd.f32 %v1874, 0.5
  %v1877 = vadd.f32 %v1875, 0.5
  %v1878 = vmul.f32 %v1876, %v1663
  %v1879 = vmul.f32 %v1877, %v1664
  %v1880 = vadd.f32 %v1878, %v1823
  %v1881 = vadd.f32 %v1879, %v1824
  %v1882 = vld [vmem:[#allocation4 + $0x118] sm:$0xff]
  %v1883 = vld [vmem:[#allocation4 + $0x138] sm:$0xff]
  %1884 = vmatprep.subr.bf16.mxu0 0
  %1885 = vmatpush1.bf16.msra.mxu0 %v1000
  %1886 = vmatprep.subr.bf16.mxu0 0
  %1887 = vmatpush1.bf16.msra.mxu0 %v1001
  %1888 = vmatprep.subr.bf16.mxu0 0
  %1889 = vmatpush1.bf16.msra.mxu0 %v1002
  %1890 = vmatprep.subr.bf16.mxu0 0
  %1891 = vmatpush1.bf16.msra.mxu0 %v1003
  %1892 = vmatprep.subr.bf16.mxu0 0
  %1893 = vmatpush1.bf16.msra.mxu0 %v1004
  %1894 = vmatprep.subr.bf16.mxu0 0
  %1895 = vmatpush1.bf16.msra.mxu0 %v1005
  %1896 = vmatprep.subr.bf16.mxu0 0
  %1897 = vmatpush1.bf16.msra.mxu0 %v1006
  %1898 = vmatprep.subr.bf16.mxu0 0
  %1899 = vmatpush1.bf16.msra.mxu0 %v1007
  %1900 = vmatprep.subr.bf16.mxu0 0
  %1901 = vmatpush1.bf16.msra.mxu0 0
  %1902 = vmatprep.subr.bf16.mxu0 0
  %1903 = vmatpush1.bf16.msra.mxu0 0
  %1904 = vmatprep.subr.bf16.mxu0 0
  %1905 = vmatpush1.bf16.msra.mxu0 0
  %1906 = vmatprep.subr.bf16.mxu0 0
  %1907 = vmatpush1.bf16.msra.mxu0 0
  %1908 = vmatprep.subr.bf16.mxu0 0
  %1909 = vmatpush1.bf16.msra.mxu0 0
  %1910 = vmatprep.subr.bf16.mxu0 0
  %1911 = vmatpush1.bf16.msra.mxu0 0
  %1912 = vmatprep.subr.bf16.mxu0 0
  %1913 = vmatpush1.bf16.msra.mxu0 0
  %1914 = vmatprep.subr.bf16.mxu0 0
  %1915 = vmatpush1.bf16.msra.mxu0 0
  %1916 = vmatprep.mubr.bf16.mxu0 0
  %1917 = vmatmul.mubr.bf16.gmra.mrb[0].mxu0 %v1722
  %v1918 = vpop.f32.mrb[0].mxu0
  %v1919 = vadd.f32 0.0, %v1918
  %v1920 = vpop.f32.mrb[0].mxu0
  %v1921 = vpop.f32.mrb[0].mxu0
  %v1922 = vadd.f32 0.0, %v1921
  %v1923 = vpop.f32.mrb[0].mxu0
  %1924 = vdwg.mxu0
  %v1925 = vadd.f32 %v1882, %v1919
  %v1926 = vadd.f32 %v1883, %v1922
  %v1927 = vmul.f32 %v1925, 0.5
  %v1928 = vmul.f32 %v1926, 0.5
  %v1929 = vtanh.pop %v1927
  %v1930 = vtanh.pop %v1928
  %v1931 = vmul.f32 %v1929, 0.5
  %v1932 = vmul.f32 %v1930, 0.5
  %v1933 = vadd.f32 %v1931, 0.5
  %v1934 = vadd.f32 %v1932, 0.5
  %v1935 = vtanh.pop %v1880
  %v1936 = vtanh.pop %v1881
  %v1937 = vmul.f32 %v1933, %v1935
  %v1938 = vmul.f32 %v1934, %v1936
  %v1939 = vpack.c.bf16 %v1938, %v1937
  %v1940 = vld [vmem:[#allocation4 + $0x150] sm:$0xff]
  %v1941 = vld [vmem:[#allocation4 + $0x170] sm:$0xff]
  %1942 = vmatprep.subr.bf16.mxu0 0
  %1943 = vmatpush1.bf16.msra.mxu0 %v649
  %1944 = vmatprep.subr.bf16.mxu0 0
  %1945 = vmatpush1.bf16.msra.mxu0 %v650
  %1946 = vmatprep.subr.bf16.mxu0 0
  %1947 = vmatpush1.bf16.msra.mxu0 %v651
  %1948 = vmatprep.subr.bf16.mxu0 0
  %1949 = vmatpush1.bf16.msra.mxu0 %v652
  %1950 = vmatprep.subr.bf16.mxu0 0
  %1951 = vmatpush1.bf16.msra.mxu0 %v653
  %1952 = vmatprep.subr.bf16.mxu0 0
  %1953 = vmatpush1.bf16.msra.mxu0 %v654
  %1954 = vmatprep.subr.bf16.mxu0 0
  %1955 = vmatpush1.bf16.msra.mxu0 %v655
  %1956 = vmatprep.subr.bf16.mxu0 0
  %1957 = vmatpush1.bf16.msra.mxu0 %v656
  %1958 = vmatprep.subr.bf16.mxu0 0
  %1959 = vmatpush1.bf16.msra.mxu0 0
  %1960 = vmatprep.subr.bf16.mxu0 0
  %1961 = vmatpush1.bf16.msra.mxu0 0
  %1962 = vmatprep.subr.bf16.mxu0 0
  %1963 = vmatpush1.bf16.msra.mxu0 0
  %1964 = vmatprep.subr.bf16.mxu0 0
  %1965 = vmatpush1.bf16.msra.mxu0 0
  %1966 = vmatprep.subr.bf16.mxu0 0
  %1967 = vmatpush1.bf16.msra.mxu0 0
  %1968 = vmatprep.subr.bf16.mxu0 0
  %1969 = vmatpush1.bf16.msra.mxu0 0
  %1970 = vmatprep.subr.bf16.mxu0 0
  %1971 = vmatpush1.bf16.msra.mxu0 0
  %1972 = vmatprep.subr.bf16.mxu0 0
  %1973 = vmatpush1.bf16.msra.mxu0 0
  %1974 = vmatprep.mubr.bf16.mxu0 0
  %1975 = vmatmul.mubr.bf16.gmra.mrb[0].mxu0 %v1939
  %v1976 = vpop.f32.mrb[0].mxu0
  %v1977 = vadd.f32 0.0, %v1976
  %v1978 = vpop.f32.mrb[0].mxu0
  %v1979 = vpop.f32.mrb[0].mxu0
  %v1980 = vadd.f32 0.0, %v1979
  %v1981 = vpop.f32.mrb[0].mxu0
  %1982 = vdwg.mxu0
  %v1983 = vadd.f32 %v1940, %v1977
  %v1984 = vadd.f32 %v1941, %v1980
  %v1985 = vtanh.pop %v1983
  %v1986 = vtanh.pop %v1984
  %v1987 = vld [vmem:[#allocation4 + $0x140] sm:$0xff]
  %v1988 = vld [vmem:[#allocation4 + $0x160] sm:$0xff]
  %1989 = vmatprep.subr.bf16.mxu0 0
  %1990 = vmatpush1.bf16.msra.mxu0 %v760
  %1991 = vmatprep.subr.bf16.mxu0 0
  %1992 = vmatpush1.bf16.msra.mxu0 %v761
  %1993 = vmatprep.subr.bf16.mxu0 0
  %1994 = vmatpush1.bf16.msra.mxu0 %v762
  %1995 = vmatprep.subr.bf16.mxu0 0
  %1996 = vmatpush1.bf16.msra.mxu0 %v763
  %1997 = vmatprep.subr.bf16.mxu0 0
  %1998 = vmatpush1.bf16.msra.mxu0 %v764
  %1999 = vmatprep.subr.bf16.mxu0 0
  %2000 = vmatpush1.bf16.msra.mxu0 %v765
  %2001 = vmatprep.subr.bf16.mxu0 0
  %2002 = vmatpush1.bf16.msra.mxu0 %v766
  %2003 = vmatprep.subr.bf16.mxu0 0
  %2004 = vmatpush1.bf16.msra.mxu0 %v767
  %2005 = vmatprep.subr.bf16.mxu0 0
  %2006 = vmatpush1.bf16.msra.mxu0 0
  %2007 = vmatprep.subr.bf16.mxu0 0
  %2008 = vmatpush1.bf16.msra.mxu0 0
  %2009 = vmatprep.subr.bf16.mxu0 0
  %2010 = vmatpush1.bf16.msra.mxu0 0
  %2011 = vmatprep.subr.bf16.mxu0 0
  %2012 = vmatpush1.bf16.msra.mxu0 0
  %2013 = vmatprep.subr.bf16.mxu0 0
  %2014 = vmatpush1.bf16.msra.mxu0 0
  %2015 = vmatprep.subr.bf16.mxu0 0
  %2016 = vmatpush1.bf16.msra.mxu0 0
  %2017 = vmatprep.subr.bf16.mxu0 0
  %2018 = vmatpush1.bf16.msra.mxu0 0
  %2019 = vmatprep.subr.bf16.mxu0 0
  %2020 = vmatpush1.bf16.msra.mxu0 0
  %2021 = vmatprep.mubr.bf16.mxu0 0
  %2022 = vmatmul.mubr.bf16.gmra.mrb[0].mxu0 %v1939
  %v2023 = vpop.f32.mrb[0].mxu0
  %v2024 = vadd.f32 0.0, %v2023
  %v2025 = vpop.f32.mrb[0].mxu0
  %v2026 = vpop.f32.mrb[0].mxu0
  %v2027 = vadd.f32 0.0, %v2026
  %v2028 = vpop.f32.mrb[0].mxu0
  %2029 = vdwg.mxu0
  %v2030 = vadd.f32 %v1987, %v2024
  %v2031 = vadd.f32 %v1988, %v2027
  %v2032 = vmul.f32 %v2030, 0.5
  %v2033 = vmul.f32 %v2031, 0.5
  %v2034 = vtanh.pop %v2032
  %v2035 = vtanh.pop %v2033
  %v2036 = vmul.f32 %v2034, 0.5
  %v2037 = vmul.f32 %v2035, 0.5
  %v2038 = vadd.f32 %v2036, 0.5
  %v2039 = vadd.f32 %v2037, 0.5
  %v2040 = vmul.f32 %v2038, %v1985
  %v2041 = vmul.f32 %v2039, %v1986
  %v2042 = vld [vmem:[#allocation4 + $0x148] sm:$0xff]
  %v2043 = vld [vmem:[#allocation4 + $0x168] sm:$0xff]
  %2044 = vmatprep.subr.bf16.mxu0 0
  %2045 = vmatpush1.bf16.msra.mxu0 %v879
  %2046 = vmatprep.subr.bf16.mxu0 0
  %2047 = vmatpush1.bf16.msra.mxu0 %v880
  %2048 = vmatprep.subr.bf16.mxu0 0
  %2049 = vmatpush1.bf16.msra.mxu0 %v881
  %2050 = vmatprep.subr.bf16.mxu0 0
  %2051 = vmatpush1.bf16.msra.mxu0 %v882
  %2052 = vmatprep.subr.bf16.mxu0 0
  %2053 = vmatpush1.bf16.msra.mxu0 %v883
  %2054 = vmatprep.subr.bf16.mxu0 0
  %2055 = vmatpush1.bf16.msra.mxu0 %v884
  %2056 = vmatprep.subr.bf16.mxu0 0
  %2057 = vmatpush1.bf16.msra.mxu0 %v885
  %2058 = vmatprep.subr.bf16.mxu0 0
  %2059 = vmatpush1.bf16.msra.mxu0 %v886
  %2060 = vmatprep.subr.bf16.mxu0 0
  %2061 = vmatpush1.bf16.msra.mxu0 0
  %2062 = vmatprep.subr.bf16.mxu0 0
  %2063 = vmatpush1.bf16.msra.mxu0 0
  %2064 = vmatprep.subr.bf16.mxu0 0
  %2065 = vmatpush1.bf16.msra.mxu0 0
  %2066 = vmatprep.subr.bf16.mxu0 0
  %2067 = vmatpush1.bf16.msra.mxu0 0
  %2068 = vmatprep.subr.bf16.mxu0 0
  %2069 = vmatpush1.bf16.msra.mxu0 0
  %2070 = vmatprep.subr.bf16.mxu0 0
  %2071 = vmatpush1.bf16.msra.mxu0 0
  %2072 = vmatprep.subr.bf16.mxu0 0
  %2073 = vmatpush1.bf16.msra.mxu0 0
  %2074 = vmatprep.subr.bf16.mxu0 0
  %2075 = vmatpush1.bf16.msra.mxu0 0
  %2076 = vmatprep.mubr.bf16.mxu0 0
  %2077 = vmatmul.mubr.bf16.gmra.mrb[0].mxu0 %v1939
  %v2078 = vpop.f32.mrb[0].mxu0
  %v2079 = vadd.f32 0.0, %v2078
  %v2080 = vpop.f32.mrb[0].mxu0
  %v2081 = vpop.f32.mrb[0].mxu0
  %v2082 = vadd.f32 0.0, %v2081
  %v2083 = vpop.f32.mrb[0].mxu0
  %2084 = vdwg.mxu0
  %v2085 = vadd.f32 %v2042, %v2079
  %v2086 = vadd.f32 %v2043, %v2082
  %v2087 = vmul.f32 %v2085, 0.5
  %v2088 = vmul.f32 %v2086, 0.5
  %v2089 = vtanh.pop %v2087
  %v2090 = vtanh.pop %v2088
  %v2091 = vmul.f32 %v2089, 0.5
  %v2092 = vmul.f32 %v2090, 0.5
  %v2093 = vadd.f32 %v2091, 0.5
  %v2094 = vadd.f32 %v2092, 0.5
  %v2095 = vmul.f32 %v2093, %v1880
  %v2096 = vmul.f32 %v2094, %v1881
  %v2097 = vadd.f32 %v2095, %v2040
  %v2098 = vadd.f32 %v2096, %v2041
  %v2099 = vld [vmem:[#allocation4 + $0x158] sm:$0xff]
  %v2100 = vld [vmem:[#allocation4 + $0x178] sm:$0xff]
  %2101 = vmatprep.subr.bf16.mxu0 0
  %2102 = vmatpush1.bf16.msra.mxu0 %v1000
  %2103 = vmatprep.subr.bf16.mxu0 0
  %2104 = vmatpush1.bf16.msra.mxu0 %v1001
  %2105 = vmatprep.subr.bf16.mxu0 0
  %2106 = vmatpush1.bf16.msra.mxu0 %v1002
  %2107 = vmatprep.subr.bf16.mxu0 0
  %2108 = vmatpush1.bf16.msra.mxu0 %v1003
  %2109 = vmatprep.subr.bf16.mxu0 0
  %2110 = vmatpush1.bf16.msra.mxu0 %v1004
  %2111 = vmatprep.subr.bf16.mxu0 0
  %2112 = vmatpush1.bf16.msra.mxu0 %v1005
  %2113 = vmatprep.subr.bf16.mxu0 0
  %2114 = vmatpush1.bf16.msra.mxu0 %v1006
  %2115 = vmatprep.subr.bf16.mxu0 0
  %2116 = vmatpush1.bf16.msra.mxu0 %v1007
  %2117 = vmatprep.subr.bf16.mxu0 0
  %2118 = vmatpush1.bf16.msra.mxu0 0
  %2119 = vmatprep.subr.bf16.mxu0 0
  %2120 = vmatpush1.bf16.msra.mxu0 0
  %2121 = vmatprep.subr.bf16.mxu0 0
  %2122 = vmatpush1.bf16.msra.mxu0 0
  %2123 = vmatprep.subr.bf16.mxu0 0
  %2124 = vmatpush1.bf16.msra.mxu0 0
  %2125 = vmatprep.subr.bf16.mxu0 0
  %2126 = vmatpush1.bf16.msra.mxu0 0
  %2127 = vmatprep.subr.bf16.mxu0 0
  %2128 = vmatpush1.bf16.msra.mxu0 0
  %2129 = vmatprep.subr.bf16.mxu0 0
  %2130 = vmatpush1.bf16.msra.mxu0 0
  %2131 = vmatprep.subr.bf16.mxu0 0
  %2132 = vmatpush1.bf16.msra.mxu0 0
  %2133 = vmatprep.mubr.bf16.mxu0 0
  %2134 = vmatmul.mubr.bf16.gmra.mrb[0].mxu0 %v1939
  %v2135 = vpop.f32.mrb[0].mxu0
  %v2136 = vadd.f32 0.0, %v2135
  %v2137 = vpop.f32.mrb[0].mxu0
  %v2138 = vpop.f32.mrb[0].mxu0
  %v2139 = vadd.f32 0.0, %v2138
  %v2140 = vpop.f32.mrb[0].mxu0
  %2141 = vdwg.mxu0
  %v2142 = vadd.f32 %v2099, %v2136
  %v2143 = vadd.f32 %v2100, %v2139
  %v2144 = vmul.f32 %v2142, 0.5
  %v2145 = vmul.f32 %v2143, 0.5
  %v2146 = vtanh.pop %v2144
  %v2147 = vtanh.pop %v2145
  %v2148 = vmul.f32 %v2146, 0.5
  %v2149 = vmul.f32 %v2147, 0.5
  %v2150 = vadd.f32 %v2148, 0.5
  %v2151 = vadd.f32 %v2149, 0.5
  %v2152 = vtanh.pop %v2097
  %v2153 = vtanh.pop %v2098
  %v2154 = vmul.f32 %v2150, %v2152
  %v2155 = vmul.f32 %v2151, %v2153
  %v2156 = vpack.c.bf16 %v2155, %v2154
  %v2157 = vld [vmem:[#allocation4 + $0x190] sm:$0xff]
  %v2158 = vld [vmem:[#allocation4 + $0x1b0] sm:$0xff]
  %2159 = vmatprep.subr.bf16.mxu0 0
  %2160 = vmatpush1.bf16.msra.mxu0 %v649
  %2161 = vmatprep.subr.bf16.mxu0 0
  %2162 = vmatpush1.bf16.msra.mxu0 %v650
  %2163 = vmatprep.subr.bf16.mxu0 0
  %2164 = vmatpush1.bf16.msra.mxu0 %v651
  %2165 = vmatprep.subr.bf16.mxu0 0
  %2166 = vmatpush1.bf16.msra.mxu0 %v652
  %2167 = vmatprep.subr.bf16.mxu0 0
  %2168 = vmatpush1.bf16.msra.mxu0 %v653
  %2169 = vmatprep.subr.bf16.mxu0 0
  %2170 = vmatpush1.bf16.msra.mxu0 %v654
  %2171 = vmatprep.subr.bf16.mxu0 0
  %2172 = vmatpush1.bf16.msra.mxu0 %v655
  %2173 = vmatprep.subr.bf16.mxu0 0
  %2174 = vmatpush1.bf16.msra.mxu0 %v656
  %2175 = vmatprep.subr.bf16.mxu0 0
  %2176 = vmatpush1.bf16.msra.mxu0 0
  %2177 = vmatprep.subr.bf16.mxu0 0
  %2178 = vmatpush1.bf16.msra.mxu0 0
  %2179 = vmatprep.subr.bf16.mxu0 0
  %2180 = vmatpush1.bf16.msra.mxu0 0
  %2181 = vmatprep.subr.bf16.mxu0 0
  %2182 = vmatpush1.bf16.msra.mxu0 0
  %2183 = vmatprep.subr.bf16.mxu0 0
  %2184 = vmatpush1.bf16.msra.mxu0 0
  %2185 = vmatprep.subr.bf16.mxu0 0
  %2186 = vmatpush1.bf16.msra.mxu0 0
  %2187 = vmatprep.subr.bf16.mxu0 0
  %2188 = vmatpush1.bf16.msra.mxu0 0
  %2189 = vmatprep.subr.bf16.mxu0 0
  %2190 = vmatpush1.bf16.msra.mxu0 0
  %2191 = vmatprep.mubr.bf16.mxu0 0
  %2192 = vmatmul.mubr.bf16.gmra.mrb[0].mxu0 %v2156
  %v2193 = vpop.f32.mrb[0].mxu0
  %v2194 = vadd.f32 0.0, %v2193
  %v2195 = vpop.f32.mrb[0].mxu0
  %v2196 = vpop.f32.mrb[0].mxu0
  %v2197 = vadd.f32 0.0, %v2196
  %v2198 = vpop.f32.mrb[0].mxu0
  %2199 = vdwg.mxu0
  %v2200 = vadd.f32 %v2157, %v2194
  %v2201 = vadd.f32 %v2158, %v2197
  %v2202 = vtanh.pop %v2200
  %v2203 = vtanh.pop %v2201
  %v2204 = vld [vmem:[#allocation4 + $0x180] sm:$0xff]
  %v2205 = vld [vmem:[#allocation4 + $0x1a0] sm:$0xff]
  %2206 = vmatprep.subr.bf16.mxu0 0
  %2207 = vmatpush1.bf16.msra.mxu0 %v760
  %2208 = vmatprep.subr.bf16.mxu0 0
  %2209 = vmatpush1.bf16.msra.mxu0 %v761
  %2210 = vmatprep.subr.bf16.mxu0 0
  %2211 = vmatpush1.bf16.msra.mxu0 %v762
  %2212 = vmatprep.subr.bf16.mxu0 0
  %2213 = vmatpush1.bf16.msra.mxu0 %v763
  %2214 = vmatprep.subr.bf16.mxu0 0
  %2215 = vmatpush1.bf16.msra.mxu0 %v764
  %2216 = vmatprep.subr.bf16.mxu0 0
  %2217 = vmatpush1.bf16.msra.mxu0 %v765
  %2218 = vmatprep.subr.bf16.mxu0 0
  %2219 = vmatpush1.bf16.msra.mxu0 %v766
  %2220 = vmatprep.subr.bf16.mxu0 0
  %2221 = vmatpush1.bf16.msra.mxu0 %v767
  %2222 = vmatprep.subr.bf16.mxu0 0
  %2223 = vmatpush1.bf16.msra.mxu0 0
  %2224 = vmatprep.subr.bf16.mxu0 0
  %2225 = vmatpush1.bf16.msra.mxu0 0
  %2226 = vmatprep.subr.bf16.mxu0 0
  %2227 = vmatpush1.bf16.msra.mxu0 0
  %2228 = vmatprep.subr.bf16.mxu0 0
  %2229 = vmatpush1.bf16.msra.mxu0 0
  %2230 = vmatprep.subr.bf16.mxu0 0
  %2231 = vmatpush1.bf16.msra.mxu0 0
  %2232 = vmatprep.subr.bf16.mxu0 0
  %2233 = vmatpush1.bf16.msra.mxu0 0
  %2234 = vmatprep.subr.bf16.mxu0 0
  %2235 = vmatpush1.bf16.msra.mxu0 0
  %2236 = vmatprep.subr.bf16.mxu0 0
  %2237 = vmatpush1.bf16.msra.mxu0 0
  %2238 = vmatprep.mubr.bf16.mxu0 0
  %2239 = vmatmul.mubr.bf16.gmra.mrb[0].mxu0 %v2156
  %v2240 = vpop.f32.mrb[0].mxu0
  %v2241 = vadd.f32 0.0, %v2240
  %v2242 = vpop.f32.mrb[0].mxu0
  %v2243 = vpop.f32.mrb[0].mxu0
  %v2244 = vadd.f32 0.0, %v2243
  %v2245 = vpop.f32.mrb[0].mxu0
  %2246 = vdwg.mxu0
  %v2247 = vadd.f32 %v2204, %v2241
  %v2248 = vadd.f32 %v2205, %v2244
  %v2249 = vmul.f32 %v2247, 0.5
  %v2250 = vmul.f32 %v2248, 0.5
  %v2251 = vtanh.pop %v2249
  %v2252 = vtanh.pop %v2250
  %v2253 = vmul.f32 %v2251, 0.5
  %v2254 = vmul.f32 %v2252, 0.5
  %v2255 = vadd.f32 %v2253, 0.5
  %v2256 = vadd.f32 %v2254, 0.5
  %v2257 = vmul.f32 %v2255, %v2202
  %v2258 = vmul.f32 %v2256, %v2203
  %v2259 = vld [vmem:[#allocation4 + $0x188] sm:$0xff]
  %v2260 = vld [vmem:[#allocation4 + $0x1a8] sm:$0xff]
  %2261 = vmatprep.subr.bf16.mxu0 0
  %2262 = vmatpush1.bf16.msra.mxu0 %v879
  %2263 = vmatprep.subr.bf16.mxu0 0
  %2264 = vmatpush1.bf16.msra.mxu0 %v880
  %2265 = vmatprep.subr.bf16.mxu0 0
  %2266 = vmatpush1.bf16.msra.mxu0 %v881
  %2267 = vmatprep.subr.bf16.mxu0 0
  %2268 = vmatpush1.bf16.msra.mxu0 %v882
  %2269 = vmatprep.subr.bf16.mxu0 0
  %2270 = vmatpush1.bf16.msra.mxu0 %v883
  %2271 = vmatprep.subr.bf16.mxu0 0
  %2272 = vmatpush1.bf16.msra.mxu0 %v884
  %2273 = vmatprep.subr.bf16.mxu0 0
  %2274 = vmatpush1.bf16.msra.mxu0 %v885
  %2275 = vmatprep.subr.bf16.mxu0 0
  %2276 = vmatpush1.bf16.msra.mxu0 %v886
  %2277 = vmatprep.subr.bf16.mxu0 0
  %2278 = vmatpush1.bf16.msra.mxu0 0
  %2279 = vmatprep.subr.bf16.mxu0 0
  %2280 = vmatpush1.bf16.msra.mxu0 0
  %2281 = vmatprep.subr.bf16.mxu0 0
  %2282 = vmatpush1.bf16.msra.mxu0 0
  %2283 = vmatprep.subr.bf16.mxu0 0
  %2284 = vmatpush1.bf16.msra.mxu0 0
  %2285 = vmatprep.subr.bf16.mxu0 0
  %2286 = vmatpush1.bf16.msra.mxu0 0
  %2287 = vmatprep.subr.bf16.mxu0 0
  %2288 = vmatpush1.bf16.msra.mxu0 0
  %2289 = vmatprep.subr.bf16.mxu0 0
  %2290 = vmatpush1.bf16.msra.mxu0 0
  %2291 = vmatprep.subr.bf16.mxu0 0
  %2292 = vmatpush1.bf16.msra.mxu0 0
  %2293 = vmatprep.mubr.bf16.mxu0 0
  %2294 = vmatmul.mubr.bf16.gmra.mrb[0].mxu0 %v2156
  %v2295 = vpop.f32.mrb[0].mxu0
  %v2296 = vadd.f32 0.0, %v2295
  %v2297 = vpop.f32.mrb[0].mxu0
  %v2298 = vpop.f32.mrb[0].mxu0
  %v2299 = vadd.f32 0.0, %v2298
  %v2300 = vpop.f32.mrb[0].mxu0
  %2301 = vdwg.mxu0
  %v2302 = vadd.f32 %v2259, %v2296
  %v2303 = vadd.f32 %v2260, %v2299
  %v2304 = vmul.f32 %v2302, 0.5
  %v2305 = vmul.f32 %v2303, 0.5
  %v2306 = vtanh.pop %v2304
  %v2307 = vtanh.pop %v2305
  %v2308 = vmul.f32 %v2306, 0.5
  %v2309 = vmul.f32 %v2307, 0.5
  %v2310 = vadd.f32 %v2308, 0.5
  %v2311 = vadd.f32 %v2309, 0.5
  %v2312 = vmul.f32 %v2310, %v2097
  %v2313 = vmul.f32 %v2311, %v2098
  %v2314 = vadd.f32 %v2312, %v2257
  %v2315 = vadd.f32 %v2313, %v2258
  %v2316 = vld [vmem:[#allocation4 + $0x198] sm:$0xff]
  %v2317 = vld [vmem:[#allocation4 + $0x1b8] sm:$0xff]
  %2318 = vmatprep.subr.bf16.mxu0 0
  %2319 = vmatpush1.bf16.msra.mxu0 %v1000
  %2320 = vmatprep.subr.bf16.mxu0 0
  %2321 = vmatpush1.bf16.msra.mxu0 %v1001
  %2322 = vmatprep.subr.bf16.mxu0 0
  %2323 = vmatpush1.bf16.msra.mxu0 %v1002
  %2324 = vmatprep.subr.bf16.mxu0 0
  %2325 = vmatpush1.bf16.msra.mxu0 %v1003
  %2326 = vmatprep.subr.bf16.mxu0 0
  %2327 = vmatpush1.bf16.msra.mxu0 %v1004
  %2328 = vmatprep.subr.bf16.mxu0 0
  %2329 = vmatpush1.bf16.msra.mxu0 %v1005
  %2330 = vmatprep.subr.bf16.mxu0 0
  %2331 = vmatpush1.bf16.msra.mxu0 %v1006
  %2332 = vmatprep.subr.bf16.mxu0 0
  %2333 = vmatpush1.bf16.msra.mxu0 %v1007
  %2334 = vmatprep.subr.bf16.mxu0 0
  %2335 = vmatpush1.bf16.msra.mxu0 0
  %2336 = vmatprep.subr.bf16.mxu0 0
  %2337 = vmatpush1.bf16.msra.mxu0 0
  %2338 = vmatprep.subr.bf16.mxu0 0
  %2339 = vmatpush1.bf16.msra.mxu0 0
  %2340 = vmatprep.subr.bf16.mxu0 0
  %2341 = vmatpush1.bf16.msra.mxu0 0
  %2342 = vmatprep.subr.bf16.mxu0 0
  %2343 = vmatpush1.bf16.msra.mxu0 0
  %2344 = vmatprep.subr.bf16.mxu0 0
  %2345 = vmatpush1.bf16.msra.mxu0 0
  %2346 = vmatprep.subr.bf16.mxu0 0
  %2347 = vmatpush1.bf16.msra.mxu0 0
  %2348 = vmatprep.subr.bf16.mxu0 0
  %2349 = vmatpush1.bf16.msra.mxu0 0
  %2350 = vmatprep.mubr.bf16.mxu0 0
  %2351 = vmatmul.mubr.bf16.gmra.mrb[0].mxu0 %v2156
  %v2352 = vpop.f32.mrb[0].mxu0
  %v2353 = vadd.f32 0.0, %v2352
  %v2354 = vpop.f32.mrb[0].mxu0
  %v2355 = vpop.f32.mrb[0].mxu0
  %v2356 = vadd.f32 0.0, %v2355
  %v2357 = vpop.f32.mrb[0].mxu0
  %2358 = vdwg.mxu0
  %v2359 = vadd.f32 %v2316, %v2353
  %v2360 = vadd.f32 %v2317, %v2356
  %v2361 = vmul.f32 %v2359, 0.5
  %v2362 = vmul.f32 %v2360, 0.5
  %v2363 = vtanh.pop %v2361
  %v2364 = vtanh.pop %v2362
  %v2365 = vmul.f32 %v2363, 0.5
  %v2366 = vmul.f32 %v2364, 0.5
  %v2367 = vadd.f32 %v2365, 0.5
  %v2368 = vadd.f32 %v2366, 0.5
  %v2369 = vtanh.pop %v2314
  %v2370 = vtanh.pop %v2315
  %v2371 = vmul.f32 %v2367, %v2369
  %v2372 = vmul.f32 %v2368, %v2370
  %v2373 = vpack.c.bf16 %v2372, %v2371
  %v2374 = vld [vmem:[#allocation4 + $0x1d0] sm:$0xff]
  %v2375 = vld [vmem:[#allocation4 + $0x1f0] sm:$0xff]
  %2376 = vmatprep.subr.bf16.mxu0 0
  %2377 = vmatpush1.bf16.msra.mxu0 %v649
  %2378 = vmatprep.subr.bf16.mxu0 0
  %2379 = vmatpush1.bf16.msra.mxu0 %v650
  %2380 = vmatprep.subr.bf16.mxu0 0
  %2381 = vmatpush1.bf16.msra.mxu0 %v651
  %2382 = vmatprep.subr.bf16.mxu0 0
  %2383 = vmatpush1.bf16.msra.mxu0 %v652
  %2384 = vmatprep.subr.bf16.mxu0 0
  %2385 = vmatpush1.bf16.msra.mxu0 %v653
  %2386 = vmatprep.subr.bf16.mxu0 0
  %2387 = vmatpush1.bf16.msra.mxu0 %v654
  %2388 = vmatprep.subr.bf16.mxu0 0
  %2389 = vmatpush1.bf16.msra.mxu0 %v655
  %2390 = vmatprep.subr.bf16.mxu0 0
  %2391 = vmatpush1.bf16.msra.mxu0 %v656
  %2392 = vmatprep.subr.bf16.mxu0 0
  %2393 = vmatpush1.bf16.msra.mxu0 0
  %2394 = vmatprep.subr.bf16.mxu0 0
  %2395 = vmatpush1.bf16.msra.mxu0 0
  %2396 = vmatprep.subr.bf16.mxu0 0
  %2397 = vmatpush1.bf16.msra.mxu0 0
  %2398 = vmatprep.subr.bf16.mxu0 0
  %2399 = vmatpush1.bf16.msra.mxu0 0
  %2400 = vmatprep.subr.bf16.mxu0 0
  %2401 = vmatpush1.bf16.msra.mxu0 0
  %2402 = vmatprep.subr.bf16.mxu0 0
  %2403 = vmatpush1.bf16.msra.mxu0 0
  %2404 = vmatprep.subr.bf16.mxu0 0
  %2405 = vmatpush1.bf16.msra.mxu0 0
  %2406 = vmatprep.subr.bf16.mxu0 0
  %2407 = vmatpush1.bf16.msra.mxu0 0
  %2408 = vmatprep.mubr.bf16.mxu0 0
  %2409 = vmatmul.mubr.bf16.gmra.mrb[0].mxu0 %v2373
  %v2410 = vpop.f32.mrb[0].mxu0
  %v2411 = vadd.f32 0.0, %v2410
  %v2412 = vpop.f32.mrb[0].mxu0
  %v2413 = vpop.f32.mrb[0].mxu0
  %v2414 = vadd.f32 0.0, %v2413
  %v2415 = vpop.f32.mrb[0].mxu0
  %2416 = vdwg.mxu0
  %v2417 = vadd.f32 %v2374, %v2411
  %v2418 = vadd.f32 %v2375, %v2414
  %v2419 = vtanh.pop %v2417
  %v2420 = vtanh.pop %v2418
  %v2421 = vld [vmem:[#allocation4 + $0x1c0] sm:$0xff]
  %v2422 = vld [vmem:[#allocation4 + $0x1e0] sm:$0xff]
  %2423 = vmatprep.subr.bf16.mxu0 0
  %2424 = vmatpush1.bf16.msra.mxu0 %v760
  %2425 = vmatprep.subr.bf16.mxu0 0
  %2426 = vmatpush1.bf16.msra.mxu0 %v761
  %2427 = vmatprep.subr.bf16.mxu0 0
  %2428 = vmatpush1.bf16.msra.mxu0 %v762
  %2429 = vmatprep.subr.bf16.mxu0 0
  %2430 = vmatpush1.bf16.msra.mxu0 %v763
  %2431 = vmatprep.subr.bf16.mxu0 0
  %2432 = vmatpush1.bf16.msra.mxu0 %v764
  %2433 = vmatprep.subr.bf16.mxu0 0
  %2434 = vmatpush1.bf16.msra.mxu0 %v765
  %2435 = vmatprep.subr.bf16.mxu0 0
  %2436 = vmatpush1.bf16.msra.mxu0 %v766
  %2437 = vmatprep.subr.bf16.mxu0 0
  %2438 = vmatpush1.bf16.msra.mxu0 %v767
  %2439 = vmatprep.subr.bf16.mxu0 0
  %2440 = vmatpush1.bf16.msra.mxu0 0
  %2441 = vmatprep.subr.bf16.mxu0 0
  %2442 = vmatpush1.bf16.msra.mxu0 0
  %2443 = vmatprep.subr.bf16.mxu0 0
  %2444 = vmatpush1.bf16.msra.mxu0 0
  %2445 = vmatprep.subr.bf16.mxu0 0
  %2446 = vmatpush1.bf16.msra.mxu0 0
  %2447 = vmatprep.subr.bf16.mxu0 0
  %2448 = vmatpush1.bf16.msra.mxu0 0
  %2449 = vmatprep.subr.bf16.mxu0 0
  %2450 = vmatpush1.bf16.msra.mxu0 0
  %2451 = vmatprep.subr.bf16.mxu0 0
  %2452 = vmatpush1.bf16.msra.mxu0 0
  %2453 = vmatprep.subr.bf16.mxu0 0
  %2454 = vmatpush1.bf16.msra.mxu0 0
  %2455 = vmatprep.mubr.bf16.mxu0 0
  %2456 = vmatmul.mubr.bf16.gmra.mrb[0].mxu0 %v2373
  %v2457 = vpop.f32.mrb[0].mxu0
  %v2458 = vadd.f32 0.0, %v2457
  %v2459 = vpop.f32.mrb[0].mxu0
  %v2460 = vpop.f32.mrb[0].mxu0
  %v2461 = vadd.f32 0.0, %v2460
  %v2462 = vpop.f32.mrb[0].mxu0
  %2463 = vdwg.mxu0
  %v2464 = vadd.f32 %v2421, %v2458
  %v2465 = vadd.f32 %v2422, %v2461
  %v2466 = vmul.f32 %v2464, 0.5
  %v2467 = vmul.f32 %v2465, 0.5
  %v2468 = vtanh.pop %v2466
  %v2469 = vtanh.pop %v2467
  %v2470 = vmul.f32 %v2468, 0.5
  %v2471 = vmul.f32 %v2469, 0.5
  %v2472 = vadd.f32 %v2470, 0.5
  %v2473 = vadd.f32 %v2471, 0.5
  %v2474 = vmul.f32 %v2472, %v2419
  %v2475 = vmul.f32 %v2473, %v2420
  %v2476 = vld [vmem:[#allocation4 + $0x1c8] sm:$0xff]
  %v2477 = vld [vmem:[#allocation4 + $0x1e8] sm:$0xff]
  %2478 = vmatprep.subr.bf16.mxu0 0
  %2479 = vmatpush1.bf16.msra.mxu0 %v879
  %2480 = vmatprep.subr.bf16.mxu0 0
  %2481 = vmatpush1.bf16.msra.mxu0 %v880
  %2482 = vmatprep.subr.bf16.mxu0 0
  %2483 = vmatpush1.bf16.msra.mxu0 %v881
  %2484 = vmatprep.subr.bf16.mxu0 0
  %2485 = vmatpush1.bf16.msra.mxu0 %v882
  %2486 = vmatprep.subr.bf16.mxu0 0
  %2487 = vmatpush1.bf16.msra.mxu0 %v883
  %2488 = vmatprep.subr.bf16.mxu0 0
  %2489 = vmatpush1.bf16.msra.mxu0 %v884
  %2490 = vmatprep.subr.bf16.mxu0 0
  %2491 = vmatpush1.bf16.msra.mxu0 %v885
  %2492 = vmatprep.subr.bf16.mxu0 0
  %2493 = vmatpush1.bf16.msra.mxu0 %v886
  %2494 = vmatprep.subr.bf16.mxu0 0
  %2495 = vmatpush1.bf16.msra.mxu0 0
  %2496 = vmatprep.subr.bf16.mxu0 0
  %2497 = vmatpush1.bf16.msra.mxu0 0
  %2498 = vmatprep.subr.bf16.mxu0 0
  %2499 = vmatpush1.bf16.msra.mxu0 0
  %2500 = vmatprep.subr.bf16.mxu0 0
  %2501 = vmatpush1.bf16.msra.mxu0 0
  %2502 = vmatprep.subr.bf16.mxu0 0
  %2503 = vmatpush1.bf16.msra.mxu0 0
  %2504 = vmatprep.subr.bf16.mxu0 0
  %2505 = vmatpush1.bf16.msra.mxu0 0
  %2506 = vmatprep.subr.bf16.mxu0 0
  %2507 = vmatpush1.bf16.msra.mxu0 0
  %2508 = vmatprep.subr.bf16.mxu0 0
  %2509 = vmatpush1.bf16.msra.mxu0 0
  %2510 = vmatprep.mubr.bf16.mxu0 0
  %2511 = vmatmul.mubr.bf16.gmra.mrb[0].mxu0 %v2373
  %v2512 = vpop.f32.mrb[0].mxu0
  %v2513 = vadd.f32 0.0, %v2512
  %v2514 = vpop.f32.mrb[0].mxu0
  %v2515 = vpop.f32.mrb[0].mxu0
  %v2516 = vadd.f32 0.0, %v2515
  %v2517 = vpop.f32.mrb[0].mxu0
  %2518 = vdwg.mxu0
  %v2519 = vadd.f32 %v2476, %v2513
  %v2520 = vadd.f32 %v2477, %v2516
  %v2521 = vmul.f32 %v2519, 0.5
  %v2522 = vmul.f32 %v2520, 0.5
  %v2523 = vtanh.pop %v2521
  %v2524 = vtanh.pop %v2522
  %v2525 = vmul.f32 %v2523, 0.5
  %v2526 = vmul.f32 %v2524, 0.5
  %v2527 = vadd.f32 %v2525, 0.5
  %v2528 = vadd.f32 %v2526, 0.5
  %v2529 = vmul.f32 %v2527, %v2314
  %v2530 = vmul.f32 %v2528, %v2315
  %v2531 = vadd.f32 %v2529, %v2474
  %v2532 = vadd.f32 %v2530, %v2475
  %v2533 = vld [vmem:[#allocation4 + $0x1d8] sm:$0xff]
  %v2534 = vld [vmem:[#allocation4 + $0x1f8] sm:$0xff]
  %2535 = vmatprep.subr.bf16.mxu0 0
  %2536 = vmatpush1.bf16.msra.mxu0 %v1000
  %2537 = vmatprep.subr.bf16.mxu0 0
  %2538 = vmatpush1.bf16.msra.mxu0 %v1001
  %2539 = vmatprep.subr.bf16.mxu0 0
  %2540 = vmatpush1.bf16.msra.mxu0 %v1002
  %2541 = vmatprep.subr.bf16.mxu0 0
  %2542 = vmatpush1.bf16.msra.mxu0 %v1003
  %2543 = vmatprep.subr.bf16.mxu0 0
  %2544 = vmatpush1.bf16.msra.mxu0 %v1004
  %2545 = vmatprep.subr.bf16.mxu0 0
  %2546 = vmatpush1.bf16.msra.mxu0 %v1005
  %2547 = vmatprep.subr.bf16.mxu0 0
  %2548 = vmatpush1.bf16.msra.mxu0 %v1006
  %2549 = vmatprep.subr.bf16.mxu0 0
  %2550 = vmatpush1.bf16.msra.mxu0 %v1007
  %2551 = vmatprep.subr.bf16.mxu0 0
  %2552 = vmatpush1.bf16.msra.mxu0 0
  %2553 = vmatprep.subr.bf16.mxu0 0
  %2554 = vmatpush1.bf16.msra.mxu0 0
  %2555 = vmatprep.subr.bf16.mxu0 0
  %2556 = vmatpush1.bf16.msra.mxu0 0
  %2557 = vmatprep.subr.bf16.mxu0 0
  %2558 = vmatpush1.bf16.msra.mxu0 0
  %2559 = vmatprep.subr.bf16.mxu0 0
  %2560 = vmatpush1.bf16.msra.mxu0 0
  %2561 = vmatprep.subr.bf16.mxu0 0
  %2562 = vmatpush1.bf16.msra.mxu0 0
  %2563 = vmatprep.subr.bf16.mxu0 0
  %2564 = vmatpush1.bf16.msra.mxu0 0
  %2565 = vmatprep.subr.bf16.mxu0 0
  %2566 = vmatpush1.bf16.msra.mxu0 0
  %2567 = vmatprep.mubr.bf16.mxu0 0
  %2568 = vmatmul.mubr.bf16.gmra.mrb[0].mxu0 %v2373
  %v2569 = vpop.f32.mrb[0].mxu0
  %v2570 = vadd.f32 0.0, %v2569
  %v2571 = vpop.f32.mrb[0].mxu0
  %v2572 = vpop.f32.mrb[0].mxu0
  %v2573 = vadd.f32 0.0, %v2572
  %v2574 = vpop.f32.mrb[0].mxu0
  %2575 = vdwg.mxu0
  %v2576 = vadd.f32 %v2533, %v2570
  %v2577 = vadd.f32 %v2534, %v2573
  %v2578 = vmul.f32 %v2576, 0.5
  %v2579 = vmul.f32 %v2577, 0.5
  %v2580 = vtanh.pop %v2578
  %v2581 = vtanh.pop %v2579
  %v2582 = vmul.f32 %v2580, 0.5
  %v2583 = vmul.f32 %v2581, 0.5
  %v2584 = vadd.f32 %v2582, 0.5
  %v2585 = vadd.f32 %v2583, 0.5
  %v2586 = vtanh.pop %v2531
  %v2587 = vtanh.pop %v2532
  %v2588 = vmul.f32 %v2584, %v2586
  %v2589 = vmul.f32 %v2585, %v2587
  %2590 = vst [vmem:[#allocation2] sm:$0xff] %v2588
  %2591 = vst [vmem:[#allocation2 + $0x8] sm:$0xff] %v2589
  %2592 = vst [vmem:[#allocation3] sm:$0xff] %v2531
  %2593 = vst [vmem:[#allocation3 + $0x8] sm:$0xff] %v2532
  // Predicated region
  $region22: #{lstm_forward.3} parent=0 // pred_check
    %p2594 = pneg %p18
  $region23: #{lstm_forward.3} parent=0 // pred_check_branch
    %2596 = sbr.rel (%p2594) target = $region25
  $region24: #{lstm_forward.3} parent=0 // pred_region
    %2597 = vst [vmem:[%s4] sm:$0xff] %v2588
    %2598 = vst [vmem:[%s4 + $0x8] sm:$0xff] %v2589
  $region25: #{lstm_forward.3} parent=0 // pred_fallthru
    _
  // Predicated region
  $region26: #{lstm_forward.3} parent=0 // pred_check
    _
  $region27: #{lstm_forward.3} parent=0 // pred_check_branch
    %2600 = sbr.rel (0) target = $region29
  $region28: #{lstm_forward.3} parent=0 // pred_region
    _
  $region29: #{lstm_forward.3} parent=0 // pred_fallthru
    _
  // Predicated region
  $region30: #{lstm_forward.3} parent=0 // pred_check
    _
  $region31: #{lstm_forward.3} parent=0 // pred_check_branch
    %2602 = sbr.rel (0) target = $region33
  $region32: #{lstm_forward.3} parent=0 // pred_region
    _
  $region33: #{lstm_forward.3} parent=0 // pred_fallthru
    _

// kernel: lstm_forward.2
$region0: #{lstm_forward.2}
  #allocation0 [shape = 'u32[]', space=smem, size = 0x4, offset = 0x4, fixed_abs, tag = 'smem constant byte address 0x4 - core index']
  #allocation1 [shape = 'u32[144,128]{1,0:T(1,128)}', space=vmem, size = 0x12000, scoped, tag = 'internal scratch']
  #allocation2 [shape = 'f32[16,128]{1,0:T(8,128)}', space=vmem, size = 0x2000, scoped, tag = 'scratch operand']
  #allocation3 [shape = 'f32[16,128]{1,0:T(8,128)}', space=vmem, size = 0x2000, scoped, tag = 'scratch operand']
  #allocation4 [shape = 'f32[128,512]{1,0:T(8,128)}', space=vmem, size = 0x40000, scoped, tag = 'scratch operand']
  %s0 = inlined_call_operand.vmem [shape: bf16[8,16,16], index: 0, kind: input, shape index: {}]
  %s1 = inlined_call_operand.vmem [shape: bf16[16,512], index: 1, kind: input, shape index: {}]
  %s2 = inlined_call_operand.hbm [shape: bf16[128,512], index: 2, kind: input, shape index: {}]
  %s3 = inlined_call_operand.vmem [shape: f32[1,512], index: 3, kind: input, shape index: {}]
  %s4 = inlined_call_operand.vmem [shape: bf16[8,16,128], index: 4, kind: output, shape index: {}]
  %s5 = sld [smem:[#allocation0]]
  $region34: #{lstm_forward.2} parent=0
    _
  %s7 = ssub.s32 1, %s5
  %s8 = scalar_select 0, %s7, %s5
  $region1: #{lstm_forward.2} parent=0
    #allocation5 [shape = 'u8[131072]{0}', space=vmem, size = 0x20000, scoped, tag = 'input window, operand 2, single buffered']
    #allocation6 [shape = 's32[1]{0}', space=sflag, size = 0x4, scoped, tag = 'scoped memory for lstm_forward.2']
    %9 = vsyncpa [#allocation6], 0
    // Predicated region
    $region2: #{lstm_forward.2} parent=1 // pred_check
      _
    $region3: #{lstm_forward.2} parent=1 // pred_check_branch
      %11 = sbr.rel (0) target = $region5
    $region4: #{lstm_forward.2} parent=1 // pred_region
      _
    $region5: #{lstm_forward.2} parent=1 // pred_fallthru
      _
    // Predicated region
    $region6: #{lstm_forward.2} parent=1 // pred_check
      _
    $region7: #{lstm_forward.2} parent=1 // pred_check_branch
      %13 = sbr.rel (0) target = $region9
    $region8: #{lstm_forward.2} parent=1 // pred_region
      _
    $region9: #{lstm_forward.2} parent=1 // pred_fallthru
      _
    // Predicated region
    $region10: #{lstm_forward.2} parent=1 // pred_check
      _
    $region11: #{lstm_forward.2} parent=1 // pred_check_branch
      %15 = sbr.rel (0) target = $region13
    $region12: #{lstm_forward.2} parent=1 // pred_region
      %s17 = ssub.s32 4096, 4096
      %18 = vsyncadd [#allocation6], %s17
      %s19 = sshll.u32 [#allocation5], 4
      %s20 = int_to_ptr.vmem [resolvable:$true] %s19
      %25 = dma.hbm_to_vmem [thread:$0]  %s2, 4096, %s20, [#allocation6], 256, 256, 16
    $region13: #{lstm_forward.2} parent=1 // pred_fallthru
      _
    // Predicated region
    $region14: #{lstm_forward.2} parent=1 // pred_check
      _
    $region15: #{lstm_forward.2} parent=1 // pred_check_branch
      %27 = sbr.rel (0) target = $region17
    $region16: #{lstm_forward.2} parent=1 // pred_region
      _
    $region17: #{lstm_forward.2} parent=1 // pred_fallthru
      _
    // Predicated region
    $region18: #{lstm_forward.2} parent=1 // pred_check
      _
    $region19: #{lstm_forward.2} parent=1 // pred_check_branch
      %29 = sbr.rel (0) target = $region21
    $region20: #{lstm_forward.2} parent=1 // pred_region
      %30 = dma.done [#allocation6], 4096
    $region21: #{lstm_forward.2} parent=1 // pred_fallthru
      _
    %p32 = scmp.eq.s32.totalorder 0, 0
    // Predicated region
    $region22: #{lstm_forward.2} parent=1 // pred_check
      %p33 = pneg %p32
    $region23: #{lstm_forward.2} parent=1 // pred_check_branch
      %35 = sbr.rel (%p33) target = $region25
    $region24: #{lstm_forward.2} parent=1 // pred_region
      %36 = vst [vmem:[#allocation2] sm:$0xff] 0.0
      %37 = vst [vmem:[#allocation2 + $0x8] sm:$0xff] 0.0
      %38 = vst [vmem:[#allocation3] sm:$0xff] 0.0
      %39 = vst [vmem:[#allocation3 + $0x8] sm:$0xff] 0.0
    $region25: #{lstm_forward.2} parent=1 // pred_fallthru
      _
    %v40 = vld [vmem:[%s0] sm:$0xf]
    %v41 = vld [vmem:[%s0 + $0x4] sm:$0xf]
    %v42 = vld [vmem:[%s0 + $0x8] sm:$0xf]
    %v43 = vld [vmem:[%s0 + $0xc] sm:$0xf]
    %v44 = vld [vmem:[%s0 + $0x10] sm:$0xf]
    %v45 = vld [vmem:[%s0 + $0x14] sm:$0xf]
    %v46 = vld [vmem:[%s0 + $0x18] sm:$0xf]
    %v47 = vld [vmem:[%s0 + $0x1c] sm:$0xf]
    %v48 = vld [vmem:[%s0 + $0x20] sm:$0xf]
    %v49 = vld [vmem:[%s0 + $0x24] sm:$0xf]
    %v50 = vld [vmem:[%s0 + $0x28] sm:$0xf]
    %v51 = vld [vmem:[%s0 + $0x2c] sm:$0xf]
    %v52 = vld [vmem:[%s0 + $0x30] sm:$0xf]
    %v53 = vld [vmem:[%s0 + $0x34] sm:$0xf]
    %v54 = vld [vmem:[%s0 + $0x38] sm:$0xf]
    %v55 = vld [vmem:[%s0 + $0x3c] sm:$0xf]
    %v56 = vld [vmem:[%s1] sm:$0xff]
    %v57 = vld [vmem:[%s1 + $0x8] sm:$0xff]
    %v58 = vld [vmem:[%s1 + $0x10] sm:$0xff]
    %v59 = vld [vmem:[%s1 + $0x18] sm:$0xff]
    %v60 = vld [vmem:[%s3] sm:$0xf]
    %v62 = vlaneseq
    %v63 = vshrl.u32 %v62, 7
    %v64 = vsub.s32 0, %v63
    %v65 = vrot.slane %v60, %v64
    %v66 = vlaneseq
    %v67 = vshrl.u32 %v66, 7
    %v68 = vsub.s32 1, %v67
    %v69 = vrot.slane %v60, %v68
    %v70 = vlaneseq
    %v71 = vshrl.u32 %v70, 7
    %v72 = vsub.s32 2, %v71
    %v73 = vrot.slane %v60, %v72
    %v74 = vlaneseq
    %v75 = vshrl.u32 %v74, 7
    %v76 = vsub.s32 3, %v75
    %v77 = vrot.slane %v60, %v76
    %v98 = vunpack.c.l.b16 %v40
    %v99 = vunpack.c.l.b16 %v41
    %v100 = vunpack.c.l.b16 %v42
    %v101 = vunpack.c.l.b16 %v43
    %v102 = vunpack.c.l.b16 %v44
    %v103 = vunpack.c.l.b16 %v45
    %v104 = vunpack.c.l.b16 %v46
    %v105 = vunpack.c.l.b16 %v47
    %v106 = vunpack.c.l.b16 %v48
    %v107 = vunpack.c.l.b16 %v49
    %v108 = vunpack.c.l.b16 %v50
    %v109 = vunpack.c.l.b16 %v51
    %v110 = vunpack.c.l.b16 %v52
    %v111 = vunpack.c.l.b16 %v53
    %v112 = vunpack.c.l.b16 %v54
    %v113 = vunpack.c.l.b16 %v55
    %v114 = vpack.c.b16 %v99, %v98
    %v115 = vpack.c.b16 %v101, %v100
    %v116 = vpack.c.b16 %v103, %v102
    %v117 = vpack.c.b16 %v105, %v104
    %v118 = vpack.c.b16 %v107, %v106
    %v119 = vpack.c.b16 %v109, %v108
    %v120 = vpack.c.b16 %v111, %v110
    %v121 = vpack.c.b16 %v113, %v112
    %v126 = vunpack.c.l.b16 %v56
    %v127 = vunpack.c.h.b16 %v56
    %v128 = vunpack.c.l.b16 %v57
    %v129 = vunpack.c.h.b16 %v57
    %v130 = vunpack.c.l.b16 %v58
    %v131 = vunpack.c.h.b16 %v58
    %v132 = vunpack.c.l.b16 %v59
    %v133 = vunpack.c.h.b16 %v59
    %v134 = vpack.c.b16 %v130, %v126
    %v135 = vpack.c.b16 %v131, %v127
    %v136 = vpack.c.b16 %v132, %v128
    %v137 = vpack.c.b16 %v133, %v129
    %vm142 = vcmask 130048
    %v144 = vsel %vm142, %v114, 0
    %v147 = vsel %vm142, %v115, 0
    %v150 = vsel %vm142, %v116, 0
    %v153 = vsel %vm142, %v117, 0
    %v156 = vsel %vm142, %v118, 0
    %v159 = vsel %vm142, %v119, 0
    %v162 = vsel %vm142, %v120, 0
    %v165 = vsel %vm142, %v121, 0
    %167 = vmatprep.subr.bf16.mxu0 %v135
    %168 = vmatpush1.bf16.msra.mxu0 %v134
    %169 = vmatprep.subr.bf16.mxu0 0
    %170 = vmatpush1.bf16.msra.mxu0 0
    %171 = vmatprep.subr.bf16.mxu0 0
    %172 = vmatpush1.bf16.msra.mxu0 0
    %173 = vmatprep.subr.bf16.mxu0 0
    %174 = vmatpush1.bf16.msra.mxu0 0
    %175 = vmatprep.subr.bf16.mxu0 0
    %176 = vmatpush1.bf16.msra.mxu0 0
    %177 = vmatprep.subr.bf16.mxu0 0
    %178 = vmatpush1.bf16.msra.mxu0 0
    %179 = vmatprep.subr.bf16.mxu0 0
    %180 = vmatpush1.bf16.msra.mxu0 0
    %181 = vmatprep.subr.bf16.mxu0 0
    %182 = vmatpush1.bf16.msra.mxu0 0
    %183 = vmatprep.subr.bf16.mxu0 0
    %184 = vmatpush1.bf16.msra.mxu0 0
    %185 = vmatprep.subr.bf16.mxu0 0
    %186 = vmatpush1.bf16.msra.mxu0 0
    %187 = vmatprep.subr.bf16.mxu0 0
    %188 = vmatpush1.bf16.msra.mxu0 0
    %189 = vmatprep.subr.bf16.mxu0 0
    %190 = vmatpush1.bf16.msra.mxu0 0
    %191 = vmatprep.subr.bf16.mxu0 0
    %192 = vmatpush1.bf16.msra.mxu0 0
    %193 = vmatprep.subr.bf16.mxu0 0
    %194 = vmatpush1.bf16.msra.mxu0 0
    %195 = vmatprep.subr.bf16.mxu0 0
    %196 = vmatpush1.bf16.msra.mxu0 0
    %197 = vmatprep.subr.bf16.mxu0 0
    %198 = vmatpush1.bf16.msra.mxu0 0
    %199 = vmatprep.mubr.bf16.mxu0 0
    %200 = vmatmul.mubr.bf16.gmra.mrb[0].mxu0 %v144
    %v201 = vpop.f32.mrb[0].mxu0
    %v202 = vadd.f32 %v65, %v201
    %v203 = vpop.f32.mrb[0].mxu0
    %v204 = vadd.f32 %v69, %v203
    %v205 = vpop.f32.mrb[0].mxu0
    %v206 = vadd.f32 %v65, %v205
    %v207 = vpop.f32.mrb[0].mxu0
    %v208 = vadd.f32 %v69, %v207
    %209 = vmatprep.mubr.bf16.mxu0 0
    %210 = vmatmul.mubr.bf16.gmra.mrb[0].mxu0 %v147
    %v211 = vpop.f32.mrb[0].mxu0
    %v212 = vadd.f32 %v65, %v211
    %v213 = vpop.f32.mrb[0].mxu0
    %v214 = vadd.f32 %v69, %v213
    %v215 = vpop.f32.mrb[0].mxu0
    %v216 = vadd.f32 %v65, %v215
    %v217 = vpop.f32.mrb[0].mxu0
    %v218 = vadd.f32 %v69, %v217
    %219 = vmatprep.mubr.bf16.mxu0 0
    %220 = vmatmul.mubr.bf16.gmra.mrb[0].mxu0 %v150
    %v221 = vpop.f32.mrb[0].mxu0
    %v222 = vadd.f32 %v65, %v221
    %v223 = vpop.f32.mrb[0].mxu0
    %v224 = vadd.f32 %v69, %v223
    %v225 = vpop.f32.mrb[0].mxu0
    %v226 = vadd.f32 %v65, %v225
    %v227 = vpop.f32.mrb[0].mxu0
    %v228 = vadd.f32 %v69, %v227
    %229 = vmatprep.mubr.bf16.mxu0 0
    %230 = vmatmul.mubr.bf16.gmra.mrb[0].mxu0 %v153
    %v231 = vpop.f32.mrb[0].mxu0
    %v232 = vadd.f32 %v65, %v231
    %v233 = vpop.f32.mrb[0].mxu0
    %v234 = vadd.f32 %v69, %v233
    %v235 = vpop.f32.mrb[0].mxu0
    %v236 = vadd.f32 %v65, %v235
    %v237 = vpop.f32.mrb[0].mxu0
    %v238 = vadd.f32 %v69, %v237
    %239 = vmatprep.mubr.bf16.mxu0 0
    %240 = vmatmul.mubr.bf16.gmra.mrb[0].mxu0 %v156
    %v241 = vpop.f32.mrb[0].mxu0
    %v242 = vadd.f32 %v65, %v241
    %v243 = vpop.f32.mrb[0].mxu0
    %v244 = vadd.f32 %v69, %v243
    %v245 = vpop.f32.mrb[0].mxu0
    %v246 = vadd.f32 %v65, %v245
    %v247 = vpop.f32.mrb[0].mxu0
    %v248 = vadd.f32 %v69, %v247
    %249 = vmatprep.mubr.bf16.mxu0 0
    %250 = vmatmul.mubr.bf16.gmra.mrb[0].mxu0 %v159
    %v251 = vpop.f32.mrb[0].mxu0
    %v252 = vadd.f32 %v65, %v251
    %v253 = vpop.f32.mrb[0].mxu0
    %v254 = vadd.f32 %v69, %v253
    %v255 = vpop.f32.mrb[0].mxu0
    %v256 = vadd.f32 %v65, %v255
    %v257 = vpop.f32.mrb[0].mxu0
    %v258 = vadd.f32 %v69, %v257
    %259 = vmatprep.mubr.bf16.mxu0 0
    %260 = vmatmul.mubr.bf16.gmra.mrb[0].mxu0 %v162
    %v261 = vpop.f32.mrb[0].mxu0
    %v262 = vadd.f32 %v65, %v261
    %v263 = vpop.f32.mrb[0].mxu0
    %v264 = vadd.f32 %v69, %v263
    %v265 = vpop.f32.mrb[0].mxu0
    %v266 = vadd.f32 %v65, %v265
    %v267 = vpop.f32.mrb[0].mxu0
    %v268 = vadd.f32 %v69, %v267
    %269 = vmatprep.mubr.bf16.mxu0 0
    %270 = vmatmul.mubr.bf16.gmra.mrb[0].mxu0 %v165
    %v271 = vpop.f32.mrb[0].mxu0
    %v272 = vadd.f32 %v65, %v271
    %v273 = vpop.f32.mrb[0].mxu0
    %v274 = vadd.f32 %v69, %v273
    %v275 = vpop.f32.mrb[0].mxu0
    %v276 = vadd.f32 %v65, %v275
    %v277 = vpop.f32.mrb[0].mxu0
    %v278 = vadd.f32 %v69, %v277
    %279 = vdwg.mxu0
    %280 = vmatprep.subr.bf16.mxu0 %v137
    %281 = vmatpush1.bf16.msra.mxu0 %v136
    %282 = vmatprep.subr.bf16.mxu0 0
    %283 = vmatpush1.bf16.msra.mxu0 0
    %284 = vmatprep.subr.bf16.mxu0 0
    %285 = vmatpush1.bf16.msra.mxu0 0
    %286 = vmatprep.subr.bf16.mxu0 0
    %287 = vmatpush1.bf16.msra.mxu0 0
    %288 = vmatprep.subr.bf16.mxu0 0
    %289 = vmatpush1.bf16.msra.mxu0 0
    %290 = vmatprep.subr.bf16.mxu0 0
    %291 = vmatpush1.bf16.msra.mxu0 0
    %292 = vmatprep.subr.bf16.mxu0 0
    %293 = vmatpush1.bf16.msra.mxu0 0
    %294 = vmatprep.subr.bf16.mxu0 0
    %295 = vmatpush1.bf16.msra.mxu0 0
    %296 = vmatprep.subr.bf16.mxu0 0
    %297 = vmatpush1.bf16.msra.mxu0 0
    %298 = vmatprep.subr.bf16.mxu0 0
    %299 = vmatpush1.bf16.msra.mxu0 0
    %300 = vmatprep.subr.bf16.mxu0 0
    %301 = vmatpush1.bf16.msra.mxu0 0
    %302 = vmatprep.subr.bf16.mxu0 0
    %303 = vmatpush1.bf16.msra.mxu0 0
    %304 = vmatprep.subr.bf16.mxu0 0
    %305 = vmatpush1.bf16.msra.mxu0 0
    %306 = vmatprep.subr.bf16.mxu0 0
    %307 = vmatpush1.bf16.msra.mxu0 0
    %308 = vmatprep.subr.bf16.mxu0 0
    %309 = vmatpush1.bf16.msra.mxu0 0
    %310 = vmatprep.subr.bf16.mxu0 0
    %311 = vmatpush1.bf16.msra.mxu0 0
    %312 = vmatprep.mubr.bf16.mxu0 0
    %313 = vmatmul.mubr.bf16.gmra.mrb[0].mxu0 %v144
    %v314 = vpop.f32.mrb[0].mxu0
    %v315 = vadd.f32 %v73, %v314
    %v316 = vpop.f32.mrb[0].mxu0
    %v317 = vadd.f32 %v77, %v316
    %v318 = vpop.f32.mrb[0].mxu0
    %v319 = vadd.f32 %v73, %v318
    %v320 = vpop.f32.mrb[0].mxu0
    %v321 = vadd.f32 %v77, %v320
    %322 = vmatprep.mubr.bf16.mxu0 0
    %323 = vmatmul.mubr.bf16.gmra.mrb[0].mxu0 %v147
    %v324 = vpop.f32.mrb[0].mxu0
    %v325 = vadd.f32 %v73, %v324
    %v326 = vpop.f32.mrb[0].mxu0
    %v327 = vadd.f32 %v77, %v326
    %v328 = vpop.f32.mrb[0].mxu0
    %v329 = vadd.f32 %v73, %v328
    %v330 = vpop.f32.mrb[0].mxu0
    %v331 = vadd.f32 %v77, %v330
    %332 = vmatprep.mubr.bf16.mxu0 0
    %333 = vmatmul.mubr.bf16.gmra.mrb[0].mxu0 %v150
    %v334 = vpop.f32.mrb[0].mxu0
    %v335 = vadd.f32 %v73, %v334
    %v336 = vpop.f32.mrb[0].mxu0
    %v337 = vadd.f32 %v77, %v336
    %v338 = vpop.f32.mrb[0].mxu0
    %v339 = vadd.f32 %v73, %v338
    %v340 = vpop.f32.mrb[0].mxu0
    %v341 = vadd.f32 %v77, %v340
    %342 = vmatprep.mubr.bf16.mxu0 0
    %343 = vmatmul.mubr.bf16.gmra.mrb[0].mxu0 %v153
    %v344 = vpop.f32.mrb[0].mxu0
    %v345 = vadd.f32 %v73, %v344
    %v346 = vpop.f32.mrb[0].mxu0
    %v347 = vadd.f32 %v77, %v346
    %v348 = vpop.f32.mrb[0].mxu0
    %v349 = vadd.f32 %v73, %v348
    %v350 = vpop.f32.mrb[0].mxu0
    %v351 = vadd.f32 %v77, %v350
    %352 = vmatprep.mubr.bf16.mxu0 0
    %353 = vmatmul.mubr.bf16.gmra.mrb[0].mxu0 %v156
    %v354 = vpop.f32.mrb[0].mxu0
    %v355 = vadd.f32 %v73, %v354
    %v356 = vpop.f32.mrb[0].mxu0
    %v357 = vadd.f32 %v77, %v356
    %v358 = vpop.f32.mrb[0].mxu0
    %v359 = vadd.f32 %v73, %v358
    %v360 = vpop.f32.mrb[0].mxu0
    %v361 = vadd.f32 %v77, %v360
    %362 = vmatprep.mubr.bf16.mxu0 0
    %363 = vmatmul.mubr.bf16.gmra.mrb[0].mxu0 %v159
    %v364 = vpop.f32.mrb[0].mxu0
    %v365 = vadd.f32 %v73, %v364
    %v366 = vpop.f32.mrb[0].mxu0
    %v367 = vadd.f32 %v77, %v366
    %v368 = vpop.f32.mrb[0].mxu0
    %v369 = vadd.f32 %v73, %v368
    %v370 = vpop.f32.mrb[0].mxu0
    %v371 = vadd.f32 %v77, %v370
    %372 = vmatprep.mubr.bf16.mxu0 0
    %373 = vmatmul.mubr.bf16.gmra.mrb[0].mxu0 %v162
    %v374 = vpop.f32.mrb[0].mxu0
    %v375 = vadd.f32 %v73, %v374
    %v376 = vpop.f32.mrb[0].mxu0
    %v377 = vadd.f32 %v77, %v376
    %v378 = vpop.f32.mrb[0].mxu0
    %v379 = vadd.f32 %v73, %v378
    %v380 = vpop.f32.mrb[0].mxu0
    %v381 = vadd.f32 %v77, %v380
    %382 = vmatprep.mubr.bf16.mxu0 0
    %383 = vmatmul.mubr.bf16.gmra.mrb[0].mxu0 %v165
    %v384 = vpop.f32.mrb[0].mxu0
    %v385 = vadd.f32 %v73, %v384
    %v386 = vpop.f32.mrb[0].mxu0
    %v387 = vadd.f32 %v77, %v386
    %v388 = vpop.f32.mrb[0].mxu0
    %v389 = vadd.f32 %v73, %v388
    %v390 = vpop.f32.mrb[0].mxu0
    %v391 = vadd.f32 %v77, %v390
    %392 = vdwg.mxu0
    %393 = vst [vmem:[#allocation4] sm:$0xff] %v202
    %394 = vst [vmem:[#allocation4 + $0x8] sm:$0xff] %v204
    %395 = vst [vmem:[#allocation4 + $0x10] sm:$0xff] %v315
    %396 = vst [vmem:[#allocation4 + $0x18] sm:$0xff] %v317
    %397 = vst [vmem:[#allocation4 + $0x20] sm:$0xff] %v206
    %398 = vst [vmem:[#allocation4 + $0x28] sm:$0xff] %v208
    %399 = vst [vmem:[#allocation4 + $0x30] sm:$0xff] %v319
    %400 = vst [vmem:[#allocation4 + $0x38] sm:$0xff] %v321
    %401 = vst [vmem:[#allocation4 + $0x40] sm:$0xff] %v212
    %402 = vst [vmem:[#allocation4 + $0x48] sm:$0xff] %v214
    %403 = vst [vmem:[#allocation4 + $0x50] sm:$0xff] %v325
    %404 = vst [vmem:[#allocation4 + $0x58] sm:$0xff] %v327
    %405 = vst [vmem:[#allocation4 + $0x60] sm:$0xff] %v216
    %406 = vst [vmem:[#allocation4 + $0x68] sm:$0xff] %v218
    %407 = vst [vmem:[#allocation4 + $0x70] sm:$0xff] %v329
    %408 = vst [vmem:[#allocation4 + $0x78] sm:$0xff] %v331
    %409 = vst [vmem:[#allocation4 + $0x80] sm:$0xff] %v222
    %410 = vst [vmem:[#allocation4 + $0x88] sm:$0xff] %v224
    %411 = vst [vmem:[#allocation4 + $0x90] sm:$0xff] %v335
    %412 = vst [vmem:[#allocation4 + $0x98] sm:$0xff] %v337
    %413 = vst [vmem:[#allocation4 + $0xa0] sm:$0xff] %v226
    %414 = vst [vmem:[#allocation4 + $0xa8] sm:$0xff] %v228
    %415 = vst [vmem:[#allocation4 + $0xb0] sm:$0xff] %v339
    %416 = vst [vmem:[#allocation4 + $0xb8] sm:$0xff] %v341
    %417 = vst [vmem:[#allocation4 + $0xc0] sm:$0xff] %v232
    %418 = vst [vmem:[#allocation4 + $0xc8] sm:$0xff] %v234
    %419 = vst [vmem:[#allocation4 + $0xd0] sm:$0xff] %v345
    %420 = vst [vmem:[#allocation4 + $0xd8] sm:$0xff] %v347
    %421 = vst [vmem:[#allocation4 + $0xe0] sm:$0xff] %v236
    %422 = vst [vmem:[#allocation4 + $0xe8] sm:$0xff] %v238
    %423 = vst [vmem:[#allocation4 + $0xf0] sm:$0xff] %v349
    %424 = vst [vmem:[#allocation4 + $0xf8] sm:$0xff] %v351
    %425 = vst [vmem:[#allocation4 + $0x100] sm:$0xff] %v242
    %426 = vst [vmem:[#allocation4 + $0x108] sm:$0xff] %v244
    %427 = vst [vmem:[#allocation4 + $0x110] sm:$0xff] %v355
    %428 = vst [vmem:[#allocation4 + $0x118] sm:$0xff] %v357
    %429 = vst [vmem:[#allocation4 + $0x120] sm:$0xff] %v246
    %430 = vst [vmem:[#allocation4 + $0x128] sm:$0xff] %v248
    %431 = vst [vmem:[#allocation4 + $0x130] sm:$0xff] %v359
    %432 = vst [vmem:[#allocation4 + $0x138] sm:$0xff] %v361
    %433 = vst [vmem:[#allocation4 + $0x140] sm:$0xff] %v252
    %434 = vst [vmem:[#allocation4 + $0x148] sm:$0xff] %v254
    %435 = vst [vmem:[#allocation4 + $0x150] sm:$0xff] %v365
    %436 = vst [vmem:[#allocation4 + $0x158] sm:$0xff] %v367
    %437 = vst [vmem:[#allocation4 + $0x160] sm:$0xff] %v256
    %438 = vst [vmem:[#allocation4 + $0x168] sm:$0xff] %v258
    %439 = vst [vmem:[#allocation4 + $0x170] sm:$0xff] %v369
    %440 = vst [vmem:[#allocation4 + $0x178] sm:$0xff] %v371
    %441 = vst [vmem:[#allocation4 + $0x180] sm:$0xff] %v262
    %442 = vst [vmem:[#allocation4 + $0x188] sm:$0xff] %v264
    %443 = vst [vmem:[#allocation4 + $0x190] sm:$0xff] %v375
    %444 = vst [vmem:[#allocation4 + $0x198] sm:$0xff] %v377
    %445 = vst [vmem:[#allocation4 + $0x1a0] sm:$0xff] %v266
    %446 = vst [vmem:[#allocation4 + $0x1a8] sm:$0xff] %v268
    %447 = vst [vmem:[#allocation4 + $0x1b0] sm:$0xff] %v379
    %448 = vst [vmem:[#allocation4 + $0x1b8] sm:$0xff] %v381
    %449 = vst [vmem:[#allocation4 + $0x1c0] sm:$0xff] %v272
    %450 = vst [vmem:[#allocation4 + $0x1c8] sm:$0xff] %v274
    %451 = vst [vmem:[#allocation4 + $0x1d0] sm:$0xff] %v385
    %452 = vst [vmem:[#allocation4 + $0x1d8] sm:$0xff] %v387
    %453 = vst [vmem:[#allocation4 + $0x1e0] sm:$0xff] %v276
    %454 = vst [vmem:[#allocation4 + $0x1e8] sm:$0xff] %v278
    %455 = vst [vmem:[#allocation4 + $0x1f0] sm:$0xff] %v389
    %456 = vst [vmem:[#allocation4 + $0x1f8] sm:$0xff] %v391
    %v457 = vld [vmem:[#allocation2] sm:$0xff]
    %v458 = vld [vmem:[#allocation2 + $0x8] sm:$0xff]
    %v459 = vld [vmem:[#allocation3] sm:$0xff]
    %v460 = vld [vmem:[#allocation3 + $0x8] sm:$0xff]
    %v461 = vpack.c.bf16 %v458, %v457
    %v462 = vld [vmem:[#allocation4 + $0x10] sm:$0xff]
    %v463 = vld [vmem:[#allocation4 + $0x30] sm:$0xff]
    %v464 = vld [vmem:[#allocation5 + $0x8] sm:$0xf]
    %v465 = vld [vmem:[#allocation5 + $0x18] sm:$0xf]
    %v466 = vld [vmem:[#allocation5 + $0x28] sm:$0xf]
    %v467 = vld [vmem:[#allocation5 + $0x38] sm:$0xf]
    %v468 = vld [vmem:[#allocation5 + $0x48] sm:$0xf]
    %v469 = vld [vmem:[#allocation5 + $0x58] sm:$0xf]
    %v470 = vld [vmem:[#allocation5 + $0x68] sm:$0xf]
    %v471 = vld [vmem:[#allocation5 + $0x78] sm:$0xf]
    %v472 = vld [vmem:[#allocation5 + $0x88] sm:$0xf]
    %v473 = vld [vmem:[#allocation5 + $0x98] sm:$0xf]
    %v474 = vld [vmem:[#allocation5 + $0xa8] sm:$0xf]
    %v475 = vld [vmem:[#allocation5 + $0xb8] sm:$0xf]
    %v476 = vld [vmem:[#allocation5 + $0xc8] sm:$0xf]
    %v477 = vld [vmem:[#allocation5 + $0xd8] sm:$0xf]
    %v478 = vld [vmem:[#allocation5 + $0xe8] sm:$0xf]
    %v479 = vld [vmem:[#allocation5 + $0xf8] sm:$0xf]
    %v496 = vunpack.c.l.b16 %v464
    %v497 = vunpack.c.l.b16 %v465
    %v498 = vunpack.c.l.b16 %v466
    %v499 = vunpack.c.l.b16 %v467
    %v500 = vunpack.c.l.b16 %v468
    %v501 = vunpack.c.l.b16 %v469
    %v502 = vunpack.c.l.b16 %v470
    %v503 = vunpack.c.l.b16 %v471
    %v504 = vunpack.c.l.b16 %v472
    %v505 = vunpack.c.l.b16 %v473
    %v506 = vunpack.c.l.b16 %v474
    %v507 = vunpack.c.l.b16 %v475
    %v508 = vunpack.c.l.b16 %v476
    %v509 = vunpack.c.l.b16 %v477
    %v510 = vunpack.c.l.b16 %v478
    %v511 = vunpack.c.l.b16 %v479
    %v512 = vpack.c.b16 %v497, %v496
    %v513 = vpack.c.b16 %v499, %v498
    %v514 = vpack.c.b16 %v501, %v500
    %v515 = vpack.c.b16 %v503, %v502
    %v516 = vpack.c.b16 %v505, %v504
    %v517 = vpack.c.b16 %v507, %v506
    %v518 = vpack.c.b16 %v509, %v508
    %v519 = vpack.c.b16 %v511, %v510
    %528 = vmatprep.subr.bf16.mxu0 0
    %529 = vmatpush1.bf16.msra.mxu0 %v512
    %530 = vmatprep.subr.bf16.mxu0 0
    %531 = vmatpush1.bf16.msra.mxu0 %v513
    %532 = vmatprep.subr.bf16.mxu0 0
    %533 = vmatpush1.bf16.msra.mxu0 %v514
    %534 = vmatprep.subr.bf16.mxu0 0
    %535 = vmatpush1.bf16.msra.mxu0 %v515
    %536 = vmatprep.subr.bf16.mxu0 0
    %537 = vmatpush1.bf16.msra.mxu0 %v516
    %538 = vmatprep.subr.bf16.mxu0 0
    %539 = vmatpush1.bf16.msra.mxu0 %v517
    %540 = vmatprep.subr.bf16.mxu0 0
    %541 = vmatpush1.bf16.msra.mxu0 %v518
    %542 = vmatprep.subr.bf16.mxu0 0
    %543 = vmatpush1.bf16.msra.mxu0 %v519
    %544 = vmatprep.subr.bf16.mxu0 0
    %545 = vmatpush1.bf16.msra.mxu0 0
    %546 = vmatprep.subr.bf16.mxu0 0
    %547 = vmatpush1.bf16.msra.mxu0 0
    %548 = vmatprep.subr.bf16.mxu0 0
    %549 = vmatpush1.bf16.msra.mxu0 0
    %550 = vmatprep.subr.bf16.mxu0 0
    %551 = vmatpush1.bf16.msra.mxu0 0
    %552 = vmatprep.subr.bf16.mxu0 0
    %553 = vmatpush1.bf16.msra.mxu0 0
    %554 = vmatprep.subr.bf16.mxu0 0
    %555 = vmatpush1.bf16.msra.mxu0 0
    %556 = vmatprep.subr.bf16.mxu0 0
    %557 = vmatpush1.bf16.msra.mxu0 0
    %558 = vmatprep.subr.bf16.mxu0 0
    %559 = vmatpush1.bf16.msra.mxu0 0
    %560 = vmatprep.mubr.bf16.mxu0 0
    %561 = vmatmul.mubr.bf16.gmra.mrb[0].mxu0 %v461
    %v562 = vpop.f32.mrb[0].mxu0
    %v563 = vadd.f32 0.0, %v562
    %v564 = vpop.f32.mrb[0].mxu0
    %v565 = vpop.f32.mrb[0].mxu0
    %v566 = vadd.f32 0.0, %v565
    %v567 = vpop.f32.mrb[0].mxu0
    %568 = vdwg.mxu0
    %v569 = vadd.f32 %v462, %v563
    %v570 = vadd.f32 %v463, %v566
    %v571 = vtanh.pop %v569
    %v572 = vtanh.pop %v570
    %v573 = vld [vmem:[#allocation4] sm:$0xff]
    %v574 = vld [vmem:[#allocation4 + $0x20] sm:$0xff]
    %v575 = vld [vmem:[#allocation5] sm:$0xf]
    %v576 = vld [vmem:[#allocation5 + $0x10] sm:$0xf]
    %v577 = vld [vmem:[#allocation5 + $0x20] sm:$0xf]
    %v578 = vld [vmem:[#allocation5 + $0x30] sm:$0xf]
    %v579 = vld [vmem:[#allocation5 + $0x40] sm:$0xf]
    %v580 = vld [vmem:[#allocation5 + $0x50] sm:$0xf]
    %v581 = vld [vmem:[#allocation5 + $0x60] sm:$0xf]
    %v582 = vld [vmem:[#allocation5 + $0x70] sm:$0xf]
    %v583 = vld [vmem:[#allocation5 + $0x80] sm:$0xf]
    %v584 = vld [vmem:[#allocation5 + $0x90] sm:$0xf]
    %v585 = vld [vmem:[#allocation5 + $0xa0] sm:$0xf]
    %v586 = vld [vmem:[#allocation5 + $0xb0] sm:$0xf]
    %v587 = vld [vmem:[#allocation5 + $0xc0] sm:$0xf]
    %v588 = vld [vmem:[#allocation5 + $0xd0] sm:$0xf]
    %v589 = vld [vmem:[#allocation5 + $0xe0] sm:$0xf]
    %v590 = vld [vmem:[#allocation5 + $0xf0] sm:$0xf]
    %v607 = vunpack.c.l.b16 %v575
    %v608 = vunpack.c.l.b16 %v576
    %v609 = vunpack.c.l.b16 %v577
    %v610 = vunpack.c.l.b16 %v578
    %v611 = vunpack.c.l.b16 %v579
    %v612 = vunpack.c.l.b16 %v580
    %v613 = vunpack.c.l.b16 %v581
    %v614 = vunpack.c.l.b16 %v582
    %v615 = vunpack.c.l.b16 %v583
    %v616 = vunpack.c.l.b16 %v584
    %v617 = vunpack.c.l.b16 %v585
    %v618 = vunpack.c.l.b16 %v586
    %v619 = vunpack.c.l.b16 %v587
    %v620 = vunpack.c.l.b16 %v588
    %v621 = vunpack.c.l.b16 %v589
    %v622 = vunpack.c.l.b16 %v590
    %v623 = vpack.c.b16 %v608, %v607
    %v624 = vpack.c.b16 %v610, %v609
    %v625 = vpack.c.b16 %v612, %v611
    %v626 = vpack.c.b16 %v614, %v613
    %v627 = vpack.c.b16 %v616, %v615
    %v628 = vpack.c.b16 %v618, %v617
    %v629 = vpack.c.b16 %v620, %v619
    %v630 = vpack.c.b16 %v622, %v621
    %639 = vmatprep.subr.bf16.mxu0 0
    %640 = vmatpush1.bf16.msra.mxu0 %v623
    %641 = vmatprep.subr.bf16.mxu0 0
    %642 = vmatpush1.bf16.msra.mxu0 %v624
    %643 = vmatprep.subr.bf16.mxu0 0
    %644 = vmatpush1.bf16.msra.mxu0 %v625
    %645 = vmatprep.subr.bf16.mxu0 0
    %646 = vmatpush1.bf16.msra.mxu0 %v626
    %647 = vmatprep.subr.bf16.mxu0 0
    %648 = vmatpush1.bf16.msra.mxu0 %v627
    %649 = vmatprep.subr.bf16.mxu0 0
    %650 = vmatpush1.bf16.msra.mxu0 %v628
    %651 = vmatprep.subr.bf16.mxu0 0
    %652 = vmatpush1.bf16.msra.mxu0 %v629
    %653 = vmatprep.subr.bf16.mxu0 0
    %654 = vmatpush1.bf16.msra.mxu0 %v630
    %655 = vmatprep.subr.bf16.mxu0 0
    %656 = vmatpush1.bf16.msra.mxu0 0
    %657 = vmatprep.subr.bf16.mxu0 0
    %658 = vmatpush1.bf16.msra.mxu0 0
    %659 = vmatprep.subr.bf16.mxu0 0
    %660 = vmatpush1.bf16.msra.mxu0 0
    %661 = vmatprep.subr.bf16.mxu0 0
    %662 = vmatpush1.bf16.msra.mxu0 0
    %663 = vmatprep.subr.bf16.mxu0 0
    %664 = vmatpush1.bf16.msra.mxu0 0
    %665 = vmatprep.subr.bf16.mxu0 0
    %666 = vmatpush1.bf16.msra.mxu0 0
    %667 = vmatprep.subr.bf16.mxu0 0
    %668 = vmatpush1.bf16.msra.mxu0 0
    %669 = vmatprep.subr.bf16.mxu0 0
    %670 = vmatpush1.bf16.msra.mxu0 0
    %671 = vmatprep.mubr.bf16.mxu0 0
    %672 = vmatmul.mubr.bf16.gmra.mrb[0].mxu0 %v461
    %v673 = vpop.f32.mrb[0].mxu0
    %v674 = vadd.f32 0.0, %v673
    %v675 = vpop.f32.mrb[0].mxu0
    %v676 = vpop.f32.mrb[0].mxu0
    %v677 = vadd.f32 0.0, %v676
    %v678 = vpop.f32.mrb[0].mxu0
    %679 = vdwg.mxu0
    %v680 = vadd.f32 %v573, %v674
    %v681 = vadd.f32 %v574, %v677
    %v682 = vmul.f32 %v680, 0.5
    %v683 = vmul.f32 %v681, 0.5
    %v684 = vtanh.pop %v682
    %v685 = vtanh.pop %v683
    %v686 = vmul.f32 %v684, 0.5
    %v687 = vmul.f32 %v685, 0.5
    %v688 = vadd.f32 %v686, 0.5
    %v689 = vadd.f32 %v687, 0.5
    %v690 = vmul.f32 %v688, %v571
    %v691 = vmul.f32 %v689, %v572
    %v692 = vld [vmem:[#allocation4 + $0x8] sm:$0xff]
    %v693 = vld [vmem:[#allocation4 + $0x28] sm:$0xff]
    %v694 = vld [vmem:[#allocation5 + $0x4] sm:$0xf]
    %v695 = vld [vmem:[#allocation5 + $0x14] sm:$0xf]
    %v696 = vld [vmem:[#allocation5 + $0x24] sm:$0xf]
    %v697 = vld [vmem:[#allocation5 + $0x34] sm:$0xf]
    %v698 = vld [vmem:[#allocation5 + $0x44] sm:$0xf]
    %v699 = vld [vmem:[#allocation5 + $0x54] sm:$0xf]
    %v700 = vld [vmem:[#allocation5 + $0x64] sm:$0xf]
    %v701 = vld [vmem:[#allocation5 + $0x74] sm:$0xf]
    %v702 = vld [vmem:[#allocation5 + $0x84] sm:$0xf]
    %v703 = vld [vmem:[#allocation5 + $0x94] sm:$0xf]
    %v704 = vld [vmem:[#allocation5 + $0xa4] sm:$0xf]
    %v705 = vld [vmem:[#allocation5 + $0xb4] sm:$0xf]
    %v706 = vld [vmem:[#allocation5 + $0xc4] sm:$0xf]
    %v707 = vld [vmem:[#allocation5 + $0xd4] sm:$0xf]
    %v708 = vld [vmem:[#allocation5 + $0xe4] sm:$0xf]
    %v709 = vld [vmem:[#allocation5 + $0xf4] sm:$0xf]
    %v726 = vunpack.c.l.b16 %v694
    %v727 = vunpack.c.l.b16 %v695
    %v728 = vunpack.c.l.b16 %v696
    %v729 = vunpack.c.l.b16 %v697
    %v730 = vunpack.c.l.b16 %v698
    %v731 = vunpack.c.l.b16 %v699
    %v732 = vunpack.c.l.b16 %v700
    %v733 = vunpack.c.l.b16 %v701
    %v734 = vunpack.c.l.b16 %v702
    %v735 = vunpack.c.l.b16 %v703
    %v736 = vunpack.c.l.b16 %v704
    %v737 = vunpack.c.l.b16 %v705
    %v738 = vunpack.c.l.b16 %v706
    %v739 = vunpack.c.l.b16 %v707
    %v740 = vunpack.c.l.b16 %v708
    %v741 = vunpack.c.l.b16 %v709
    %v742 = vpack.c.b16 %v727, %v726
    %v743 = vpack.c.b16 %v729, %v728
    %v744 = vpack.c.b16 %v731, %v730
    %v745 = vpack.c.b16 %v733, %v732
    %v746 = vpack.c.b16 %v735, %v734
    %v747 = vpack.c.b16 %v737, %v736
    %v748 = vpack.c.b16 %v739, %v738
    %v749 = vpack.c.b16 %v741, %v740
    %758 = vmatprep.subr.bf16.mxu0 0
    %759 = vmatpush1.bf16.msra.mxu0 %v742
    %760 = vmatprep.subr.bf16.mxu0 0
    %761 = vmatpush1.bf16.msra.mxu0 %v743
    %762 = vmatprep.subr.bf16.mxu0 0
    %763 = vmatpush1.bf16.msra.mxu0 %v744
    %764 = vmatprep.subr.bf16.mxu0 0
    %765 = vmatpush1.bf16.msra.mxu0 %v745
    %766 = vmatprep.subr.bf16.mxu0 0
    %767 = vmatpush1.bf16.msra.mxu0 %v746
    %768 = vmatprep.subr.bf16.mxu0 0
    %769 = vmatpush1.bf16.msra.mxu0 %v747
    %770 = vmatprep.subr.bf16.mxu0 0
    %771 = vmatpush1.bf16.msra.mxu0 %v748
    %772 = vmatprep.subr.bf16.mxu0 0
    %773 = vmatpush1.bf16.msra.mxu0 %v749
    %774 = vmatprep.subr.bf16.mxu0 0
    %775 = vmatpush1.bf16.msra.mxu0 0
    %776 = vmatprep.subr.bf16.mxu0 0
    %777 = vmatpush1.bf16.msra.mxu0 0
    %778 = vmatprep.subr.bf16.mxu0 0
    %779 = vmatpush1.bf16.msra.mxu0 0
    %780 = vmatprep.subr.bf16.mxu0 0
    %781 = vmatpush1.bf16.msra.mxu0 0
    %782 = vmatprep.subr.bf16.mxu0 0
    %783 = vmatpush1.bf16.msra.mxu0 0
    %784 = vmatprep.subr.bf16.mxu0 0
    %785 = vmatpush1.bf16.msra.mxu0 0
    %786 = vmatprep.subr.bf16.mxu0 0
    %787 = vmatpush1.bf16.msra.mxu0 0
    %788 = vmatprep.subr.bf16.mxu0 0
    %789 = vmatpush1.bf16.msra.mxu0 0
    %790 = vmatprep.mubr.bf16.mxu0 0
    %791 = vmatmul.mubr.bf16.gmra.mrb[0].mxu0 %v461
    %v792 = vpop.f32.mrb[0].mxu0
    %v793 = vadd.f32 0.0, %v792
    %v794 = vpop.f32.mrb[0].mxu0
    %v795 = vpop.f32.mrb[0].mxu0
    %v796 = vadd.f32 0.0, %v795
    %v797 = vpop.f32.mrb[0].mxu0
    %798 = vdwg.mxu0
    %v799 = vadd.f32 %v692, %v793
    %v800 = vadd.f32 %v693, %v796
    %v801 = vmul.f32 %v799, 0.5
    %v802 = vmul.f32 %v800, 0.5
    %v803 = vtanh.pop %v801
    %v804 = vtanh.pop %v802
    %v805 = vmul.f32 %v803, 0.5
    %v806 = vmul.f32 %v804, 0.5
    %v807 = vadd.f32 %v805, 0.5
    %v808 = vadd.f32 %v806, 0.5
    %v809 = vmul.f32 %v807, %v459
    %v810 = vmul.f32 %v808, %v460
    %v811 = vadd.f32 %v809, %v690
    %v812 = vadd.f32 %v810, %v691
    %v813 = vld [vmem:[#allocation4 + $0x18] sm:$0xff]
    %v814 = vld [vmem:[#allocation4 + $0x38] sm:$0xff]
    %v815 = vld [vmem:[#allocation5 + $0xc] sm:$0xf]
    %v816 = vld [vmem:[#allocation5 + $0x1c] sm:$0xf]
    %v817 = vld [vmem:[#allocation5 + $0x2c] sm:$0xf]
    %v818 = vld [vmem:[#allocation5 + $0x3c] sm:$0xf]
    %v819 = vld [vmem:[#allocation5 + $0x4c] sm:$0xf]
    %v820 = vld [vmem:[#allocation5 + $0x5c] sm:$0xf]
    %v821 = vld [vmem:[#allocation5 + $0x6c] sm:$0xf]
    %v822 = vld [vmem:[#allocation5 + $0x7c] sm:$0xf]
    %v823 = vld [vmem:[#allocation5 + $0x8c] sm:$0xf]
    %v824 = vld [vmem:[#allocation5 + $0x9c] sm:$0xf]
    %v825 = vld [vmem:[#allocation5 + $0xac] sm:$0xf]
    %v826 = vld [vmem:[#allocation5 + $0xbc] sm:$0xf]
    %v827 = vld [vmem:[#allocation5 + $0xcc] sm:$0xf]
    %v828 = vld [vmem:[#allocation5 + $0xdc] sm:$0xf]
    %v829 = vld [vmem:[#allocation5 + $0xec] sm:$0xf]
    %v830 = vld [vmem:[#allocation5 + $0xfc] sm:$0xf]
    %v847 = vunpack.c.l.b16 %v815
    %v848 = vunpack.c.l.b16 %v816
    %v849 = vunpack.c.l.b16 %v817
    %v850 = vunpack.c.l.b16 %v818
    %v851 = vunpack.c.l.b16 %v819
    %v852 = vunpack.c.l.b16 %v820
    %v853 = vunpack.c.l.b16 %v821
    %v854 = vunpack.c.l.b16 %v822
    %v855 = vunpack.c.l.b16 %v823
    %v856 = vunpack.c.l.b16 %v824
    %v857 = vunpack.c.l.b16 %v825
    %v858 = vunpack.c.l.b16 %v826
    %v859 = vunpack.c.l.b16 %v827
    %v860 = vunpack.c.l.b16 %v828
    %v861 = vunpack.c.l.b16 %v829
    %v862 = vunpack.c.l.b16 %v830
    %v863 = vpack.c.b16 %v848, %v847
    %v864 = vpack.c.b16 %v850, %v849
    %v865 = vpack.c.b16 %v852, %v851
    %v866 = vpack.c.b16 %v854, %v853
    %v867 = vpack.c.b16 %v856, %v855
    %v868 = vpack.c.b16 %v858, %v857
    %v869 = vpack.c.b16 %v860, %v859
    %v870 = vpack.c.b16 %v862, %v861
    %879 = vmatprep.subr.bf16.mxu0 0
    %880 = vmatpush1.bf16.msra.mxu0 %v863
    %881 = vmatprep.subr.bf16.mxu0 0
    %882 = vmatpush1.bf16.msra.mxu0 %v864
    %883 = vmatprep.subr.bf16.mxu0 0
    %884 = vmatpush1.bf16.msra.mxu0 %v865
    %885 = vmatprep.subr.bf16.mxu0 0
    %886 = vmatpush1.bf16.msra.mxu0 %v866
    %887 = vmatprep.subr.bf16.mxu0 0
    %888 = vmatpush1.bf16.msra.mxu0 %v867
    %889 = vmatprep.subr.bf16.mxu0 0
    %890 = vmatpush1.bf16.msra.mxu0 %v868
    %891 = vmatprep.subr.bf16.mxu0 0
    %892 = vmatpush1.bf16.msra.mxu0 %v869
    %893 = vmatprep.subr.bf16.mxu0 0
    %894 = vmatpush1.bf16.msra.mxu0 %v870
    %895 = vmatprep.subr.bf16.mxu0 0
    %896 = vmatpush1.bf16.msra.mxu0 0
    %897 = vmatprep.subr.bf16.mxu0 0
    %898 = vmatpush1.bf16.msra.mxu0 0
    %899 = vmatprep.subr.bf16.mxu0 0
    %900 = vmatpush1.bf16.msra.mxu0 0
    %901 = vmatprep.subr.bf16.mxu0 0
    %902 = vmatpush1.bf16.msra.mxu0 0
    %903 = vmatprep.subr.bf16.mxu0 0
    %904 = vmatpush1.bf16.msra.mxu0 0
    %905 = vmatprep.subr.bf16.mxu0 0
    %906 = vmatpush1.bf16.msra.mxu0 0
    %907 = vmatprep.subr.bf16.mxu0 0
    %908 = vmatpush1.bf16.msra.mxu0 0
    %909 = vmatprep.subr.bf16.mxu0 0
    %910 = vmatpush1.bf16.msra.mxu0 0
    %911 = vmatprep.mubr.bf16.mxu0 0
    %912 = vmatmul.mubr.bf16.gmra.mrb[0].mxu0 %v461
    %v913 = vpop.f32.mrb[0].mxu0
    %v914 = vadd.f32 0.0, %v913
    %v915 = vpop.f32.mrb[0].mxu0
    %v916 = vpop.f32.mrb[0].mxu0
    %v917 = vadd.f32 0.0, %v916
    %v918 = vpop.f32.mrb[0].mxu0
    %919 = vdwg.mxu0
    %v920 = vadd.f32 %v813, %v914
    %v921 = vadd.f32 %v814, %v917
    %v922 = vmul.f32 %v920, 0.5
    %v923 = vmul.f32 %v921, 0.5
    %v924 = vtanh.pop %v922
    %v925 = vtanh.pop %v923
    %v926 = vmul.f32 %v924, 0.5
    %v927 = vmul.f32 %v925, 0.5
    %v928 = vadd.f32 %v926, 0.5
    %v929 = vadd.f32 %v927, 0.5
    %v930 = vtanh.pop %v811
    %v931 = vtanh.pop %v812
    %v932 = vmul.f32 %v928, %v930
    %v933 = vmul.f32 %v929, %v931
    %v934 = vpack.c.bf16 %v933, %v932
    %v936 = vunpack.c.l.b16 %v934
    %v937 = vunpack.c.h.b16 %v934
    %v938 = vpack.c.b16 %v936, %v936
    %v939 = vpack.c.b16 %v937, %v937
    %942 = vst [vmem:[%s4] sm:$0xf] %v938
    %943 = vst [vmem:[%s4 + $0x4] sm:$0xf] %v939
    %v944 = vld [vmem:[#allocation4 + $0x50] sm:$0xff]
    %v945 = vld [vmem:[#allocation4 + $0x70] sm:$0xff]
    %v946 = vld [vmem:[#allocation5 + $0x8] sm:$0xf]
    %v947 = vld [vmem:[#allocation5 + $0x18] sm:$0xf]
    %v948 = vld [vmem:[#allocation5 + $0x28] sm:$0xf]
    %v949 = vld [vmem:[#allocation5 + $0x38] sm:$0xf]
    %v950 = vld [vmem:[#allocation5 + $0x48] sm:$0xf]
    %v951 = vld [vmem:[#allocation5 + $0x58] sm:$0xf]
    %v952 = vld [vmem:[#allocation5 + $0x68] sm:$0xf]
    %v953 = vld [vmem:[#allocation5 + $0x78] sm:$0xf]
    %v954 = vld [vmem:[#allocation5 + $0x88] sm:$0xf]
    %v955 = vld [vmem:[#allocation5 + $0x98] sm:$0xf]
    %v956 = vld [vmem:[#allocation5 + $0xa8] sm:$0xf]
    %v957 = vld [vmem:[#allocation5 + $0xb8] sm:$0xf]
    %v958 = vld [vmem:[#allocation5 + $0xc8] sm:$0xf]
    %v959 = vld [vmem:[#allocation5 + $0xd8] sm:$0xf]
    %v960 = vld [vmem:[#allocation5 + $0xe8] sm:$0xf]
    %v961 = vld [vmem:[#allocation5 + $0xf8] sm:$0xf]
    %v978 = vunpack.c.l.b16 %v946
    %v979 = vunpack.c.l.b16 %v947
    %v980 = vunpack.c.l.b16 %v948
    %v981 = vunpack.c.l.b16 %v949
    %v982 = vunpack.c.l.b16 %v950
    %v983 = vunpack.c.l.b16 %v951
    %v984 = vunpack.c.l.b16 %v952
    %v985 = vunpack.c.l.b16 %v953
    %v986 = vunpack.c.l.b16 %v954
    %v987 = vunpack.c.l.b16 %v955
    %v988 = vunpack.c.l.b16 %v956
    %v989 = vunpack.c.l.b16 %v957
    %v990 = vunpack.c.l.b16 %v958
    %v991 = vunpack.c.l.b16 %v959
    %v992 = vunpack.c.l.b16 %v960
    %v993 = vunpack.c.l.b16 %v961
    %v994 = vpack.c.b16 %v979, %v978
    %v995 = vpack.c.b16 %v981, %v980
    %v996 = vpack.c.b16 %v983, %v982
    %v997 = vpack.c.b16 %v985, %v984
    %v998 = vpack.c.b16 %v987, %v986
    %v999 = vpack.c.b16 %v989, %v988
    %v1000 = vpack.c.b16 %v991, %v990
    %v1001 = vpack.c.b16 %v993, %v992
    %1010 = vmatprep.subr.bf16.mxu0 0
    %1011 = vmatpush1.bf16.msra.mxu0 %v994
    %1012 = vmatprep.subr.bf16.mxu0 0
    %1013 = vmatpush1.bf16.msra.mxu0 %v995
    %1014 = vmatprep.subr.bf16.mxu0 0
    %1015 = vmatpush1.bf16.msra.mxu0 %v996
    %1016 = vmatprep.subr.bf16.mxu0 0
    %1017 = vmatpush1.bf16.msra.mxu0 %v997
    %1018 = vmatprep.subr.bf16.mxu0 0
    %1019 = vmatpush1.bf16.msra.mxu0 %v998
    %1020 = vmatprep.subr.bf16.mxu0 0
    %1021 = vmatpush1.bf16.msra.mxu0 %v999
    %1022 = vmatprep.subr.bf16.mxu0 0
    %1023 = vmatpush1.bf16.msra.mxu0 %v1000
    %1024 = vmatprep.subr.bf16.mxu0 0
    %1025 = vmatpush1.bf16.msra.mxu0 %v1001
    %1026 = vmatprep.subr.bf16.mxu0 0
    %1027 = vmatpush1.bf16.msra.mxu0 0
    %1028 = vmatprep.subr.bf16.mxu0 0
    %1029 = vmatpush1.bf16.msra.mxu0 0
    %1030 = vmatprep.subr.bf16.mxu0 0
    %1031 = vmatpush1.bf16.msra.mxu0 0
    %1032 = vmatprep.subr.bf16.mxu0 0
    %1033 = vmatpush1.bf16.msra.mxu0 0
    %1034 = vmatprep.subr.bf16.mxu0 0
    %1035 = vmatpush1.bf16.msra.mxu0 0
    %1036 = vmatprep.subr.bf16.mxu0 0
    %1037 = vmatpush1.bf16.msra.mxu0 0
    %1038 = vmatprep.subr.bf16.mxu0 0
    %1039 = vmatpush1.bf16.msra.mxu0 0
    %1040 = vmatprep.subr.bf16.mxu0 0
    %1041 = vmatpush1.bf16.msra.mxu0 0
    %1042 = vmatprep.mubr.bf16.mxu0 0
    %1043 = vmatmul.mubr.bf16.gmra.mrb[0].mxu0 %v934
    %v1044 = vpop.f32.mrb[0].mxu0
    %v1045 = vadd.f32 0.0, %v1044
    %v1046 = vpop.f32.mrb[0].mxu0
    %v1047 = vpop.f32.mrb[0].mxu0
    %v1048 = vadd.f32 0.0, %v1047
    %v1049 = vpop.f32.mrb[0].mxu0
    %1050 = vdwg.mxu0
    %v1051 = vadd.f32 %v944, %v1045
    %v1052 = vadd.f32 %v945, %v1048
    %v1053 = vtanh.pop %v1051
    %v1054 = vtanh.pop %v1052
    %v1055 = vld [vmem:[#allocation4 + $0x40] sm:$0xff]
    %v1056 = vld [vmem:[#allocation4 + $0x60] sm:$0xff]
    %v1057 = vld [vmem:[#allocation5] sm:$0xf]
    %v1058 = vld [vmem:[#allocation5 + $0x10] sm:$0xf]
    %v1059 = vld [vmem:[#allocation5 + $0x20] sm:$0xf]
    %v1060 = vld [vmem:[#allocation5 + $0x30] sm:$0xf]
    %v1061 = vld [vmem:[#allocation5 + $0x40] sm:$0xf]
    %v1062 = vld [vmem:[#allocation5 + $0x50] sm:$0xf]
    %v1063 = vld [vmem:[#allocation5 + $0x60] sm:$0xf]
    %v1064 = vld [vmem:[#allocation5 + $0x70] sm:$0xf]
    %v1065 = vld [vmem:[#allocation5 + $0x80] sm:$0xf]
    %v1066 = vld [vmem:[#allocation5 + $0x90] sm:$0xf]
    %v1067 = vld [vmem:[#allocation5 + $0xa0] sm:$0xf]
    %v1068 = vld [vmem:[#allocation5 + $0xb0] sm:$0xf]
    %v1069 = vld [vmem:[#allocation5 + $0xc0] sm:$0xf]
    %v1070 = vld [vmem:[#allocation5 + $0xd0] sm:$0xf]
    %v1071 = vld [vmem:[#allocation5 + $0xe0] sm:$0xf]
    %v1072 = vld [vmem:[#allocation5 + $0xf0] sm:$0xf]
    %v1089 = vunpack.c.l.b16 %v1057
    %v1090 = vunpack.c.l.b16 %v1058
    %v1091 = vunpack.c.l.b16 %v1059
    %v1092 = vunpack.c.l.b16 %v1060
    %v1093 = vunpack.c.l.b16 %v1061
    %v1094 = vunpack.c.l.b16 %v1062
    %v1095 = vunpack.c.l.b16 %v1063
    %v1096 = vunpack.c.l.b16 %v1064
    %v1097 = vunpack.c.l.b16 %v1065
    %v1098 = vunpack.c.l.b16 %v1066
    %v1099 = vunpack.c.l.b16 %v1067
    %v1100 = vunpack.c.l.b16 %v1068
    %v1101 = vunpack.c.l.b16 %v1069
    %v1102 = vunpack.c.l.b16 %v1070
    %v1103 = vunpack.c.l.b16 %v1071
    %v1104 = vunpack.c.l.b16 %v1072
    %v1105 = vpack.c.b16 %v1090, %v1089
    %v1106 = vpack.c.b16 %v1092, %v1091
    %v1107 = vpack.c.b16 %v1094, %v1093
    %v1108 = vpack.c.b16 %v1096, %v1095
    %v1109 = vpack.c.b16 %v1098, %v1097
    %v1110 = vpack.c.b16 %v1100, %v1099
    %v1111 = vpack.c.b16 %v1102, %v1101
    %v1112 = vpack.c.b16 %v1104, %v1103
    %1121 = vmatprep.subr.bf16.mxu0 0
    %1122 = vmatpush1.bf16.msra.mxu0 %v1105
    %1123 = vmatprep.subr.bf16.mxu0 0
    %1124 = vmatpush1.bf16.msra.mxu0 %v1106
    %1125 = vmatprep.subr.bf16.mxu0 0
    %1126 = vmatpush1.bf16.msra.mxu0 %v1107
    %1127 = vmatprep.subr.bf16.mxu0 0
    %1128 = vmatpush1.bf16.msra.mxu0 %v1108
    %1129 = vmatprep.subr.bf16.mxu0 0
    %1130 = vmatpush1.bf16.msra.mxu0 %v1109
    %1131 = vmatprep.subr.bf16.mxu0 0
    %1132 = vmatpush1.bf16.msra.mxu0 %v1110
    %1133 = vmatprep.subr.bf16.mxu0 0
    %1134 = vmatpush1.bf16.msra.mxu0 %v1111
    %1135 = vmatprep.subr.bf16.mxu0 0
    %1136 = vmatpush1.bf16.msra.mxu0 %v1112
    %1137 = vmatprep.subr.bf16.mxu0 0
    %1138 = vmatpush1.bf16.msra.mxu0 0
    %1139 = vmatprep.subr.bf16.mxu0 0
    %1140 = vmatpush1.bf16.msra.mxu0 0
    %1141 = vmatprep.subr.bf16.mxu0 0
    %1142 = vmatpush1.bf16.msra.mxu0 0
    %1143 = vmatprep.subr.bf16.mxu0 0
    %1144 = vmatpush1.bf16.msra.mxu0 0
    %1145 = vmatprep.subr.bf16.mxu0 0
    %1146 = vmatpush1.bf16.msra.mxu0 0
    %1147 = vmatprep.subr.bf16.mxu0 0
    %1148 = vmatpush1.bf16.msra.mxu0 0
    %1149 = vmatprep.subr.bf16.mxu0 0
    %1150 = vmatpush1.bf16.msra.mxu0 0
    %1151 = vmatprep.subr.bf16.mxu0 0
    %1152 = vmatpush1.bf16.msra.mxu0 0
    %1153 = vmatprep.mubr.bf16.mxu0 0
    %1154 = vmatmul.mubr.bf16.gmra.mrb[0].mxu0 %v934
    %v1155 = vpop.f32.mrb[0].mxu0
    %v1156 = vadd.f32 0.0, %v1155
    %v1157 = vpop.f32.mrb[0].mxu0
    %v1158 = vpop.f32.mrb[0].mxu0
    %v1159 = vadd.f32 0.0, %v1158
    %v1160 = vpop.f32.mrb[0].mxu0
    %1161 = vdwg.mxu0
    %v1162 = vadd.f32 %v1055, %v1156
    %v1163 = vadd.f32 %v1056, %v1159
    %v1164 = vmul.f32 %v1162, 0.5
    %v1165 = vmul.f32 %v1163, 0.5
    %v1166 = vtanh.pop %v1164
    %v1167 = vtanh.pop %v1165
    %v1168 = vmul.f32 %v1166, 0.5
    %v1169 = vmul.f32 %v1167, 0.5
    %v1170 = vadd.f32 %v1168, 0.5
    %v1171 = vadd.f32 %v1169, 0.5
    %v1172 = vmul.f32 %v1170, %v1053
    %v1173 = vmul.f32 %v1171, %v1054
    %v1174 = vld [vmem:[#allocation4 + $0x48] sm:$0xff]
    %v1175 = vld [vmem:[#allocation4 + $0x68] sm:$0xff]
    %v1176 = vld [vmem:[#allocation5 + $0x4] sm:$0xf]
    %v1177 = vld [vmem:[#allocation5 + $0x14] sm:$0xf]
    %v1178 = vld [vmem:[#allocation5 + $0x24] sm:$0xf]
    %v1179 = vld [vmem:[#allocation5 + $0x34] sm:$0xf]
    %v1180 = vld [vmem:[#allocation5 + $0x44] sm:$0xf]
    %v1181 = vld [vmem:[#allocation5 + $0x54] sm:$0xf]
    %v1182 = vld [vmem:[#allocation5 + $0x64] sm:$0xf]
    %v1183 = vld [vmem:[#allocation5 + $0x74] sm:$0xf]
    %v1184 = vld [vmem:[#allocation5 + $0x84] sm:$0xf]
    %v1185 = vld [vmem:[#allocation5 + $0x94] sm:$0xf]
    %v1186 = vld [vmem:[#allocation5 + $0xa4] sm:$0xf]
    %v1187 = vld [vmem:[#allocation5 + $0xb4] sm:$0xf]
    %v1188 = vld [vmem:[#allocation5 + $0xc4] sm:$0xf]
    %v1189 = vld [vmem:[#allocation5 + $0xd4] sm:$0xf]
    %v1190 = vld [vmem:[#allocation5 + $0xe4] sm:$0xf]
    %v1191 = vld [vmem:[#allocation5 + $0xf4] sm:$0xf]
    %v1208 = vunpack.c.l.b16 %v1176
    %v1209 = vunpack.c.l.b16 %v1177
    %v1210 = vunpack.c.l.b16 %v1178
    %v1211 = vunpack.c.l.b16 %v1179
    %v1212 = vunpack.c.l.b16 %v1180
    %v1213 = vunpack.c.l.b16 %v1181
    %v1214 = vunpack.c.l.b16 %v1182
    %v1215 = vunpack.c.l.b16 %v1183
    %v1216 = vunpack.c.l.b16 %v1184
    %v1217 = vunpack.c.l.b16 %v1185
    %v1218 = vunpack.c.l.b16 %v1186
    %v1219 = vunpack.c.l.b16 %v1187
    %v1220 = vunpack.c.l.b16 %v1188
    %v1221 = vunpack.c.l.b16 %v1189
    %v1222 = vunpack.c.l.b16 %v1190
    %v1223 = vunpack.c.l.b16 %v1191
    %v1224 = vpack.c.b16 %v1209, %v1208
    %v1225 = vpack.c.b16 %v1211, %v1210
    %v1226 = vpack.c.b16 %v1213, %v1212
    %v1227 = vpack.c.b16 %v1215, %v1214
    %v1228 = vpack.c.b16 %v1217, %v1216
    %v1229 = vpack.c.b16 %v1219, %v1218
    %v1230 = vpack.c.b16 %v1221, %v1220
    %v1231 = vpack.c.b16 %v1223, %v1222
    %1240 = vmatprep.subr.bf16.mxu0 0
    %1241 = vmatpush1.bf16.msra.mxu0 %v1224
    %1242 = vmatprep.subr.bf16.mxu0 0
    %1243 = vmatpush1.bf16.msra.mxu0 %v1225
    %1244 = vmatprep.subr.bf16.mxu0 0
    %1245 = vmatpush1.bf16.msra.mxu0 %v1226
    %1246 = vmatprep.subr.bf16.mxu0 0
    %1247 = vmatpush1.bf16.msra.mxu0 %v1227
    %1248 = vmatprep.subr.bf16.mxu0 0
    %1249 = vmatpush1.bf16.msra.mxu0 %v1228
    %1250 = vmatprep.subr.bf16.mxu0 0
    %1251 = vmatpush1.bf16.msra.mxu0 %v1229
    %1252 = vmatprep.subr.bf16.mxu0 0
    %1253 = vmatpush1.bf16.msra.mxu0 %v1230
    %1254 = vmatprep.subr.bf16.mxu0 0
    %1255 = vmatpush1.bf16.msra.mxu0 %v1231
    %1256 = vmatprep.subr.bf16.mxu0 0
    %1257 = vmatpush1.bf16.msra.mxu0 0
    %1258 = vmatprep.subr.bf16.mxu0 0
    %1259 = vmatpush1.bf16.msra.mxu0 0
    %1260 = vmatprep.subr.bf16.mxu0 0
    %1261 = vmatpush1.bf16.msra.mxu0 0
    %1262 = vmatprep.subr.bf16.mxu0 0
    %1263 = vmatpush1.bf16.msra.mxu0 0
    %1264 = vmatprep.subr.bf16.mxu0 0
    %1265 = vmatpush1.bf16.msra.mxu0 0
    %1266 = vmatprep.subr.bf16.mxu0 0
    %1267 = vmatpush1.bf16.msra.mxu0 0
    %1268 = vmatprep.subr.bf16.mxu0 0
    %1269 = vmatpush1.bf16.msra.mxu0 0
    %1270 = vmatprep.subr.bf16.mxu0 0
    %1271 = vmatpush1.bf16.msra.mxu0 0
    %1272 = vmatprep.mubr.bf16.mxu0 0
    %1273 = vmatmul.mubr.bf16.gmra.mrb[0].mxu0 %v934
    %v1274 = vpop.f32.mrb[0].mxu0
    %v1275 = vadd.f32 0.0, %v1274
    %v1276 = vpop.f32.mrb[0].mxu0
    %v1277 = vpop.f32.mrb[0].mxu0
    %v1278 = vadd.f32 0.0, %v1277
    %v1279 = vpop.f32.mrb[0].mxu0
    %1280 = vdwg.mxu0
    %v1281 = vadd.f32 %v1174, %v1275
    %v1282 = vadd.f32 %v1175, %v1278
    %v1283 = vmul.f32 %v1281, 0.5
    %v1284 = vmul.f32 %v1282, 0.5
    %v1285 = vtanh.pop %v1283
    %v1286 = vtanh.pop %v1284
    %v1287 = vmul.f32 %v1285, 0.5
    %v1288 = vmul.f32 %v1286, 0.5
    %v1289 = vadd.f32 %v1287, 0.5
    %v1290 = vadd.f32 %v1288, 0.5
    %v1291 = vmul.f32 %v1289, %v811
    %v1292 = vmul.f32 %v1290, %v812
    %v1293 = vadd.f32 %v1291, %v1172
    %v1294 = vadd.f32 %v1292, %v1173
    %v1295 = vld [vmem:[#allocation4 + $0x58] sm:$0xff]
    %v1296 = vld [vmem:[#allocation4 + $0x78] sm:$0xff]
    %v1297 = vld [vmem:[#allocation5 + $0xc] sm:$0xf]
    %v1298 = vld [vmem:[#allocation5 + $0x1c] sm:$0xf]
    %v1299 = vld [vmem:[#allocation5 + $0x2c] sm:$0xf]
    %v1300 = vld [vmem:[#allocation5 + $0x3c] sm:$0xf]
    %v1301 = vld [vmem:[#allocation5 + $0x4c] sm:$0xf]
    %v1302 = vld [vmem:[#allocation5 + $0x5c] sm:$0xf]
    %v1303 = vld [vmem:[#allocation5 + $0x6c] sm:$0xf]
    %v1304 = vld [vmem:[#allocation5 + $0x7c] sm:$0xf]
    %v1305 = vld [vmem:[#allocation5 + $0x8c] sm:$0xf]
    %v1306 = vld [vmem:[#allocation5 + $0x9c] sm:$0xf]
    %v1307 = vld [vmem:[#allocation5 + $0xac] sm:$0xf]
    %v1308 = vld [vmem:[#allocation5 + $0xbc] sm:$0xf]
    %v1309 = vld [vmem:[#allocation5 + $0xcc] sm:$0xf]
    %v1310 = vld [vmem:[#allocation5 + $0xdc] sm:$0xf]
    %v1311 = vld [vmem:[#allocation5 + $0xec] sm:$0xf]
    %v1312 = vld [vmem:[#allocation5 + $0xfc] sm:$0xf]
    %v1329 = vunpack.c.l.b16 %v1297
    %v1330 = vunpack.c.l.b16 %v1298
    %v1331 = vunpack.c.l.b16 %v1299
    %v1332 = vunpack.c.l.b16 %v1300
    %v1333 = vunpack.c.l.b16 %v1301
    %v1334 = vunpack.c.l.b16 %v1302
    %v1335 = vunpack.c.l.b16 %v1303
    %v1336 = vunpack.c.l.b16 %v1304
    %v1337 = vunpack.c.l.b16 %v1305
    %v1338 = vunpack.c.l.b16 %v1306
    %v1339 = vunpack.c.l.b16 %v1307
    %v1340 = vunpack.c.l.b16 %v1308
    %v1341 = vunpack.c.l.b16 %v1309
    %v1342 = vunpack.c.l.b16 %v1310
    %v1343 = vunpack.c.l.b16 %v1311
    %v1344 = vunpack.c.l.b16 %v1312
    %v1345 = vpack.c.b16 %v1330, %v1329
    %v1346 = vpack.c.b16 %v1332, %v1331
    %v1347 = vpack.c.b16 %v1334, %v1333
    %v1348 = vpack.c.b16 %v1336, %v1335
    %v1349 = vpack.c.b16 %v1338, %v1337
    %v1350 = vpack.c.b16 %v1340, %v1339
    %v1351 = vpack.c.b16 %v1342, %v1341
    %v1352 = vpack.c.b16 %v1344, %v1343
    %1361 = vmatprep.subr.bf16.mxu0 0
    %1362 = vmatpush1.bf16.msra.mxu0 %v1345
    %1363 = vmatprep.subr.bf16.mxu0 0
    %1364 = vmatpush1.bf16.msra.mxu0 %v1346
    %1365 = vmatprep.subr.bf16.mxu0 0
    %1366 = vmatpush1.bf16.msra.mxu0 %v1347
    %1367 = vmatprep.subr.bf16.mxu0 0
    %1368 = vmatpush1.bf16.msra.mxu0 %v1348
    %1369 = vmatprep.subr.bf16.mxu0 0
    %1370 = vmatpush1.bf16.msra.mxu0 %v1349
    %1371 = vmatprep.subr.bf16.mxu0 0
    %1372 = vmatpush1.bf16.msra.mxu0 %v1350
    %1373 = vmatprep.subr.bf16.mxu0 0
    %1374 = vmatpush1.bf16.msra.mxu0 %v1351
    %1375 = vmatprep.subr.bf16.mxu0 0
    %1376 = vmatpush1.bf16.msra.mxu0 %v1352
    %1377 = vmatprep.subr.bf16.mxu0 0
    %1378 = vmatpush1.bf16.msra.mxu0 0
    %1379 = vmatprep.subr.bf16.mxu0 0
    %1380 = vmatpush1.bf16.msra.mxu0 0
    %1381 = vmatprep.subr.bf16.mxu0 0
    %1382 = vmatpush1.bf16.msra.mxu0 0
    %1383 = vmatprep.subr.bf16.mxu0 0
    %1384 = vmatpush1.bf16.msra.mxu0 0
    %1385 = vmatprep.subr.bf16.mxu0 0
    %1386 = vmatpush1.bf16.msra.mxu0 0
    %1387 = vmatprep.subr.bf16.mxu0 0
    %1388 = vmatpush1.bf16.msra.mxu0 0
    %1389 = vmatprep.subr.bf16.mxu0 0
    %1390 = vmatpush1.bf16.msra.mxu0 0
    %1391 = vmatprep.subr.bf16.mxu0 0
    %1392 = vmatpush1.bf16.msra.mxu0 0
    %1393 = vmatprep.mubr.bf16.mxu0 0
    %1394 = vmatmul.mubr.bf16.gmra.mrb[0].mxu0 %v934
    %v1395 = vpop.f32.mrb[0].mxu0
    %v1396 = vadd.f32 0.0, %v1395
    %v1397 = vpop.f32.mrb[0].mxu0
    %v1398 = vpop.f32.mrb[0].mxu0
    %v1399 = vadd.f32 0.0, %v1398
    %v1400 = vpop.f32.mrb[0].mxu0
    %1401 = vdwg.mxu0
    %v1402 = vadd.f32 %v1295, %v1396
    %v1403 = vadd.f32 %v1296, %v1399
    %v1404 = vmul.f32 %v1402, 0.5
    %v1405 = vmul.f32 %v1403, 0.5
    %v1406 = vtanh.pop %v1404
    %v1407 = vtanh.pop %v1405
    %v1408 = vmul.f32 %v1406, 0.5
    %v1409 = vmul.f32 %v1407, 0.5
    %v1410 = vadd.f32 %v1408, 0.5
    %v1411 = vadd.f32 %v1409, 0.5
    %v1412 = vtanh.pop %v1293
    %v1413 = vtanh.pop %v1294
    %v1414 = vmul.f32 %v1410, %v1412
    %v1415 = vmul.f32 %v1411, %v1413
    %v1416 = vpack.c.bf16 %v1415, %v1414
    %v1418 = vunpack.c.l.b16 %v1416
    %v1419 = vunpack.c.h.b16 %v1416
    %v1420 = vpack.c.b16 %v1418, %v1418
    %v1421 = vpack.c.b16 %v1419, %v1419
    %s1424 = scalar_lea.vmem %s4, 8
    %1425 = vst [vmem:[%s1424] sm:$0xf] %v1420
    %1426 = vst [vmem:[%s1424 + $0x4] sm:$0xf] %v1421
    %v1427 = vld [vmem:[#allocation4 + $0x90] sm:$0xff]
    %v1428 = vld [vmem:[#allocation4 + $0xb0] sm:$0xff]
    %v1429 = vld [vmem:[#allocation5 + $0x8] sm:$0xf]
    %v1430 = vld [vmem:[#allocation5 + $0x18] sm:$0xf]
    %v1431 = vld [vmem:[#allocation5 + $0x28] sm:$0xf]
    %v1432 = vld [vmem:[#allocation5 + $0x38] sm:$0xf]
    %v1433 = vld [vmem:[#allocation5 + $0x48] sm:$0xf]
    %v1434 = vld [vmem:[#allocation5 + $0x58] sm:$0xf]
    %v1435 = vld [vmem:[#allocation5 + $0x68] sm:$0xf]
    %v1436 = vld [vmem:[#allocation5 + $0x78] sm:$0xf]
    %v1437 = vld [vmem:[#allocation5 + $0x88] sm:$0xf]
    %v1438 = vld [vmem:[#allocation5 + $0x98] sm:$0xf]
    %v1439 = vld [vmem:[#allocation5 + $0xa8] sm:$0xf]
    %v1440 = vld [vmem:[#allocation5 + $0xb8] sm:$0xf]
    %v1441 = vld [vmem:[#allocation5 + $0xc8] sm:$0xf]
    %v1442 = vld [vmem:[#allocation5 + $0xd8] sm:$0xf]
    %v1443 = vld [vmem:[#allocation5 + $0xe8] sm:$0xf]
    %v1444 = vld [vmem:[#allocation5 + $0xf8] sm:$0xf]
    %v1461 = vunpack.c.l.b16 %v1429
    %v1462 = vunpack.c.l.b16 %v1430
    %v1463 = vunpack.c.l.b16 %v1431
    %v1464 = vunpack.c.l.b16 %v1432
    %v1465 = vunpack.c.l.b16 %v1433
    %v1466 = vunpack.c.l.b16 %v1434
    %v1467 = vunpack.c.l.b16 %v1435
    %v1468 = vunpack.c.l.b16 %v1436
    %v1469 = vunpack.c.l.b16 %v1437
    %v1470 = vunpack.c.l.b16 %v1438
    %v1471 = vunpack.c.l.b16 %v1439
    %v1472 = vunpack.c.l.b16 %v1440
    %v1473 = vunpack.c.l.b16 %v1441
    %v1474 = vunpack.c.l.b16 %v1442
    %v1475 = vunpack.c.l.b16 %v1443
    %v1476 = vunpack.c.l.b16 %v1444
    %v1477 = vpack.c.b16 %v1462, %v1461
    %v1478 = vpack.c.b16 %v1464, %v1463
    %v1479 = vpack.c.b16 %v1466, %v1465
    %v1480 = vpack.c.b16 %v1468, %v1467
    %v1481 = vpack.c.b16 %v1470, %v1469
    %v1482 = vpack.c.b16 %v1472, %v1471
    %v1483 = vpack.c.b16 %v1474, %v1473
    %v1484 = vpack.c.b16 %v1476, %v1475
    %1493 = vmatprep.subr.bf16.mxu0 0
    %1494 = vmatpush1.bf16.msra.mxu0 %v1477
    %1495 = vmatprep.subr.bf16.mxu0 0
    %1496 = vmatpush1.bf16.msra.mxu0 %v1478
    %1497 = vmatprep.subr.bf16.mxu0 0
    %1498 = vmatpush1.bf16.msra.mxu0 %v1479
    %1499 = vmatprep.subr.bf16.mxu0 0
    %1500 = vmatpush1.bf16.msra.mxu0 %v1480
    %1501 = vmatprep.subr.bf16.mxu0 0
    %1502 = vmatpush1.bf16.msra.mxu0 %v1481
    %1503 = vmatprep.subr.bf16.mxu0 0
    %1504 = vmatpush1.bf16.msra.mxu0 %v1482
    %1505 = vmatprep.subr.bf16.mxu0 0
    %1506 = vmatpush1.bf16.msra.mxu0 %v1483
    %1507 = vmatprep.subr.bf16.mxu0 0
    %1508 = vmatpush1.bf16.msra.mxu0 %v1484
    %1509 = vmatprep.subr.bf16.mxu0 0
    %1510 = vmatpush1.bf16.msra.mxu0 0
    %1511 = vmatprep.subr.bf16.mxu0 0
    %1512 = vmatpush1.bf16.msra.mxu0 0
    %1513 = vmatprep.subr.bf16.mxu0 0
    %1514 = vmatpush1.bf16.msra.mxu0 0
    %1515 = vmatprep.subr.bf16.mxu0 0
    %1516 = vmatpush1.bf16.msra.mxu0 0
    %1517 = vmatprep.subr.bf16.mxu0 0
    %1518 = vmatpush1.bf16.msra.mxu0 0
    %1519 = vmatprep.subr.bf16.mxu0 0
    %1520 = vmatpush1.bf16.msra.mxu0 0
    %1521 = vmatprep.subr.bf16.mxu0 0
    %1522 = vmatpush1.bf16.msra.mxu0 0
    %1523 = vmatprep.subr.bf16.mxu0 0
    %1524 = vmatpush1.bf16.msra.mxu0 0
    %1525 = vmatprep.mubr.bf16.mxu0 0
    %1526 = vmatmul.mubr.bf16.gmra.mrb[0].mxu0 %v1416
    %v1527 = vpop.f32.mrb[0].mxu0
    %v1528 = vadd.f32 0.0, %v1527
    %v1529 = vpop.f32.mrb[0].mxu0
    %v1530 = vpop.f32.mrb[0].mxu0
    %v1531 = vadd.f32 0.0, %v1530
    %v1532 = vpop.f32.mrb[0].mxu0
    %1533 = vdwg.mxu0
    %v1534 = vadd.f32 %v1427, %v1528
    %v1535 = vadd.f32 %v1428, %v1531
    %v1536 = vtanh.pop %v1534
    %v1537 = vtanh.pop %v1535
    %v1538 = vld [vmem:[#allocation4 + $0x80] sm:$0xff]
    %v1539 = vld [vmem:[#allocation4 + $0xa0] sm:$0xff]
    %v1540 = vld [vmem:[#allocation5] sm:$0xf]
    %v1541 = vld [vmem:[#allocation5 + $0x10] sm:$0xf]
    %v1542 = vld [vmem:[#allocation5 + $0x20] sm:$0xf]
    %v1543 = vld [vmem:[#allocation5 + $0x30] sm:$0xf]
    %v1544 = vld [vmem:[#allocation5 + $0x40] sm:$0xf]
    %v1545 = vld [vmem:[#allocation5 + $0x50] sm:$0xf]
    %v1546 = vld [vmem:[#allocation5 + $0x60] sm:$0xf]
    %v1547 = vld [vmem:[#allocation5 + $0x70] sm:$0xf]
    %v1548 = vld [vmem:[#allocation5 + $0x80] sm:$0xf]
    %v1549 = vld [vmem:[#allocation5 + $0x90] sm:$0xf]
    %v1550 = vld [vmem:[#allocation5 + $0xa0] sm:$0xf]
    %v1551 = vld [vmem:[#allocation5 + $0xb0] sm:$0xf]
    %v1552 = vld [vmem:[#allocation5 + $0xc0] sm:$0xf]
    %v1553 = vld [vmem:[#allocation5 + $0xd0] sm:$0xf]
    %v1554 = vld [vmem:[#allocation5 + $0xe0] sm:$0xf]
    %v1555 = vld [vmem:[#allocation5 + $0xf0] sm:$0xf]
    %v1572 = vunpack.c.l.b16 %v1540
    %v1573 = vunpack.c.l.b16 %v1541
    %v1574 = vunpack.c.l.b16 %v1542
    %v1575 = vunpack.c.l.b16 %v1543
    %v1576 = vunpack.c.l.b16 %v1544
    %v1577 = vunpack.c.l.b16 %v1545
    %v1578 = vunpack.c.l.b16 %v1546
    %v1579 = vunpack.c.l.b16 %v1547
    %v1580 = vunpack.c.l.b16 %v1548
    %v1581 = vunpack.c.l.b16 %v1549
    %v1582 = vunpack.c.l.b16 %v1550
    %v1583 = vunpack.c.l.b16 %v1551
    %v1584 = vunpack.c.l.b16 %v1552
    %v1585 = vunpack.c.l.b16 %v1553
    %v1586 = vunpack.c.l.b16 %v1554
    %v1587 = vunpack.c.l.b16 %v1555
    %v1588 = vpack.c.b16 %v1573, %v1572
    %v1589 = vpack.c.b16 %v1575, %v1574
    %v1590 = vpack.c.b16 %v1577, %v1576
    %v1591 = vpack.c.b16 %v1579, %v1578
    %v1592 = vpack.c.b16 %v1581, %v1580
    %v1593 = vpack.c.b16 %v1583, %v1582
    %v1594 = vpack.c.b16 %v1585, %v1584
    %v1595 = vpack.c.b16 %v1587, %v1586
    %1604 = vmatprep.subr.bf16.mxu0 0
    %1605 = vmatpush1.bf16.msra.mxu0 %v1588
    %1606 = vmatprep.subr.bf16.mxu0 0
    %1607 = vmatpush1.bf16.msra.mxu0 %v1589
    %1608 = vmatprep.subr.bf16.mxu0 0
    %1609 = vmatpush1.bf16.msra.mxu0 %v1590
    %1610 = vmatprep.subr.bf16.mxu0 0
    %1611 = vmatpush1.bf16.msra.mxu0 %v1591
    %1612 = vmatprep.subr.bf16.mxu0 0
    %1613 = vmatpush1.bf16.msra.mxu0 %v1592
    %1614 = vmatprep.subr.bf16.mxu0 0
    %1615 = vmatpush1.bf16.msra.mxu0 %v1593
    %1616 = vmatprep.subr.bf16.mxu0 0
    %1617 = vmatpush1.bf16.msra.mxu0 %v1594
    %1618 = vmatprep.subr.bf16.mxu0 0
    %1619 = vmatpush1.bf16.msra.mxu0 %v1595
    %1620 = vmatprep.subr.bf16.mxu0 0
    %1621 = vmatpush1.bf16.msra.mxu0 0
    %1622 = vmatprep.subr.bf16.mxu0 0
    %1623 = vmatpush1.bf16.msra.mxu0 0
    %1624 = vmatprep.subr.bf16.mxu0 0
    %1625 = vmatpush1.bf16.msra.mxu0 0
    %1626 = vmatprep.subr.bf16.mxu0 0
    %1627 = vmatpush1.bf16.msra.mxu0 0
    %1628 = vmatprep.subr.bf16.mxu0 0
    %1629 = vmatpush1.bf16.msra.mxu0 0
    %1630 = vmatprep.subr.bf16.mxu0 0
    %1631 = vmatpush1.bf16.msra.mxu0 0
    %1632 = vmatprep.subr.bf16.mxu0 0
    %1633 = vmatpush1.bf16.msra.mxu0 0
    %1634 = vmatprep.subr.bf16.mxu0 0
    %1635 = vmatpush1.bf16.msra.mxu0 0
    %1636 = vmatprep.mubr.bf16.mxu0 0
    %1637 = vmatmul.mubr.bf16.gmra.mrb[0].mxu0 %v1416
    %v1638 = vpop.f32.mrb[0].mxu0
    %v1639 = vadd.f32 0.0, %v1638
    %v1640 = vpop.f32.mrb[0].mxu0
    %v1641 = vpop.f32.mrb[0].mxu0
    %v1642 = vadd.f32 0.0, %v1641
    %v1643 = vpop.f32.mrb[0].mxu0
    %1644 = vdwg.mxu0
    %v1645 = vadd.f32 %v1538, %v1639
    %v1646 = vadd.f32 %v1539, %v1642
    %v1647 = vmul.f32 %v1645, 0.5
    %v1648 = vmul.f32 %v1646, 0.5
    %v1649 = vtanh.pop %v1647
    %v1650 = vtanh.pop %v1648
    %v1651 = vmul.f32 %v1649, 0.5
    %v1652 = vmul.f32 %v1650, 0.5
    %v1653 = vadd.f32 %v1651, 0.5
    %v1654 = vadd.f32 %v1652, 0.5
    %v1655 = vmul.f32 %v1653, %v1536
    %v1656 = vmul.f32 %v1654, %v1537
    %v1657 = vld [vmem:[#allocation4 + $0x88] sm:$0xff]
    %v1658 = vld [vmem:[#allocation4 + $0xa8] sm:$0xff]
    %v1659 = vld [vmem:[#allocation5 + $0x4] sm:$0xf]
    %v1660 = vld [vmem:[#allocation5 + $0x14] sm:$0xf]
    %v1661 = vld [vmem:[#allocation5 + $0x24] sm:$0xf]
    %v1662 = vld [vmem:[#allocation5 + $0x34] sm:$0xf]
    %v1663 = vld [vmem:[#allocation5 + $0x44] sm:$0xf]
    %v1664 = vld [vmem:[#allocation5 + $0x54] sm:$0xf]
    %v1665 = vld [vmem:[#allocation5 + $0x64] sm:$0xf]
    %v1666 = vld [vmem:[#allocation5 + $0x74] sm:$0xf]
    %v1667 = vld [vmem:[#allocation5 + $0x84] sm:$0xf]
    %v1668 = vld [vmem:[#allocation5 + $0x94] sm:$0xf]
    %v1669 = vld [vmem:[#allocation5 + $0xa4] sm:$0xf]
    %v1670 = vld [vmem:[#allocation5 + $0xb4] sm:$0xf]
    %v1671 = vld [vmem:[#allocation5 + $0xc4] sm:$0xf]
    %v1672 = vld [vmem:[#allocation5 + $0xd4] sm:$0xf]
    %v1673 = vld [vmem:[#allocation5 + $0xe4] sm:$0xf]
    %v1674 = vld [vmem:[#allocation5 + $0xf4] sm:$0xf]
    %v1691 = vunpack.c.l.b16 %v1659
    %v1692 = vunpack.c.l.b16 %v1660
    %v1693 = vunpack.c.l.b16 %v1661
    %v1694 = vunpack.c.l.b16 %v1662
    %v1695 = vunpack.c.l.b16 %v1663
    %v1696 = vunpack.c.l.b16 %v1664
    %v1697 = vunpack.c.l.b16 %v1665
    %v1698 = vunpack.c.l.b16 %v1666
    %v1699 = vunpack.c.l.b16 %v1667
    %v1700 = vunpack.c.l.b16 %v1668
    %v1701 = vunpack.c.l.b16 %v1669
    %v1702 = vunpack.c.l.b16 %v1670
    %v1703 = vunpack.c.l.b16 %v1671
    %v1704 = vunpack.c.l.b16 %v1672
    %v1705 = vunpack.c.l.b16 %v1673
    %v1706 = vunpack.c.l.b16 %v1674
    %v1707 = vpack.c.b16 %v1692, %v1691
    %v1708 = vpack.c.b16 %v1694, %v1693
    %v1709 = vpack.c.b16 %v1696, %v1695
    %v1710 = vpack.c.b16 %v1698, %v1697
    %v1711 = vpack.c.b16 %v1700, %v1699
    %v1712 = vpack.c.b16 %v1702, %v1701
    %v1713 = vpack.c.b16 %v1704, %v1703
    %v1714 = vpack.c.b16 %v1706, %v1705
    %1723 = vmatprep.subr.bf16.mxu0 0
    %1724 = vmatpush1.bf16.msra.mxu0 %v1707
    %1725 = vmatprep.subr.bf16.mxu0 0
    %1726 = vmatpush1.bf16.msra.mxu0 %v1708
    %1727 = vmatprep.subr.bf16.mxu0 0
    %1728 = vmatpush1.bf16.msra.mxu0 %v1709
    %1729 = vmatprep.subr.bf16.mxu0 0
    %1730 = vmatpush1.bf16.msra.mxu0 %v1710
    %1731 = vmatprep.subr.bf16.mxu0 0
    %1732 = vmatpush1.bf16.msra.mxu0 %v1711
    %1733 = vmatprep.subr.bf16.mxu0 0
    %1734 = vmatpush1.bf16.msra.mxu0 %v1712
    %1735 = vmatprep.subr.bf16.mxu0 0
    %1736 = vmatpush1.bf16.msra.mxu0 %v1713
    %1737 = vmatprep.subr.bf16.mxu0 0
    %1738 = vmatpush1.bf16.msra.mxu0 %v1714
    %1739 = vmatprep.subr.bf16.mxu0 0
    %1740 = vmatpush1.bf16.msra.mxu0 0
    %1741 = vmatprep.subr.bf16.mxu0 0
    %1742 = vmatpush1.bf16.msra.mxu0 0
    %1743 = vmatprep.subr.bf16.mxu0 0
    %1744 = vmatpush1.bf16.msra.mxu0 0
    %1745 = vmatprep.subr.bf16.mxu0 0
    %1746 = vmatpush1.bf16.msra.mxu0 0
    %1747 = vmatprep.subr.bf16.mxu0 0
    %1748 = vmatpush1.bf16.msra.mxu0 0
    %1749 = vmatprep.subr.bf16.mxu0 0
    %1750 = vmatpush1.bf16.msra.mxu0 0
    %1751 = vmatprep.subr.bf16.mxu0 0
    %1752 = vmatpush1.bf16.msra.mxu0 0
    %1753 = vmatprep.subr.bf16.mxu0 0
    %1754 = vmatpush1.bf16.msra.mxu0 0
    %1755 = vmatprep.mubr.bf16.mxu0 0
    %1756 = vmatmul.mubr.bf16.gmra.mrb[0].mxu0 %v1416
    %v1757 = vpop.f32.mrb[0].mxu0
    %v1758 = vadd.f32 0.0, %v1757
    %v1759 = vpop.f32.mrb[0].mxu0
    %v1760 = vpop.f32.mrb[0].mxu0
    %v1761 = vadd.f32 0.0, %v1760
    %v1762 = vpop.f32.mrb[0].mxu0
    %1763 = vdwg.mxu0
    %v1764 = vadd.f32 %v1657, %v1758
    %v1765 = vadd.f32 %v1658, %v1761
    %v1766 = vmul.f32 %v1764, 0.5
    %v1767 = vmul.f32 %v1765, 0.5
    %v1768 = vtanh.pop %v1766
    %v1769 = vtanh.pop %v1767
    %v1770 = vmul.f32 %v1768, 0.5
    %v1771 = vmul.f32 %v1769, 0.5
    %v1772 = vadd.f32 %v1770, 0.5
    %v1773 = vadd.f32 %v1771, 0.5
    %v1774 = vmul.f32 %v1772, %v1293
    %v1775 = vmul.f32 %v1773, %v1294
    %v1776 = vadd.f32 %v1774, %v1655
    %v1777 = vadd.f32 %v1775, %v1656
    %v1778 = vld [vmem:[#allocation4 + $0x98] sm:$0xff]
    %v1779 = vld [vmem:[#allocation4 + $0xb8] sm:$0xff]
    %v1780 = vld [vmem:[#allocation5 + $0xc] sm:$0xf]
    %v1781 = vld [vmem:[#allocation5 + $0x1c] sm:$0xf]
    %v1782 = vld [vmem:[#allocation5 + $0x2c] sm:$0xf]
    %v1783 = vld [vmem:[#allocation5 + $0x3c] sm:$0xf]
    %v1784 = vld [vmem:[#allocation5 + $0x4c] sm:$0xf]
    %v1785 = vld [vmem:[#allocation5 + $0x5c] sm:$0xf]
    %v1786 = vld [vmem:[#allocation5 + $0x6c] sm:$0xf]
    %v1787 = vld [vmem:[#allocation5 + $0x7c] sm:$0xf]
    %v1788 = vld [vmem:[#allocation5 + $0x8c] sm:$0xf]
    %v1789 = vld [vmem:[#allocation5 + $0x9c] sm:$0xf]
    %v1790 = vld [vmem:[#allocation5 + $0xac] sm:$0xf]
    %v1791 = vld [vmem:[#allocation5 + $0xbc] sm:$0xf]
    %v1792 = vld [vmem:[#allocation5 + $0xcc] sm:$0xf]
    %v1793 = vld [vmem:[#allocation5 + $0xdc] sm:$0xf]
    %v1794 = vld [vmem:[#allocation5 + $0xec] sm:$0xf]
    %v1795 = vld [vmem:[#allocation5 + $0xfc] sm:$0xf]
    %v1812 = vunpack.c.l.b16 %v1780
    %v1813 = vunpack.c.l.b16 %v1781
    %v1814 = vunpack.c.l.b16 %v1782
    %v1815 = vunpack.c.l.b16 %v1783
    %v1816 = vunpack.c.l.b16 %v1784
    %v1817 = vunpack.c.l.b16 %v1785
    %v1818 = vunpack.c.l.b16 %v1786
    %v1819 = vunpack.c.l.b16 %v1787
    %v1820 = vunpack.c.l.b16 %v1788
    %v1821 = vunpack.c.l.b16 %v1789
    %v1822 = vunpack.c.l.b16 %v1790
    %v1823 = vunpack.c.l.b16 %v1791
    %v1824 = vunpack.c.l.b16 %v1792
    %v1825 = vunpack.c.l.b16 %v1793
    %v1826 = vunpack.c.l.b16 %v1794
    %v1827 = vunpack.c.l.b16 %v1795
    %v1828 = vpack.c.b16 %v1813, %v1812
    %v1829 = vpack.c.b16 %v1815, %v1814
    %v1830 = vpack.c.b16 %v1817, %v1816
    %v1831 = vpack.c.b16 %v1819, %v1818
    %v1832 = vpack.c.b16 %v1821, %v1820
    %v1833 = vpack.c.b16 %v1823, %v1822
    %v1834 = vpack.c.b16 %v1825, %v1824
    %v1835 = vpack.c.b16 %v1827, %v1826
    %1844 = vmatprep.subr.bf16.mxu0 0
    %1845 = vmatpush1.bf16.msra.mxu0 %v1828
    %1846 = vmatprep.subr.bf16.mxu0 0
    %1847 = vmatpush1.bf16.msra.mxu0 %v1829
    %1848 = vmatprep.subr.bf16.mxu0 0
    %1849 = vmatpush1.bf16.msra.mxu0 %v1830
    %1850 = vmatprep.subr.bf16.mxu0 0
    %1851 = vmatpush1.bf16.msra.mxu0 %v1831
    %1852 = vmatprep.subr.bf16.mxu0 0
    %1853 = vmatpush1.bf16.msra.mxu0 %v1832
    %1854 = vmatprep.subr.bf16.mxu0 0
    %1855 = vmatpush1.bf16.msra.mxu0 %v1833
    %1856 = vmatprep.subr.bf16.mxu0 0
    %1857 = vmatpush1.bf16.msra.mxu0 %v1834
    %1858 = vmatprep.subr.bf16.mxu0 0
    %1859 = vmatpush1.bf16.msra.mxu0 %v1835
    %1860 = vmatprep.subr.bf16.mxu0 0
    %1861 = vmatpush1.bf16.msra.mxu0 0
    %1862 = vmatprep.subr.bf16.mxu0 0
    %1863 = vmatpush1.bf16.msra.mxu0 0
    %1864 = vmatprep.subr.bf16.mxu0 0
    %1865 = vmatpush1.bf16.msra.mxu0 0
    %1866 = vmatprep.subr.bf16.mxu0 0
    %1867 = vmatpush1.bf16.msra.mxu0 0
    %1868 = vmatprep.subr.bf16.mxu0 0
    %1869 = vmatpush1.bf16.msra.mxu0 0
    %1870 = vmatprep.subr.bf16.mxu0 0
    %1871 = vmatpush1.bf16.msra.mxu0 0
    %1872 = vmatprep.subr.bf16.mxu0 0
    %1873 = vmatpush1.bf16.msra.mxu0 0
    %1874 = vmatprep.subr.bf16.mxu0 0
    %1875 = vmatpush1.bf16.msra.mxu0 0
    %1876 = vmatprep.mubr.bf16.mxu0 0
    %1877 = vmatmul.mubr.bf16.gmra.mrb[0].mxu0 %v1416
    %v1878 = vpop.f32.mrb[0].mxu0
    %v1879 = vadd.f32 0.0, %v1878
    %v1880 = vpop.f32.mrb[0].mxu0
    %v1881 = vpop.f32.mrb[0].mxu0
    %v1882 = vadd.f32 0.0, %v1881
    %v1883 = vpop.f32.mrb[0].mxu0
    %1884 = vdwg.mxu0
    %v1885 = vadd.f32 %v1778, %v1879
    %v1886 = vadd.f32 %v1779, %v1882
    %v1887 = vmul.f32 %v1885, 0.5
    %v1888 = vmul.f32 %v1886, 0.5
    %v1889 = vtanh.pop %v1887
    %v1890 = vtanh.pop %v1888
    %v1891 = vmul.f32 %v1889, 0.5
    %v1892 = vmul.f32 %v1890, 0.5
    %v1893 = vadd.f32 %v1891, 0.5
    %v1894 = vadd.f32 %v1892, 0.5
    %v1895 = vtanh.pop %v1776
    %v1896 = vtanh.pop %v1777
    %v1897 = vmul.f32 %v1893, %v1895
    %v1898 = vmul.f32 %v1894, %v1896
    %v1899 = vpack.c.bf16 %v1898, %v1897
    %v1901 = vunpack.c.l.b16 %v1899
    %v1902 = vunpack.c.h.b16 %v1899
    %v1903 = vpack.c.b16 %v1901, %v1901
    %v1904 = vpack.c.b16 %v1902, %v1902
    %s1907 = scalar_lea.vmem %s4, 16
    %1908 = vst [vmem:[%s1907] sm:$0xf] %v1903
    %1909 = vst [vmem:[%s1907 + $0x4] sm:$0xf] %v1904
    %v1910 = vld [vmem:[#allocation4 + $0xd0] sm:$0xff]
    %v1911 = vld [vmem:[#allocation4 + $0xf0] sm:$0xff]
    %v1912 = vld [vmem:[#allocation5 + $0x8] sm:$0xf]
    %v1913 = vld [vmem:[#allocation5 + $0x18] sm:$0xf]
    %v1914 = vld [vmem:[#allocation5 + $0x28] sm:$0xf]
    %v1915 = vld [vmem:[#allocation5 + $0x38] sm:$0xf]
    %v1916 = vld [vmem:[#allocation5 + $0x48] sm:$0xf]
    %v1917 = vld [vmem:[#allocation5 + $0x58] sm:$0xf]
    %v1918 = vld [vmem:[#allocation5 + $0x68] sm:$0xf]
    %v1919 = vld [vmem:[#allocation5 + $0x78] sm:$0xf]
    %v1920 = vld [vmem:[#allocation5 + $0x88] sm:$0xf]
    %v1921 = vld [vmem:[#allocation5 + $0x98] sm:$0xf]
    %v1922 = vld [vmem:[#allocation5 + $0xa8] sm:$0xf]
    %v1923 = vld [vmem:[#allocation5 + $0xb8] sm:$0xf]
    %v1924 = vld [vmem:[#allocation5 + $0xc8] sm:$0xf]
    %v1925 = vld [vmem:[#allocation5 + $0xd8] sm:$0xf]
    %v1926 = vld [vmem:[#allocation5 + $0xe8] sm:$0xf]
    %v1927 = vld [vmem:[#allocation5 + $0xf8] sm:$0xf]
    %v1944 = vunpack.c.l.b16 %v1912
    %v1945 = vunpack.c.l.b16 %v1913
    %v1946 = vunpack.c.l.b16 %v1914
    %v1947 = vunpack.c.l.b16 %v1915
    %v1948 = vunpack.c.l.b16 %v1916
    %v1949 = vunpack.c.l.b16 %v1917
    %v1950 = vunpack.c.l.b16 %v1918
    %v1951 = vunpack.c.l.b16 %v1919
    %v1952 = vunpack.c.l.b16 %v1920
    %v1953 = vunpack.c.l.b16 %v1921
    %v1954 = vunpack.c.l.b16 %v1922
    %v1955 = vunpack.c.l.b16 %v1923
    %v1956 = vunpack.c.l.b16 %v1924
    %v1957 = vunpack.c.l.b16 %v1925
    %v1958 = vunpack.c.l.b16 %v1926
    %v1959 = vunpack.c.l.b16 %v1927
    %v1960 = vpack.c.b16 %v1945, %v1944
    %v1961 = vpack.c.b16 %v1947, %v1946
    %v1962 = vpack.c.b16 %v1949, %v1948
    %v1963 = vpack.c.b16 %v1951, %v1950
    %v1964 = vpack.c.b16 %v1953, %v1952
    %v1965 = vpack.c.b16 %v1955, %v1954
    %v1966 = vpack.c.b16 %v1957, %v1956
    %v1967 = vpack.c.b16 %v1959, %v1958
    %1976 = vmatprep.subr.bf16.mxu0 0
    %1977 = vmatpush1.bf16.msra.mxu0 %v1960
    %1978 = vmatprep.subr.bf16.mxu0 0
    %1979 = vmatpush1.bf16.msra.mxu0 %v1961
    %1980 = vmatprep.subr.bf16.mxu0 0
    %1981 = vmatpush1.bf16.msra.mxu0 %v1962
    %1982 = vmatprep.subr.bf16.mxu0 0
    %1983 = vmatpush1.bf16.msra.mxu0 %v1963
    %1984 = vmatprep.subr.bf16.mxu0 0
    %1985 = vmatpush1.bf16.msra.mxu0 %v1964
    %1986 = vmatprep.subr.bf16.mxu0 0
    %1987 = vmatpush1.bf16.msra.mxu0 %v1965
    %1988 = vmatprep.subr.bf16.mxu0 0
    %1989 = vmatpush1.bf16.msra.mxu0 %v1966
    %1990 = vmatprep.subr.bf16.mxu0 0
    %1991 = vmatpush1.bf16.msra.mxu0 %v1967
    %1992 = vmatprep.subr.bf16.mxu0 0
    %1993 = vmatpush1.bf16.msra.mxu0 0
    %1994 = vmatprep.subr.bf16.mxu0 0
    %1995 = vmatpush1.bf16.msra.mxu0 0
    %1996 = vmatprep.subr.bf16.mxu0 0
    %1997 = vmatpush1.bf16.msra.mxu0 0
    %1998 = vmatprep.subr.bf16.mxu0 0
    %1999 = vmatpush1.bf16.msra.mxu0 0
    %2000 = vmatprep.subr.bf16.mxu0 0
    %2001 = vmatpush1.bf16.msra.mxu0 0
    %2002 = vmatprep.subr.bf16.mxu0 0
    %2003 = vmatpush1.bf16.msra.mxu0 0
    %2004 = vmatprep.subr.bf16.mxu0 0
    %2005 = vmatpush1.bf16.msra.mxu0 0
    %2006 = vmatprep.subr.bf16.mxu0 0
    %2007 = vmatpush1.bf16.msra.mxu0 0
    %2008 = vmatprep.mubr.bf16.mxu0 0
    %2009 = vmatmul.mubr.bf16.gmra.mrb[0].mxu0 %v1899
    %v2010 = vpop.f32.mrb[0].mxu0
    %v2011 = vadd.f32 0.0, %v2010
    %v2012 = vpop.f32.mrb[0].mxu0
    %v2013 = vpop.f32.mrb[0].mxu0
    %v2014 = vadd.f32 0.0, %v2013
    %v2015 = vpop.f32.mrb[0].mxu0
    %2016 = vdwg.mxu0
    %v2017 = vadd.f32 %v1910, %v2011
    %v2018 = vadd.f32 %v1911, %v2014
    %v2019 = vtanh.pop %v2017
    %v2020 = vtanh.pop %v2018
    %v2021 = vld [vmem:[#allocation4 + $0xc0] sm:$0xff]
    %v2022 = vld [vmem:[#allocation4 + $0xe0] sm:$0xff]
    %v2023 = vld [vmem:[#allocation5] sm:$0xf]
    %v2024 = vld [vmem:[#allocation5 + $0x10] sm:$0xf]
    %v2025 = vld [vmem:[#allocation5 + $0x20] sm:$0xf]
    %v2026 = vld [vmem:[#allocation5 + $0x30] sm:$0xf]
    %v2027 = vld [vmem:[#allocation5 + $0x40] sm:$0xf]
    %v2028 = vld [vmem:[#allocation5 + $0x50] sm:$0xf]
    %v2029 = vld [vmem:[#allocation5 + $0x60] sm:$0xf]
    %v2030 = vld [vmem:[#allocation5 + $0x70] sm:$0xf]
    %v2031 = vld [vmem:[#allocation5 + $0x80] sm:$0xf]
    %v2032 = vld [vmem:[#allocation5 + $0x90] sm:$0xf]
    %v2033 = vld [vmem:[#allocation5 + $0xa0] sm:$0xf]
    %v2034 = vld [vmem:[#allocation5 + $0xb0] sm:$0xf]
    %v2035 = vld [vmem:[#allocation5 + $0xc0] sm:$0xf]
    %v2036 = vld [vmem:[#allocation5 + $0xd0] sm:$0xf]
    %v2037 = vld [vmem:[#allocation5 + $0xe0] sm:$0xf]
    %v2038 = vld [vmem:[#allocation5 + $0xf0] sm:$0xf]
    %v2055 = vunpack.c.l.b16 %v2023
    %v2056 = vunpack.c.l.b16 %v2024
    %v2057 = vunpack.c.l.b16 %v2025
    %v2058 = vunpack.c.l.b16 %v2026
    %v2059 = vunpack.c.l.b16 %v2027
    %v2060 = vunpack.c.l.b16 %v2028
    %v2061 = vunpack.c.l.b16 %v2029
    %v2062 = vunpack.c.l.b16 %v2030
    %v2063 = vunpack.c.l.b16 %v2031
    %v2064 = vunpack.c.l.b16 %v2032
    %v2065 = vunpack.c.l.b16 %v2033
    %v2066 = vunpack.c.l.b16 %v2034
    %v2067 = vunpack.c.l.b16 %v2035
    %v2068 = vunpack.c.l.b16 %v2036
    %v2069 = vunpack.c.l.b16 %v2037
    %v2070 = vunpack.c.l.b16 %v2038
    %v2071 = vpack.c.b16 %v2056, %v2055
    %v2072 = vpack.c.b16 %v2058, %v2057
    %v2073 = vpack.c.b16 %v2060, %v2059
    %v2074 = vpack.c.b16 %v2062, %v2061
    %v2075 = vpack.c.b16 %v2064, %v2063
    %v2076 = vpack.c.b16 %v2066, %v2065
    %v2077 = vpack.c.b16 %v2068, %v2067
    %v2078 = vpack.c.b16 %v2070, %v2069
    %2087 = vmatprep.subr.bf16.mxu0 0
    %2088 = vmatpush1.bf16.msra.mxu0 %v2071
    %2089 = vmatprep.subr.bf16.mxu0 0
    %2090 = vmatpush1.bf16.msra.mxu0 %v2072
    %2091 = vmatprep.subr.bf16.mxu0 0
    %2092 = vmatpush1.bf16.msra.mxu0 %v2073
    %2093 = vmatprep.subr.bf16.mxu0 0
    %2094 = vmatpush1.bf16.msra.mxu0 %v2074
    %2095 = vmatprep.subr.bf16.mxu0 0
    %2096 = vmatpush1.bf16.msra.mxu0 %v2075
    %2097 = vmatprep.subr.bf16.mxu0 0
    %2098 = vmatpush1.bf16.msra.mxu0 %v2076
    %2099 = vmatprep.subr.bf16.mxu0 0
    %2100 = vmatpush1.bf16.msra.mxu0 %v2077
    %2101 = vmatprep.subr.bf16.mxu0 0
    %2102 = vmatpush1.bf16.msra.mxu0 %v2078
    %2103 = vmatprep.subr.bf16.mxu0 0
    %2104 = vmatpush1.bf16.msra.mxu0 0
    %2105 = vmatprep.subr.bf16.mxu0 0
    %2106 = vmatpush1.bf16.msra.mxu0 0
    %2107 = vmatprep.subr.bf16.mxu0 0
    %2108 = vmatpush1.bf16.msra.mxu0 0
    %2109 = vmatprep.subr.bf16.mxu0 0
    %2110 = vmatpush1.bf16.msra.mxu0 0
    %2111 = vmatprep.subr.bf16.mxu0 0
    %2112 = vmatpush1.bf16.msra.mxu0 0
    %2113 = vmatprep.subr.bf16.mxu0 0
    %2114 = vmatpush1.bf16.msra.mxu0 0
    %2115 = vmatprep.subr.bf16.mxu0 0
    %2116 = vmatpush1.bf16.msra.mxu0 0
    %2117 = vmatprep.subr.bf16.mxu0 0
    %2118 = vmatpush1.bf16.msra.mxu0 0
    %2119 = vmatprep.mubr.bf16.mxu0 0
    %2120 = vmatmul.mubr.bf16.gmra.mrb[0].mxu0 %v1899
    %v2121 = vpop.f32.mrb[0].mxu0
    %v2122 = vadd.f32 0.0, %v2121
    %v2123 = vpop.f32.mrb[0].mxu0
    %v2124 = vpop.f32.mrb[0].mxu0
    %v2125 = vadd.f32 0.0, %v2124
    %v2126 = vpop.f32.mrb[0].mxu0
    %2127 = vdwg.mxu0
    %v2128 = vadd.f32 %v2021, %v2122
    %v2129 = vadd.f32 %v2022, %v2125
    %v2130 = vmul.f32 %v2128, 0.5
    %v2131 = vmul.f32 %v2129, 0.5
    %v2132 = vtanh.pop %v2130
    %v2133 = vtanh.pop %v2131
    %v2134 = vmul.f32 %v2132, 0.5
    %v2135 = vmul.f32 %v2133, 0.5
    %v2136 = vadd.f32 %v2134, 0.5
    %v2137 = vadd.f32 %v2135, 0.5
    %v2138 = vmul.f32 %v2136, %v2019
    %v2139 = vmul.f32 %v2137, %v2020
    %v2140 = vld [vmem:[#allocation4 + $0xc8] sm:$0xff]
    %v2141 = vld [vmem:[#allocation4 + $0xe8] sm:$0xff]
    %v2142 = vld [vmem:[#allocation5 + $0x4] sm:$0xf]
    %v2143 = vld [vmem:[#allocation5 + $0x14] sm:$0xf]
    %v2144 = vld [vmem:[#allocation5 + $0x24] sm:$0xf]
    %v2145 = vld [vmem:[#allocation5 + $0x34] sm:$0xf]
    %v2146 = vld [vmem:[#allocation5 + $0x44] sm:$0xf]
    %v2147 = vld [vmem:[#allocation5 + $0x54] sm:$0xf]
    %v2148 = vld [vmem:[#allocation5 + $0x64] sm:$0xf]
    %v2149 = vld [vmem:[#allocation5 + $0x74] sm:$0xf]
    %v2150 = vld [vmem:[#allocation5 + $0x84] sm:$0xf]
    %v2151 = vld [vmem:[#allocation5 + $0x94] sm:$0xf]
    %v2152 = vld [vmem:[#allocation5 + $0xa4] sm:$0xf]
    %v2153 = vld [vmem:[#allocation5 + $0xb4] sm:$0xf]
    %v2154 = vld [vmem:[#allocation5 + $0xc4] sm:$0xf]
    %v2155 = vld [vmem:[#allocation5 + $0xd4] sm:$0xf]
    %v2156 = vld [vmem:[#allocation5 + $0xe4] sm:$0xf]
    %v2157 = vld [vmem:[#allocation5 + $0xf4] sm:$0xf]
    %v2174 = vunpack.c.l.b16 %v2142
    %v2175 = vunpack.c.l.b16 %v2143
    %v2176 = vunpack.c.l.b16 %v2144
    %v2177 = vunpack.c.l.b16 %v2145
    %v2178 = vunpack.c.l.b16 %v2146
    %v2179 = vunpack.c.l.b16 %v2147
    %v2180 = vunpack.c.l.b16 %v2148
    %v2181 = vunpack.c.l.b16 %v2149
    %v2182 = vunpack.c.l.b16 %v2150
    %v2183 = vunpack.c.l.b16 %v2151
    %v2184 = vunpack.c.l.b16 %v2152
    %v2185 = vunpack.c.l.b16 %v2153
    %v2186 = vunpack.c.l.b16 %v2154
    %v2187 = vunpack.c.l.b16 %v2155
    %v2188 = vunpack.c.l.b16 %v2156
    %v2189 = vunpack.c.l.b16 %v2157
    %v2190 = vpack.c.b16 %v2175, %v2174
    %v2191 = vpack.c.b16 %v2177, %v2176
    %v2192 = vpack.c.b16 %v2179, %v2178
    %v2193 = vpack.c.b16 %v2181, %v2180
    %v2194 = vpack.c.b16 %v2183, %v2182
    %v2195 = vpack.c.b16 %v2185, %v2184
    %v2196 = vpack.c.b16 %v2187, %v2186
    %v2197 = vpack.c.b16 %v2189, %v2188
    %2206 = vmatprep.subr.bf16.mxu0 0
    %2207 = vmatpush1.bf16.msra.mxu0 %v2190
    %2208 = vmatprep.subr.bf16.mxu0 0
    %2209 = vmatpush1.bf16.msra.mxu0 %v2191
    %2210 = vmatprep.subr.bf16.mxu0 0
    %2211 = vmatpush1.bf16.msra.mxu0 %v2192
    %2212 = vmatprep.subr.bf16.mxu0 0
    %2213 = vmatpush1.bf16.msra.mxu0 %v2193
    %2214 = vmatprep.subr.bf16.mxu0 0
    %2215 = vmatpush1.bf16.msra.mxu0 %v2194
    %2216 = vmatprep.subr.bf16.mxu0 0
    %2217 = vmatpush1.bf16.msra.mxu0 %v2195
    %2218 = vmatprep.subr.bf16.mxu0 0
    %2219 = vmatpush1.bf16.msra.mxu0 %v2196
    %2220 = vmatprep.subr.bf16.mxu0 0
    %2221 = vmatpush1.bf16.msra.mxu0 %v2197
    %2222 = vmatprep.subr.bf16.mxu0 0
    %2223 = vmatpush1.bf16.msra.mxu0 0
    %2224 = vmatprep.subr.bf16.mxu0 0
    %2225 = vmatpush1.bf16.msra.mxu0 0
    %2226 = vmatprep.subr.bf16.mxu0 0
    %2227 = vmatpush1.bf16.msra.mxu0 0
    %2228 = vmatprep.subr.bf16.mxu0 0
    %2229 = vmatpush1.bf16.msra.mxu0 0
    %2230 = vmatprep.subr.bf16.mxu0 0
    %2231 = vmatpush1.bf16.msra.mxu0 0
    %2232 = vmatprep.subr.bf16.mxu0 0
    %2233 = vmatpush1.bf16.msra.mxu0 0
    %2234 = vmatprep.subr.bf16.mxu0 0
    %2235 = vmatpush1.bf16.msra.mxu0 0
    %2236 = vmatprep.subr.bf16.mxu0 0
    %2237 = vmatpush1.bf16.msra.mxu0 0
    %2238 = vmatprep.mubr.bf16.mxu0 0
    %2239 = vmatmul.mubr.bf16.gmra.mrb[0].mxu0 %v1899
    %v2240 = vpop.f32.mrb[0].mxu0
    %v2241 = vadd.f32 0.0, %v2240
    %v2242 = vpop.f32.mrb[0].mxu0
    %v2243 = vpop.f32.mrb[0].mxu0
    %v2244 = vadd.f32 0.0, %v2243
    %v2245 = vpop.f32.mrb[0].mxu0
    %2246 = vdwg.mxu0
    %v2247 = vadd.f32 %v2140, %v2241
    %v2248 = vadd.f32 %v2141, %v2244
    %v2249 = vmul.f32 %v2247, 0.5
    %v2250 = vmul.f32 %v2248, 0.5
    %v2251 = vtanh.pop %v2249
    %v2252 = vtanh.pop %v2250
    %v2253 = vmul.f32 %v2251, 0.5
    %v2254 = vmul.f32 %v2252, 0.5
    %v2255 = vadd.f32 %v2253, 0.5
    %v2256 = vadd.f32 %v2254, 0.5
    %v2257 = vmul.f32 %v2255, %v1776
    %v2258 = vmul.f32 %v2256, %v1777
    %v2259 = vadd.f32 %v2257, %v2138
    %v2260 = vadd.f32 %v2258, %v2139
    %v2261 = vld [vmem:[#allocation4 + $0xd8] sm:$0xff]
    %v2262 = vld [vmem:[#allocation4 + $0xf8] sm:$0xff]
    %v2263 = vld [vmem:[#allocation5 + $0xc] sm:$0xf]
    %v2264 = vld [vmem:[#allocation5 + $0x1c] sm:$0xf]
    %v2265 = vld [vmem:[#allocation5 + $0x2c] sm:$0xf]
    %v2266 = vld [vmem:[#allocation5 + $0x3c] sm:$0xf]
    %v2267 = vld [vmem:[#allocation5 + $0x4c] sm:$0xf]
    %v2268 = vld [vmem:[#allocation5 + $0x5c] sm:$0xf]
    %v2269 = vld [vmem:[#allocation5 + $0x6c] sm:$0xf]
    %v2270 = vld [vmem:[#allocation5 + $0x7c] sm:$0xf]
    %v2271 = vld [vmem:[#allocation5 + $0x8c] sm:$0xf]
    %v2272 = vld [vmem:[#allocation5 + $0x9c] sm:$0xf]
    %v2273 = vld [vmem:[#allocation5 + $0xac] sm:$0xf]
    %v2274 = vld [vmem:[#allocation5 + $0xbc] sm:$0xf]
    %v2275 = vld [vmem:[#allocation5 + $0xcc] sm:$0xf]
    %v2276 = vld [vmem:[#allocation5 + $0xdc] sm:$0xf]
    %v2277 = vld [vmem:[#allocation5 + $0xec] sm:$0xf]
    %v2278 = vld [vmem:[#allocation5 + $0xfc] sm:$0xf]
    %v2295 = vunpack.c.l.b16 %v2263
    %v2296 = vunpack.c.l.b16 %v2264
    %v2297 = vunpack.c.l.b16 %v2265
    %v2298 = vunpack.c.l.b16 %v2266
    %v2299 = vunpack.c.l.b16 %v2267
    %v2300 = vunpack.c.l.b16 %v2268
    %v2301 = vunpack.c.l.b16 %v2269
    %v2302 = vunpack.c.l.b16 %v2270
    %v2303 = vunpack.c.l.b16 %v2271
    %v2304 = vunpack.c.l.b16 %v2272
    %v2305 = vunpack.c.l.b16 %v2273
    %v2306 = vunpack.c.l.b16 %v2274
    %v2307 = vunpack.c.l.b16 %v2275
    %v2308 = vunpack.c.l.b16 %v2276
    %v2309 = vunpack.c.l.b16 %v2277
    %v2310 = vunpack.c.l.b16 %v2278
    %v2311 = vpack.c.b16 %v2296, %v2295
    %v2312 = vpack.c.b16 %v2298, %v2297
    %v2313 = vpack.c.b16 %v2300, %v2299
    %v2314 = vpack.c.b16 %v2302, %v2301
    %v2315 = vpack.c.b16 %v2304, %v2303
    %v2316 = vpack.c.b16 %v2306, %v2305
    %v2317 = vpack.c.b16 %v2308, %v2307
    %v2318 = vpack.c.b16 %v2310, %v2309
    %2327 = vmatprep.subr.bf16.mxu0 0
    %2328 = vmatpush1.bf16.msra.mxu0 %v2311
    %2329 = vmatprep.subr.bf16.mxu0 0
    %2330 = vmatpush1.bf16.msra.mxu0 %v2312
    %2331 = vmatprep.subr.bf16.mxu0 0
    %2332 = vmatpush1.bf16.msra.mxu0 %v2313
    %2333 = vmatprep.subr.bf16.mxu0 0
    %2334 = vmatpush1.bf16.msra.mxu0 %v2314
    %2335 = vmatprep.subr.bf16.mxu0 0
    %2336 = vmatpush1.bf16.msra.mxu0 %v2315
    %2337 = vmatprep.subr.bf16.mxu0 0
    %2338 = vmatpush1.bf16.msra.mxu0 %v2316
    %2339 = vmatprep.subr.bf16.mxu0 0
    %2340 = vmatpush1.bf16.msra.mxu0 %v2317
    %2341 = vmatprep.subr.bf16.mxu0 0
    %2342 = vmatpush1.bf16.msra.mxu0 %v2318
    %2343 = vmatprep.subr.bf16.mxu0 0
    %2344 = vmatpush1.bf16.msra.mxu0 0
    %2345 = vmatprep.subr.bf16.mxu0 0
    %2346 = vmatpush1.bf16.msra.mxu0 0
    %2347 = vmatprep.subr.bf16.mxu0 0
    %2348 = vmatpush1.bf16.msra.mxu0 0
    %2349 = vmatprep.subr.bf16.mxu0 0
    %2350 = vmatpush1.bf16.msra.mxu0 0
    %2351 = vmatprep.subr.bf16.mxu0 0
    %2352 = vmatpush1.bf16.msra.mxu0 0
    %2353 = vmatprep.subr.bf16.mxu0 0
    %2354 = vmatpush1.bf16.msra.mxu0 0
    %2355 = vmatprep.subr.bf16.mxu0 0
    %2356 = vmatpush1.bf16.msra.mxu0 0
    %2357 = vmatprep.subr.bf16.mxu0 0
    %2358 = vmatpush1.bf16.msra.mxu0 0
    %2359 = vmatprep.mubr.bf16.mxu0 0
    %2360 = vmatmul.mubr.bf16.gmra.mrb[0].mxu0 %v1899
    %v2361 = vpop.f32.mrb[0].mxu0
    %v2362 = vadd.f32 0.0, %v2361
    %v2363 = vpop.f32.mrb[0].mxu0
    %v2364 = vpop.f32.mrb[0].mxu0
    %v2365 = vadd.f32 0.0, %v2364
    %v2366 = vpop.f32.mrb[0].mxu0
    %2367 = vdwg.mxu0
    %v2368 = vadd.f32 %v2261, %v2362
    %v2369 = vadd.f32 %v2262, %v2365
    %v2370 = vmul.f32 %v2368, 0.5
    %v2371 = vmul.f32 %v2369, 0.5
    %v2372 = vtanh.pop %v2370
    %v2373 = vtanh.pop %v2371
    %v2374 = vmul.f32 %v2372, 0.5
    %v2375 = vmul.f32 %v2373, 0.5
    %v2376 = vadd.f32 %v2374, 0.5
    %v2377 = vadd.f32 %v2375, 0.5
    %v2378 = vtanh.pop %v2259
    %v2379 = vtanh.pop %v2260
    %v2380 = vmul.f32 %v2376, %v2378
    %v2381 = vmul.f32 %v2377, %v2379
    %v2382 = vpack.c.bf16 %v2381, %v2380
    %v2384 = vunpack.c.l.b16 %v2382
    %v2385 = vunpack.c.h.b16 %v2382
    %v2386 = vpack.c.b16 %v2384, %v2384
    %v2387 = vpack.c.b16 %v2385, %v2385
    %s2390 = scalar_lea.vmem %s4, 24
    %2391 = vst [vmem:[%s2390] sm:$0xf] %v2386
    %2392 = vst [vmem:[%s2390 + $0x4] sm:$0xf] %v2387
    %v2393 = vld [vmem:[#allocation4 + $0x110] sm:$0xff]
    %v2394 = vld [vmem:[#allocation4 + $0x130] sm:$0xff]
    %v2395 = vld [vmem:[#allocation5 + $0x8] sm:$0xf]
    %v2396 = vld [vmem:[#allocation5 + $0x18] sm:$0xf]
    %v2397 = vld [vmem:[#allocation5 + $0x28] sm:$0xf]
    %v2398 = vld [vmem:[#allocation5 + $0x38] sm:$0xf]
    %v2399 = vld [vmem:[#allocation5 + $0x48] sm:$0xf]
    %v2400 = vld [vmem:[#allocation5 + $0x58] sm:$0xf]
    %v2401 = vld [vmem:[#allocation5 + $0x68] sm:$0xf]
    %v2402 = vld [vmem:[#allocation5 + $0x78] sm:$0xf]
    %v2403 = vld [vmem:[#allocation5 + $0x88] sm:$0xf]
    %v2404 = vld [vmem:[#allocation5 + $0x98] sm:$0xf]
    %v2405 = vld [vmem:[#allocation5 + $0xa8] sm:$0xf]
    %v2406 = vld [vmem:[#allocation5 + $0xb8] sm:$0xf]
    %v2407 = vld [vmem:[#allocation5 + $0xc8] sm:$0xf]
    %v2408 = vld [vmem:[#allocation5 + $0xd8] sm:$0xf]
    %v2409 = vld [vmem:[#allocation5 + $0xe8] sm:$0xf]
    %v2410 = vld [vmem:[#allocation5 + $0xf8] sm:$0xf]
    %v2427 = vunpack.c.l.b16 %v2395
    %v2428 = vunpack.c.l.b16 %v2396
    %v2429 = vunpack.c.l.b16 %v2397
    %v2430 = vunpack.c.l.b16 %v2398
    %v2431 = vunpack.c.l.b16 %v2399
    %v2432 = vunpack.c.l.b16 %v2400
    %v2433 = vunpack.c.l.b16 %v2401
    %v2434 = vunpack.c.l.b16 %v2402
    %v2435 = vunpack.c.l.b16 %v2403
    %v2436 = vunpack.c.l.b16 %v2404
    %v2437 = vunpack.c.l.b16 %v2405
    %v2438 = vunpack.c.l.b16 %v2406
    %v2439 = vunpack.c.l.b16 %v2407
    %v2440 = vunpack.c.l.b16 %v2408
    %v2441 = vunpack.c.l.b16 %v2409
    %v2442 = vunpack.c.l.b16 %v2410
    %v2443 = vpack.c.b16 %v2428, %v2427
    %v2444 = vpack.c.b16 %v2430, %v2429
    %v2445 = vpack.c.b16 %v2432, %v2431
    %v2446 = vpack.c.b16 %v2434, %v2433
    %v2447 = vpack.c.b16 %v2436, %v2435
    %v2448 = vpack.c.b16 %v2438, %v2437
    %v2449 = vpack.c.b16 %v2440, %v2439
    %v2450 = vpack.c.b16 %v2442, %v2441
    %2459 = vmatprep.subr.bf16.mxu0 0
    %2460 = vmatpush1.bf16.msra.mxu0 %v2443
    %2461 = vmatprep.subr.bf16.mxu0 0
    %2462 = vmatpush1.bf16.msra.mxu0 %v2444
    %2463 = vmatprep.subr.bf16.mxu0 0
    %2464 = vmatpush1.bf16.msra.mxu0 %v2445
    %2465 = vmatprep.subr.bf16.mxu0 0
    %2466 = vmatpush1.bf16.msra.mxu0 %v2446
    %2467 = vmatprep.subr.bf16.mxu0 0
    %2468 = vmatpush1.bf16.msra.mxu0 %v2447
    %2469 = vmatprep.subr.bf16.mxu0 0
    %2470 = vmatpush1.bf16.msra.mxu0 %v2448
    %2471 = vmatprep.subr.bf16.mxu0 0
    %2472 = vmatpush1.bf16.msra.mxu0 %v2449
    %2473 = vmatprep.subr.bf16.mxu0 0
    %2474 = vmatpush1.bf16.msra.mxu0 %v2450
    %2475 = vmatprep.subr.bf16.mxu0 0
    %2476 = vmatpush1.bf16.msra.mxu0 0
    %2477 = vmatprep.subr.bf16.mxu0 0
    %2478 = vmatpush1.bf16.msra.mxu0 0
    %2479 = vmatprep.subr.bf16.mxu0 0
    %2480 = vmatpush1.bf16.msra.mxu0 0
    %2481 = vmatprep.subr.bf16.mxu0 0
    %2482 = vmatpush1.bf16.msra.mxu0 0
    %2483 = vmatprep.subr.bf16.mxu0 0
    %2484 = vmatpush1.bf16.msra.mxu0 0
    %2485 = vmatprep.subr.bf16.mxu0 0
    %2486 = vmatpush1.bf16.msra.mxu0 0
    %2487 = vmatprep.subr.bf16.mxu0 0
    %2488 = vmatpush1.bf16.msra.mxu0 0
    %2489 = vmatprep.subr.bf16.mxu0 0
    %2490 = vmatpush1.bf16.msra.mxu0 0
    %2491 = vmatprep.mubr.bf16.mxu0 0
    %2492 = vmatmul.mubr.bf16.gmra.mrb[0].mxu0 %v2382
    %v2493 = vpop.f32.mrb[0].mxu0
    %v2494 = vadd.f32 0.0, %v2493
    %v2495 = vpop.f32.mrb[0].mxu0
    %v2496 = vpop.f32.mrb[0].mxu0
    %v2497 = vadd.f32 0.0, %v2496
    %v2498 = vpop.f32.mrb[0].mxu0
    %2499 = vdwg.mxu0
    %v2500 = vadd.f32 %v2393, %v2494
    %v2501 = vadd.f32 %v2394, %v2497
    %v2502 = vtanh.pop %v2500
    %v2503 = vtanh.pop %v2501
    %v2504 = vld [vmem:[#allocation4 + $0x100] sm:$0xff]
    %v2505 = vld [vmem:[#allocation4 + $0x120] sm:$0xff]
    %v2506 = vld [vmem:[#allocation5] sm:$0xf]
    %v2507 = vld [vmem:[#allocation5 + $0x10] sm:$0xf]
    %v2508 = vld [vmem:[#allocation5 + $0x20] sm:$0xf]
    %v2509 = vld [vmem:[#allocation5 + $0x30] sm:$0xf]
    %v2510 = vld [vmem:[#allocation5 + $0x40] sm:$0xf]
    %v2511 = vld [vmem:[#allocation5 + $0x50] sm:$0xf]
    %v2512 = vld [vmem:[#allocation5 + $0x60] sm:$0xf]
    %v2513 = vld [vmem:[#allocation5 + $0x70] sm:$0xf]
    %v2514 = vld [vmem:[#allocation5 + $0x80] sm:$0xf]
    %v2515 = vld [vmem:[#allocation5 + $0x90] sm:$0xf]
    %v2516 = vld [vmem:[#allocation5 + $0xa0] sm:$0xf]
    %v2517 = vld [vmem:[#allocation5 + $0xb0] sm:$0xf]
    %v2518 = vld [vmem:[#allocation5 + $0xc0] sm:$0xf]
    %v2519 = vld [vmem:[#allocation5 + $0xd0] sm:$0xf]
    %v2520 = vld [vmem:[#allocation5 + $0xe0] sm:$0xf]
    %v2521 = vld [vmem:[#allocation5 + $0xf0] sm:$0xf]
    %v2538 = vunpack.c.l.b16 %v2506
    %v2539 = vunpack.c.l.b16 %v2507
    %v2540 = vunpack.c.l.b16 %v2508
    %v2541 = vunpack.c.l.b16 %v2509
    %v2542 = vunpack.c.l.b16 %v2510
    %v2543 = vunpack.c.l.b16 %v2511
    %v2544 = vunpack.c.l.b16 %v2512
    %v2545 = vunpack.c.l.b16 %v2513
    %v2546 = vunpack.c.l.b16 %v2514
    %v2547 = vunpack.c.l.b16 %v2515
    %v2548 = vunpack.c.l.b16 %v2516
    %v2549 = vunpack.c.l.b16 %v2517
    %v2550 = vunpack.c.l.b16 %v2518
    %v2551 = vunpack.c.l.b16 %v2519
    %v2552 = vunpack.c.l.b16 %v2520
    %v2553 = vunpack.c.l.b16 %v2521
    %v2554 = vpack.c.b16 %v2539, %v2538
    %v2555 = vpack.c.b16 %v2541, %v2540
    %v2556 = vpack.c.b16 %v2543, %v2542
    %v2557 = vpack.c.b16 %v2545, %v2544
    %v2558 = vpack.c.b16 %v2547, %v2546
    %v2559 = vpack.c.b16 %v2549, %v2548
    %v2560 = vpack.c.b16 %v2551, %v2550
    %v2561 = vpack.c.b16 %v2553, %v2552
    %2570 = vmatprep.subr.bf16.mxu0 0
    %2571 = vmatpush1.bf16.msra.mxu0 %v2554
    %2572 = vmatprep.subr.bf16.mxu0 0
    %2573 = vmatpush1.bf16.msra.mxu0 %v2555
    %2574 = vmatprep.subr.bf16.mxu0 0
    %2575 = vmatpush1.bf16.msra.mxu0 %v2556
    %2576 = vmatprep.subr.bf16.mxu0 0
    %2577 = vmatpush1.bf16.msra.mxu0 %v2557
    %2578 = vmatprep.subr.bf16.mxu0 0
    %2579 = vmatpush1.bf16.msra.mxu0 %v2558
    %2580 = vmatprep.subr.bf16.mxu0 0
    %2581 = vmatpush1.bf16.msra.mxu0 %v2559
    %2582 = vmatprep.subr.bf16.mxu0 0
    %2583 = vmatpush1.bf16.msra.mxu0 %v2560
    %2584 = vmatprep.subr.bf16.mxu0 0
    %2585 = vmatpush1.bf16.msra.mxu0 %v2561
    %2586 = vmatprep.subr.bf16.mxu0 0
    %2587 = vmatpush1.bf16.msra.mxu0 0
    %2588 = vmatprep.subr.bf16.mxu0 0
    %2589 = vmatpush1.bf16.msra.mxu0 0
    %2590 = vmatprep.subr.bf16.mxu0 0
    %2591 = vmatpush1.bf16.msra.mxu0 0
    %2592 = vmatprep.subr.bf16.mxu0 0
    %2593 = vmatpush1.bf16.msra.mxu0 0
    %2594 = vmatprep.subr.bf16.mxu0 0
    %2595 = vmatpush1.bf16.msra.mxu0 0
    %2596 = vmatprep.subr.bf16.mxu0 0
    %2597 = vmatpush1.bf16.msra.mxu0 0
    %2598 = vmatprep.subr.bf16.mxu0 0
    %2599 = vmatpush1.bf16.msra.mxu0 0
    %2600 = vmatprep.subr.bf16.mxu0 0
    %2601 = vmatpush1.bf16.msra.mxu0 0
    %2602 = vmatprep.mubr.bf16.mxu0 0
    %2603 = vmatmul.mubr.bf16.gmra.mrb[0].mxu0 %v2382
    %v2604 = vpop.f32.mrb[0].mxu0
    %v2605 = vadd.f32 0.0, %v2604
    %v2606 = vpop.f32.mrb[0].mxu0
    %v2607 = vpop.f32.mrb[0].mxu0
    %v2608 = vadd.f32 0.0, %v2607
    %v2609 = vpop.f32.mrb[0].mxu0
    %2610 = vdwg.mxu0
    %v2611 = vadd.f32 %v2504, %v2605
    %v2612 = vadd.f32 %v2505, %v2608
    %v2613 = vmul.f32 %v2611, 0.5
    %v2614 = vmul.f32 %v2612, 0.5
    %v2615 = vtanh.pop %v2613
    %v2616 = vtanh.pop %v2614
    %v2617 = vmul.f32 %v2615, 0.5
    %v2618 = vmul.f32 %v2616, 0.5
    %v2619 = vadd.f32 %v2617, 0.5
    %v2620 = vadd.f32 %v2618, 0.5
    %v2621 = vmul.f32 %v2619, %v2502
    %v2622 = vmul.f32 %v2620, %v2503
    %v2623 = vld [vmem:[#allocation4 + $0x108] sm:$0xff]
    %v2624 = vld [vmem:[#allocation4 + $0x128] sm:$0xff]
    %v2625 = vld [vmem:[#allocation5 + $0x4] sm:$0xf]
    %v2626 = vld [vmem:[#allocation5 + $0x14] sm:$0xf]
    %v2627 = vld [vmem:[#allocation5 + $0x24] sm:$0xf]
    %v2628 = vld [vmem:[#allocation5 + $0x34] sm:$0xf]
    %v2629 = vld [vmem:[#allocation5 + $0x44] sm:$0xf]
    %v2630 = vld [vmem:[#allocation5 + $0x54] sm:$0xf]
    %v2631 = vld [vmem:[#allocation5 + $0x64] sm:$0xf]
    %v2632 = vld [vmem:[#allocation5 + $0x74] sm:$0xf]
    %v2633 = vld [vmem:[#allocation5 + $0x84] sm:$0xf]
    %v2634 = vld [vmem:[#allocation5 + $0x94] sm:$0xf]
    %v2635 = vld [vmem:[#allocation5 + $0xa4] sm:$0xf]
    %v2636 = vld [vmem:[#allocation5 + $0xb4] sm:$0xf]
    %v2637 = vld [vmem:[#allocation5 + $0xc4] sm:$0xf]
    %v2638 = vld [vmem:[#allocation5 + $0xd4] sm:$0xf]
    %v2639 = vld [vmem:[#allocation5 + $0xe4] sm:$0xf]
    %v2640 = vld [vmem:[#allocation5 + $0xf4] sm:$0xf]
    %v2657 = vunpack.c.l.b16 %v2625
    %v2658 = vunpack.c.l.b16 %v2626
    %v2659 = vunpack.c.l.b16 %v2627
    %v2660 = vunpack.c.l.b16 %v2628
    %v2661 = vunpack.c.l.b16 %v2629
    %v2662 = vunpack.c.l.b16 %v2630
    %v2663 = vunpack.c.l.b16 %v2631
    %v2664 = vunpack.c.l.b16 %v2632
    %v2665 = vunpack.c.l.b16 %v2633
    %v2666 = vunpack.c.l.b16 %v2634
    %v2667 = vunpack.c.l.b16 %v2635
    %v2668 = vunpack.c.l.b16 %v2636
    %v2669 = vunpack.c.l.b16 %v2637
    %v2670 = vunpack.c.l.b16 %v2638
    %v2671 = vunpack.c.l.b16 %v2639
    %v2672 = vunpack.c.l.b16 %v2640
    %v2673 = vpack.c.b16 %v2658, %v2657
    %v2674 = vpack.c.b16 %v2660, %v2659
    %v2675 = vpack.c.b16 %v2662, %v2661
    %v2676 = vpack.c.b16 %v2664, %v2663
    %v2677 = vpack.c.b16 %v2666, %v2665
    %v2678 = vpack.c.b16 %v2668, %v2667
    %v2679 = vpack.c.b16 %v2670, %v2669
    %v2680 = vpack.c.b16 %v2672, %v2671
    %2689 = vmatprep.subr.bf16.mxu0 0
    %2690 = vmatpush1.bf16.msra.mxu0 %v2673
    %2691 = vmatprep.subr.bf16.mxu0 0
    %2692 = vmatpush1.bf16.msra.mxu0 %v2674
    %2693 = vmatprep.subr.bf16.mxu0 0
    %2694 = vmatpush1.bf16.msra.mxu0 %v2675
    %2695 = vmatprep.subr.bf16.mxu0 0
    %2696 = vmatpush1.bf16.msra.mxu0 %v2676
    %2697 = vmatprep.subr.bf16.mxu0 0
    %2698 = vmatpush1.bf16.msra.mxu0 %v2677
    %2699 = vmatprep.subr.bf16.mxu0 0
    %2700 = vmatpush1.bf16.msra.mxu0 %v2678
    %2701 = vmatprep.subr.bf16.mxu0 0
    %2702 = vmatpush1.bf16.msra.mxu0 %v2679
    %2703 = vmatprep.subr.bf16.mxu0 0
    %2704 = vmatpush1.bf16.msra.mxu0 %v2680
    %2705 = vmatprep.subr.bf16.mxu0 0
    %2706 = vmatpush1.bf16.msra.mxu0 0
    %2707 = vmatprep.subr.bf16.mxu0 0
    %2708 = vmatpush1.bf16.msra.mxu0 0
    %2709 = vmatprep.subr.bf16.mxu0 0
    %2710 = vmatpush1.bf16.msra.mxu0 0
    %2711 = vmatprep.subr.bf16.mxu0 0
    %2712 = vmatpush1.bf16.msra.mxu0 0
    %2713 = vmatprep.subr.bf16.mxu0 0
    %2714 = vmatpush1.bf16.msra.mxu0 0
    %2715 = vmatprep.subr.bf16.mxu0 0
    %2716 = vmatpush1.bf16.msra.mxu0 0
    %2717 = vmatprep.subr.bf16.mxu0 0
    %2718 = vmatpush1.bf16.msra.mxu0 0
    %2719 = vmatprep.subr.bf16.mxu0 0
    %2720 = vmatpush1.bf16.msra.mxu0 0
    %2721 = vmatprep.mubr.bf16.mxu0 0
    %2722 = vmatmul.mubr.bf16.gmra.mrb[0].mxu0 %v2382
    %v2723 = vpop.f32.mrb[0].mxu0
    %v2724 = vadd.f32 0.0, %v2723
    %v2725 = vpop.f32.mrb[0].mxu0
    %v2726 = vpop.f32.mrb[0].mxu0
    %v2727 = vadd.f32 0.0, %v2726
    %v2728 = vpop.f32.mrb[0].mxu0
    %2729 = vdwg.mxu0
    %v2730 = vadd.f32 %v2623, %v2724
    %v2731 = vadd.f32 %v2624, %v2727
    %v2732 = vmul.f32 %v2730, 0.5
    %v2733 = vmul.f32 %v2731, 0.5
    %v2734 = vtanh.pop %v2732
    %v2735 = vtanh.pop %v2733
    %v2736 = vmul.f32 %v2734, 0.5
    %v2737 = vmul.f32 %v2735, 0.5
    %v2738 = vadd.f32 %v2736, 0.5
    %v2739 = vadd.f32 %v2737, 0.5
    %v2740 = vmul.f32 %v2738, %v2259
    %v2741 = vmul.f32 %v2739, %v2260
    %v2742 = vadd.f32 %v2740, %v2621
    %v2743 = vadd.f32 %v2741, %v2622
    %v2744 = vld [vmem:[#allocation4 + $0x118] sm:$0xff]
    %v2745 = vld [vmem:[#allocation4 + $0x138] sm:$0xff]
    %v2746 = vld [vmem:[#allocation5 + $0xc] sm:$0xf]
    %v2747 = vld [vmem:[#allocation5 + $0x1c] sm:$0xf]
    %v2748 = vld [vmem:[#allocation5 + $0x2c] sm:$0xf]
    %v2749 = vld [vmem:[#allocation5 + $0x3c] sm:$0xf]
    %v2750 = vld [vmem:[#allocation5 + $0x4c] sm:$0xf]
    %v2751 = vld [vmem:[#allocation5 + $0x5c] sm:$0xf]
    %v2752 = vld [vmem:[#allocation5 + $0x6c] sm:$0xf]
    %v2753 = vld [vmem:[#allocation5 + $0x7c] sm:$0xf]
    %v2754 = vld [vmem:[#allocation5 + $0x8c] sm:$0xf]
    %v2755 = vld [vmem:[#allocation5 + $0x9c] sm:$0xf]
    %v2756 = vld [vmem:[#allocation5 + $0xac] sm:$0xf]
    %v2757 = vld [vmem:[#allocation5 + $0xbc] sm:$0xf]
    %v2758 = vld [vmem:[#allocation5 + $0xcc] sm:$0xf]
    %v2759 = vld [vmem:[#allocation5 + $0xdc] sm:$0xf]
    %v2760 = vld [vmem:[#allocation5 + $0xec] sm:$0xf]
    %v2761 = vld [vmem:[#allocation5 + $0xfc] sm:$0xf]
    %v2778 = vunpack.c.l.b16 %v2746
    %v2779 = vunpack.c.l.b16 %v2747
    %v2780 = vunpack.c.l.b16 %v2748
    %v2781 = vunpack.c.l.b16 %v2749
    %v2782 = vunpack.c.l.b16 %v2750
    %v2783 = vunpack.c.l.b16 %v2751
    %v2784 = vunpack.c.l.b16 %v2752
    %v2785 = vunpack.c.l.b16 %v2753
    %v2786 = vunpack.c.l.b16 %v2754
    %v2787 = vunpack.c.l.b16 %v2755
    %v2788 = vunpack.c.l.b16 %v2756
    %v2789 = vunpack.c.l.b16 %v2757
    %v2790 = vunpack.c.l.b16 %v2758
    %v2791 = vunpack.c.l.b16 %v2759
    %v2792 = vunpack.c.l.b16 %v2760
    %v2793 = vunpack.c.l.b16 %v2761
    %v2794 = vpack.c.b16 %v2779, %v2778
    %v2795 = vpack.c.b16 %v2781, %v2780
    %v2796 = vpack.c.b16 %v2783, %v2782
    %v2797 = vpack.c.b16 %v2785, %v2784
    %v2798 = vpack.c.b16 %v2787, %v2786
    %v2799 = vpack.c.b16 %v2789, %v2788
    %v2800 = vpack.c.b16 %v2791, %v2790
    %v2801 = vpack.c.b16 %v2793, %v2792
    %2810 = vmatprep.subr.bf16.mxu0 0
    %2811 = vmatpush1.bf16.msra.mxu0 %v2794
    %2812 = vmatprep.subr.bf16.mxu0 0
    %2813 = vmatpush1.bf16.msra.mxu0 %v2795
    %2814 = vmatprep.subr.bf16.mxu0 0
    %2815 = vmatpush1.bf16.msra.mxu0 %v2796
    %2816 = vmatprep.subr.bf16.mxu0 0
    %2817 = vmatpush1.bf16.msra.mxu0 %v2797
    %2818 = vmatprep.subr.bf16.mxu0 0
    %2819 = vmatpush1.bf16.msra.mxu0 %v2798
    %2820 = vmatprep.subr.bf16.mxu0 0
    %2821 = vmatpush1.bf16.msra.mxu0 %v2799
    %2822 = vmatprep.subr.bf16.mxu0 0
    %2823 = vmatpush1.bf16.msra.mxu0 %v2800
    %2824 = vmatprep.subr.bf16.mxu0 0
    %2825 = vmatpush1.bf16.msra.mxu0 %v2801
    %2826 = vmatprep.subr.bf16.mxu0 0
    %2827 = vmatpush1.bf16.msra.mxu0 0
    %2828 = vmatprep.subr.bf16.mxu0 0
    %2829 = vmatpush1.bf16.msra.mxu0 0
    %2830 = vmatprep.subr.bf16.mxu0 0
    %2831 = vmatpush1.bf16.msra.mxu0 0
    %2832 = vmatprep.subr.bf16.mxu0 0
    %2833 = vmatpush1.bf16.msra.mxu0 0
    %2834 = vmatprep.subr.bf16.mxu0 0
    %2835 = vmatpush1.bf16.msra.mxu0 0
    %2836 = vmatprep.subr.bf16.mxu0 0
    %2837 = vmatpush1.bf16.msra.mxu0 0
    %2838 = vmatprep.subr.bf16.mxu0 0
    %2839 = vmatpush1.bf16.msra.mxu0 0
    %2840 = vmatprep.subr.bf16.mxu0 0
    %2841 = vmatpush1.bf16.msra.mxu0 0
    %2842 = vmatprep.mubr.bf16.mxu0 0
    %2843 = vmatmul.mubr.bf16.gmra.mrb[0].mxu0 %v2382
    %v2844 = vpop.f32.mrb[0].mxu0
    %v2845 = vadd.f32 0.0, %v2844
    %v2846 = vpop.f32.mrb[0].mxu0
    %v2847 = vpop.f32.mrb[0].mxu0
    %v2848 = vadd.f32 0.0, %v2847
    %v2849 = vpop.f32.mrb[0].mxu0
    %2850 = vdwg.mxu0
    %v2851 = vadd.f32 %v2744, %v2845
    %v2852 = vadd.f32 %v2745, %v2848
    %v2853 = vmul.f32 %v2851, 0.5
    %v2854 = vmul.f32 %v2852, 0.5
    %v2855 = vtanh.pop %v2853
    %v2856 = vtanh.pop %v2854
    %v2857 = vmul.f32 %v2855, 0.5
    %v2858 = vmul.f32 %v2856, 0.5
    %v2859 = vadd.f32 %v2857, 0.5
    %v2860 = vadd.f32 %v2858, 0.5
    %v2861 = vtanh.pop %v2742
    %v2862 = vtanh.pop %v2743
    %v2863 = vmul.f32 %v2859, %v2861
    %v2864 = vmul.f32 %v2860, %v2862
    %v2865 = vpack.c.bf16 %v2864, %v2863
    %v2867 = vunpack.c.l.b16 %v2865
    %v2868 = vunpack.c.h.b16 %v2865
    %v2869 = vpack.c.b16 %v2867, %v2867
    %v2870 = vpack.c.b16 %v2868, %v2868
    %s2873 = scalar_lea.vmem %s4, 32
    %2874 = vst [vmem:[%s2873] sm:$0xf] %v2869
    %2875 = vst [vmem:[%s2873 + $0x4] sm:$0xf] %v2870
    %v2876 = vld [vmem:[#allocation4 + $0x150] sm:$0xff]
    %v2877 = vld [vmem:[#allocation4 + $0x170] sm:$0xff]
    %v2878 = vld [vmem:[#allocation5 + $0x8] sm:$0xf]
    %v2879 = vld [vmem:[#allocation5 + $0x18] sm:$0xf]
    %v2880 = vld [vmem:[#allocation5 + $0x28] sm:$0xf]
    %v2881 = vld [vmem:[#allocation5 + $0x38] sm:$0xf]
    %v2882 = vld [vmem:[#allocation5 + $0x48] sm:$0xf]
    %v2883 = vld [vmem:[#allocation5 + $0x58] sm:$0xf]
    %v2884 = vld [vmem:[#allocation5 + $0x68] sm:$0xf]
    %v2885 = vld [vmem:[#allocation5 + $0x78] sm:$0xf]
    %v2886 = vld [vmem:[#allocation5 + $0x88] sm:$0xf]
    %v2887 = vld [vmem:[#allocation5 + $0x98] sm:$0xf]
    %v2888 = vld [vmem:[#allocation5 + $0xa8] sm:$0xf]
    %v2889 = vld [vmem:[#allocation5 + $0xb8] sm:$0xf]
    %v2890 = vld [vmem:[#allocation5 + $0xc8] sm:$0xf]
    %v2891 = vld [vmem:[#allocation5 + $0xd8] sm:$0xf]
    %v2892 = vld [vmem:[#allocation5 + $0xe8] sm:$0xf]
    %v2893 = vld [vmem:[#allocation5 + $0xf8] sm:$0xf]
    %v2910 = vunpack.c.l.b16 %v2878
    %v2911 = vunpack.c.l.b16 %v2879
    %v2912 = vunpack.c.l.b16 %v2880
    %v2913 = vunpack.c.l.b16 %v2881
    %v2914 = vunpack.c.l.b16 %v2882
    %v2915 = vunpack.c.l.b16 %v2883
    %v2916 = vunpack.c.l.b16 %v2884
    %v2917 = vunpack.c.l.b16 %v2885
    %v2918 = vunpack.c.l.b16 %v2886
    %v2919 = vunpack.c.l.b16 %v2887
    %v2920 = vunpack.c.l.b16 %v2888
    %v2921 = vunpack.c.l.b16 %v2889
    %v2922 = vunpack.c.l.b16 %v2890
    %v2923 = vunpack.c.l.b16 %v2891
    %v2924 = vunpack.c.l.b16 %v2892
    %v2925 = vunpack.c.l.b16 %v2893
    %v2926 = vpack.c.b16 %v2911, %v2910
    %v2927 = vpack.c.b16 %v2913, %v2912
    %v2928 = vpack.c.b16 %v2915, %v2914
    %v2929 = vpack.c.b16 %v2917, %v2916
    %v2930 = vpack.c.b16 %v2919, %v2918
    %v2931 = vpack.c.b16 %v2921, %v2920
    %v2932 = vpack.c.b16 %v2923, %v2922
    %v2933 = vpack.c.b16 %v2925, %v2924
    %2942 = vmatprep.subr.bf16.mxu0 0
    %2943 = vmatpush1.bf16.msra.mxu0 %v2926
    %2944 = vmatprep.subr.bf16.mxu0 0
    %2945 = vmatpush1.bf16.msra.mxu0 %v2927
    %2946 = vmatprep.subr.bf16.mxu0 0
    %2947 = vmatpush1.bf16.msra.mxu0 %v2928
    %2948 = vmatprep.subr.bf16.mxu0 0
    %2949 = vmatpush1.bf16.msra.mxu0 %v2929
    %2950 = vmatprep.subr.bf16.mxu0 0
    %2951 = vmatpush1.bf16.msra.mxu0 %v2930
    %2952 = vmatprep.subr.bf16.mxu0 0
    %2953 = vmatpush1.bf16.msra.mxu0 %v2931
    %2954 = vmatprep.subr.bf16.mxu0 0
    %2955 = vmatpush1.bf16.msra.mxu0 %v2932
    %2956 = vmatprep.subr.bf16.mxu0 0
    %2957 = vmatpush1.bf16.msra.mxu0 %v2933
    %2958 = vmatprep.subr.bf16.mxu0 0
    %2959 = vmatpush1.bf16.msra.mxu0 0
    %2960 = vmatprep.subr.bf16.mxu0 0
    %2961 = vmatpush1.bf16.msra.mxu0 0
    %2962 = vmatprep.subr.bf16.mxu0 0
    %2963 = vmatpush1.bf16.msra.mxu0 0
    %2964 = vmatprep.subr.bf16.mxu0 0
    %2965 = vmatpush1.bf16.msra.mxu0 0
    %2966 = vmatprep.subr.bf16.mxu0 0
    %2967 = vmatpush1.bf16.msra.mxu0 0
    %2968 = vmatprep.subr.bf16.mxu0 0
    %2969 = vmatpush1.bf16.msra.mxu0 0
    %2970 = vmatprep.subr.bf16.mxu0 0
    %2971 = vmatpush1.bf16.msra.mxu0 0
    %2972 = vmatprep.subr.bf16.mxu0 0
    %2973 = vmatpush1.bf16.msra.mxu0 0
    %2974 = vmatprep.mubr.bf16.mxu0 0
    %2975 = vmatmul.mubr.bf16.gmra.mrb[0].mxu0 %v2865
    %v2976 = vpop.f32.mrb[0].mxu0
    %v2977 = vadd.f32 0.0, %v2976
    %v2978 = vpop.f32.mrb[0].mxu0
    %v2979 = vpop.f32.mrb[0].mxu0
    %v2980 = vadd.f32 0.0, %v2979
    %v2981 = vpop.f32.mrb[0].mxu0
    %2982 = vdwg.mxu0
    %v2983 = vadd.f32 %v2876, %v2977
    %v2984 = vadd.f32 %v2877, %v2980
    %v2985 = vtanh.pop %v2983
    %v2986 = vtanh.pop %v2984
    %v2987 = vld [vmem:[#allocation4 + $0x140] sm:$0xff]
    %v2988 = vld [vmem:[#allocation4 + $0x160] sm:$0xff]
    %v2989 = vld [vmem:[#allocation5] sm:$0xf]
    %v2990 = vld [vmem:[#allocation5 + $0x10] sm:$0xf]
    %v2991 = vld [vmem:[#allocation5 + $0x20] sm:$0xf]
    %v2992 = vld [vmem:[#allocation5 + $0x30] sm:$0xf]
    %v2993 = vld [vmem:[#allocation5 + $0x40] sm:$0xf]
    %v2994 = vld [vmem:[#allocation5 + $0x50] sm:$0xf]
    %v2995 = vld [vmem:[#allocation5 + $0x60] sm:$0xf]
    %v2996 = vld [vmem:[#allocation5 + $0x70] sm:$0xf]
    %v2997 = vld [vmem:[#allocation5 + $0x80] sm:$0xf]
    %v2998 = vld [vmem:[#allocation5 + $0x90] sm:$0xf]
    %v2999 = vld [vmem:[#allocation5 + $0xa0] sm:$0xf]
    %v3000 = vld [vmem:[#allocation5 + $0xb0] sm:$0xf]
    %v3001 = vld [vmem:[#allocation5 + $0xc0] sm:$0xf]
    %v3002 = vld [vmem:[#allocation5 + $0xd0] sm:$0xf]
    %v3003 = vld [vmem:[#allocation5 + $0xe0] sm:$0xf]
    %v3004 = vld [vmem:[#allocation5 + $0xf0] sm:$0xf]
    %v3021 = vunpack.c.l.b16 %v2989
    %v3022 = vunpack.c.l.b16 %v2990
    %v3023 = vunpack.c.l.b16 %v2991
    %v3024 = vunpack.c.l.b16 %v2992
    %v3025 = vunpack.c.l.b16 %v2993
    %v3026 = vunpack.c.l.b16 %v2994
    %v3027 = vunpack.c.l.b16 %v2995
    %v3028 = vunpack.c.l.b16 %v2996
    %v3029 = vunpack.c.l.b16 %v2997
    %v3030 = vunpack.c.l.b16 %v2998
    %v3031 = vunpack.c.l.b16 %v2999
    %v3032 = vunpack.c.l.b16 %v3000
    %v3033 = vunpack.c.l.b16 %v3001
    %v3034 = vunpack.c.l.b16 %v3002
    %v3035 = vunpack.c.l.b16 %v3003
    %v3036 = vunpack.c.l.b16 %v3004
    %v3037 = vpack.c.b16 %v3022, %v3021
    %v3038 = vpack.c.b16 %v3024, %v3023
    %v3039 = vpack.c.b16 %v3026, %v3025
    %v3040 = vpack.c.b16 %v3028, %v3027
    %v3041 = vpack.c.b16 %v3030, %v3029
    %v3042 = vpack.c.b16 %v3032, %v3031
    %v3043 = vpack.c.b16 %v3034, %v3033
    %v3044 = vpack.c.b16 %v3036, %v3035
    %3053 = vmatprep.subr.bf16.mxu0 0
    %3054 = vmatpush1.bf16.msra.mxu0 %v3037
    %3055 = vmatprep.subr.bf16.mxu0 0
    %3056 = vmatpush1.bf16.msra.mxu0 %v3038
    %3057 = vmatprep.subr.bf16.mxu0 0
    %3058 = vmatpush1.bf16.msra.mxu0 %v3039
    %3059 = vmatprep.subr.bf16.mxu0 0
    %3060 = vmatpush1.bf16.msra.mxu0 %v3040
    %3061 = vmatprep.subr.bf16.mxu0 0
    %3062 = vmatpush1.bf16.msra.mxu0 %v3041
    %3063 = vmatprep.subr.bf16.mxu0 0
    %3064 = vmatpush1.bf16.msra.mxu0 %v3042
    %3065 = vmatprep.subr.bf16.mxu0 0
    %3066 = vmatpush1.bf16.msra.mxu0 %v3043
    %3067 = vmatprep.subr.bf16.mxu0 0
    %3068 = vmatpush1.bf16.msra.mxu0 %v3044
    %3069 = vmatprep.subr.bf16.mxu0 0
    %3070 = vmatpush1.bf16.msra.mxu0 0
    %3071 = vmatprep.subr.bf16.mxu0 0
    %3072 = vmatpush1.bf16.msra.mxu0 0
    %3073 = vmatprep.subr.bf16.mxu0 0
    %3074 = vmatpush1.bf16.msra.mxu0 0
    %3075 = vmatprep.subr.bf16.mxu0 0
    %3076 = vmatpush1.bf16.msra.mxu0 0
    %3077 = vmatprep.subr.bf16.mxu0 0
    %3078 = vmatpush1.bf16.msra.mxu0 0
    %3079 = vmatprep.subr.bf16.mxu0 0
    %3080 = vmatpush1.bf16.msra.mxu0 0
    %3081 = vmatprep.subr.bf16.mxu0 0
    %3082 = vmatpush1.bf16.msra.mxu0 0
    %3083 = vmatprep.subr.bf16.mxu0 0
    %3084 = vmatpush1.bf16.msra.mxu0 0
    %3085 = vmatprep.mubr.bf16.mxu0 0
    %3086 = vmatmul.mubr.bf16.gmra.mrb[0].mxu0 %v2865
    %v3087 = vpop.f32.mrb[0].mxu0
    %v3088 = vadd.f32 0.0, %v3087
    %v3089 = vpop.f32.mrb[0].mxu0
    %v3090 = vpop.f32.mrb[0].mxu0
    %v3091 = vadd.f32 0.0, %v3090
    %v3092 = vpop.f32.mrb[0].mxu0
    %3093 = vdwg.mxu0
    %v3094 = vadd.f32 %v2987, %v3088
    %v3095 = vadd.f32 %v2988, %v3091
    %v3096 = vmul.f32 %v3094, 0.5
    %v3097 = vmul.f32 %v3095, 0.5
    %v3098 = vtanh.pop %v3096
    %v3099 = vtanh.pop %v3097
    %v3100 = vmul.f32 %v3098, 0.5
    %v3101 = vmul.f32 %v3099, 0.5
    %v3102 = vadd.f32 %v3100, 0.5
    %v3103 = vadd.f32 %v3101, 0.5
    %v3104 = vmul.f32 %v3102, %v2985
    %v3105 = vmul.f32 %v3103, %v2986
    %v3106 = vld [vmem:[#allocation4 + $0x148] sm:$0xff]
    %v3107 = vld [vmem:[#allocation4 + $0x168] sm:$0xff]
    %v3108 = vld [vmem:[#allocation5 + $0x4] sm:$0xf]
    %v3109 = vld [vmem:[#allocation5 + $0x14] sm:$0xf]
    %v3110 = vld [vmem:[#allocation5 + $0x24] sm:$0xf]
    %v3111 = vld [vmem:[#allocation5 + $0x34] sm:$0xf]
    %v3112 = vld [vmem:[#allocation5 + $0x44] sm:$0xf]
    %v3113 = vld [vmem:[#allocation5 + $0x54] sm:$0xf]
    %v3114 = vld [vmem:[#allocation5 + $0x64] sm:$0xf]
    %v3115 = vld [vmem:[#allocation5 + $0x74] sm:$0xf]
    %v3116 = vld [vmem:[#allocation5 + $0x84] sm:$0xf]
    %v3117 = vld [vmem:[#allocation5 + $0x94] sm:$0xf]
    %v3118 = vld [vmem:[#allocation5 + $0xa4] sm:$0xf]
    %v3119 = vld [vmem:[#allocation5 + $0xb4] sm:$0xf]
    %v3120 = vld [vmem:[#allocation5 + $0xc4] sm:$0xf]
    %v3121 = vld [vmem:[#allocation5 + $0xd4] sm:$0xf]
    %v3122 = vld [vmem:[#allocation5 + $0xe4] sm:$0xf]
    %v3123 = vld [vmem:[#allocation5 + $0xf4] sm:$0xf]
    %v3140 = vunpack.c.l.b16 %v3108
    %v3141 = vunpack.c.l.b16 %v3109
    %v3142 = vunpack.c.l.b16 %v3110
    %v3143 = vunpack.c.l.b16 %v3111
    %v3144 = vunpack.c.l.b16 %v3112
    %v3145 = vunpack.c.l.b16 %v3113
    %v3146 = vunpack.c.l.b16 %v3114
    %v3147 = vunpack.c.l.b16 %v3115
    %v3148 = vunpack.c.l.b16 %v3116
    %v3149 = vunpack.c.l.b16 %v3117
    %v3150 = vunpack.c.l.b16 %v3118
    %v3151 = vunpack.c.l.b16 %v3119
    %v3152 = vunpack.c.l.b16 %v3120
    %v3153 = vunpack.c.l.b16 %v3121
    %v3154 = vunpack.c.l.b16 %v3122
    %v3155 = vunpack.c.l.b16 %v3123
    %v3156 = vpack.c.b16 %v3141, %v3140
    %v3157 = vpack.c.b16 %v3143, %v3142
    %v3158 = vpack.c.b16 %v3145, %v3144
    %v3159 = vpack.c.b16 %v3147, %v3146
    %v3160 = vpack.c.b16 %v3149, %v3148
    %v3161 = vpack.c.b16 %v3151, %v3150
    %v3162 = vpack.c.b16 %v3153, %v3152
    %v3163 = vpack.c.b16 %v3155, %v3154
    %3172 = vmatprep.subr.bf16.mxu0 0
    %3173 = vmatpush1.bf16.msra.mxu0 %v3156
    %3174 = vmatprep.subr.bf16.mxu0 0
    %3175 = vmatpush1.bf16.msra.mxu0 %v3157
    %3176 = vmatprep.subr.bf16.mxu0 0
    %3177 = vmatpush1.bf16.msra.mxu0 %v3158
    %3178 = vmatprep.subr.bf16.mxu0 0
    %3179 = vmatpush1.bf16.msra.mxu0 %v3159
    %3180 = vmatprep.subr.bf16.mxu0 0
    %3181 = vmatpush1.bf16.msra.mxu0 %v3160
    %3182 = vmatprep.subr.bf16.mxu0 0
    %3183 = vmatpush1.bf16.msra.mxu0 %v3161
    %3184 = vmatprep.subr.bf16.mxu0 0
    %3185 = vmatpush1.bf16.msra.mxu0 %v3162
    %3186 = vmatprep.subr.bf16.mxu0 0
    %3187 = vmatpush1.bf16.msra.mxu0 %v3163
    %3188 = vmatprep.subr.bf16.mxu0 0
    %3189 = vmatpush1.bf16.msra.mxu0 0
    %3190 = vmatprep.subr.bf16.mxu0 0
    %3191 = vmatpush1.bf16.msra.mxu0 0
    %3192 = vmatprep.subr.bf16.mxu0 0
    %3193 = vmatpush1.bf16.msra.mxu0 0
    %3194 = vmatprep.subr.bf16.mxu0 0
    %3195 = vmatpush1.bf16.msra.mxu0 0
    %3196 = vmatprep.subr.bf16.mxu0 0
    %3197 = vmatpush1.bf16.msra.mxu0 0
    %3198 = vmatprep.subr.bf16.mxu0 0
    %3199 = vmatpush1.bf16.msra.mxu0 0
    %3200 = vmatprep.subr.bf16.mxu0 0
    %3201 = vmatpush1.bf16.msra.mxu0 0
    %3202 = vmatprep.subr.bf16.mxu0 0
    %3203 = vmatpush1.bf16.msra.mxu0 0
    %3204 = vmatprep.mubr.bf16.mxu0 0
    %3205 = vmatmul.mubr.bf16.gmra.mrb[0].mxu0 %v2865
    %v3206 = vpop.f32.mrb[0].mxu0
    %v3207 = vadd.f32 0.0, %v3206
    %v3208 = vpop.f32.mrb[0].mxu0
    %v3209 = vpop.f32.mrb[0].mxu0
    %v3210 = vadd.f32 0.0, %v3209
    %v3211 = vpop.f32.mrb[0].mxu0
    %3212 = vdwg.mxu0
    %v3213 = vadd.f32 %v3106, %v3207
    %v3214 = vadd.f32 %v3107, %v3210
    %v3215 = vmul.f32 %v3213, 0.5
    %v3216 = vmul.f32 %v3214, 0.5
    %v3217 = vtanh.pop %v3215
    %v3218 = vtanh.pop %v3216
    %v3219 = vmul.f32 %v3217, 0.5
    %v3220 = vmul.f32 %v3218, 0.5
    %v3221 = vadd.f32 %v3219, 0.5
    %v3222 = vadd.f32 %v3220, 0.5
    %v3223 = vmul.f32 %v3221, %v2742
    %v3224 = vmul.f32 %v3222, %v2743
    %v3225 = vadd.f32 %v3223, %v3104
    %v3226 = vadd.f32 %v3224, %v3105
    %v3227 = vld [vmem:[#allocation4 + $0x158] sm:$0xff]
    %v3228 = vld [vmem:[#allocation4 + $0x178] sm:$0xff]
    %v3229 = vld [vmem:[#allocation5 + $0xc] sm:$0xf]
    %v3230 = vld [vmem:[#allocation5 + $0x1c] sm:$0xf]
    %v3231 = vld [vmem:[#allocation5 + $0x2c] sm:$0xf]
    %v3232 = vld [vmem:[#allocation5 + $0x3c] sm:$0xf]
    %v3233 = vld [vmem:[#allocation5 + $0x4c] sm:$0xf]
    %v3234 = vld [vmem:[#allocation5 + $0x5c] sm:$0xf]
    %v3235 = vld [vmem:[#allocation5 + $0x6c] sm:$0xf]
    %v3236 = vld [vmem:[#allocation5 + $0x7c] sm:$0xf]
    %v3237 = vld [vmem:[#allocation5 + $0x8c] sm:$0xf]
    %v3238 = vld [vmem:[#allocation5 + $0x9c] sm:$0xf]
    %v3239 = vld [vmem:[#allocation5 + $0xac] sm:$0xf]
    %v3240 = vld [vmem:[#allocation5 + $0xbc] sm:$0xf]
    %v3241 = vld [vmem:[#allocation5 + $0xcc] sm:$0xf]
    %v3242 = vld [vmem:[#allocation5 + $0xdc] sm:$0xf]
    %v3243 = vld [vmem:[#allocation5 + $0xec] sm:$0xf]
    %v3244 = vld [vmem:[#allocation5 + $0xfc] sm:$0xf]
    %v3261 = vunpack.c.l.b16 %v3229
    %v3262 = vunpack.c.l.b16 %v3230
    %v3263 = vunpack.c.l.b16 %v3231
    %v3264 = vunpack.c.l.b16 %v3232
    %v3265 = vunpack.c.l.b16 %v3233
    %v3266 = vunpack.c.l.b16 %v3234
    %v3267 = vunpack.c.l.b16 %v3235
    %v3268 = vunpack.c.l.b16 %v3236
    %v3269 = vunpack.c.l.b16 %v3237
    %v3270 = vunpack.c.l.b16 %v3238
    %v3271 = vunpack.c.l.b16 %v3239
    %v3272 = vunpack.c.l.b16 %v3240
    %v3273 = vunpack.c.l.b16 %v3241
    %v3274 = vunpack.c.l.b16 %v3242
    %v3275 = vunpack.c.l.b16 %v3243
    %v3276 = vunpack.c.l.b16 %v3244
    %v3277 = vpack.c.b16 %v3262, %v3261
    %v3278 = vpack.c.b16 %v3264, %v3263
    %v3279 = vpack.c.b16 %v3266, %v3265
    %v3280 = vpack.c.b16 %v3268, %v3267
    %v3281 = vpack.c.b16 %v3270, %v3269
    %v3282 = vpack.c.b16 %v3272, %v3271
    %v3283 = vpack.c.b16 %v3274, %v3273
    %v3284 = vpack.c.b16 %v3276, %v3275
    %3293 = vmatprep.subr.bf16.mxu0 0
    %3294 = vmatpush1.bf16.msra.mxu0 %v3277
    %3295 = vmatprep.subr.bf16.mxu0 0
    %3296 = vmatpush1.bf16.msra.mxu0 %v3278
    %3297 = vmatprep.subr.bf16.mxu0 0
    %3298 = vmatpush1.bf16.msra.mxu0 %v3279
    %3299 = vmatprep.subr.bf16.mxu0 0
    %3300 = vmatpush1.bf16.msra.mxu0 %v3280
    %3301 = vmatprep.subr.bf16.mxu0 0
    %3302 = vmatpush1.bf16.msra.mxu0 %v3281
    %3303 = vmatprep.subr.bf16.mxu0 0
    %3304 = vmatpush1.bf16.msra.mxu0 %v3282
    %3305 = vmatprep.subr.bf16.mxu0 0
    %3306 = vmatpush1.bf16.msra.mxu0 %v3283
    %3307 = vmatprep.subr.bf16.mxu0 0
    %3308 = vmatpush1.bf16.msra.mxu0 %v3284
    %3309 = vmatprep.subr.bf16.mxu0 0
    %3310 = vmatpush1.bf16.msra.mxu0 0
    %3311 = vmatprep.subr.bf16.mxu0 0
    %3312 = vmatpush1.bf16.msra.mxu0 0
    %3313 = vmatprep.subr.bf16.mxu0 0
    %3314 = vmatpush1.bf16.msra.mxu0 0
    %3315 = vmatprep.subr.bf16.mxu0 0
    %3316 = vmatpush1.bf16.msra.mxu0 0
    %3317 = vmatprep.subr.bf16.mxu0 0
    %3318 = vmatpush1.bf16.msra.mxu0 0
    %3319 = vmatprep.subr.bf16.mxu0 0
    %3320 = vmatpush1.bf16.msra.mxu0 0
    %3321 = vmatprep.subr.bf16.mxu0 0
    %3322 = vmatpush1.bf16.msra.mxu0 0
    %3323 = vmatprep.subr.bf16.mxu0 0
    %3324 = vmatpush1.bf16.msra.mxu0 0
    %3325 = vmatprep.mubr.bf16.mxu0 0
    %3326 = vmatmul.mubr.bf16.gmra.mrb[0].mxu0 %v2865
    %v3327 = vpop.f32.mrb[0].mxu0
    %v3328 = vadd.f32 0.0, %v3327
    %v3329 = vpop.f32.mrb[0].mxu0
    %v3330 = vpop.f32.mrb[0].mxu0
    %v3331 = vadd.f32 0.0, %v3330
    %v3332 = vpop.f32.mrb[0].mxu0
    %3333 = vdwg.mxu0
    %v3334 = vadd.f32 %v3227, %v3328
    %v3335 = vadd.f32 %v3228, %v3331
    %v3336 = vmul.f32 %v3334, 0.5
    %v3337 = vmul.f32 %v3335, 0.5
    %v3338 = vtanh.pop %v3336
    %v3339 = vtanh.pop %v3337
    %v3340 = vmul.f32 %v3338, 0.5
    %v3341 = vmul.f32 %v3339, 0.5
    %v3342 = vadd.f32 %v3340, 0.5
    %v3343 = vadd.f32 %v3341, 0.5
    %v3344 = vtanh.pop %v3225
    %v3345 = vtanh.pop %v3226
    %v3346 = vmul.f32 %v3342, %v3344
    %v3347 = vmul.f32 %v3343, %v3345
    %v3348 = vpack.c.bf16 %v3347, %v3346
    %v3350 = vunpack.c.l.b16 %v3348
    %v3351 = vunpack.c.h.b16 %v3348
    %v3352 = vpack.c.b16 %v3350, %v3350
    %v3353 = vpack.c.b16 %v3351, %v3351
    %s3356 = scalar_lea.vmem %s4, 40
    %3357 = vst [vmem:[%s3356] sm:$0xf] %v3352
    %3358 = vst [vmem:[%s3356 + $0x4] sm:$0xf] %v3353
    %v3359 = vld [vmem:[#allocation4 + $0x190] sm:$0xff]
    %v3360 = vld [vmem:[#allocation4 + $0x1b0] sm:$0xff]
    %v3361 = vld [vmem:[#allocation5 + $0x8] sm:$0xf]
    %v3362 = vld [vmem:[#allocation5 + $0x18] sm:$0xf]
    %v3363 = vld [vmem:[#allocation5 + $0x28] sm:$0xf]
    %v3364 = vld [vmem:[#allocation5 + $0x38] sm:$0xf]
    %v3365 = vld [vmem:[#allocation5 + $0x48] sm:$0xf]
    %v3366 = vld [vmem:[#allocation5 + $0x58] sm:$0xf]
    %v3367 = vld [vmem:[#allocation5 + $0x68] sm:$0xf]
    %v3368 = vld [vmem:[#allocation5 + $0x78] sm:$0xf]
    %v3369 = vld [vmem:[#allocation5 + $0x88] sm:$0xf]
    %v3370 = vld [vmem:[#allocation5 + $0x98] sm:$0xf]
    %v3371 = vld [vmem:[#allocation5 + $0xa8] sm:$0xf]
    %v3372 = vld [vmem:[#allocation5 + $0xb8] sm:$0xf]
    %v3373 = vld [vmem:[#allocation5 + $0xc8] sm:$0xf]
    %v3374 = vld [vmem:[#allocation5 + $0xd8] sm:$0xf]
    %v3375 = vld [vmem:[#allocation5 + $0xe8] sm:$0xf]
    %v3376 = vld [vmem:[#allocation5 + $0xf8] sm:$0xf]
    %v3393 = vunpack.c.l.b16 %v3361
    %v3394 = vunpack.c.l.b16 %v3362
    %v3395 = vunpack.c.l.b16 %v3363
    %v3396 = vunpack.c.l.b16 %v3364
    %v3397 = vunpack.c.l.b16 %v3365
    %v3398 = vunpack.c.l.b16 %v3366
    %v3399 = vunpack.c.l.b16 %v3367
    %v3400 = vunpack.c.l.b16 %v3368
    %v3401 = vunpack.c.l.b16 %v3369
    %v3402 = vunpack.c.l.b16 %v3370
    %v3403 = vunpack.c.l.b16 %v3371
    %v3404 = vunpack.c.l.b16 %v3372
    %v3405 = vunpack.c.l.b16 %v3373
    %v3406 = vunpack.c.l.b16 %v3374
    %v3407 = vunpack.c.l.b16 %v3375
    %v3408 = vunpack.c.l.b16 %v3376
    %v3409 = vpack.c.b16 %v3394, %v3393
    %v3410 = vpack.c.b16 %v3396, %v3395
    %v3411 = vpack.c.b16 %v3398, %v3397
    %v3412 = vpack.c.b16 %v3400, %v3399
    %v3413 = vpack.c.b16 %v3402, %v3401
    %v3414 = vpack.c.b16 %v3404, %v3403
    %v3415 = vpack.c.b16 %v3406, %v3405
    %v3416 = vpack.c.b16 %v3408, %v3407
    %3425 = vmatprep.subr.bf16.mxu0 0
    %3426 = vmatpush1.bf16.msra.mxu0 %v3409
    %3427 = vmatprep.subr.bf16.mxu0 0
    %3428 = vmatpush1.bf16.msra.mxu0 %v3410
    %3429 = vmatprep.subr.bf16.mxu0 0
    %3430 = vmatpush1.bf16.msra.mxu0 %v3411
    %3431 = vmatprep.subr.bf16.mxu0 0
    %3432 = vmatpush1.bf16.msra.mxu0 %v3412
    %3433 = vmatprep.subr.bf16.mxu0 0
    %3434 = vmatpush1.bf16.msra.mxu0 %v3413
    %3435 = vmatprep.subr.bf16.mxu0 0
    %3436 = vmatpush1.bf16.msra.mxu0 %v3414
    %3437 = vmatprep.subr.bf16.mxu0 0
    %3438 = vmatpush1.bf16.msra.mxu0 %v3415
    %3439 = vmatprep.subr.bf16.mxu0 0
    %3440 = vmatpush1.bf16.msra.mxu0 %v3416
    %3441 = vmatprep.subr.bf16.mxu0 0
    %3442 = vmatpush1.bf16.msra.mxu0 0
    %3443 = vmatprep.subr.bf16.mxu0 0
    %3444 = vmatpush1.bf16.msra.mxu0 0
    %3445 = vmatprep.subr.bf16.mxu0 0
    %3446 = vmatpush1.bf16.msra.mxu0 0
    %3447 = vmatprep.subr.bf16.mxu0 0
    %3448 = vmatpush1.bf16.msra.mxu0 0
    %3449 = vmatprep.subr.bf16.mxu0 0
    %3450 = vmatpush1.bf16.msra.mxu0 0
    %3451 = vmatprep.subr.bf16.mxu0 0
    %3452 = vmatpush1.bf16.msra.mxu0 0
    %3453 = vmatprep.subr.bf16.mxu0 0
    %3454 = vmatpush1.bf16.msra.mxu0 0
    %3455 = vmatprep.subr.bf16.mxu0 0
    %3456 = vmatpush1.bf16.msra.mxu0 0
    %3457 = vmatprep.mubr.bf16.mxu0 0
    %3458 = vmatmul.mubr.bf16.gmra.mrb[0].mxu0 %v3348
    %v3459 = vpop.f32.mrb[0].mxu0
    %v3460 = vadd.f32 0.0, %v3459
    %v3461 = vpop.f32.mrb[0].mxu0
    %v3462 = vpop.f32.mrb[0].mxu0
    %v3463 = vadd.f32 0.0, %v3462
    %v3464 = vpop.f32.mrb[0].mxu0
    %3465 = vdwg.mxu0
    %v3466 = vadd.f32 %v3359, %v3460
    %v3467 = vadd.f32 %v3360, %v3463
    %v3468 = vtanh.pop %v3466
    %v3469 = vtanh.pop %v3467
    %v3470 = vld [vmem:[#allocation4 + $0x180] sm:$0xff]
    %v3471 = vld [vmem:[#allocation4 + $0x1a0] sm:$0xff]
    %v3472 = vld [vmem:[#allocation5] sm:$0xf]
    %v3473 = vld [vmem:[#allocation5 + $0x10] sm:$0xf]
    %v3474 = vld [vmem:[#allocation5 + $0x20] sm:$0xf]
    %v3475 = vld [vmem:[#allocation5 + $0x30] sm:$0xf]
    %v3476 = vld [vmem:[#allocation5 + $0x40] sm:$0xf]
    %v3477 = vld [vmem:[#allocation5 + $0x50] sm:$0xf]
    %v3478 = vld [vmem:[#allocation5 + $0x60] sm:$0xf]
    %v3479 = vld [vmem:[#allocation5 + $0x70] sm:$0xf]
    %v3480 = vld [vmem:[#allocation5 + $0x80] sm:$0xf]
    %v3481 = vld [vmem:[#allocation5 + $0x90] sm:$0xf]
    %v3482 = vld [vmem:[#allocation5 + $0xa0] sm:$0xf]
    %v3483 = vld [vmem:[#allocation5 + $0xb0] sm:$0xf]
    %v3484 = vld [vmem:[#allocation5 + $0xc0] sm:$0xf]
    %v3485 = vld [vmem:[#allocation5 + $0xd0] sm:$0xf]
    %v3486 = vld [vmem:[#allocation5 + $0xe0] sm:$0xf]
    %v3487 = vld [vmem:[#allocation5 + $0xf0] sm:$0xf]
    %v3504 = vunpack.c.l.b16 %v3472
    %v3505 = vunpack.c.l.b16 %v3473
    %v3506 = vunpack.c.l.b16 %v3474
    %v3507 = vunpack.c.l.b16 %v3475
    %v3508 = vunpack.c.l.b16 %v3476
    %v3509 = vunpack.c.l.b16 %v3477
    %v3510 = vunpack.c.l.b16 %v3478
    %v3511 = vunpack.c.l.b16 %v3479
    %v3512 = vunpack.c.l.b16 %v3480
    %v3513 = vunpack.c.l.b16 %v3481
    %v3514 = vunpack.c.l.b16 %v3482
    %v3515 = vunpack.c.l.b16 %v3483
    %v3516 = vunpack.c.l.b16 %v3484
    %v3517 = vunpack.c.l.b16 %v3485
    %v3518 = vunpack.c.l.b16 %v3486
    %v3519 = vunpack.c.l.b16 %v3487
    %v3520 = vpack.c.b16 %v3505, %v3504
    %v3521 = vpack.c.b16 %v3507, %v3506
    %v3522 = vpack.c.b16 %v3509, %v3508
    %v3523 = vpack.c.b16 %v3511, %v3510
    %v3524 = vpack.c.b16 %v3513, %v3512
    %v3525 = vpack.c.b16 %v3515, %v3514
    %v3526 = vpack.c.b16 %v3517, %v3516
    %v3527 = vpack.c.b16 %v3519, %v3518
    %3536 = vmatprep.subr.bf16.mxu0 0
    %3537 = vmatpush1.bf16.msra.mxu0 %v3520
    %3538 = vmatprep.subr.bf16.mxu0 0
    %3539 = vmatpush1.bf16.msra.mxu0 %v3521
    %3540 = vmatprep.subr.bf16.mxu0 0
    %3541 = vmatpush1.bf16.msra.mxu0 %v3522
    %3542 = vmatprep.subr.bf16.mxu0 0
    %3543 = vmatpush1.bf16.msra.mxu0 %v3523
    %3544 = vmatprep.subr.bf16.mxu0 0
    %3545 = vmatpush1.bf16.msra.mxu0 %v3524
    %3546 = vmatprep.subr.bf16.mxu0 0
    %3547 = vmatpush1.bf16.msra.mxu0 %v3525
    %3548 = vmatprep.subr.bf16.mxu0 0
    %3549 = vmatpush1.bf16.msra.mxu0 %v3526
    %3550 = vmatprep.subr.bf16.mxu0 0
    %3551 = vmatpush1.bf16.msra.mxu0 %v3527
    %3552 = vmatprep.subr.bf16.mxu0 0
    %3553 = vmatpush1.bf16.msra.mxu0 0
    %3554 = vmatprep.subr.bf16.mxu0 0
    %3555 = vmatpush1.bf16.msra.mxu0 0
    %3556 = vmatprep.subr.bf16.mxu0 0
    %3557 = vmatpush1.bf16.msra.mxu0 0
    %3558 = vmatprep.subr.bf16.mxu0 0
    %3559 = vmatpush1.bf16.msra.mxu0 0
    %3560 = vmatprep.subr.bf16.mxu0 0
    %3561 = vmatpush1.bf16.msra.mxu0 0
    %3562 = vmatprep.subr.bf16.mxu0 0
    %3563 = vmatpush1.bf16.msra.mxu0 0
    %3564 = vmatprep.subr.bf16.mxu0 0
    %3565 = vmatpush1.bf16.msra.mxu0 0
    %3566 = vmatprep.subr.bf16.mxu0 0
    %3567 = vmatpush1.bf16.msra.mxu0 0
    %3568 = vmatprep.mubr.bf16.mxu0 0
    %3569 = vmatmul.mubr.bf16.gmra.mrb[0].mxu0 %v3348
    %v3570 = vpop.f32.mrb[0].mxu0
    %v3571 = vadd.f32 0.0, %v3570
    %v3572 = vpop.f32.mrb[0].mxu0
    %v3573 = vpop.f32.mrb[0].mxu0
    %v3574 = vadd.f32 0.0, %v3573
    %v3575 = vpop.f32.mrb[0].mxu0
    %3576 = vdwg.mxu0
    %v3577 = vadd.f32 %v3470, %v3571
    %v3578 = vadd.f32 %v3471, %v3574
    %v3579 = vmul.f32 %v3577, 0.5
    %v3580 = vmul.f32 %v3578, 0.5
    %v3581 = vtanh.pop %v3579
    %v3582 = vtanh.pop %v3580
    %v3583 = vmul.f32 %v3581, 0.5
    %v3584 = vmul.f32 %v3582, 0.5
    %v3585 = vadd.f32 %v3583, 0.5
    %v3586 = vadd.f32 %v3584, 0.5
    %v3587 = vmul.f32 %v3585, %v3468
    %v3588 = vmul.f32 %v3586, %v3469
    %v3589 = vld [vmem:[#allocation4 + $0x188] sm:$0xff]
    %v3590 = vld [vmem:[#allocation4 + $0x1a8] sm:$0xff]
    %v3591 = vld [vmem:[#allocation5 + $0x4] sm:$0xf]
    %v3592 = vld [vmem:[#allocation5 + $0x14] sm:$0xf]
    %v3593 = vld [vmem:[#allocation5 + $0x24] sm:$0xf]
    %v3594 = vld [vmem:[#allocation5 + $0x34] sm:$0xf]
    %v3595 = vld [vmem:[#allocation5 + $0x44] sm:$0xf]
    %v3596 = vld [vmem:[#allocation5 + $0x54] sm:$0xf]
    %v3597 = vld [vmem:[#allocation5 + $0x64] sm:$0xf]
    %v3598 = vld [vmem:[#allocation5 + $0x74] sm:$0xf]
    %v3599 = vld [vmem:[#allocation5 + $0x84] sm:$0xf]
    %v3600 = vld [vmem:[#allocation5 + $0x94] sm:$0xf]
    %v3601 = vld [vmem:[#allocation5 + $0xa4] sm:$0xf]
    %v3602 = vld [vmem:[#allocation5 + $0xb4] sm:$0xf]
    %v3603 = vld [vmem:[#allocation5 + $0xc4] sm:$0xf]
    %v3604 = vld [vmem:[#allocation5 + $0xd4] sm:$0xf]
    %v3605 = vld [vmem:[#allocation5 + $0xe4] sm:$0xf]
    %v3606 = vld [vmem:[#allocation5 + $0xf4] sm:$0xf]
    %v3623 = vunpack.c.l.b16 %v3591
    %v3624 = vunpack.c.l.b16 %v3592
    %v3625 = vunpack.c.l.b16 %v3593
    %v3626 = vunpack.c.l.b16 %v3594
    %v3627 = vunpack.c.l.b16 %v3595
    %v3628 = vunpack.c.l.b16 %v3596
    %v3629 = vunpack.c.l.b16 %v3597
    %v3630 = vunpack.c.l.b16 %v3598
    %v3631 = vunpack.c.l.b16 %v3599
    %v3632 = vunpack.c.l.b16 %v3600
    %v3633 = vunpack.c.l.b16 %v3601
    %v3634 = vunpack.c.l.b16 %v3602
    %v3635 = vunpack.c.l.b16 %v3603
    %v3636 = vunpack.c.l.b16 %v3604
    %v3637 = vunpack.c.l.b16 %v3605
    %v3638 = vunpack.c.l.b16 %v3606
    %v3639 = vpack.c.b16 %v3624, %v3623
    %v3640 = vpack.c.b16 %v3626, %v3625
    %v3641 = vpack.c.b16 %v3628, %v3627
    %v3642 = vpack.c.b16 %v3630, %v3629
    %v3643 = vpack.c.b16 %v3632, %v3631
    %v3644 = vpack.c.b16 %v3634, %v3633
    %v3645 = vpack.c.b16 %v3636, %v3635
    %v3646 = vpack.c.b16 %v3638, %v3637
    %3655 = vmatprep.subr.bf16.mxu0 0
    %3656 = vmatpush1.bf16.msra.mxu0 %v3639
    %3657 = vmatprep.subr.bf16.mxu0 0
    %3658 = vmatpush1.bf16.msra.mxu0 %v3640
    %3659 = vmatprep.subr.bf16.mxu0 0
    %3660 = vmatpush1.bf16.msra.mxu0 %v3641
    %3661 = vmatprep.subr.bf16.mxu0 0
    %3662 = vmatpush1.bf16.msra.mxu0 %v3642
    %3663 = vmatprep.subr.bf16.mxu0 0
    %3664 = vmatpush1.bf16.msra.mxu0 %v3643
    %3665 = vmatprep.subr.bf16.mxu0 0
    %3666 = vmatpush1.bf16.msra.mxu0 %v3644
    %3667 = vmatprep.subr.bf16.mxu0 0
    %3668 = vmatpush1.bf16.msra.mxu0 %v3645
    %3669 = vmatprep.subr.bf16.mxu0 0
    %3670 = vmatpush1.bf16.msra.mxu0 %v3646
    %3671 = vmatprep.subr.bf16.mxu0 0
    %3672 = vmatpush1.bf16.msra.mxu0 0
    %3673 = vmatprep.subr.bf16.mxu0 0
    %3674 = vmatpush1.bf16.msra.mxu0 0
    %3675 = vmatprep.subr.bf16.mxu0 0
    %3676 = vmatpush1.bf16.msra.mxu0 0
    %3677 = vmatprep.subr.bf16.mxu0 0
    %3678 = vmatpush1.bf16.msra.mxu0 0
    %3679 = vmatprep.subr.bf16.mxu0 0
    %3680 = vmatpush1.bf16.msra.mxu0 0
    %3681 = vmatprep.subr.bf16.mxu0 0
    %3682 = vmatpush1.bf16.msra.mxu0 0
    %3683 = vmatprep.subr.bf16.mxu0 0
    %3684 = vmatpush1.bf16.msra.mxu0 0
    %3685 = vmatprep.subr.bf16.mxu0 0
    %3686 = vmatpush1.bf16.msra.mxu0 0
    %3687 = vmatprep.mubr.bf16.mxu0 0
    %3688 = vmatmul.mubr.bf16.gmra.mrb[0].mxu0 %v3348
    %v3689 = vpop.f32.mrb[0].mxu0
    %v3690 = vadd.f32 0.0, %v3689
    %v3691 = vpop.f32.mrb[0].mxu0
    %v3692 = vpop.f32.mrb[0].mxu0
    %v3693 = vadd.f32 0.0, %v3692
    %v3694 = vpop.f32.mrb[0].mxu0
    %3695 = vdwg.mxu0
    %v3696 = vadd.f32 %v3589, %v3690
    %v3697 = vadd.f32 %v3590, %v3693
    %v3698 = vmul.f32 %v3696, 0.5
    %v3699 = vmul.f32 %v3697, 0.5
    %v3700 = vtanh.pop %v3698
    %v3701 = vtanh.pop %v3699
    %v3702 = vmul.f32 %v3700, 0.5
    %v3703 = vmul.f32 %v3701, 0.5
    %v3704 = vadd.f32 %v3702, 0.5
    %v3705 = vadd.f32 %v3703, 0.5
    %v3706 = vmul.f32 %v3704, %v3225
    %v3707 = vmul.f32 %v3705, %v3226
    %v3708 = vadd.f32 %v3706, %v3587
    %v3709 = vadd.f32 %v3707, %v3588
    %v3710 = vld [vmem:[#allocation4 + $0x198] sm:$0xff]
    %v3711 = vld [vmem:[#allocation4 + $0x1b8] sm:$0xff]
    %v3712 = vld [vmem:[#allocation5 + $0xc] sm:$0xf]
    %v3713 = vld [vmem:[#allocation5 + $0x1c] sm:$0xf]
    %v3714 = vld [vmem:[#allocation5 + $0x2c] sm:$0xf]
    %v3715 = vld [vmem:[#allocation5 + $0x3c] sm:$0xf]
    %v3716 = vld [vmem:[#allocation5 + $0x4c] sm:$0xf]
    %v3717 = vld [vmem:[#allocation5 + $0x5c] sm:$0xf]
    %v3718 = vld [vmem:[#allocation5 + $0x6c] sm:$0xf]
    %v3719 = vld [vmem:[#allocation5 + $0x7c] sm:$0xf]
    %v3720 = vld [vmem:[#allocation5 + $0x8c] sm:$0xf]
    %v3721 = vld [vmem:[#allocation5 + $0x9c] sm:$0xf]
    %v3722 = vld [vmem:[#allocation5 + $0xac] sm:$0xf]
    %v3723 = vld [vmem:[#allocation5 + $0xbc] sm:$0xf]
    %v3724 = vld [vmem:[#allocation5 + $0xcc] sm:$0xf]
    %v3725 = vld [vmem:[#allocation5 + $0xdc] sm:$0xf]
    %v3726 = vld [vmem:[#allocation5 + $0xec] sm:$0xf]
    %v3727 = vld [vmem:[#allocation5 + $0xfc] sm:$0xf]
    %v3744 = vunpack.c.l.b16 %v3712
    %v3745 = vunpack.c.l.b16 %v3713
    %v3746 = vunpack.c.l.b16 %v3714
    %v3747 = vunpack.c.l.b16 %v3715
    %v3748 = vunpack.c.l.b16 %v3716
    %v3749 = vunpack.c.l.b16 %v3717
    %v3750 = vunpack.c.l.b16 %v3718
    %v3751 = vunpack.c.l.b16 %v3719
    %v3752 = vunpack.c.l.b16 %v3720
    %v3753 = vunpack.c.l.b16 %v3721
    %v3754 = vunpack.c.l.b16 %v3722
    %v3755 = vunpack.c.l.b16 %v3723
    %v3756 = vunpack.c.l.b16 %v3724
    %v3757 = vunpack.c.l.b16 %v3725
    %v3758 = vunpack.c.l.b16 %v3726
    %v3759 = vunpack.c.l.b16 %v3727
    %v3760 = vpack.c.b16 %v3745, %v3744
    %v3761 = vpack.c.b16 %v3747, %v3746
    %v3762 = vpack.c.b16 %v3749, %v3748
    %v3763 = vpack.c.b16 %v3751, %v3750
    %v3764 = vpack.c.b16 %v3753, %v3752
    %v3765 = vpack.c.b16 %v3755, %v3754
    %v3766 = vpack.c.b16 %v3757, %v3756
    %v3767 = vpack.c.b16 %v3759, %v3758
    %3776 = vmatprep.subr.bf16.mxu0 0
    %3777 = vmatpush1.bf16.msra.mxu0 %v3760
    %3778 = vmatprep.subr.bf16.mxu0 0
    %3779 = vmatpush1.bf16.msra.mxu0 %v3761
    %3780 = vmatprep.subr.bf16.mxu0 0
    %3781 = vmatpush1.bf16.msra.mxu0 %v3762
    %3782 = vmatprep.subr.bf16.mxu0 0
    %3783 = vmatpush1.bf16.msra.mxu0 %v3763
    %3784 = vmatprep.subr.bf16.mxu0 0
    %3785 = vmatpush1.bf16.msra.mxu0 %v3764
    %3786 = vmatprep.subr.bf16.mxu0 0
    %3787 = vmatpush1.bf16.msra.mxu0 %v3765
    %3788 = vmatprep.subr.bf16.mxu0 0
    %3789 = vmatpush1.bf16.msra.mxu0 %v3766
    %3790 = vmatprep.subr.bf16.mxu0 0
    %3791 = vmatpush1.bf16.msra.mxu0 %v3767
    %3792 = vmatprep.subr.bf16.mxu0 0
    %3793 = vmatpush1.bf16.msra.mxu0 0
    %3794 = vmatprep.subr.bf16.mxu0 0
    %3795 = vmatpush1.bf16.msra.mxu0 0
    %3796 = vmatprep.subr.bf16.mxu0 0
    %3797 = vmatpush1.bf16.msra.mxu0 0
    %3798 = vmatprep.subr.bf16.mxu0 0
    %3799 = vmatpush1.bf16.msra.mxu0 0
    %3800 = vmatprep.subr.bf16.mxu0 0
    %3801 = vmatpush1.bf16.msra.mxu0 0
    %3802 = vmatprep.subr.bf16.mxu0 0
    %3803 = vmatpush1.bf16.msra.mxu0 0
    %3804 = vmatprep.subr.bf16.mxu0 0
    %3805 = vmatpush1.bf16.msra.mxu0 0
    %3806 = vmatprep.subr.bf16.mxu0 0
    %3807 = vmatpush1.bf16.msra.mxu0 0
    %3808 = vmatprep.mubr.bf16.mxu0 0
    %3809 = vmatmul.mubr.bf16.gmra.mrb[0].mxu0 %v3348
    %v3810 = vpop.f32.mrb[0].mxu0
    %v3811 = vadd.f32 0.0, %v3810
    %v3812 = vpop.f32.mrb[0].mxu0
    %v3813 = vpop.f32.mrb[0].mxu0
    %v3814 = vadd.f32 0.0, %v3813
    %v3815 = vpop.f32.mrb[0].mxu0
    %3816 = vdwg.mxu0
    %v3817 = vadd.f32 %v3710, %v3811
    %v3818 = vadd.f32 %v3711, %v3814
    %v3819 = vmul.f32 %v3817, 0.5
    %v3820 = vmul.f32 %v3818, 0.5
    %v3821 = vtanh.pop %v3819
    %v3822 = vtanh.pop %v3820
    %v3823 = vmul.f32 %v3821, 0.5
    %v3824 = vmul.f32 %v3822, 0.5
    %v3825 = vadd.f32 %v3823, 0.5
    %v3826 = vadd.f32 %v3824, 0.5
    %v3827 = vtanh.pop %v3708
    %v3828 = vtanh.pop %v3709
    %v3829 = vmul.f32 %v3825, %v3827
    %v3830 = vmul.f32 %v3826, %v3828
    %v3831 = vpack.c.bf16 %v3830, %v3829
    %v3833 = vunpack.c.l.b16 %v3831
    %v3834 = vunpack.c.h.b16 %v3831
    %v3835 = vpack.c.b16 %v3833, %v3833
    %v3836 = vpack.c.b16 %v3834, %v3834
    %s3839 = scalar_lea.vmem %s4, 48
    %3840 = vst [vmem:[%s3839] sm:$0xf] %v3835
    %3841 = vst [vmem:[%s3839 + $0x4] sm:$0xf] %v3836
    %v3842 = vld [vmem:[#allocation4 + $0x1d0] sm:$0xff]
    %v3843 = vld [vmem:[#allocation4 + $0x1f0] sm:$0xff]
    %v3844 = vld [vmem:[#allocation5 + $0x8] sm:$0xf]
    %v3845 = vld [vmem:[#allocation5 + $0x18] sm:$0xf]
    %v3846 = vld [vmem:[#allocation5 + $0x28] sm:$0xf]
    %v3847 = vld [vmem:[#allocation5 + $0x38] sm:$0xf]
    %v3848 = vld [vmem:[#allocation5 + $0x48] sm:$0xf]
    %v3849 = vld [vmem:[#allocation5 + $0x58] sm:$0xf]
    %v3850 = vld [vmem:[#allocation5 + $0x68] sm:$0xf]
    %v3851 = vld [vmem:[#allocation5 + $0x78] sm:$0xf]
    %v3852 = vld [vmem:[#allocation5 + $0x88] sm:$0xf]
    %v3853 = vld [vmem:[#allocation5 + $0x98] sm:$0xf]
    %v3854 = vld [vmem:[#allocation5 + $0xa8] sm:$0xf]
    %v3855 = vld [vmem:[#allocation5 + $0xb8] sm:$0xf]
    %v3856 = vld [vmem:[#allocation5 + $0xc8] sm:$0xf]
    %v3857 = vld [vmem:[#allocation5 + $0xd8] sm:$0xf]
    %v3858 = vld [vmem:[#allocation5 + $0xe8] sm:$0xf]
    %v3859 = vld [vmem:[#allocation5 + $0xf8] sm:$0xf]
    %v3876 = vunpack.c.l.b16 %v3844
    %v3877 = vunpack.c.l.b16 %v3845
    %v3878 = vunpack.c.l.b16 %v3846
    %v3879 = vunpack.c.l.b16 %v3847
    %v3880 = vunpack.c.l.b16 %v3848
    %v3881 = vunpack.c.l.b16 %v3849
    %v3882 = vunpack.c.l.b16 %v3850
    %v3883 = vunpack.c.l.b16 %v3851
    %v3884 = vunpack.c.l.b16 %v3852
    %v3885 = vunpack.c.l.b16 %v3853
    %v3886 = vunpack.c.l.b16 %v3854
    %v3887 = vunpack.c.l.b16 %v3855
    %v3888 = vunpack.c.l.b16 %v3856
    %v3889 = vunpack.c.l.b16 %v3857
    %v3890 = vunpack.c.l.b16 %v3858
    %v3891 = vunpack.c.l.b16 %v3859
    %v3892 = vpack.c.b16 %v3877, %v3876
    %v3893 = vpack.c.b16 %v3879, %v3878
    %v3894 = vpack.c.b16 %v3881, %v3880
    %v3895 = vpack.c.b16 %v3883, %v3882
    %v3896 = vpack.c.b16 %v3885, %v3884
    %v3897 = vpack.c.b16 %v3887, %v3886
    %v3898 = vpack.c.b16 %v3889, %v3888
    %v3899 = vpack.c.b16 %v3891, %v3890
    %3908 = vmatprep.subr.bf16.mxu0 0
    %3909 = vmatpush1.bf16.msra.mxu0 %v3892
    %3910 = vmatprep.subr.bf16.mxu0 0
    %3911 = vmatpush1.bf16.msra.mxu0 %v3893
    %3912 = vmatprep.subr.bf16.mxu0 0
    %3913 = vmatpush1.bf16.msra.mxu0 %v3894
    %3914 = vmatprep.subr.bf16.mxu0 0
    %3915 = vmatpush1.bf16.msra.mxu0 %v3895
    %3916 = vmatprep.subr.bf16.mxu0 0
    %3917 = vmatpush1.bf16.msra.mxu0 %v3896
    %3918 = vmatprep.subr.bf16.mxu0 0
    %3919 = vmatpush1.bf16.msra.mxu0 %v3897
    %3920 = vmatprep.subr.bf16.mxu0 0
    %3921 = vmatpush1.bf16.msra.mxu0 %v3898
    %3922 = vmatprep.subr.bf16.mxu0 0
    %3923 = vmatpush1.bf16.msra.mxu0 %v3899
    %3924 = vmatprep.subr.bf16.mxu0 0
    %3925 = vmatpush1.bf16.msra.mxu0 0
    %3926 = vmatprep.subr.bf16.mxu0 0
    %3927 = vmatpush1.bf16.msra.mxu0 0
    %3928 = vmatprep.subr.bf16.mxu0 0
    %3929 = vmatpush1.bf16.msra.mxu0 0
    %3930 = vmatprep.subr.bf16.mxu0 0
    %3931 = vmatpush1.bf16.msra.mxu0 0
    %3932 = vmatprep.subr.bf16.mxu0 0
    %3933 = vmatpush1.bf16.msra.mxu0 0
    %3934 = vmatprep.subr.bf16.mxu0 0
    %3935 = vmatpush1.bf16.msra.mxu0 0
    %3936 = vmatprep.subr.bf16.mxu0 0
    %3937 = vmatpush1.bf16.msra.mxu0 0
    %3938 = vmatprep.subr.bf16.mxu0 0
    %3939 = vmatpush1.bf16.msra.mxu0 0
    %3940 = vmatprep.mubr.bf16.mxu0 0
    %3941 = vmatmul.mubr.bf16.gmra.mrb[0].mxu0 %v3831
    %v3942 = vpop.f32.mrb[0].mxu0
    %v3943 = vadd.f32 0.0, %v3942
    %v3944 = vpop.f32.mrb[0].mxu0
    %v3945 = vpop.f32.mrb[0].mxu0
    %v3946 = vadd.f32 0.0, %v3945
    %v3947 = vpop.f32.mrb[0].mxu0
    %3948 = vdwg.mxu0
    %v3949 = vadd.f32 %v3842, %v3943
    %v3950 = vadd.f32 %v3843, %v3946
    %v3951 = vtanh.pop %v3949
    %v3952 = vtanh.pop %v3950
    %v3953 = vld [vmem:[#allocation4 + $0x1c0] sm:$0xff]
    %v3954 = vld [vmem:[#allocation4 + $0x1e0] sm:$0xff]
    %v3955 = vld [vmem:[#allocation5] sm:$0xf]
    %v3956 = vld [vmem:[#allocation5 + $0x10] sm:$0xf]
    %v3957 = vld [vmem:[#allocation5 + $0x20] sm:$0xf]
    %v3958 = vld [vmem:[#allocation5 + $0x30] sm:$0xf]
    %v3959 = vld [vmem:[#allocation5 + $0x40] sm:$0xf]
    %v3960 = vld [vmem:[#allocation5 + $0x50] sm:$0xf]
    %v3961 = vld [vmem:[#allocation5 + $0x60] sm:$0xf]
    %v3962 = vld [vmem:[#allocation5 + $0x70] sm:$0xf]
    %v3963 = vld [vmem:[#allocation5 + $0x80] sm:$0xf]
    %v3964 = vld [vmem:[#allocation5 + $0x90] sm:$0xf]
    %v3965 = vld [vmem:[#allocation5 + $0xa0] sm:$0xf]
    %v3966 = vld [vmem:[#allocation5 + $0xb0] sm:$0xf]
    %v3967 = vld [vmem:[#allocation5 + $0xc0] sm:$0xf]
    %v3968 = vld [vmem:[#allocation5 + $0xd0] sm:$0xf]
    %v3969 = vld [vmem:[#allocation5 + $0xe0] sm:$0xf]
    %v3970 = vld [vmem:[#allocation5 + $0xf0] sm:$0xf]
    %v3987 = vunpack.c.l.b16 %v3955
    %v3988 = vunpack.c.l.b16 %v3956
    %v3989 = vunpack.c.l.b16 %v3957
    %v3990 = vunpack.c.l.b16 %v3958
    %v3991 = vunpack.c.l.b16 %v3959
    %v3992 = vunpack.c.l.b16 %v3960
    %v3993 = vunpack.c.l.b16 %v3961
    %v3994 = vunpack.c.l.b16 %v3962
    %v3995 = vunpack.c.l.b16 %v3963
    %v3996 = vunpack.c.l.b16 %v3964
    %v3997 = vunpack.c.l.b16 %v3965
    %v3998 = vunpack.c.l.b16 %v3966
    %v3999 = vunpack.c.l.b16 %v3967
    %v4000 = vunpack.c.l.b16 %v3968
    %v4001 = vunpack.c.l.b16 %v3969
    %v4002 = vunpack.c.l.b16 %v3970
    %v4003 = vpack.c.b16 %v3988, %v3987
    %v4004 = vpack.c.b16 %v3990, %v3989
    %v4005 = vpack.c.b16 %v3992, %v3991
    %v4006 = vpack.c.b16 %v3994, %v3993
    %v4007 = vpack.c.b16 %v3996, %v3995
    %v4008 = vpack.c.b16 %v3998, %v3997
    %v4009 = vpack.c.b16 %v4000, %v3999
    %v4010 = vpack.c.b16 %v4002, %v4001
    %4019 = vmatprep.subr.bf16.mxu0 0
    %4020 = vmatpush1.bf16.msra.mxu0 %v4003
    %4021 = vmatprep.subr.bf16.mxu0 0
    %4022 = vmatpush1.bf16.msra.mxu0 %v4004
    %4023 = vmatprep.subr.bf16.mxu0 0
    %4024 = vmatpush1.bf16.msra.mxu0 %v4005
    %4025 = vmatprep.subr.bf16.mxu0 0
    %4026 = vmatpush1.bf16.msra.mxu0 %v4006
    %4027 = vmatprep.subr.bf16.mxu0 0
    %4028 = vmatpush1.bf16.msra.mxu0 %v4007
    %4029 = vmatprep.subr.bf16.mxu0 0
    %4030 = vmatpush1.bf16.msra.mxu0 %v4008
    %4031 = vmatprep.subr.bf16.mxu0 0
    %4032 = vmatpush1.bf16.msra.mxu0 %v4009
    %4033 = vmatprep.subr.bf16.mxu0 0
    %4034 = vmatpush1.bf16.msra.mxu0 %v4010
    %4035 = vmatprep.subr.bf16.mxu0 0
    %4036 = vmatpush1.bf16.msra.mxu0 0
    %4037 = vmatprep.subr.bf16.mxu0 0
    %4038 = vmatpush1.bf16.msra.mxu0 0
    %4039 = vmatprep.subr.bf16.mxu0 0
    %4040 = vmatpush1.bf16.msra.mxu0 0
    %4041 = vmatprep.subr.bf16.mxu0 0
    %4042 = vmatpush1.bf16.msra.mxu0 0
    %4043 = vmatprep.subr.bf16.mxu0 0
    %4044 = vmatpush1.bf16.msra.mxu0 0
    %4045 = vmatprep.subr.bf16.mxu0 0
    %4046 = vmatpush1.bf16.msra.mxu0 0
    %4047 = vmatprep.subr.bf16.mxu0 0
    %4048 = vmatpush1.bf16.msra.mxu0 0
    %4049 = vmatprep.subr.bf16.mxu0 0
    %4050 = vmatpush1.bf16.msra.mxu0 0
    %4051 = vmatprep.mubr.bf16.mxu0 0
    %4052 = vmatmul.mubr.bf16.gmra.mrb[0].mxu0 %v3831
    %v4053 = vpop.f32.mrb[0].mxu0
    %v4054 = vadd.f32 0.0, %v4053
    %v4055 = vpop.f32.mrb[0].mxu0
    %v4056 = vpop.f32.mrb[0].mxu0
    %v4057 = vadd.f32 0.0, %v4056
    %v4058 = vpop.f32.mrb[0].mxu0
    %4059 = vdwg.mxu0
    %v4060 = vadd.f32 %v3953, %v4054
    %v4061 = vadd.f32 %v3954, %v4057
    %v4062 = vmul.f32 %v4060, 0.5
    %v4063 = vmul.f32 %v4061, 0.5
    %v4064 = vtanh.pop %v4062
    %v4065 = vtanh.pop %v4063
    %v4066 = vmul.f32 %v4064, 0.5
    %v4067 = vmul.f32 %v4065, 0.5
    %v4068 = vadd.f32 %v4066, 0.5
    %v4069 = vadd.f32 %v4067, 0.5
    %v4070 = vmul.f32 %v4068, %v3951
    %v4071 = vmul.f32 %v4069, %v3952
    %v4072 = vld [vmem:[#allocation4 + $0x1c8] sm:$0xff]
    %v4073 = vld [vmem:[#allocation4 + $0x1e8] sm:$0xff]
    %v4074 = vld [vmem:[#allocation5 + $0x4] sm:$0xf]
    %v4075 = vld [vmem:[#allocation5 + $0x14] sm:$0xf]
    %v4076 = vld [vmem:[#allocation5 + $0x24] sm:$0xf]
    %v4077 = vld [vmem:[#allocation5 + $0x34] sm:$0xf]
    %v4078 = vld [vmem:[#allocation5 + $0x44] sm:$0xf]
    %v4079 = vld [vmem:[#allocation5 + $0x54] sm:$0xf]
    %v4080 = vld [vmem:[#allocation5 + $0x64] sm:$0xf]
    %v4081 = vld [vmem:[#allocation5 + $0x74] sm:$0xf]
    %v4082 = vld [vmem:[#allocation5 + $0x84] sm:$0xf]
    %v4083 = vld [vmem:[#allocation5 + $0x94] sm:$0xf]
    %v4084 = vld [vmem:[#allocation5 + $0xa4] sm:$0xf]
    %v4085 = vld [vmem:[#allocation5 + $0xb4] sm:$0xf]
    %v4086 = vld [vmem:[#allocation5 + $0xc4] sm:$0xf]
    %v4087 = vld [vmem:[#allocation5 + $0xd4] sm:$0xf]
    %v4088 = vld [vmem:[#allocation5 + $0xe4] sm:$0xf]
    %v4089 = vld [vmem:[#allocation5 + $0xf4] sm:$0xf]
    %v4106 = vunpack.c.l.b16 %v4074
    %v4107 = vunpack.c.l.b16 %v4075
    %v4108 = vunpack.c.l.b16 %v4076
    %v4109 = vunpack.c.l.b16 %v4077
    %v4110 = vunpack.c.l.b16 %v4078
    %v4111 = vunpack.c.l.b16 %v4079
    %v4112 = vunpack.c.l.b16 %v4080
    %v4113 = vunpack.c.l.b16 %v4081
    %v4114 = vunpack.c.l.b16 %v4082
    %v4115 = vunpack.c.l.b16 %v4083
    %v4116 = vunpack.c.l.b16 %v4084
    %v4117 = vunpack.c.l.b16 %v4085
    %v4118 = vunpack.c.l.b16 %v4086
    %v4119 = vunpack.c.l.b16 %v4087
    %v4120 = vunpack.c.l.b16 %v4088
    %v4121 = vunpack.c.l.b16 %v4089
    %v4122 = vpack.c.b16 %v4107, %v4106
    %v4123 = vpack.c.b16 %v4109, %v4108
    %v4124 = vpack.c.b16 %v4111, %v4110
    %v4125 = vpack.c.b16 %v4113, %v4112
    %v4126 = vpack.c.b16 %v4115, %v4114
    %v4127 = vpack.c.b16 %v4117, %v4116
    %v4128 = vpack.c.b16 %v4119, %v4118
    %v4129 = vpack.c.b16 %v4121, %v4120
    %4138 = vmatprep.subr.bf16.mxu0 0
    %4139 = vmatpush1.bf16.msra.mxu0 %v4122
    %4140 = vmatprep.subr.bf16.mxu0 0
    %4141 = vmatpush1.bf16.msra.mxu0 %v4123
    %4142 = vmatprep.subr.bf16.mxu0 0
    %4143 = vmatpush1.bf16.msra.mxu0 %v4124
    %4144 = vmatprep.subr.bf16.mxu0 0
    %4145 = vmatpush1.bf16.msra.mxu0 %v4125
    %4146 = vmatprep.subr.bf16.mxu0 0
    %4147 = vmatpush1.bf16.msra.mxu0 %v4126
    %4148 = vmatprep.subr.bf16.mxu0 0
    %4149 = vmatpush1.bf16.msra.mxu0 %v4127
    %4150 = vmatprep.subr.bf16.mxu0 0
    %4151 = vmatpush1.bf16.msra.mxu0 %v4128
    %4152 = vmatprep.subr.bf16.mxu0 0
    %4153 = vmatpush1.bf16.msra.mxu0 %v4129
    %4154 = vmatprep.subr.bf16.mxu0 0
    %4155 = vmatpush1.bf16.msra.mxu0 0
    %4156 = vmatprep.subr.bf16.mxu0 0
    %4157 = vmatpush1.bf16.msra.mxu0 0
    %4158 = vmatprep.subr.bf16.mxu0 0
    %4159 = vmatpush1.bf16.msra.mxu0 0
    %4160 = vmatprep.subr.bf16.mxu0 0
    %4161 = vmatpush1.bf16.msra.mxu0 0
    %4162 = vmatprep.subr.bf16.mxu0 0
    %4163 = vmatpush1.bf16.msra.mxu0 0
    %4164 = vmatprep.subr.bf16.mxu0 0
    %4165 = vmatpush1.bf16.msra.mxu0 0
    %4166 = vmatprep.subr.bf16.mxu0 0
    %4167 = vmatpush1.bf16.msra.mxu0 0
    %4168 = vmatprep.subr.bf16.mxu0 0
    %4169 = vmatpush1.bf16.msra.mxu0 0
    %4170 = vmatprep.mubr.bf16.mxu0 0
    %4171 = vmatmul.mubr.bf16.gmra.mrb[0].mxu0 %v3831
    %v4172 = vpop.f32.mrb[0].mxu0
    %v4173 = vadd.f32 0.0, %v4172
    %v4174 = vpop.f32.mrb[0].mxu0
    %v4175 = vpop.f32.mrb[0].mxu0
    %v4176 = vadd.f32 0.0, %v4175
    %v4177 = vpop.f32.mrb[0].mxu0
    %4178 = vdwg.mxu0
    %v4179 = vadd.f32 %v4072, %v4173
    %v4180 = vadd.f32 %v4073, %v4176
    %v4181 = vmul.f32 %v4179, 0.5
    %v4182 = vmul.f32 %v4180, 0.5
    %v4183 = vtanh.pop %v4181
    %v4184 = vtanh.pop %v4182
    %v4185 = vmul.f32 %v4183, 0.5
    %v4186 = vmul.f32 %v4184, 0.5
    %v4187 = vadd.f32 %v4185, 0.5
    %v4188 = vadd.f32 %v4186, 0.5
    %v4189 = vmul.f32 %v4187, %v3708
    %v4190 = vmul.f32 %v4188, %v3709
    %v4191 = vadd.f32 %v4189, %v4070
    %v4192 = vadd.f32 %v4190, %v4071
    %v4193 = vld [vmem:[#allocation4 + $0x1d8] sm:$0xff]
    %v4194 = vld [vmem:[#allocation4 + $0x1f8] sm:$0xff]
    %v4195 = vld [vmem:[#allocation5 + $0xc] sm:$0xf]
    %v4196 = vld [vmem:[#allocation5 + $0x1c] sm:$0xf]
    %v4197 = vld [vmem:[#allocation5 + $0x2c] sm:$0xf]
    %v4198 = vld [vmem:[#allocation5 + $0x3c] sm:$0xf]
    %v4199 = vld [vmem:[#allocation5 + $0x4c] sm:$0xf]
    %v4200 = vld [vmem:[#allocation5 + $0x5c] sm:$0xf]
    %v4201 = vld [vmem:[#allocation5 + $0x6c] sm:$0xf]
    %v4202 = vld [vmem:[#allocation5 + $0x7c] sm:$0xf]
    %v4203 = vld [vmem:[#allocation5 + $0x8c] sm:$0xf]
    %v4204 = vld [vmem:[#allocation5 + $0x9c] sm:$0xf]
    %v4205 = vld [vmem:[#allocation5 + $0xac] sm:$0xf]
    %v4206 = vld [vmem:[#allocation5 + $0xbc] sm:$0xf]
    %v4207 = vld [vmem:[#allocation5 + $0xcc] sm:$0xf]
    %v4208 = vld [vmem:[#allocation5 + $0xdc] sm:$0xf]
    %v4209 = vld [vmem:[#allocation5 + $0xec] sm:$0xf]
    %v4210 = vld [vmem:[#allocation5 + $0xfc] sm:$0xf]
    %v4227 = vunpack.c.l.b16 %v4195
    %v4228 = vunpack.c.l.b16 %v4196
    %v4229 = vunpack.c.l.b16 %v4197
    %v4230 = vunpack.c.l.b16 %v4198
    %v4231 = vunpack.c.l.b16 %v4199
    %v4232 = vunpack.c.l.b16 %v4200
    %v4233 = vunpack.c.l.b16 %v4201
    %v4234 = vunpack.c.l.b16 %v4202
    %v4235 = vunpack.c.l.b16 %v4203
    %v4236 = vunpack.c.l.b16 %v4204
    %v4237 = vunpack.c.l.b16 %v4205
    %v4238 = vunpack.c.l.b16 %v4206
    %v4239 = vunpack.c.l.b16 %v4207
    %v4240 = vunpack.c.l.b16 %v4208
    %v4241 = vunpack.c.l.b16 %v4209
    %v4242 = vunpack.c.l.b16 %v4210
    %v4243 = vpack.c.b16 %v4228, %v4227
    %v4244 = vpack.c.b16 %v4230, %v4229
    %v4245 = vpack.c.b16 %v4232, %v4231
    %v4246 = vpack.c.b16 %v4234, %v4233
    %v4247 = vpack.c.b16 %v4236, %v4235
    %v4248 = vpack.c.b16 %v4238, %v4237
    %v4249 = vpack.c.b16 %v4240, %v4239
    %v4250 = vpack.c.b16 %v4242, %v4241
    %4259 = vmatprep.subr.bf16.mxu0 0
    %4260 = vmatpush1.bf16.msra.mxu0 %v4243
    %4261 = vmatprep.subr.bf16.mxu0 0
    %4262 = vmatpush1.bf16.msra.mxu0 %v4244
    %4263 = vmatprep.subr.bf16.mxu0 0
    %4264 = vmatpush1.bf16.msra.mxu0 %v4245
    %4265 = vmatprep.subr.bf16.mxu0 0
    %4266 = vmatpush1.bf16.msra.mxu0 %v4246
    %4267 = vmatprep.subr.bf16.mxu0 0
    %4268 = vmatpush1.bf16.msra.mxu0 %v4247
    %4269 = vmatprep.subr.bf16.mxu0 0
    %4270 = vmatpush1.bf16.msra.mxu0 %v4248
    %4271 = vmatprep.subr.bf16.mxu0 0
    %4272 = vmatpush1.bf16.msra.mxu0 %v4249
    %4273 = vmatprep.subr.bf16.mxu0 0
    %4274 = vmatpush1.bf16.msra.mxu0 %v4250
    %4275 = vmatprep.subr.bf16.mxu0 0
    %4276 = vmatpush1.bf16.msra.mxu0 0
    %4277 = vmatprep.subr.bf16.mxu0 0
    %4278 = vmatpush1.bf16.msra.mxu0 0
    %4279 = vmatprep.subr.bf16.mxu0 0
    %4280 = vmatpush1.bf16.msra.mxu0 0
    %4281 = vmatprep.subr.bf16.mxu0 0
    %4282 = vmatpush1.bf16.msra.mxu0 0
    %4283 = vmatprep.subr.bf16.mxu0 0
    %4284 = vmatpush1.bf16.msra.mxu0 0
    %4285 = vmatprep.subr.bf16.mxu0 0
    %4286 = vmatpush1.bf16.msra.mxu0 0
    %4287 = vmatprep.subr.bf16.mxu0 0
    %4288 = vmatpush1.bf16.msra.mxu0 0
    %4289 = vmatprep.subr.bf16.mxu0 0
    %4290 = vmatpush1.bf16.msra.mxu0 0
    %4291 = vmatprep.mubr.bf16.mxu0 0
    %4292 = vmatmul.mubr.bf16.gmra.mrb[0].mxu0 %v3831
    %v4293 = vpop.f32.mrb[0].mxu0
    %v4294 = vadd.f32 0.0, %v4293
    %v4295 = vpop.f32.mrb[0].mxu0
    %v4296 = vpop.f32.mrb[0].mxu0
    %v4297 = vadd.f32 0.0, %v4296
    %v4298 = vpop.f32.mrb[0].mxu0
    %4299 = vdwg.mxu0
    %v4300 = vadd.f32 %v4193, %v4294
    %v4301 = vadd.f32 %v4194, %v4297
    %v4302 = vmul.f32 %v4300, 0.5
    %v4303 = vmul.f32 %v4301, 0.5
    %v4304 = vtanh.pop %v4302
    %v4305 = vtanh.pop %v4303
    %v4306 = vmul.f32 %v4304, 0.5
    %v4307 = vmul.f32 %v4305, 0.5
    %v4308 = vadd.f32 %v4306, 0.5
    %v4309 = vadd.f32 %v4307, 0.5
    %v4310 = vtanh.pop %v4191
    %v4311 = vtanh.pop %v4192
    %v4312 = vmul.f32 %v4308, %v4310
    %v4313 = vmul.f32 %v4309, %v4311
    %v4314 = vpack.c.bf16 %v4313, %v4312
    %v4316 = vunpack.c.l.b16 %v4314
    %v4317 = vunpack.c.h.b16 %v4314
    %v4318 = vpack.c.b16 %v4316, %v4316
    %v4319 = vpack.c.b16 %v4317, %v4317
    %s4322 = scalar_lea.vmem %s4, 56
    %4323 = vst [vmem:[%s4322] sm:$0xf] %v4318
    %4324 = vst [vmem:[%s4322 + $0x4] sm:$0xf] %v4319
    %4325 = vst [vmem:[#allocation2] sm:$0xff] %v4312
    %4326 = vst [vmem:[#allocation2 + $0x8] sm:$0xff] %v4313
    %4327 = vst [vmem:[#allocation3] sm:$0xff] %v4191
    %4328 = vst [vmem:[#allocation3 + $0x8] sm:$0xff] %v4192
    // Predicated region
    $region26: #{lstm_forward.2} parent=1 // pred_check
      _
    $region27: #{lstm_forward.2} parent=1 // pred_check_branch
      %4330 = sbr.rel (0) target = $region29
    $region28: #{lstm_forward.2} parent=1 // pred_region
      _
    $region29: #{lstm_forward.2} parent=1 // pred_fallthru
      _
    // Predicated region
    $region30: #{lstm_forward.2} parent=1 // pred_check
      _
    $region31: #{lstm_forward.2} parent=1 // pred_check_branch
      %4332 = sbr.rel (0) target = $region33
    $region32: #{lstm_forward.2} parent=1 // pred_region
      _
    $region33: #{lstm_forward.2} parent=1 // pred_fallthru
      _
    %4333 = vsyncpa [#allocation6], 1

</llo_original>
